<compile_context>
chip_gen: v5e
topology: v5e:2x2
jax: 0.10.0
libtpu: 0.0.40
codegen_flags: <defaults>
</compile_context>

<pallas_src>
import math
from functools import partial

import numpy as np
import jax
import jax.numpy as jnp
from jax.experimental import pallas as pl
from jax.experimental.pallas import tpu as pltpu


# ----------------------------- in-kernel helpers ----------------------------

def _mx(a, b):
    """MXU matmul: bf16 operands, f32 accumulation."""
    return jnp.dot(a.astype(jnp.bfloat16), b.astype(jnp.bfloat16),
                   preferred_element_type=jnp.float32)


def _mx_nt(a, b):
    """a @ b.T (NT matmul) without materializing a transpose."""
    return jax.lax.dot_general(
        a.astype(jnp.bfloat16), b.astype(jnp.bfloat16),
        (((1,), (1,)), ((), ())), preferred_element_type=jnp.float32)


def _layer_norm(x, a2, b2, eps=1e-6):
    # HisRepItself / Annotated-Transformer LayerNorm: unbiased std, eps on std.
    mean = jnp.mean(x, axis=-1, keepdims=True)
    var = jnp.sum((x - mean) ** 2, axis=-1, keepdims=True) / (x.shape[-1] - 1)
    inv = pl.reciprocal(jnp.sqrt(var) + eps, approx=True)
    return a2 * (x - mean) * inv + b2


# ------------------- single fused forward-pass mega-kernel -------------------

def _att_model_kernel(
        src_ref, pe_ref,
        wi_ref, bi_ref,
        ln1_ref, wqkv_ref, bqkv_ref, wo_ref, bo_ref,
        ln2_ref, w1_ref, b1_ref, w2_ref, b2_ref,
        lnf_ref, wout_ref, bout_ref,
        convw_ref,
        dcth_ref, dctt_ref, dct_ref, idct_ref,
        gc1_w_ref, gc1_att_ref, gc1_b_ref, gc1_bns_ref, gc1_bnb_ref,
        blk_w_ref, blk_att_ref, blk_b_ref, blk_bns_ref, blk_bnb_ref,
        gc7_w_ref, gc7_att_ref, gc7_b_ref,
        o_ref,
        *, nlayers, nheads, conv_k, kernel_size, num_stage, dct_n):
    d_model = wi_ref.shape[1]
    dk = d_model // nheads
    inv_sqrt_dk = 1.0 / math.sqrt(dk)
    S = src_ref.shape[0]
    T = o_ref.shape[0]

    # ---- init_lin + positional encoding (eval: dropout = identity) ----------
    src = src_ref[...]                                          # [S, F] f32
    x = _mx(src, wi_ref[...]) + bi_ref[...] + pe_ref[...]       # [S, D] f32

    # ---- N pre-norm encoder layers ------------------------------------------
    for l in range(nlayers):
        ln1 = ln1_ref[l]                                        # [2, D]
        xa = _layer_norm(x, ln1[0:1, :], ln1[1:2, :])
        qkv = _mx(xa, wqkv_ref[l]) + bqkv_ref[l]                # [S, 3D]
        wo_l = wo_ref[l]                                        # [D, D] bf16
        attn_out = None
        for hh in range(nheads):
            q = qkv[:, hh * dk:(hh + 1) * dk]
            k = qkv[:, d_model + hh * dk:d_model + (hh + 1) * dk]
            v = qkv[:, 2 * d_model + hh * dk:2 * d_model + (hh + 1) * dk]
            sc = _mx_nt(q, k) * inv_sqrt_dk                     # [S, S]
            sc = sc - jnp.max(sc, axis=-1, keepdims=True)
            p = jnp.exp(sc)
            p = p * pl.reciprocal(jnp.sum(p, axis=-1, keepdims=True),
                                  approx=True)
            head = _mx(p, v)                                    # [S, dk]
            # distribute the output projection over heads -> no lane concat
            contrib = _mx(head, wo_l[hh * dk:(hh + 1) * dk, :])
            attn_out = contrib if attn_out is None else attn_out + contrib
        x = x + attn_out + bo_ref[l]
        ln2 = ln2_ref[l]
        xb = _layer_norm(x, ln2[0:1, :], ln2[1:2, :])
        hmid = jax.nn.relu(_mx(xb, w1_ref[l]) + b1_ref[l])
        x = x + _mx(hmid, w2_ref[l]) + b2_ref[l]

    # ---- final encoder LayerNorm + inter_lin --------------------------------
    lnf = lnf_ref[...]
    xn = _layer_norm(x, lnf[0:1, :], lnf[1:2, :])
    att_lin = _mx(xn, wout_ref[...]) + bout_ref[...]            # [S, F]

    # ---- ResConvBlock: 3x valid Conv1d(conv_k) + LeakyReLU + cropped residual
    # TODO(synk): ResConvBlock source unavailable; assuming 3 bias-free valid
    # Conv1d(C->C, conv_k) + LeakyReLU(0.01) with a residual of the end-cropped
    # conv input.  Conv = sum of K shifted [lout,C]@[C,C] matmuls (no im2col).
    def conv_valid(hin, ci):
        lout = hin.shape[0] - conv_k + 1
        acc = _mx(hin[0:lout, :], convw_ref[ci * conv_k])
        for kk in range(1, conv_k):
            acc = acc + _mx(hin[kk:kk + lout, :], convw_ref[ci * conv_k + kk])
        return acc

    lrelu = lambda v: jnp.where(v >= 0, v, 0.01 * v)
    h = lrelu(conv_valid(att_lin, 0))
    h = lrelu(conv_valid(h, 1))
    h = lrelu(conv_valid(h, 2))
    att_conv = h + att_lin[S - T:, :]                           # [T, F]

    # ---- DCT of (att_conv + input_gcn) via linearity -------------------------
    # input_gcn = [src[-ks:] ; last_pose x output_n] is never materialized:
    #   dct @ input_gcn = dct[:, :ks] @ src[-ks:] + rowsum(dct[:, ks:]) * last
    src_tail = src[S - kernel_size:, :]                         # [ks, F]
    last_row = src[S - 1:S, :]                                  # [1, F]
    gd = _mx(dcth_ref[...], src_tail) + dctt_ref[...] * last_row   # [dct_n, F]
    ad = _mx(dct_ref[...], att_conv) + gd                          # [dct_n, F]
    z0 = jnp.concatenate([gd, ad], axis=0)                      # [2*dct_n, F]

    # ---- GCN stack, run fully in transposed [feature, node] space ------------
    # (weights/adjacency pre-transposed on the host; eval: dropout = identity,
    #  BatchNorm folded to per-(hidden,node) scale/shift.)
    def gc_t(z, w_t, att_t, b_t):     # (att @ (zT @ W) + b)T = WT z attT + b
        return _mx(_mx(w_t, z), att_t) + b_t

    y = gc_t(z0, gc1_w_ref[...], gc1_att_ref[...], gc1_b_ref[...])
    y = jnp.tanh(y * gc1_bns_ref[...] + gc1_bnb_ref[...])
    for st in range(num_stage):
        z = gc_t(y, blk_w_ref[2 * st], blk_att_ref[2 * st], blk_b_ref[2 * st])
        z = jnp.tanh(z * blk_bns_ref[2 * st] + blk_bnb_ref[2 * st])
        z = gc_t(z, blk_w_ref[2 * st + 1], blk_att_ref[2 * st + 1],
                 blk_b_ref[2 * st + 1])
        z = jnp.tanh(z * blk_bns_ref[2 * st + 1] + blk_bnb_ref[2 * st + 1])
        y = z + y
    y = gc_t(y, gc7_w_ref[...], gc7_att_ref[...], gc7_b_ref[...])
    dct_out_t = y + z0                                          # [2*dct_n, F]

    # ---- IDCT epilogue --------------------------------------------------------
    o_ref[...] = _mx(idct_ref[...], dct_out_t[:dct_n, :])       # [T, F]


def att_model_pallas_call(seq_in, consts, params, *, cfg, output_n):
    B, S_in, F = seq_in.shape
    ks = cfg['kernel_size']
    T = ks + output_n
    enc, gcn = params['enc'], params['gcn']

    args = [
        seq_in, params['pe'],
        enc['init_w'], enc['init_b'],
        enc['ln1'], enc['wqkv'], enc['bqkv'], enc['wo'], enc['bo'],
        enc['ln2'], enc['ff_w1'], enc['ff_b1'], enc['ff_w2'], enc['ff_b2'],
        enc['norm'], enc['inter_w'], enc['inter_b'],
        params['conv_w'],
        consts['dct_head'], consts['dct_tail'], consts['dct_sub'],
        consts['idct_sub'],
        gcn['gc1_w'], gcn['gc1_att'], gcn['gc1_b'], gcn['gc1_bns'],
        gcn['gc1_bnb'],
        gcn['blk_w'], gcn['blk_att'], gcn['blk_b'], gcn['blk_bns'],
        gcn['blk_bnb'],
        gcn['gc7_w'], gcn['gc7_att'], gcn['gc7_b'],
    ]

    def const_spec(a):  # whole array, VMEM-resident, same block every step
        return pl.BlockSpec(a.shape, lambda b, n=a.ndim: (0,) * n)

    in_specs = ([pl.BlockSpec((None, S_in, F), lambda b: (b, 0, 0))] +
                [const_spec(a) for a in args[1:]])

    return pl.pallas_call(
        partial(_att_model_kernel,
                nlayers=cfg['N'], nheads=cfg['h'], conv_k=cfg['conv_k'],
                kernel_size=ks, num_stage=cfg['num_stage'],
                dct_n=cfg['dct_n']),
        out_shape=jax.ShapeDtypeStruct((B, T, F), jnp.float32),
        grid=(B,),
        in_specs=in_specs,
        out_specs=pl.BlockSpec((None, T, F), lambda b: (b, 0, 0)),
        compiler_params=pltpu.CompilerParams(
            dimension_semantics=("parallel",)),   # batch across v7x's 2 TCs
    )(*args)


# ------------------------------- host-side glue ------------------------------

def get_dct_matrix(N):
    dct_m = np.eye(N)
    for k in range(N):
        for i in range(N):
            w = np.sqrt(2.0 / N)
            if k == 0:
                w = np.sqrt(1.0 / N)
            dct_m[k, i] = w * np.cos(np.pi * (i + 0.5) * k / N)
    idct_m = np.linalg.inv(dct_m)
    return dct_m.astype(np.float32), idct_m.astype(np.float32)


def positional_encoding_table(seq_len, d_model):
    pos = np.arange(seq_len, dtype=np.float32)[:, None]
    div = np.exp(np.arange(0, d_model, 2, dtype=np.float32)
                 * -(math.log(10000.0) / d_model))
    pe = np.zeros((seq_len, d_model), np.float32)
    pe[:, 0::2] = np.sin(pos * div)
    pe[:, 1::2] = np.cos(pos * div)
    return jnp.asarray(pe)


def src_reformat(src, input_n, substract_last_pose=False):
    # TODO(synk): src_reformat source unavailable; assuming it keeps the first
    # input_n frames and returns the last observed pose.
    src_in = src[:, :input_n]
    last_pose = src_in[:, -1:, :]
    if substract_last_pose:
        src_in = src_in - last_pose
    return src_in, last_pose


def att_model_forward(src, params, cfg, output_n, input_n, itera=1):
    ks, dct_n = cfg['kernel_size'], cfg['dct_n']
    subseq_length = ks + output_n
    dct_np, idct_np = get_dct_matrix(subseq_length)
    dct_sub = dct_np[:dct_n]                                  # [dct_n, T]
    consts = dict(
        dct_head=jnp.asarray(dct_sub[:, :ks], jnp.bfloat16),
        dct_tail=jnp.asarray(dct_sub[:, ks:].sum(axis=1, keepdims=True),
                             jnp.float32),
        dct_sub=jnp.asarray(dct_sub, jnp.bfloat16),
        idct_sub=jnp.asarray(idct_np[:, :dct_n], jnp.bfloat16),
    )

    src_in, _last_pose = src_reformat(src, input_n, substract_last_pose=False)

    def one_iter(seq_in):
        return att_model_pallas_call(seq_in, consts, params,
                                     cfg=cfg, output_n=output_n)

    out_gcn = one_iter(src_in)
    outputs = [out_gcn[:, :, None, :]]                        # unsqueeze(2)
    new_in = src_in
    for _ in range(itera - 1):
        new_in = jnp.concatenate([new_in[:, -(input_n - output_n):],
                                  out_gcn[:, -output_n:]], axis=1)
        out_gcn = one_iter(new_in)
        outputs.append(out_gcn[:, -output_n:][:, :, None, :])
    return jnp.concatenate(outputs, axis=1)


# -------------------------------- params init --------------------------------

def xavier_uniform(key, shape, fan_in, fan_out):
    bound = math.sqrt(6.0 / (fan_in + fan_out))
    return jax.random.uniform(key, shape, jnp.float32, -bound, bound)


def init_params(key, cfg, input_n):
    F, D, Dff = cfg['in_features'], cfg['d_att_model'], cfg['d_ff']
    hidden, dct_n, N = cfg['d_model'], cfg['dct_n'], cfg['N']
    node, ns, K = F, cfg['num_stage'], cfg['conv_k']
    keys = iter(jax.random.split(key, 1024))
    nk = lambda: next(keys)
    zeros = lambda *s: jnp.zeros(s, jnp.float32)
    bf = lambda a: a.astype(jnp.bfloat16)

    def lin(fi, fo):        # Linear weight stored pre-transposed [in, out]
        return xavier_uniform(nk(), (fi, fo), fi, fo)

    ln_pair = jnp.stack([jnp.ones((D,), jnp.float32),
                         jnp.zeros((D,), jnp.float32)])           # [2, D]

    enc = dict(
        init_w=bf(lin(F, D)), init_b=zeros(1, D),
        ln1=jnp.tile(ln_pair[None], (N, 1, 1)),
        ln2=jnp.tile(ln_pair[None], (N, 1, 1)),
        norm=ln_pair,
        wqkv=bf(jnp.stack([jnp.concatenate([lin(D, D), lin(D, D), lin(D, D)],
                                           axis=1) for _ in range(N)])),
        bqkv=zeros(N, 1, 3 * D),
        wo=bf(jnp.stack([lin(D, D) for _ in range(N)])),
        bo=zeros(N, 1, D),
        ff_w1=bf(jnp.stack([lin(D, Dff) for _ in range(N)])),
        ff_b1=zeros(N, 1, Dff),
        ff_w2=bf(jnp.stack([lin(Dff, D) for _ in range(N)])),
        ff_b2=zeros(N, 1, D),
        inter_w=bf(lin(D, F)), inter_b=zeros(1, F),
    )

    # Conv1d weights: PyTorch [Cout, Cin, K] -> per-tap [Cin, Cout], the 3
    # convs stacked along the first axis -> [3*K, C, C] (bf16).
    def conv_taps():
        w = xavier_uniform(nk(), (F, F, K), F * K, F * K)         # [Cout,Cin,K]
        return jnp.transpose(w, (2, 1, 0))                        # [K,Cin,Cout]
    conv_w = bf(jnp.concatenate([conv_taps() for _ in range(3)], axis=0))

    def bn_fold(gamma, beta, mean, var, eps=1e-5):
        scale = gamma / jnp.sqrt(var + eps)
        return scale, beta - mean * scale

    # eval-mode BatchNorm1d(node*hidden) folded from (default) running stats;
    # replace with checkpoint statistics when loading trained weights.
    bns, bnb = bn_fold(jnp.ones((node, hidden), jnp.float32),
                       jnp.zeros((node, hidden), jnp.float32),
                       jnp.zeros((node, hidden), jnp.float32),
                       jnp.ones((node, hidden), jnp.float32))
    bns_t, bnb_t = bns.T, bnb.T                                   # [hidden,node]

    def gc(fi, fo):
        return (xavier_uniform(nk(), (fi, fo), fi, fo),
                xavier_uniform(nk(), (node, node), node, node),
                zeros(fo, 1))

    gc1_w, gc1_att, gc1_b = gc(2 * dct_n, hidden)
    gc7_w, gc7_att, gc7_b = gc(hidden, 2 * dct_n)
    blk = [gc(hidden, hidden) for _ in range(2 * ns)]
    # GCN weights pre-transposed so the kernel runs the GCN in [feature, node]
    # space with zero in-kernel transposes.
    gcn = dict(
        gc1_w=bf(gc1_w.T), gc1_att=bf(gc1_att.T), gc1_b=gc1_b,
        gc1_bns=bns_t, gc1_bnb=bnb_t,
        blk_w=bf(jnp.stack([w.T for w, _, _ in blk])),
        blk_att=bf(jnp.stack([a.T for _, a, _ in blk])),
        blk_b=jnp.stack([b for _, _, b in blk]),
        blk_bns=jnp.tile(bns_t[None], (2 * ns, 1, 1)),
        blk_bnb=jnp.tile(bnb_t[None], (2 * ns, 1, 1)),
        gc7_w=bf(gc7_w.T), gc7_att=bf(gc7_att.T), gc7_b=gc7_b,
    )

    return dict(enc=enc, gcn=gcn, conv_w=conv_w,
                pe=positional_encoding_table(input_n, D))


# ------------------------------------ main ------------------------------------

if __name__ == "__main__":
    # Small, self-consistent config: 3 valid k=11 convs remove 30 frames, so
    # input_n = kernel_size + output_n + 30 (ResConvBlock source unavailable).
    cfg = dict(in_features=16, kernel_size=10, d_model=32, h=4, dct_n=10,
               num_stage=2, d_ff=32, N=2, d_att_model=32, conv_k=11)
    output_n, input_n = 8, 48
    assert input_n - 3 * (cfg['conv_k'] - 1) == cfg['kernel_size'] + output_n

    key = jax.random.PRNGKey(0)
    pkey, xkey = jax.random.split(key)
    params = init_params(pkey, cfg, input_n)
    src = jax.random.normal(xkey, (2, input_n, cfg['in_features']), jnp.float32)

    fwd = jax.jit(lambda s, p: att_model_forward(
        s, p, cfg, output_n=output_n, input_n=input_n, itera=1))
    out = jax.block_until_ready(fwd(src, params))

    assert out.shape == (2, cfg['kernel_size'] + output_n, 1,
                         cfg['in_features']), out.shape
    assert bool(jnp.all(jnp.isfinite(out)))
    print("KERNEL_OK")
</pallas_src>

<mosaic_0001>
module attributes {stable_mosaic.version = 11 : i64} {
  func.func @_att_model_kernel(%arg0: i32, %arg1: memref<1x48x16xf32, #tpu.memory_space<vmem>>, %arg2: memref<48x32xf32, #tpu.memory_space<vmem>>, %arg3: memref<16x32xbf16, #tpu.memory_space<vmem>>, %arg4: memref<1x32xf32, #tpu.memory_space<vmem>>, %arg5: memref<2x2x32xf32, #tpu.memory_space<vmem>>, %arg6: memref<2x32x96xbf16, #tpu.memory_space<vmem>>, %arg7: memref<2x1x96xf32, #tpu.memory_space<vmem>>, %arg8: memref<2x32x32xbf16, #tpu.memory_space<vmem>>, %arg9: memref<2x1x32xf32, #tpu.memory_space<vmem>>, %arg10: memref<2x2x32xf32, #tpu.memory_space<vmem>>, %arg11: memref<2x32x32xbf16, #tpu.memory_space<vmem>>, %arg12: memref<2x1x32xf32, #tpu.memory_space<vmem>>, %arg13: memref<2x32x32xbf16, #tpu.memory_space<vmem>>, %arg14: memref<2x1x32xf32, #tpu.memory_space<vmem>>, %arg15: memref<2x32xf32, #tpu.memory_space<vmem>>, %arg16: memref<32x16xbf16, #tpu.memory_space<vmem>>, %arg17: memref<1x16xf32, #tpu.memory_space<vmem>>, %arg18: memref<33x16x16xbf16, #tpu.memory_space<vmem>>, %arg19: memref<10x10xbf16, #tpu.memory_space<vmem>>, %arg20: memref<10x1xf32, #tpu.memory_space<vmem>>, %arg21: memref<10x18xbf16, #tpu.memory_space<vmem>>, %arg22: memref<18x10xbf16, #tpu.memory_space<vmem>>, %arg23: memref<32x20xbf16, #tpu.memory_space<vmem>>, %arg24: memref<16x16xbf16, #tpu.memory_space<vmem>>, %arg25: memref<32x1xf32, #tpu.memory_space<vmem>>, %arg26: memref<32x16xf32, #tpu.memory_space<vmem>>, %arg27: memref<32x16xf32, #tpu.memory_space<vmem>>, %arg28: memref<4x32x32xbf16, #tpu.memory_space<vmem>>, %arg29: memref<4x16x16xbf16, #tpu.memory_space<vmem>>, %arg30: memref<4x32x1xf32, #tpu.memory_space<vmem>>, %arg31: memref<4x32x16xf32, #tpu.memory_space<vmem>>, %arg32: memref<4x32x16xf32, #tpu.memory_space<vmem>>, %arg33: memref<20x32xbf16, #tpu.memory_space<vmem>>, %arg34: memref<16x16xbf16, #tpu.memory_space<vmem>>, %arg35: memref<20x1xf32, #tpu.memory_space<vmem>>, %arg36: memref<1x18x16xf32, #tpu.memory_space<vmem>>) attributes {dimension_semantics = [#tpu.dimension_semantics<parallel>], iteration_bounds = array<i64: 2>, scalar_prefetch = 0 : i64, scratch_operands = 0 : i64, tpu.core_type = #tpu.core_type<tc>, window_params = [{transform_indices = @transform_0, window_bounds = array<i64: 1, 48, 16>}, {pipeline_mode = #tpu.pipeline_mode<synchronous>, transform_indices = @transform_1, window_bounds = array<i64: 48, 32>}, {pipeline_mode = #tpu.pipeline_mode<synchronous>, transform_indices = @transform_2, window_bounds = array<i64: 16, 32>}, {pipeline_mode = #tpu.pipeline_mode<synchronous>, transform_indices = @transform_3, window_bounds = array<i64: 1, 32>}, {pipeline_mode = #tpu.pipeline_mode<synchronous>, transform_indices = @transform_4, window_bounds = array<i64: 2, 2, 32>}, {pipeline_mode = #tpu.pipeline_mode<synchronous>, transform_indices = @transform_5, window_bounds = array<i64: 2, 32, 96>}, {pipeline_mode = #tpu.pipeline_mode<synchronous>, transform_indices = @transform_6, window_bounds = array<i64: 2, 1, 96>}, {pipeline_mode = #tpu.pipeline_mode<synchronous>, transform_indices = @transform_7, window_bounds = array<i64: 2, 32, 32>}, {pipeline_mode = #tpu.pipeline_mode<synchronous>, transform_indices = @transform_8, window_bounds = array<i64: 2, 1, 32>}, {pipeline_mode = #tpu.pipeline_mode<synchronous>, transform_indices = @transform_9, window_bounds = array<i64: 2, 2, 32>}, {pipeline_mode = #tpu.pipeline_mode<synchronous>, transform_indices = @transform_10, window_bounds = array<i64: 2, 32, 32>}, {pipeline_mode = #tpu.pipeline_mode<synchronous>, transform_indices = @transform_11, window_bounds = array<i64: 2, 1, 32>}, {pipeline_mode = #tpu.pipeline_mode<synchronous>, transform_indices = @transform_12, window_bounds = array<i64: 2, 32, 32>}, {pipeline_mode = #tpu.pipeline_mode<synchronous>, transform_indices = @transform_13, window_bounds = array<i64: 2, 1, 32>}, {pipeline_mode = #tpu.pipeline_mode<synchronous>, transform_indices = @transform_14, window_bounds = array<i64: 2, 32>}, {pipeline_mode = #tpu.pipeline_mode<synchronous>, transform_indices = @transform_15, window_bounds = array<i64: 32, 16>}, {pipeline_mode = #tpu.pipeline_mode<synchronous>, transform_indices = @transform_16, window_bounds = array<i64: 1, 16>}, {pipeline_mode = #tpu.pipeline_mode<synchronous>, transform_indices = @transform_17, window_bounds = array<i64: 33, 16, 16>}, {pipeline_mode = #tpu.pipeline_mode<synchronous>, transform_indices = @transform_18, window_bounds = array<i64: 10, 10>}, {pipeline_mode = #tpu.pipeline_mode<synchronous>, transform_indices = @transform_19, window_bounds = array<i64: 10, 1>}, {pipeline_mode = #tpu.pipeline_mode<synchronous>, transform_indices = @transform_20, window_bounds = array<i64: 10, 18>}, {pipeline_mode = #tpu.pipeline_mode<synchronous>, transform_indices = @transform_21, window_bounds = array<i64: 18, 10>}, {pipeline_mode = #tpu.pipeline_mode<synchronous>, transform_indices = @transform_22, window_bounds = array<i64: 32, 20>}, {pipeline_mode = #tpu.pipeline_mode<synchronous>, transform_indices = @transform_23, window_bounds = array<i64: 16, 16>}, {pipeline_mode = #tpu.pipeline_mode<synchronous>, transform_indices = @transform_24, window_bounds = array<i64: 32, 1>}, {pipeline_mode = #tpu.pipeline_mode<synchronous>, transform_indices = @transform_25, window_bounds = array<i64: 32, 16>}, {pipeline_mode = #tpu.pipeline_mode<synchronous>, transform_indices = @transform_26, window_bounds = array<i64: 32, 16>}, {pipeline_mode = #tpu.pipeline_mode<synchronous>, transform_indices = @transform_27, window_bounds = array<i64: 4, 32, 32>}, {pipeline_mode = #tpu.pipeline_mode<synchronous>, transform_indices = @transform_28, window_bounds = array<i64: 4, 16, 16>}, {pipeline_mode = #tpu.pipeline_mode<synchronous>, transform_indices = @transform_29, window_bounds = array<i64: 4, 32, 1>}, {pipeline_mode = #tpu.pipeline_mode<synchronous>, transform_indices = @transform_30, window_bounds = array<i64: 4, 32, 16>}, {pipeline_mode = #tpu.pipeline_mode<synchronous>, transform_indices = @transform_31, window_bounds = array<i64: 4, 32, 16>}, {pipeline_mode = #tpu.pipeline_mode<synchronous>, transform_indices = @transform_32, window_bounds = array<i64: 20, 32>}, {pipeline_mode = #tpu.pipeline_mode<synchronous>, transform_indices = @transform_33, window_bounds = array<i64: 16, 16>}, {pipeline_mode = #tpu.pipeline_mode<synchronous>, transform_indices = @transform_34, window_bounds = array<i64: 20, 1>}, {transform_indices = @transform_35, window_bounds = array<i64: 1, 18, 16>}]} {
    %c0 = arith.constant 0 : index
    %c0_0 = arith.constant 0 : index
    %c0_1 = arith.constant 0 : index
    %0 = vector.load %arg1[%c0, %c0_0, %c0_1] : memref<1x48x16xf32, #tpu.memory_space<vmem>>, vector<1x48x16xf32>
    %1 = vector.shape_cast %0 : vector<1x48x16xf32> to vector<48x16xf32>
    %c0_2 = arith.constant 0 : index
    %c0_3 = arith.constant 0 : index
    %2 = vector.load %arg3[%c0_2, %c0_3] : memref<16x32xbf16, #tpu.memory_space<vmem>>, vector<16x32xbf16>
    %3 = arith.truncf %1 : vector<48x16xf32> to vector<48x16xbf16>
    %cst = arith.constant dense<0.000000e+00> : vector<48x32xf32>
    %4 = tpu.matmul %3, %2, %cst {dimension_numbers = #tpu.dot_dimension_numbers<[1], [0], [0], [1], [0, 0, 1, 1], [], []>} : vector<48x16xbf16>, vector<16x32xbf16>, vector<48x32xf32> -> vector<48x32xf32>
    %c0_4 = arith.constant 0 : index
    %c0_5 = arith.constant 0 : index
    %5 = vector.load %arg4[%c0_4, %c0_5] : memref<1x32xf32, #tpu.memory_space<vmem>>, vector<1x32xf32>
    %6 = vector.broadcast %5 : vector<1x32xf32> to vector<48x32xf32>
    %7 = arith.addf %4, %6 : vector<48x32xf32>
    %c0_6 = arith.constant 0 : index
    %c0_7 = arith.constant 0 : index
    %8 = vector.load %arg2[%c0_6, %c0_7] : memref<48x32xf32, #tpu.memory_space<vmem>>, vector<48x32xf32>
    %9 = arith.addf %7, %8 : vector<48x32xf32>
    %c0_8 = arith.constant 0 : index
    %c0_9 = arith.constant 0 : index
    %c0_10 = arith.constant 0 : index
    %10 = vector.load %arg5[%c0_8, %c0_9, %c0_10] : memref<2x2x32xf32, #tpu.memory_space<vmem>>, vector<1x2x32xf32>
    %11 = vector.shape_cast %10 : vector<1x2x32xf32> to vector<2x32xf32>
    %12 = vector.extract_strided_slice %11 {offsets = [0, 0], sizes = [1, 32], strides = [1, 1]} : vector<2x32xf32> to vector<1x32xf32>
    %13 = vector.extract_strided_slice %11 {offsets = [1, 0], sizes = [1, 32], strides = [1, 1]} : vector<2x32xf32> to vector<1x32xf32>
    %cst_11 = arith.constant dense<0.000000e+00> : vector<48xf32>
    %14 = vector.multi_reduction <add>, %9, %cst_11 [1] : vector<48x32xf32> to vector<48xf32>
    %15 = vector.shape_cast %14 : vector<48xf32> to vector<48x1xf32>
    %cst_12 = arith.constant 3.200000e+01 : f32
    %16 = vector.broadcast %cst_12 : f32 to vector<48x1xf32>
    %17 = arith.divf %15, %16 : vector<48x1xf32>
    %18 = vector.broadcast %17 : vector<48x1xf32> to vector<48x32xf32>
    %19 = arith.subf %9, %18 : vector<48x32xf32>
    %20 = arith.mulf %19, %19 : vector<48x32xf32>
    %cst_13 = arith.constant dense<0.000000e+00> : vector<48xf32>
    %21 = vector.multi_reduction <add>, %20, %cst_13 [1] : vector<48x32xf32> to vector<48xf32>
    %22 = vector.shape_cast %21 : vector<48xf32> to vector<48x1xf32>
    %cst_14 = arith.constant 3.100000e+01 : f32
    %23 = vector.broadcast %cst_14 : f32 to vector<48x1xf32>
    %24 = arith.divf %22, %23 : vector<48x1xf32>
    %25 = math.sqrt %24 : vector<48x1xf32>
    %cst_15 = arith.constant 9.99999997E-7 : f32
    %26 = vector.broadcast %cst_15 : f32 to vector<48x1xf32>
    %27 = arith.addf %25, %26 : vector<48x1xf32>
    %28 = tpu.reciprocal %27 {approx = true} : vector<48x1xf32> -> vector<48x1xf32>
    %29 = vector.broadcast %17 : vector<48x1xf32> to vector<48x32xf32>
    %30 = arith.subf %9, %29 : vector<48x32xf32>
    %31 = vector.broadcast %12 : vector<1x32xf32> to vector<48x32xf32>
    %32 = arith.mulf %31, %30 : vector<48x32xf32>
    %33 = vector.broadcast %28 : vector<48x1xf32> to vector<48x32xf32>
    %34 = arith.mulf %32, %33 : vector<48x32xf32>
    %35 = vector.broadcast %13 : vector<1x32xf32> to vector<48x32xf32>
    %36 = arith.addf %34, %35 : vector<48x32xf32>
    %c0_16 = arith.constant 0 : index
    %c0_17 = arith.constant 0 : index
    %c0_18 = arith.constant 0 : index
    %37 = vector.load %arg6[%c0_16, %c0_17, %c0_18] : memref<2x32x96xbf16, #tpu.memory_space<vmem>>, vector<1x32x96xbf16>
    %38 = vector.shape_cast %37 : vector<1x32x96xbf16> to vector<32x96xbf16>
    %39 = arith.truncf %36 : vector<48x32xf32> to vector<48x32xbf16>
    %cst_19 = arith.constant dense<0.000000e+00> : vector<48x96xf32>
    %40 = tpu.matmul %39, %38, %cst_19 {dimension_numbers = #tpu.dot_dimension_numbers<[1], [0], [0], [1], [0, 0, 1, 1], [], []>} : vector<48x32xbf16>, vector<32x96xbf16>, vector<48x96xf32> -> vector<48x96xf32>
    %c0_20 = arith.constant 0 : index
    %c0_21 = arith.constant 0 : index
    %c0_22 = arith.constant 0 : index
    %41 = vector.load %arg7[%c0_20, %c0_21, %c0_22] : memref<2x1x96xf32, #tpu.memory_space<vmem>>, vector<1x1x96xf32>
    %42 = vector.shape_cast %41 : vector<1x1x96xf32> to vector<1x96xf32>
    %43 = vector.broadcast %42 : vector<1x96xf32> to vector<48x96xf32>
    %44 = arith.addf %40, %43 : vector<48x96xf32>
    %c0_23 = arith.constant 0 : index
    %c0_24 = arith.constant 0 : index
    %c0_25 = arith.constant 0 : index
    %45 = vector.load %arg8[%c0_23, %c0_24, %c0_25] : memref<2x32x32xbf16, #tpu.memory_space<vmem>>, vector<1x32x32xbf16>
    %46 = vector.shape_cast %45 : vector<1x32x32xbf16> to vector<32x32xbf16>
    %47 = vector.extract_strided_slice %44 {offsets = [0, 0], sizes = [48, 8], strides = [1, 1]} : vector<48x96xf32> to vector<48x8xf32>
    %48 = vector.extract_strided_slice %44 {offsets = [0, 32], sizes = [48, 8], strides = [1, 1]} : vector<48x96xf32> to vector<48x8xf32>
    %49 = vector.extract_strided_slice %44 {offsets = [0, 64], sizes = [48, 8], strides = [1, 1]} : vector<48x96xf32> to vector<48x8xf32>
    %50 = arith.truncf %47 : vector<48x8xf32> to vector<48x8xbf16>
    %51 = arith.truncf %48 : vector<48x8xf32> to vector<48x8xbf16>
    %cst_26 = arith.constant dense<0.000000e+00> : vector<48x48xf32>
    %52 = tpu.matmul %50, %51, %cst_26 {dimension_numbers = #tpu.dot_dimension_numbers<[1], [1], [0], [0], [0, 0, 1, 0], [], []>} : vector<48x8xbf16>, vector<48x8xbf16>, vector<48x48xf32> -> vector<48x48xf32>
    %cst_27 = arith.constant 0.353553385 : f32
    %53 = vector.broadcast %cst_27 : f32 to vector<48x48xf32>
    %54 = arith.mulf %52, %53 : vector<48x48xf32>
    %cst_28 = arith.constant dense<0xFF800000> : vector<48xf32>
    %55 = vector.multi_reduction <maximumf>, %54, %cst_28 [1] : vector<48x48xf32> to vector<48xf32>
    %56 = vector.shape_cast %55 : vector<48xf32> to vector<48x1xf32>
    %57 = vector.broadcast %56 : vector<48x1xf32> to vector<48x48xf32>
    %58 = arith.subf %54, %57 : vector<48x48xf32>
    %59 = math.exp %58 : vector<48x48xf32>
    %cst_29 = arith.constant dense<0.000000e+00> : vector<48xf32>
    %60 = vector.multi_reduction <add>, %59, %cst_29 [1] : vector<48x48xf32> to vector<48xf32>
    %61 = vector.shape_cast %60 : vector<48xf32> to vector<48x1xf32>
    %62 = tpu.reciprocal %61 {approx = true} : vector<48x1xf32> -> vector<48x1xf32>
    %63 = vector.broadcast %62 : vector<48x1xf32> to vector<48x48xf32>
    %64 = arith.mulf %59, %63 : vector<48x48xf32>
    %65 = arith.truncf %64 : vector<48x48xf32> to vector<48x48xbf16>
    %66 = arith.truncf %49 : vector<48x8xf32> to vector<48x8xbf16>
    %cst_30 = arith.constant dense<0.000000e+00> : vector<48x8xf32>
    %67 = tpu.matmul %65, %66, %cst_30 {dimension_numbers = #tpu.dot_dimension_numbers<[1], [0], [0], [1], [0, 0, 1, 1], [], []>} : vector<48x48xbf16>, vector<48x8xbf16>, vector<48x8xf32> -> vector<48x8xf32>
    %68 = vector.extract_strided_slice %46 {offsets = [0, 0], sizes = [8, 32], strides = [1, 1]} : vector<32x32xbf16> to vector<8x32xbf16>
    %69 = arith.truncf %67 : vector<48x8xf32> to vector<48x8xbf16>
    %cst_31 = arith.constant dense<0.000000e+00> : vector<48x32xf32>
    %70 = tpu.matmul %69, %68, %cst_31 {dimension_numbers = #tpu.dot_dimension_numbers<[1], [0], [0], [1], [0, 0, 1, 1], [], []>} : vector<48x8xbf16>, vector<8x32xbf16>, vector<48x32xf32> -> vector<48x32xf32>
    %71 = vector.extract_strided_slice %44 {offsets = [0, 8], sizes = [48, 8], strides = [1, 1]} : vector<48x96xf32> to vector<48x8xf32>
    %72 = vector.extract_strided_slice %44 {offsets = [0, 40], sizes = [48, 8], strides = [1, 1]} : vector<48x96xf32> to vector<48x8xf32>
    %73 = vector.extract_strided_slice %44 {offsets = [0, 72], sizes = [48, 8], strides = [1, 1]} : vector<48x96xf32> to vector<48x8xf32>
    %74 = arith.truncf %71 : vector<48x8xf32> to vector<48x8xbf16>
    %75 = arith.truncf %72 : vector<48x8xf32> to vector<48x8xbf16>
    %cst_32 = arith.constant dense<0.000000e+00> : vector<48x48xf32>
    %76 = tpu.matmul %74, %75, %cst_32 {dimension_numbers = #tpu.dot_dimension_numbers<[1], [1], [0], [0], [0, 0, 1, 0], [], []>} : vector<48x8xbf16>, vector<48x8xbf16>, vector<48x48xf32> -> vector<48x48xf32>
    %cst_33 = arith.constant 0.353553385 : f32
    %77 = vector.broadcast %cst_33 : f32 to vector<48x48xf32>
    %78 = arith.mulf %76, %77 : vector<48x48xf32>
    %cst_34 = arith.constant dense<0xFF800000> : vector<48xf32>
    %79 = vector.multi_reduction <maximumf>, %78, %cst_34 [1] : vector<48x48xf32> to vector<48xf32>
    %80 = vector.shape_cast %79 : vector<48xf32> to vector<48x1xf32>
    %81 = vector.broadcast %80 : vector<48x1xf32> to vector<48x48xf32>
    %82 = arith.subf %78, %81 : vector<48x48xf32>
    %83 = math.exp %82 : vector<48x48xf32>
    %cst_35 = arith.constant dense<0.000000e+00> : vector<48xf32>
    %84 = vector.multi_reduction <add>, %83, %cst_35 [1] : vector<48x48xf32> to vector<48xf32>
    %85 = vector.shape_cast %84 : vector<48xf32> to vector<48x1xf32>
    %86 = tpu.reciprocal %85 {approx = true} : vector<48x1xf32> -> vector<48x1xf32>
    %87 = vector.broadcast %86 : vector<48x1xf32> to vector<48x48xf32>
    %88 = arith.mulf %83, %87 : vector<48x48xf32>
    %89 = arith.truncf %88 : vector<48x48xf32> to vector<48x48xbf16>
    %90 = arith.truncf %73 : vector<48x8xf32> to vector<48x8xbf16>
    %cst_36 = arith.constant dense<0.000000e+00> : vector<48x8xf32>
    %91 = tpu.matmul %89, %90, %cst_36 {dimension_numbers = #tpu.dot_dimension_numbers<[1], [0], [0], [1], [0, 0, 1, 1], [], []>} : vector<48x48xbf16>, vector<48x8xbf16>, vector<48x8xf32> -> vector<48x8xf32>
    %92 = vector.extract_strided_slice %46 {offsets = [8, 0], sizes = [8, 32], strides = [1, 1]} : vector<32x32xbf16> to vector<8x32xbf16>
    %93 = arith.truncf %91 : vector<48x8xf32> to vector<48x8xbf16>
    %cst_37 = arith.constant dense<0.000000e+00> : vector<48x32xf32>
    %94 = tpu.matmul %93, %92, %cst_37 {dimension_numbers = #tpu.dot_dimension_numbers<[1], [0], [0], [1], [0, 0, 1, 1], [], []>} : vector<48x8xbf16>, vector<8x32xbf16>, vector<48x32xf32> -> vector<48x32xf32>
    %95 = arith.addf %70, %94 : vector<48x32xf32>
    %96 = vector.extract_strided_slice %44 {offsets = [0, 16], sizes = [48, 8], strides = [1, 1]} : vector<48x96xf32> to vector<48x8xf32>
    %97 = vector.extract_strided_slice %44 {offsets = [0, 48], sizes = [48, 8], strides = [1, 1]} : vector<48x96xf32> to vector<48x8xf32>
    %98 = vector.extract_strided_slice %44 {offsets = [0, 80], sizes = [48, 8], strides = [1, 1]} : vector<48x96xf32> to vector<48x8xf32>
    %99 = arith.truncf %96 : vector<48x8xf32> to vector<48x8xbf16>
    %100 = arith.truncf %97 : vector<48x8xf32> to vector<48x8xbf16>
    %cst_38 = arith.constant dense<0.000000e+00> : vector<48x48xf32>
    %101 = tpu.matmul %99, %100, %cst_38 {dimension_numbers = #tpu.dot_dimension_numbers<[1], [1], [0], [0], [0, 0, 1, 0], [], []>} : vector<48x8xbf16>, vector<48x8xbf16>, vector<48x48xf32> -> vector<48x48xf32>
    %cst_39 = arith.constant 0.353553385 : f32
    %102 = vector.broadcast %cst_39 : f32 to vector<48x48xf32>
    %103 = arith.mulf %101, %102 : vector<48x48xf32>
    %cst_40 = arith.constant dense<0xFF800000> : vector<48xf32>
    %104 = vector.multi_reduction <maximumf>, %103, %cst_40 [1] : vector<48x48xf32> to vector<48xf32>
    %105 = vector.shape_cast %104 : vector<48xf32> to vector<48x1xf32>
    %106 = vector.broadcast %105 : vector<48x1xf32> to vector<48x48xf32>
    %107 = arith.subf %103, %106 : vector<48x48xf32>
    %108 = math.exp %107 : vector<48x48xf32>
    %cst_41 = arith.constant dense<0.000000e+00> : vector<48xf32>
    %109 = vector.multi_reduction <add>, %108, %cst_41 [1] : vector<48x48xf32> to vector<48xf32>
    %110 = vector.shape_cast %109 : vector<48xf32> to vector<48x1xf32>
    %111 = tpu.reciprocal %110 {approx = true} : vector<48x1xf32> -> vector<48x1xf32>
    %112 = vector.broadcast %111 : vector<48x1xf32> to vector<48x48xf32>
    %113 = arith.mulf %108, %112 : vector<48x48xf32>
    %114 = arith.truncf %113 : vector<48x48xf32> to vector<48x48xbf16>
    %115 = arith.truncf %98 : vector<48x8xf32> to vector<48x8xbf16>
    %cst_42 = arith.constant dense<0.000000e+00> : vector<48x8xf32>
    %116 = tpu.matmul %114, %115, %cst_42 {dimension_numbers = #tpu.dot_dimension_numbers<[1], [0], [0], [1], [0, 0, 1, 1], [], []>} : vector<48x48xbf16>, vector<48x8xbf16>, vector<48x8xf32> -> vector<48x8xf32>
    %117 = vector.extract_strided_slice %46 {offsets = [16, 0], sizes = [8, 32], strides = [1, 1]} : vector<32x32xbf16> to vector<8x32xbf16>
    %118 = arith.truncf %116 : vector<48x8xf32> to vector<48x8xbf16>
    %cst_43 = arith.constant dense<0.000000e+00> : vector<48x32xf32>
    %119 = tpu.matmul %118, %117, %cst_43 {dimension_numbers = #tpu.dot_dimension_numbers<[1], [0], [0], [1], [0, 0, 1, 1], [], []>} : vector<48x8xbf16>, vector<8x32xbf16>, vector<48x32xf32> -> vector<48x32xf32>
    %120 = arith.addf %95, %119 : vector<48x32xf32>
    %121 = vector.extract_strided_slice %44 {offsets = [0, 24], sizes = [48, 8], strides = [1, 1]} : vector<48x96xf32> to vector<48x8xf32>
    %122 = vector.extract_strided_slice %44 {offsets = [0, 56], sizes = [48, 8], strides = [1, 1]} : vector<48x96xf32> to vector<48x8xf32>
    %123 = vector.extract_strided_slice %44 {offsets = [0, 88], sizes = [48, 8], strides = [1, 1]} : vector<48x96xf32> to vector<48x8xf32>
    %124 = arith.truncf %121 : vector<48x8xf32> to vector<48x8xbf16>
    %125 = arith.truncf %122 : vector<48x8xf32> to vector<48x8xbf16>
    %cst_44 = arith.constant dense<0.000000e+00> : vector<48x48xf32>
    %126 = tpu.matmul %124, %125, %cst_44 {dimension_numbers = #tpu.dot_dimension_numbers<[1], [1], [0], [0], [0, 0, 1, 0], [], []>} : vector<48x8xbf16>, vector<48x8xbf16>, vector<48x48xf32> -> vector<48x48xf32>
    %cst_45 = arith.constant 0.353553385 : f32
    %127 = vector.broadcast %cst_45 : f32 to vector<48x48xf32>
    %128 = arith.mulf %126, %127 : vector<48x48xf32>
    %cst_46 = arith.constant dense<0xFF800000> : vector<48xf32>
    %129 = vector.multi_reduction <maximumf>, %128, %cst_46 [1] : vector<48x48xf32> to vector<48xf32>
    %130 = vector.shape_cast %129 : vector<48xf32> to vector<48x1xf32>
    %131 = vector.broadcast %130 : vector<48x1xf32> to vector<48x48xf32>
    %132 = arith.subf %128, %131 : vector<48x48xf32>
    %133 = math.exp %132 : vector<48x48xf32>
    %cst_47 = arith.constant dense<0.000000e+00> : vector<48xf32>
    %134 = vector.multi_reduction <add>, %133, %cst_47 [1] : vector<48x48xf32> to vector<48xf32>
    %135 = vector.shape_cast %134 : vector<48xf32> to vector<48x1xf32>
    %136 = tpu.reciprocal %135 {approx = true} : vector<48x1xf32> -> vector<48x1xf32>
    %137 = vector.broadcast %136 : vector<48x1xf32> to vector<48x48xf32>
    %138 = arith.mulf %133, %137 : vector<48x48xf32>
    %139 = arith.truncf %138 : vector<48x48xf32> to vector<48x48xbf16>
    %140 = arith.truncf %123 : vector<48x8xf32> to vector<48x8xbf16>
    %cst_48 = arith.constant dense<0.000000e+00> : vector<48x8xf32>
    %141 = tpu.matmul %139, %140, %cst_48 {dimension_numbers = #tpu.dot_dimension_numbers<[1], [0], [0], [1], [0, 0, 1, 1], [], []>} : vector<48x48xbf16>, vector<48x8xbf16>, vector<48x8xf32> -> vector<48x8xf32>
    %142 = vector.extract_strided_slice %46 {offsets = [24, 0], sizes = [8, 32], strides = [1, 1]} : vector<32x32xbf16> to vector<8x32xbf16>
    %143 = arith.truncf %141 : vector<48x8xf32> to vector<48x8xbf16>
    %cst_49 = arith.constant dense<0.000000e+00> : vector<48x32xf32>
    %144 = tpu.matmul %143, %142, %cst_49 {dimension_numbers = #tpu.dot_dimension_numbers<[1], [0], [0], [1], [0, 0, 1, 1], [], []>} : vector<48x8xbf16>, vector<8x32xbf16>, vector<48x32xf32> -> vector<48x32xf32>
    %145 = arith.addf %120, %144 : vector<48x32xf32>
    %146 = arith.addf %9, %145 : vector<48x32xf32>
    %c0_50 = arith.constant 0 : index
    %c0_51 = arith.constant 0 : index
    %c0_52 = arith.constant 0 : index
    %147 = vector.load %arg9[%c0_50, %c0_51, %c0_52] : memref<2x1x32xf32, #tpu.memory_space<vmem>>, vector<1x1x32xf32>
    %148 = vector.shape_cast %147 : vector<1x1x32xf32> to vector<1x32xf32>
    %149 = vector.broadcast %148 : vector<1x32xf32> to vector<48x32xf32>
    %150 = arith.addf %146, %149 : vector<48x32xf32>
    %c0_53 = arith.constant 0 : index
    %c0_54 = arith.constant 0 : index
    %c0_55 = arith.constant 0 : index
    %151 = vector.load %arg10[%c0_53, %c0_54, %c0_55] : memref<2x2x32xf32, #tpu.memory_space<vmem>>, vector<1x2x32xf32>
    %152 = vector.shape_cast %151 : vector<1x2x32xf32> to vector<2x32xf32>
    %153 = vector.extract_strided_slice %152 {offsets = [0, 0], sizes = [1, 32], strides = [1, 1]} : vector<2x32xf32> to vector<1x32xf32>
    %154 = vector.extract_strided_slice %152 {offsets = [1, 0], sizes = [1, 32], strides = [1, 1]} : vector<2x32xf32> to vector<1x32xf32>
    %cst_56 = arith.constant dense<0.000000e+00> : vector<48xf32>
    %155 = vector.multi_reduction <add>, %150, %cst_56 [1] : vector<48x32xf32> to vector<48xf32>
    %156 = vector.shape_cast %155 : vector<48xf32> to vector<48x1xf32>
    %cst_57 = arith.constant 3.200000e+01 : f32
    %157 = vector.broadcast %cst_57 : f32 to vector<48x1xf32>
    %158 = arith.divf %156, %157 : vector<48x1xf32>
    %159 = vector.broadcast %158 : vector<48x1xf32> to vector<48x32xf32>
    %160 = arith.subf %150, %159 : vector<48x32xf32>
    %161 = arith.mulf %160, %160 : vector<48x32xf32>
    %cst_58 = arith.constant dense<0.000000e+00> : vector<48xf32>
    %162 = vector.multi_reduction <add>, %161, %cst_58 [1] : vector<48x32xf32> to vector<48xf32>
    %163 = vector.shape_cast %162 : vector<48xf32> to vector<48x1xf32>
    %cst_59 = arith.constant 3.100000e+01 : f32
    %164 = vector.broadcast %cst_59 : f32 to vector<48x1xf32>
    %165 = arith.divf %163, %164 : vector<48x1xf32>
    %166 = math.sqrt %165 : vector<48x1xf32>
    %cst_60 = arith.constant 9.99999997E-7 : f32
    %167 = vector.broadcast %cst_60 : f32 to vector<48x1xf32>
    %168 = arith.addf %166, %167 : vector<48x1xf32>
    %169 = tpu.reciprocal %168 {approx = true} : vector<48x1xf32> -> vector<48x1xf32>
    %170 = vector.broadcast %158 : vector<48x1xf32> to vector<48x32xf32>
    %171 = arith.subf %150, %170 : vector<48x32xf32>
    %172 = vector.broadcast %153 : vector<1x32xf32> to vector<48x32xf32>
    %173 = arith.mulf %172, %171 : vector<48x32xf32>
    %174 = vector.broadcast %169 : vector<48x1xf32> to vector<48x32xf32>
    %175 = arith.mulf %173, %174 : vector<48x32xf32>
    %176 = vector.broadcast %154 : vector<1x32xf32> to vector<48x32xf32>
    %177 = arith.addf %175, %176 : vector<48x32xf32>
    %c0_61 = arith.constant 0 : index
    %c0_62 = arith.constant 0 : index
    %c0_63 = arith.constant 0 : index
    %178 = vector.load %arg11[%c0_61, %c0_62, %c0_63] : memref<2x32x32xbf16, #tpu.memory_space<vmem>>, vector<1x32x32xbf16>
    %179 = vector.shape_cast %178 : vector<1x32x32xbf16> to vector<32x32xbf16>
    %180 = arith.truncf %177 : vector<48x32xf32> to vector<48x32xbf16>
    %cst_64 = arith.constant dense<0.000000e+00> : vector<48x32xf32>
    %181 = tpu.matmul %180, %179, %cst_64 {dimension_numbers = #tpu.dot_dimension_numbers<[1], [0], [0], [1], [0, 0, 1, 1], [], []>} : vector<48x32xbf16>, vector<32x32xbf16>, vector<48x32xf32> -> vector<48x32xf32>
    %c0_65 = arith.constant 0 : index
    %c0_66 = arith.constant 0 : index
    %c0_67 = arith.constant 0 : index
    %182 = vector.load %arg12[%c0_65, %c0_66, %c0_67] : memref<2x1x32xf32, #tpu.memory_space<vmem>>, vector<1x1x32xf32>
    %183 = vector.shape_cast %182 : vector<1x1x32xf32> to vector<1x32xf32>
    %184 = vector.broadcast %183 : vector<1x32xf32> to vector<48x32xf32>
    %185 = arith.addf %181, %184 : vector<48x32xf32>
    %cst_68 = arith.constant 0.000000e+00 : f32
    %186 = vector.broadcast %cst_68 : f32 to vector<48x32xf32>
    %187 = arith.maximumf %185, %186 : vector<48x32xf32>
    %c0_69 = arith.constant 0 : index
    %c0_70 = arith.constant 0 : index
    %c0_71 = arith.constant 0 : index
    %188 = vector.load %arg13[%c0_69, %c0_70, %c0_71] : memref<2x32x32xbf16, #tpu.memory_space<vmem>>, vector<1x32x32xbf16>
    %189 = vector.shape_cast %188 : vector<1x32x32xbf16> to vector<32x32xbf16>
    %190 = arith.truncf %187 : vector<48x32xf32> to vector<48x32xbf16>
    %cst_72 = arith.constant dense<0.000000e+00> : vector<48x32xf32>
    %191 = tpu.matmul %190, %189, %cst_72 {dimension_numbers = #tpu.dot_dimension_numbers<[1], [0], [0], [1], [0, 0, 1, 1], [], []>} : vector<48x32xbf16>, vector<32x32xbf16>, vector<48x32xf32> -> vector<48x32xf32>
    %192 = arith.addf %150, %191 : vector<48x32xf32>
    %c0_73 = arith.constant 0 : index
    %c0_74 = arith.constant 0 : index
    %c0_75 = arith.constant 0 : index
    %193 = vector.load %arg14[%c0_73, %c0_74, %c0_75] : memref<2x1x32xf32, #tpu.memory_space<vmem>>, vector<1x1x32xf32>
    %194 = vector.shape_cast %193 : vector<1x1x32xf32> to vector<1x32xf32>
    %195 = vector.broadcast %194 : vector<1x32xf32> to vector<48x32xf32>
    %196 = arith.addf %192, %195 : vector<48x32xf32>
    %c1 = arith.constant 1 : index
    %c0_76 = arith.constant 0 : index
    %c0_77 = arith.constant 0 : index
    %197 = vector.load %arg5[%c1, %c0_76, %c0_77] : memref<2x2x32xf32, #tpu.memory_space<vmem>>, vector<1x2x32xf32>
    %198 = vector.shape_cast %197 : vector<1x2x32xf32> to vector<2x32xf32>
    %199 = vector.extract_strided_slice %198 {offsets = [0, 0], sizes = [1, 32], strides = [1, 1]} : vector<2x32xf32> to vector<1x32xf32>
    %200 = vector.extract_strided_slice %198 {offsets = [1, 0], sizes = [1, 32], strides = [1, 1]} : vector<2x32xf32> to vector<1x32xf32>
    %cst_78 = arith.constant dense<0.000000e+00> : vector<48xf32>
    %201 = vector.multi_reduction <add>, %196, %cst_78 [1] : vector<48x32xf32> to vector<48xf32>
    %202 = vector.shape_cast %201 : vector<48xf32> to vector<48x1xf32>
    %cst_79 = arith.constant 3.200000e+01 : f32
    %203 = vector.broadcast %cst_79 : f32 to vector<48x1xf32>
    %204 = arith.divf %202, %203 : vector<48x1xf32>
    %205 = vector.broadcast %204 : vector<48x1xf32> to vector<48x32xf32>
    %206 = arith.subf %196, %205 : vector<48x32xf32>
    %207 = arith.mulf %206, %206 : vector<48x32xf32>
    %cst_80 = arith.constant dense<0.000000e+00> : vector<48xf32>
    %208 = vector.multi_reduction <add>, %207, %cst_80 [1] : vector<48x32xf32> to vector<48xf32>
    %209 = vector.shape_cast %208 : vector<48xf32> to vector<48x1xf32>
    %cst_81 = arith.constant 3.100000e+01 : f32
    %210 = vector.broadcast %cst_81 : f32 to vector<48x1xf32>
    %211 = arith.divf %209, %210 : vector<48x1xf32>
    %212 = math.sqrt %211 : vector<48x1xf32>
    %cst_82 = arith.constant 9.99999997E-7 : f32
    %213 = vector.broadcast %cst_82 : f32 to vector<48x1xf32>
    %214 = arith.addf %212, %213 : vector<48x1xf32>
    %215 = tpu.reciprocal %214 {approx = true} : vector<48x1xf32> -> vector<48x1xf32>
    %216 = vector.broadcast %204 : vector<48x1xf32> to vector<48x32xf32>
    %217 = arith.subf %196, %216 : vector<48x32xf32>
    %218 = vector.broadcast %199 : vector<1x32xf32> to vector<48x32xf32>
    %219 = arith.mulf %218, %217 : vector<48x32xf32>
    %220 = vector.broadcast %215 : vector<48x1xf32> to vector<48x32xf32>
    %221 = arith.mulf %219, %220 : vector<48x32xf32>
    %222 = vector.broadcast %200 : vector<1x32xf32> to vector<48x32xf32>
    %223 = arith.addf %221, %222 : vector<48x32xf32>
    %c1_83 = arith.constant 1 : index
    %c0_84 = arith.constant 0 : index
    %c0_85 = arith.constant 0 : index
    %224 = vector.load %arg6[%c1_83, %c0_84, %c0_85] : memref<2x32x96xbf16, #tpu.memory_space<vmem>>, vector<1x32x96xbf16>
    %225 = vector.shape_cast %224 : vector<1x32x96xbf16> to vector<32x96xbf16>
    %226 = arith.truncf %223 : vector<48x32xf32> to vector<48x32xbf16>
    %cst_86 = arith.constant dense<0.000000e+00> : vector<48x96xf32>
    %227 = tpu.matmul %226, %225, %cst_86 {dimension_numbers = #tpu.dot_dimension_numbers<[1], [0], [0], [1], [0, 0, 1, 1], [], []>} : vector<48x32xbf16>, vector<32x96xbf16>, vector<48x96xf32> -> vector<48x96xf32>
    %c1_87 = arith.constant 1 : index
    %c0_88 = arith.constant 0 : index
    %c0_89 = arith.constant 0 : index
    %228 = vector.load %arg7[%c1_87, %c0_88, %c0_89] : memref<2x1x96xf32, #tpu.memory_space<vmem>>, vector<1x1x96xf32>
    %229 = vector.shape_cast %228 : vector<1x1x96xf32> to vector<1x96xf32>
    %230 = vector.broadcast %229 : vector<1x96xf32> to vector<48x96xf32>
    %231 = arith.addf %227, %230 : vector<48x96xf32>
    %c1_90 = arith.constant 1 : index
    %c0_91 = arith.constant 0 : index
    %c0_92 = arith.constant 0 : index
    %232 = vector.load %arg8[%c1_90, %c0_91, %c0_92] : memref<2x32x32xbf16, #tpu.memory_space<vmem>>, vector<1x32x32xbf16>
    %233 = vector.shape_cast %232 : vector<1x32x32xbf16> to vector<32x32xbf16>
    %234 = vector.extract_strided_slice %231 {offsets = [0, 0], sizes = [48, 8], strides = [1, 1]} : vector<48x96xf32> to vector<48x8xf32>
    %235 = vector.extract_strided_slice %231 {offsets = [0, 32], sizes = [48, 8], strides = [1, 1]} : vector<48x96xf32> to vector<48x8xf32>
    %236 = vector.extract_strided_slice %231 {offsets = [0, 64], sizes = [48, 8], strides = [1, 1]} : vector<48x96xf32> to vector<48x8xf32>
    %237 = arith.truncf %234 : vector<48x8xf32> to vector<48x8xbf16>
    %238 = arith.truncf %235 : vector<48x8xf32> to vector<48x8xbf16>
    %cst_93 = arith.constant dense<0.000000e+00> : vector<48x48xf32>
    %239 = tpu.matmul %237, %238, %cst_93 {dimension_numbers = #tpu.dot_dimension_numbers<[1], [1], [0], [0], [0, 0, 1, 0], [], []>} : vector<48x8xbf16>, vector<48x8xbf16>, vector<48x48xf32> -> vector<48x48xf32>
    %cst_94 = arith.constant 0.353553385 : f32
    %240 = vector.broadcast %cst_94 : f32 to vector<48x48xf32>
    %241 = arith.mulf %239, %240 : vector<48x48xf32>
    %cst_95 = arith.constant dense<0xFF800000> : vector<48xf32>
    %242 = vector.multi_reduction <maximumf>, %241, %cst_95 [1] : vector<48x48xf32> to vector<48xf32>
    %243 = vector.shape_cast %242 : vector<48xf32> to vector<48x1xf32>
    %244 = vector.broadcast %243 : vector<48x1xf32> to vector<48x48xf32>
    %245 = arith.subf %241, %244 : vector<48x48xf32>
    %246 = math.exp %245 : vector<48x48xf32>
    %cst_96 = arith.constant dense<0.000000e+00> : vector<48xf32>
    %247 = vector.multi_reduction <add>, %246, %cst_96 [1] : vector<48x48xf32> to vector<48xf32>
    %248 = vector.shape_cast %247 : vector<48xf32> to vector<48x1xf32>
    %249 = tpu.reciprocal %248 {approx = true} : vector<48x1xf32> -> vector<48x1xf32>
    %250 = vector.broadcast %249 : vector<48x1xf32> to vector<48x48xf32>
    %251 = arith.mulf %246, %250 : vector<48x48xf32>
    %252 = arith.truncf %251 : vector<48x48xf32> to vector<48x48xbf16>
    %253 = arith.truncf %236 : vector<48x8xf32> to vector<48x8xbf16>
    %cst_97 = arith.constant dense<0.000000e+00> : vector<48x8xf32>
    %254 = tpu.matmul %252, %253, %cst_97 {dimension_numbers = #tpu.dot_dimension_numbers<[1], [0], [0], [1], [0, 0, 1, 1], [], []>} : vector<48x48xbf16>, vector<48x8xbf16>, vector<48x8xf32> -> vector<48x8xf32>
    %255 = vector.extract_strided_slice %233 {offsets = [0, 0], sizes = [8, 32], strides = [1, 1]} : vector<32x32xbf16> to vector<8x32xbf16>
    %256 = arith.truncf %254 : vector<48x8xf32> to vector<48x8xbf16>
    %cst_98 = arith.constant dense<0.000000e+00> : vector<48x32xf32>
    %257 = tpu.matmul %256, %255, %cst_98 {dimension_numbers = #tpu.dot_dimension_numbers<[1], [0], [0], [1], [0, 0, 1, 1], [], []>} : vector<48x8xbf16>, vector<8x32xbf16>, vector<48x32xf32> -> vector<48x32xf32>
    %258 = vector.extract_strided_slice %231 {offsets = [0, 8], sizes = [48, 8], strides = [1, 1]} : vector<48x96xf32> to vector<48x8xf32>
    %259 = vector.extract_strided_slice %231 {offsets = [0, 40], sizes = [48, 8], strides = [1, 1]} : vector<48x96xf32> to vector<48x8xf32>
    %260 = vector.extract_strided_slice %231 {offsets = [0, 72], sizes = [48, 8], strides = [1, 1]} : vector<48x96xf32> to vector<48x8xf32>
    %261 = arith.truncf %258 : vector<48x8xf32> to vector<48x8xbf16>
    %262 = arith.truncf %259 : vector<48x8xf32> to vector<48x8xbf16>
    %cst_99 = arith.constant dense<0.000000e+00> : vector<48x48xf32>
    %263 = tpu.matmul %261, %262, %cst_99 {dimension_numbers = #tpu.dot_dimension_numbers<[1], [1], [0], [0], [0, 0, 1, 0], [], []>} : vector<48x8xbf16>, vector<48x8xbf16>, vector<48x48xf32> -> vector<48x48xf32>
    %cst_100 = arith.constant 0.353553385 : f32
    %264 = vector.broadcast %cst_100 : f32 to vector<48x48xf32>
    %265 = arith.mulf %263, %264 : vector<48x48xf32>
    %cst_101 = arith.constant dense<0xFF800000> : vector<48xf32>
    %266 = vector.multi_reduction <maximumf>, %265, %cst_101 [1] : vector<48x48xf32> to vector<48xf32>
    %267 = vector.shape_cast %266 : vector<48xf32> to vector<48x1xf32>
    %268 = vector.broadcast %267 : vector<48x1xf32> to vector<48x48xf32>
    %269 = arith.subf %265, %268 : vector<48x48xf32>
    %270 = math.exp %269 : vector<48x48xf32>
    %cst_102 = arith.constant dense<0.000000e+00> : vector<48xf32>
    %271 = vector.multi_reduction <add>, %270, %cst_102 [1] : vector<48x48xf32> to vector<48xf32>
    %272 = vector.shape_cast %271 : vector<48xf32> to vector<48x1xf32>
    %273 = tpu.reciprocal %272 {approx = true} : vector<48x1xf32> -> vector<48x1xf32>
    %274 = vector.broadcast %273 : vector<48x1xf32> to vector<48x48xf32>
    %275 = arith.mulf %270, %274 : vector<48x48xf32>
    %276 = arith.truncf %275 : vector<48x48xf32> to vector<48x48xbf16>
    %277 = arith.truncf %260 : vector<48x8xf32> to vector<48x8xbf16>
    %cst_103 = arith.constant dense<0.000000e+00> : vector<48x8xf32>
    %278 = tpu.matmul %276, %277, %cst_103 {dimension_numbers = #tpu.dot_dimension_numbers<[1], [0], [0], [1], [0, 0, 1, 1], [], []>} : vector<48x48xbf16>, vector<48x8xbf16>, vector<48x8xf32> -> vector<48x8xf32>
    %279 = vector.extract_strided_slice %233 {offsets = [8, 0], sizes = [8, 32], strides = [1, 1]} : vector<32x32xbf16> to vector<8x32xbf16>
    %280 = arith.truncf %278 : vector<48x8xf32> to vector<48x8xbf16>
    %cst_104 = arith.constant dense<0.000000e+00> : vector<48x32xf32>
    %281 = tpu.matmul %280, %279, %cst_104 {dimension_numbers = #tpu.dot_dimension_numbers<[1], [0], [0], [1], [0, 0, 1, 1], [], []>} : vector<48x8xbf16>, vector<8x32xbf16>, vector<48x32xf32> -> vector<48x32xf32>
    %282 = arith.addf %257, %281 : vector<48x32xf32>
    %283 = vector.extract_strided_slice %231 {offsets = [0, 16], sizes = [48, 8], strides = [1, 1]} : vector<48x96xf32> to vector<48x8xf32>
    %284 = vector.extract_strided_slice %231 {offsets = [0, 48], sizes = [48, 8], strides = [1, 1]} : vector<48x96xf32> to vector<48x8xf32>
    %285 = vector.extract_strided_slice %231 {offsets = [0, 80], sizes = [48, 8], strides = [1, 1]} : vector<48x96xf32> to vector<48x8xf32>
    %286 = arith.truncf %283 : vector<48x8xf32> to vector<48x8xbf16>
    %287 = arith.truncf %284 : vector<48x8xf32> to vector<48x8xbf16>
    %cst_105 = arith.constant dense<0.000000e+00> : vector<48x48xf32>
    %288 = tpu.matmul %286, %287, %cst_105 {dimension_numbers = #tpu.dot_dimension_numbers<[1], [1], [0], [0], [0, 0, 1, 0], [], []>} : vector<48x8xbf16>, vector<48x8xbf16>, vector<48x48xf32> -> vector<48x48xf32>
    %cst_106 = arith.constant 0.353553385 : f32
    %289 = vector.broadcast %cst_106 : f32 to vector<48x48xf32>
    %290 = arith.mulf %288, %289 : vector<48x48xf32>
    %cst_107 = arith.constant dense<0xFF800000> : vector<48xf32>
    %291 = vector.multi_reduction <maximumf>, %290, %cst_107 [1] : vector<48x48xf32> to vector<48xf32>
    %292 = vector.shape_cast %291 : vector<48xf32> to vector<48x1xf32>
    %293 = vector.broadcast %292 : vector<48x1xf32> to vector<48x48xf32>
    %294 = arith.subf %290, %293 : vector<48x48xf32>
    %295 = math.exp %294 : vector<48x48xf32>
    %cst_108 = arith.constant dense<0.000000e+00> : vector<48xf32>
    %296 = vector.multi_reduction <add>, %295, %cst_108 [1] : vector<48x48xf32> to vector<48xf32>
    %297 = vector.shape_cast %296 : vector<48xf32> to vector<48x1xf32>
    %298 = tpu.reciprocal %297 {approx = true} : vector<48x1xf32> -> vector<48x1xf32>
    %299 = vector.broadcast %298 : vector<48x1xf32> to vector<48x48xf32>
    %300 = arith.mulf %295, %299 : vector<48x48xf32>
    %301 = arith.truncf %300 : vector<48x48xf32> to vector<48x48xbf16>
    %302 = arith.truncf %285 : vector<48x8xf32> to vector<48x8xbf16>
    %cst_109 = arith.constant dense<0.000000e+00> : vector<48x8xf32>
    %303 = tpu.matmul %301, %302, %cst_109 {dimension_numbers = #tpu.dot_dimension_numbers<[1], [0], [0], [1], [0, 0, 1, 1], [], []>} : vector<48x48xbf16>, vector<48x8xbf16>, vector<48x8xf32> -> vector<48x8xf32>
    %304 = vector.extract_strided_slice %233 {offsets = [16, 0], sizes = [8, 32], strides = [1, 1]} : vector<32x32xbf16> to vector<8x32xbf16>
    %305 = arith.truncf %303 : vector<48x8xf32> to vector<48x8xbf16>
    %cst_110 = arith.constant dense<0.000000e+00> : vector<48x32xf32>
    %306 = tpu.matmul %305, %304, %cst_110 {dimension_numbers = #tpu.dot_dimension_numbers<[1], [0], [0], [1], [0, 0, 1, 1], [], []>} : vector<48x8xbf16>, vector<8x32xbf16>, vector<48x32xf32> -> vector<48x32xf32>
    %307 = arith.addf %282, %306 : vector<48x32xf32>
    %308 = vector.extract_strided_slice %231 {offsets = [0, 24], sizes = [48, 8], strides = [1, 1]} : vector<48x96xf32> to vector<48x8xf32>
    %309 = vector.extract_strided_slice %231 {offsets = [0, 56], sizes = [48, 8], strides = [1, 1]} : vector<48x96xf32> to vector<48x8xf32>
    %310 = vector.extract_strided_slice %231 {offsets = [0, 88], sizes = [48, 8], strides = [1, 1]} : vector<48x96xf32> to vector<48x8xf32>
    %311 = arith.truncf %308 : vector<48x8xf32> to vector<48x8xbf16>
    %312 = arith.truncf %309 : vector<48x8xf32> to vector<48x8xbf16>
    %cst_111 = arith.constant dense<0.000000e+00> : vector<48x48xf32>
    %313 = tpu.matmul %311, %312, %cst_111 {dimension_numbers = #tpu.dot_dimension_numbers<[1], [1], [0], [0], [0, 0, 1, 0], [], []>} : vector<48x8xbf16>, vector<48x8xbf16>, vector<48x48xf32> -> vector<48x48xf32>
    %cst_112 = arith.constant 0.353553385 : f32
    %314 = vector.broadcast %cst_112 : f32 to vector<48x48xf32>
    %315 = arith.mulf %313, %314 : vector<48x48xf32>
    %cst_113 = arith.constant dense<0xFF800000> : vector<48xf32>
    %316 = vector.multi_reduction <maximumf>, %315, %cst_113 [1] : vector<48x48xf32> to vector<48xf32>
    %317 = vector.shape_cast %316 : vector<48xf32> to vector<48x1xf32>
    %318 = vector.broadcast %317 : vector<48x1xf32> to vector<48x48xf32>
    %319 = arith.subf %315, %318 : vector<48x48xf32>
    %320 = math.exp %319 : vector<48x48xf32>
    %cst_114 = arith.constant dense<0.000000e+00> : vector<48xf32>
    %321 = vector.multi_reduction <add>, %320, %cst_114 [1] : vector<48x48xf32> to vector<48xf32>
    %322 = vector.shape_cast %321 : vector<48xf32> to vector<48x1xf32>
    %323 = tpu.reciprocal %322 {approx = true} : vector<48x1xf32> -> vector<48x1xf32>
    %324 = vector.broadcast %323 : vector<48x1xf32> to vector<48x48xf32>
    %325 = arith.mulf %320, %324 : vector<48x48xf32>
    %326 = arith.truncf %325 : vector<48x48xf32> to vector<48x48xbf16>
    %327 = arith.truncf %310 : vector<48x8xf32> to vector<48x8xbf16>
    %cst_115 = arith.constant dense<0.000000e+00> : vector<48x8xf32>
    %328 = tpu.matmul %326, %327, %cst_115 {dimension_numbers = #tpu.dot_dimension_numbers<[1], [0], [0], [1], [0, 0, 1, 1], [], []>} : vector<48x48xbf16>, vector<48x8xbf16>, vector<48x8xf32> -> vector<48x8xf32>
    %329 = vector.extract_strided_slice %233 {offsets = [24, 0], sizes = [8, 32], strides = [1, 1]} : vector<32x32xbf16> to vector<8x32xbf16>
    %330 = arith.truncf %328 : vector<48x8xf32> to vector<48x8xbf16>
    %cst_116 = arith.constant dense<0.000000e+00> : vector<48x32xf32>
    %331 = tpu.matmul %330, %329, %cst_116 {dimension_numbers = #tpu.dot_dimension_numbers<[1], [0], [0], [1], [0, 0, 1, 1], [], []>} : vector<48x8xbf16>, vector<8x32xbf16>, vector<48x32xf32> -> vector<48x32xf32>
    %332 = arith.addf %307, %331 : vector<48x32xf32>
    %333 = arith.addf %196, %332 : vector<48x32xf32>
    %c1_117 = arith.constant 1 : index
    %c0_118 = arith.constant 0 : index
    %c0_119 = arith.constant 0 : index
    %334 = vector.load %arg9[%c1_117, %c0_118, %c0_119] : memref<2x1x32xf32, #tpu.memory_space<vmem>>, vector<1x1x32xf32>
    %335 = vector.shape_cast %334 : vector<1x1x32xf32> to vector<1x32xf32>
    %336 = vector.broadcast %335 : vector<1x32xf32> to vector<48x32xf32>
    %337 = arith.addf %333, %336 : vector<48x32xf32>
    %c1_120 = arith.constant 1 : index
    %c0_121 = arith.constant 0 : index
    %c0_122 = arith.constant 0 : index
    %338 = vector.load %arg10[%c1_120, %c0_121, %c0_122] : memref<2x2x32xf32, #tpu.memory_space<vmem>>, vector<1x2x32xf32>
    %339 = vector.shape_cast %338 : vector<1x2x32xf32> to vector<2x32xf32>
    %340 = vector.extract_strided_slice %339 {offsets = [0, 0], sizes = [1, 32], strides = [1, 1]} : vector<2x32xf32> to vector<1x32xf32>
    %341 = vector.extract_strided_slice %339 {offsets = [1, 0], sizes = [1, 32], strides = [1, 1]} : vector<2x32xf32> to vector<1x32xf32>
    %cst_123 = arith.constant dense<0.000000e+00> : vector<48xf32>
    %342 = vector.multi_reduction <add>, %337, %cst_123 [1] : vector<48x32xf32> to vector<48xf32>
    %343 = vector.shape_cast %342 : vector<48xf32> to vector<48x1xf32>
    %cst_124 = arith.constant 3.200000e+01 : f32
    %344 = vector.broadcast %cst_124 : f32 to vector<48x1xf32>
    %345 = arith.divf %343, %344 : vector<48x1xf32>
    %346 = vector.broadcast %345 : vector<48x1xf32> to vector<48x32xf32>
    %347 = arith.subf %337, %346 : vector<48x32xf32>
    %348 = arith.mulf %347, %347 : vector<48x32xf32>
    %cst_125 = arith.constant dense<0.000000e+00> : vector<48xf32>
    %349 = vector.multi_reduction <add>, %348, %cst_125 [1] : vector<48x32xf32> to vector<48xf32>
    %350 = vector.shape_cast %349 : vector<48xf32> to vector<48x1xf32>
    %cst_126 = arith.constant 3.100000e+01 : f32
    %351 = vector.broadcast %cst_126 : f32 to vector<48x1xf32>
    %352 = arith.divf %350, %351 : vector<48x1xf32>
    %353 = math.sqrt %352 : vector<48x1xf32>
    %cst_127 = arith.constant 9.99999997E-7 : f32
    %354 = vector.broadcast %cst_127 : f32 to vector<48x1xf32>
    %355 = arith.addf %353, %354 : vector<48x1xf32>
    %356 = tpu.reciprocal %355 {approx = true} : vector<48x1xf32> -> vector<48x1xf32>
    %357 = vector.broadcast %345 : vector<48x1xf32> to vector<48x32xf32>
    %358 = arith.subf %337, %357 : vector<48x32xf32>
    %359 = vector.broadcast %340 : vector<1x32xf32> to vector<48x32xf32>
    %360 = arith.mulf %359, %358 : vector<48x32xf32>
    %361 = vector.broadcast %356 : vector<48x1xf32> to vector<48x32xf32>
    %362 = arith.mulf %360, %361 : vector<48x32xf32>
    %363 = vector.broadcast %341 : vector<1x32xf32> to vector<48x32xf32>
    %364 = arith.addf %362, %363 : vector<48x32xf32>
    %c1_128 = arith.constant 1 : index
    %c0_129 = arith.constant 0 : index
    %c0_130 = arith.constant 0 : index
    %365 = vector.load %arg11[%c1_128, %c0_129, %c0_130] : memref<2x32x32xbf16, #tpu.memory_space<vmem>>, vector<1x32x32xbf16>
    %366 = vector.shape_cast %365 : vector<1x32x32xbf16> to vector<32x32xbf16>
    %367 = arith.truncf %364 : vector<48x32xf32> to vector<48x32xbf16>
    %cst_131 = arith.constant dense<0.000000e+00> : vector<48x32xf32>
    %368 = tpu.matmul %367, %366, %cst_131 {dimension_numbers = #tpu.dot_dimension_numbers<[1], [0], [0], [1], [0, 0, 1, 1], [], []>} : vector<48x32xbf16>, vector<32x32xbf16>, vector<48x32xf32> -> vector<48x32xf32>
    %c1_132 = arith.constant 1 : index
    %c0_133 = arith.constant 0 : index
    %c0_134 = arith.constant 0 : index
    %369 = vector.load %arg12[%c1_132, %c0_133, %c0_134] : memref<2x1x32xf32, #tpu.memory_space<vmem>>, vector<1x1x32xf32>
    %370 = vector.shape_cast %369 : vector<1x1x32xf32> to vector<1x32xf32>
    %371 = vector.broadcast %370 : vector<1x32xf32> to vector<48x32xf32>
    %372 = arith.addf %368, %371 : vector<48x32xf32>
    %cst_135 = arith.constant 0.000000e+00 : f32
    %373 = vector.broadcast %cst_135 : f32 to vector<48x32xf32>
    %374 = arith.maximumf %372, %373 : vector<48x32xf32>
    %c1_136 = arith.constant 1 : index
    %c0_137 = arith.constant 0 : index
    %c0_138 = arith.constant 0 : index
    %375 = vector.load %arg13[%c1_136, %c0_137, %c0_138] : memref<2x32x32xbf16, #tpu.memory_space<vmem>>, vector<1x32x32xbf16>
    %376 = vector.shape_cast %375 : vector<1x32x32xbf16> to vector<32x32xbf16>
    %377 = arith.truncf %374 : vector<48x32xf32> to vector<48x32xbf16>
    %cst_139 = arith.constant dense<0.000000e+00> : vector<48x32xf32>
    %378 = tpu.matmul %377, %376, %cst_139 {dimension_numbers = #tpu.dot_dimension_numbers<[1], [0], [0], [1], [0, 0, 1, 1], [], []>} : vector<48x32xbf16>, vector<32x32xbf16>, vector<48x32xf32> -> vector<48x32xf32>
    %379 = arith.addf %337, %378 : vector<48x32xf32>
    %c1_140 = arith.constant 1 : index
    %c0_141 = arith.constant 0 : index
    %c0_142 = arith.constant 0 : index
    %380 = vector.load %arg14[%c1_140, %c0_141, %c0_142] : memref<2x1x32xf32, #tpu.memory_space<vmem>>, vector<1x1x32xf32>
    %381 = vector.shape_cast %380 : vector<1x1x32xf32> to vector<1x32xf32>
    %382 = vector.broadcast %381 : vector<1x32xf32> to vector<48x32xf32>
    %383 = arith.addf %379, %382 : vector<48x32xf32>
    %c0_143 = arith.constant 0 : index
    %c0_144 = arith.constant 0 : index
    %384 = vector.load %arg15[%c0_143, %c0_144] : memref<2x32xf32, #tpu.memory_space<vmem>>, vector<2x32xf32>
    %385 = vector.extract_strided_slice %384 {offsets = [0, 0], sizes = [1, 32], strides = [1, 1]} : vector<2x32xf32> to vector<1x32xf32>
    %386 = vector.extract_strided_slice %384 {offsets = [1, 0], sizes = [1, 32], strides = [1, 1]} : vector<2x32xf32> to vector<1x32xf32>
    %cst_145 = arith.constant dense<0.000000e+00> : vector<48xf32>
    %387 = vector.multi_reduction <add>, %383, %cst_145 [1] : vector<48x32xf32> to vector<48xf32>
    %388 = vector.shape_cast %387 : vector<48xf32> to vector<48x1xf32>
    %cst_146 = arith.constant 3.200000e+01 : f32
    %389 = vector.broadcast %cst_146 : f32 to vector<48x1xf32>
    %390 = arith.divf %388, %389 : vector<48x1xf32>
    %391 = vector.broadcast %390 : vector<48x1xf32> to vector<48x32xf32>
    %392 = arith.subf %383, %391 : vector<48x32xf32>
    %393 = arith.mulf %392, %392 : vector<48x32xf32>
    %cst_147 = arith.constant dense<0.000000e+00> : vector<48xf32>
    %394 = vector.multi_reduction <add>, %393, %cst_147 [1] : vector<48x32xf32> to vector<48xf32>
    %395 = vector.shape_cast %394 : vector<48xf32> to vector<48x1xf32>
    %cst_148 = arith.constant 3.100000e+01 : f32
    %396 = vector.broadcast %cst_148 : f32 to vector<48x1xf32>
    %397 = arith.divf %395, %396 : vector<48x1xf32>
    %398 = math.sqrt %397 : vector<48x1xf32>
    %cst_149 = arith.constant 9.99999997E-7 : f32
    %399 = vector.broadcast %cst_149 : f32 to vector<48x1xf32>
    %400 = arith.addf %398, %399 : vector<48x1xf32>
    %401 = tpu.reciprocal %400 {approx = true} : vector<48x1xf32> -> vector<48x1xf32>
    %402 = vector.broadcast %390 : vector<48x1xf32> to vector<48x32xf32>
    %403 = arith.subf %383, %402 : vector<48x32xf32>
    %404 = vector.broadcast %385 : vector<1x32xf32> to vector<48x32xf32>
    %405 = arith.mulf %404, %403 : vector<48x32xf32>
    %406 = vector.broadcast %401 : vector<48x1xf32> to vector<48x32xf32>
    %407 = arith.mulf %405, %406 : vector<48x32xf32>
    %408 = vector.broadcast %386 : vector<1x32xf32> to vector<48x32xf32>
    %409 = arith.addf %407, %408 : vector<48x32xf32>
    %c0_150 = arith.constant 0 : index
    %c0_151 = arith.constant 0 : index
    %410 = vector.load %arg16[%c0_150, %c0_151] : memref<32x16xbf16, #tpu.memory_space<vmem>>, vector<32x16xbf16>
    %411 = arith.truncf %409 : vector<48x32xf32> to vector<48x32xbf16>
    %cst_152 = arith.constant dense<0.000000e+00> : vector<48x16xf32>
    %412 = tpu.matmul %411, %410, %cst_152 {dimension_numbers = #tpu.dot_dimension_numbers<[1], [0], [0], [1], [0, 0, 1, 1], [], []>} : vector<48x32xbf16>, vector<32x16xbf16>, vector<48x16xf32> -> vector<48x16xf32>
    %c0_153 = arith.constant 0 : index
    %c0_154 = arith.constant 0 : index
    %413 = vector.load %arg17[%c0_153, %c0_154] : memref<1x16xf32, #tpu.memory_space<vmem>>, vector<1x16xf32>
    %414 = vector.broadcast %413 : vector<1x16xf32> to vector<48x16xf32>
    %415 = arith.addf %412, %414 : vector<48x16xf32>
    %416 = vector.extract_strided_slice %415 {offsets = [0, 0], sizes = [38, 16], strides = [1, 1]} : vector<48x16xf32> to vector<38x16xf32>
    %c0_155 = arith.constant 0 : index
    %c0_156 = arith.constant 0 : index
    %c0_157 = arith.constant 0 : index
    %417 = vector.load %arg18[%c0_155, %c0_156, %c0_157] : memref<33x16x16xbf16, #tpu.memory_space<vmem>>, vector<1x16x16xbf16>
    %418 = vector.shape_cast %417 : vector<1x16x16xbf16> to vector<16x16xbf16>
    %419 = arith.truncf %416 : vector<38x16xf32> to vector<38x16xbf16>
    %cst_158 = arith.constant dense<0.000000e+00> : vector<38x16xf32>
    %420 = tpu.matmul %419, %418, %cst_158 {dimension_numbers = #tpu.dot_dimension_numbers<[1], [0], [0], [1], [0, 0, 1, 1], [], []>} : vector<38x16xbf16>, vector<16x16xbf16>, vector<38x16xf32> -> vector<38x16xf32>
    %421 = vector.extract_strided_slice %415 {offsets = [1, 0], sizes = [38, 16], strides = [1, 1]} : vector<48x16xf32> to vector<38x16xf32>
    %c1_159 = arith.constant 1 : index
    %c0_160 = arith.constant 0 : index
    %c0_161 = arith.constant 0 : index
    %422 = vector.load %arg18[%c1_159, %c0_160, %c0_161] : memref<33x16x16xbf16, #tpu.memory_space<vmem>>, vector<1x16x16xbf16>
    %423 = vector.shape_cast %422 : vector<1x16x16xbf16> to vector<16x16xbf16>
    %424 = arith.truncf %421 : vector<38x16xf32> to vector<38x16xbf16>
    %cst_162 = arith.constant dense<0.000000e+00> : vector<38x16xf32>
    %425 = tpu.matmul %424, %423, %cst_162 {dimension_numbers = #tpu.dot_dimension_numbers<[1], [0], [0], [1], [0, 0, 1, 1], [], []>} : vector<38x16xbf16>, vector<16x16xbf16>, vector<38x16xf32> -> vector<38x16xf32>
    %426 = arith.addf %420, %425 : vector<38x16xf32>
    %427 = vector.extract_strided_slice %415 {offsets = [2, 0], sizes = [38, 16], strides = [1, 1]} : vector<48x16xf32> to vector<38x16xf32>
    %c2 = arith.constant 2 : index
    %c0_163 = arith.constant 0 : index
    %c0_164 = arith.constant 0 : index
    %428 = vector.load %arg18[%c2, %c0_163, %c0_164] : memref<33x16x16xbf16, #tpu.memory_space<vmem>>, vector<1x16x16xbf16>
    %429 = vector.shape_cast %428 : vector<1x16x16xbf16> to vector<16x16xbf16>
    %430 = arith.truncf %427 : vector<38x16xf32> to vector<38x16xbf16>
    %cst_165 = arith.constant dense<0.000000e+00> : vector<38x16xf32>
    %431 = tpu.matmul %430, %429, %cst_165 {dimension_numbers = #tpu.dot_dimension_numbers<[1], [0], [0], [1], [0, 0, 1, 1], [], []>} : vector<38x16xbf16>, vector<16x16xbf16>, vector<38x16xf32> -> vector<38x16xf32>
    %432 = arith.addf %426, %431 : vector<38x16xf32>
    %433 = vector.extract_strided_slice %415 {offsets = [3, 0], sizes = [38, 16], strides = [1, 1]} : vector<48x16xf32> to vector<38x16xf32>
    %c3 = arith.constant 3 : index
    %c0_166 = arith.constant 0 : index
    %c0_167 = arith.constant 0 : index
    %434 = vector.load %arg18[%c3, %c0_166, %c0_167] : memref<33x16x16xbf16, #tpu.memory_space<vmem>>, vector<1x16x16xbf16>
    %435 = vector.shape_cast %434 : vector<1x16x16xbf16> to vector<16x16xbf16>
    %436 = arith.truncf %433 : vector<38x16xf32> to vector<38x16xbf16>
    %cst_168 = arith.constant dense<0.000000e+00> : vector<38x16xf32>
    %437 = tpu.matmul %436, %435, %cst_168 {dimension_numbers = #tpu.dot_dimension_numbers<[1], [0], [0], [1], [0, 0, 1, 1], [], []>} : vector<38x16xbf16>, vector<16x16xbf16>, vector<38x16xf32> -> vector<38x16xf32>
    %438 = arith.addf %432, %437 : vector<38x16xf32>
    %439 = vector.extract_strided_slice %415 {offsets = [4, 0], sizes = [38, 16], strides = [1, 1]} : vector<48x16xf32> to vector<38x16xf32>
    %c4 = arith.constant 4 : index
    %c0_169 = arith.constant 0 : index
    %c0_170 = arith.constant 0 : index
    %440 = vector.load %arg18[%c4, %c0_169, %c0_170] : memref<33x16x16xbf16, #tpu.memory_space<vmem>>, vector<1x16x16xbf16>
    %441 = vector.shape_cast %440 : vector<1x16x16xbf16> to vector<16x16xbf16>
    %442 = arith.truncf %439 : vector<38x16xf32> to vector<38x16xbf16>
    %cst_171 = arith.constant dense<0.000000e+00> : vector<38x16xf32>
    %443 = tpu.matmul %442, %441, %cst_171 {dimension_numbers = #tpu.dot_dimension_numbers<[1], [0], [0], [1], [0, 0, 1, 1], [], []>} : vector<38x16xbf16>, vector<16x16xbf16>, vector<38x16xf32> -> vector<38x16xf32>
    %444 = arith.addf %438, %443 : vector<38x16xf32>
    %445 = vector.extract_strided_slice %415 {offsets = [5, 0], sizes = [38, 16], strides = [1, 1]} : vector<48x16xf32> to vector<38x16xf32>
    %c5 = arith.constant 5 : index
    %c0_172 = arith.constant 0 : index
    %c0_173 = arith.constant 0 : index
    %446 = vector.load %arg18[%c5, %c0_172, %c0_173] : memref<33x16x16xbf16, #tpu.memory_space<vmem>>, vector<1x16x16xbf16>
    %447 = vector.shape_cast %446 : vector<1x16x16xbf16> to vector<16x16xbf16>
    %448 = arith.truncf %445 : vector<38x16xf32> to vector<38x16xbf16>
    %cst_174 = arith.constant dense<0.000000e+00> : vector<38x16xf32>
    %449 = tpu.matmul %448, %447, %cst_174 {dimension_numbers = #tpu.dot_dimension_numbers<[1], [0], [0], [1], [0, 0, 1, 1], [], []>} : vector<38x16xbf16>, vector<16x16xbf16>, vector<38x16xf32> -> vector<38x16xf32>
    %450 = arith.addf %444, %449 : vector<38x16xf32>
    %451 = vector.extract_strided_slice %415 {offsets = [6, 0], sizes = [38, 16], strides = [1, 1]} : vector<48x16xf32> to vector<38x16xf32>
    %c6 = arith.constant 6 : index
    %c0_175 = arith.constant 0 : index
    %c0_176 = arith.constant 0 : index
    %452 = vector.load %arg18[%c6, %c0_175, %c0_176] : memref<33x16x16xbf16, #tpu.memory_space<vmem>>, vector<1x16x16xbf16>
    %453 = vector.shape_cast %452 : vector<1x16x16xbf16> to vector<16x16xbf16>
    %454 = arith.truncf %451 : vector<38x16xf32> to vector<38x16xbf16>
    %cst_177 = arith.constant dense<0.000000e+00> : vector<38x16xf32>
    %455 = tpu.matmul %454, %453, %cst_177 {dimension_numbers = #tpu.dot_dimension_numbers<[1], [0], [0], [1], [0, 0, 1, 1], [], []>} : vector<38x16xbf16>, vector<16x16xbf16>, vector<38x16xf32> -> vector<38x16xf32>
    %456 = arith.addf %450, %455 : vector<38x16xf32>
    %457 = vector.extract_strided_slice %415 {offsets = [7, 0], sizes = [38, 16], strides = [1, 1]} : vector<48x16xf32> to vector<38x16xf32>
    %c7 = arith.constant 7 : index
    %c0_178 = arith.constant 0 : index
    %c0_179 = arith.constant 0 : index
    %458 = vector.load %arg18[%c7, %c0_178, %c0_179] : memref<33x16x16xbf16, #tpu.memory_space<vmem>>, vector<1x16x16xbf16>
    %459 = vector.shape_cast %458 : vector<1x16x16xbf16> to vector<16x16xbf16>
    %460 = arith.truncf %457 : vector<38x16xf32> to vector<38x16xbf16>
    %cst_180 = arith.constant dense<0.000000e+00> : vector<38x16xf32>
    %461 = tpu.matmul %460, %459, %cst_180 {dimension_numbers = #tpu.dot_dimension_numbers<[1], [0], [0], [1], [0, 0, 1, 1], [], []>} : vector<38x16xbf16>, vector<16x16xbf16>, vector<38x16xf32> -> vector<38x16xf32>
    %462 = arith.addf %456, %461 : vector<38x16xf32>
    %463 = vector.extract_strided_slice %415 {offsets = [8, 0], sizes = [38, 16], strides = [1, 1]} : vector<48x16xf32> to vector<38x16xf32>
    %c8 = arith.constant 8 : index
    %c0_181 = arith.constant 0 : index
    %c0_182 = arith.constant 0 : index
    %464 = vector.load %arg18[%c8, %c0_181, %c0_182] : memref<33x16x16xbf16, #tpu.memory_space<vmem>>, vector<1x16x16xbf16>
    %465 = vector.shape_cast %464 : vector<1x16x16xbf16> to vector<16x16xbf16>
    %466 = arith.truncf %463 : vector<38x16xf32> to vector<38x16xbf16>
    %cst_183 = arith.constant dense<0.000000e+00> : vector<38x16xf32>
    %467 = tpu.matmul %466, %465, %cst_183 {dimension_numbers = #tpu.dot_dimension_numbers<[1], [0], [0], [1], [0, 0, 1, 1], [], []>} : vector<38x16xbf16>, vector<16x16xbf16>, vector<38x16xf32> -> vector<38x16xf32>
    %468 = arith.addf %462, %467 : vector<38x16xf32>
    %469 = vector.extract_strided_slice %415 {offsets = [9, 0], sizes = [38, 16], strides = [1, 1]} : vector<48x16xf32> to vector<38x16xf32>
    %c9 = arith.constant 9 : index
    %c0_184 = arith.constant 0 : index
    %c0_185 = arith.constant 0 : index
    %470 = vector.load %arg18[%c9, %c0_184, %c0_185] : memref<33x16x16xbf16, #tpu.memory_space<vmem>>, vector<1x16x16xbf16>
    %471 = vector.shape_cast %470 : vector<1x16x16xbf16> to vector<16x16xbf16>
    %472 = arith.truncf %469 : vector<38x16xf32> to vector<38x16xbf16>
    %cst_186 = arith.constant dense<0.000000e+00> : vector<38x16xf32>
    %473 = tpu.matmul %472, %471, %cst_186 {dimension_numbers = #tpu.dot_dimension_numbers<[1], [0], [0], [1], [0, 0, 1, 1], [], []>} : vector<38x16xbf16>, vector<16x16xbf16>, vector<38x16xf32> -> vector<38x16xf32>
    %474 = arith.addf %468, %473 : vector<38x16xf32>
    %475 = vector.extract_strided_slice %415 {offsets = [10, 0], sizes = [38, 16], strides = [1, 1]} : vector<48x16xf32> to vector<38x16xf32>
    %c10 = arith.constant 10 : index
    %c0_187 = arith.constant 0 : index
    %c0_188 = arith.constant 0 : index
    %476 = vector.load %arg18[%c10, %c0_187, %c0_188] : memref<33x16x16xbf16, #tpu.memory_space<vmem>>, vector<1x16x16xbf16>
    %477 = vector.shape_cast %476 : vector<1x16x16xbf16> to vector<16x16xbf16>
    %478 = arith.truncf %475 : vector<38x16xf32> to vector<38x16xbf16>
    %cst_189 = arith.constant dense<0.000000e+00> : vector<38x16xf32>
    %479 = tpu.matmul %478, %477, %cst_189 {dimension_numbers = #tpu.dot_dimension_numbers<[1], [0], [0], [1], [0, 0, 1, 1], [], []>} : vector<38x16xbf16>, vector<16x16xbf16>, vector<38x16xf32> -> vector<38x16xf32>
    %480 = arith.addf %474, %479 : vector<38x16xf32>
    %cst_190 = arith.constant 0.000000e+00 : f32
    %481 = vector.broadcast %cst_190 : f32 to vector<38x16xf32>
    %482 = arith.cmpf oge, %480, %481 : vector<38x16xf32>
    %cst_191 = arith.constant 0.00999999977 : f32
    %483 = vector.broadcast %cst_191 : f32 to vector<38x16xf32>
    %484 = arith.mulf %483, %480 : vector<38x16xf32>
    %485 = arith.select %482, %480, %484 : vector<38x16xi1>, vector<38x16xf32>
    %486 = vector.extract_strided_slice %485 {offsets = [0, 0], sizes = [28, 16], strides = [1, 1]} : vector<38x16xf32> to vector<28x16xf32>
    %c11 = arith.constant 11 : index
    %c0_192 = arith.constant 0 : index
    %c0_193 = arith.constant 0 : index
    %487 = vector.load %arg18[%c11, %c0_192, %c0_193] : memref<33x16x16xbf16, #tpu.memory_space<vmem>>, vector<1x16x16xbf16>
    %488 = vector.shape_cast %487 : vector<1x16x16xbf16> to vector<16x16xbf16>
    %489 = arith.truncf %486 : vector<28x16xf32> to vector<28x16xbf16>
    %cst_194 = arith.constant dense<0.000000e+00> : vector<28x16xf32>
    %490 = tpu.matmul %489, %488, %cst_194 {dimension_numbers = #tpu.dot_dimension_numbers<[1], [0], [0], [1], [0, 0, 1, 1], [], []>} : vector<28x16xbf16>, vector<16x16xbf16>, vector<28x16xf32> -> vector<28x16xf32>
    %491 = vector.extract_strided_slice %485 {offsets = [1, 0], sizes = [28, 16], strides = [1, 1]} : vector<38x16xf32> to vector<28x16xf32>
    %c12 = arith.constant 12 : index
    %c0_195 = arith.constant 0 : index
    %c0_196 = arith.constant 0 : index
    %492 = vector.load %arg18[%c12, %c0_195, %c0_196] : memref<33x16x16xbf16, #tpu.memory_space<vmem>>, vector<1x16x16xbf16>
    %493 = vector.shape_cast %492 : vector<1x16x16xbf16> to vector<16x16xbf16>
    %494 = arith.truncf %491 : vector<28x16xf32> to vector<28x16xbf16>
    %cst_197 = arith.constant dense<0.000000e+00> : vector<28x16xf32>
    %495 = tpu.matmul %494, %493, %cst_197 {dimension_numbers = #tpu.dot_dimension_numbers<[1], [0], [0], [1], [0, 0, 1, 1], [], []>} : vector<28x16xbf16>, vector<16x16xbf16>, vector<28x16xf32> -> vector<28x16xf32>
    %496 = arith.addf %490, %495 : vector<28x16xf32>
    %497 = vector.extract_strided_slice %485 {offsets = [2, 0], sizes = [28, 16], strides = [1, 1]} : vector<38x16xf32> to vector<28x16xf32>
    %c13 = arith.constant 13 : index
    %c0_198 = arith.constant 0 : index
    %c0_199 = arith.constant 0 : index
    %498 = vector.load %arg18[%c13, %c0_198, %c0_199] : memref<33x16x16xbf16, #tpu.memory_space<vmem>>, vector<1x16x16xbf16>
    %499 = vector.shape_cast %498 : vector<1x16x16xbf16> to vector<16x16xbf16>
    %500 = arith.truncf %497 : vector<28x16xf32> to vector<28x16xbf16>
    %cst_200 = arith.constant dense<0.000000e+00> : vector<28x16xf32>
    %501 = tpu.matmul %500, %499, %cst_200 {dimension_numbers = #tpu.dot_dimension_numbers<[1], [0], [0], [1], [0, 0, 1, 1], [], []>} : vector<28x16xbf16>, vector<16x16xbf16>, vector<28x16xf32> -> vector<28x16xf32>
    %502 = arith.addf %496, %501 : vector<28x16xf32>
    %503 = vector.extract_strided_slice %485 {offsets = [3, 0], sizes = [28, 16], strides = [1, 1]} : vector<38x16xf32> to vector<28x16xf32>
    %c14 = arith.constant 14 : index
    %c0_201 = arith.constant 0 : index
    %c0_202 = arith.constant 0 : index
    %504 = vector.load %arg18[%c14, %c0_201, %c0_202] : memref<33x16x16xbf16, #tpu.memory_space<vmem>>, vector<1x16x16xbf16>
    %505 = vector.shape_cast %504 : vector<1x16x16xbf16> to vector<16x16xbf16>
    %506 = arith.truncf %503 : vector<28x16xf32> to vector<28x16xbf16>
    %cst_203 = arith.constant dense<0.000000e+00> : vector<28x16xf32>
    %507 = tpu.matmul %506, %505, %cst_203 {dimension_numbers = #tpu.dot_dimension_numbers<[1], [0], [0], [1], [0, 0, 1, 1], [], []>} : vector<28x16xbf16>, vector<16x16xbf16>, vector<28x16xf32> -> vector<28x16xf32>
    %508 = arith.addf %502, %507 : vector<28x16xf32>
    %509 = vector.extract_strided_slice %485 {offsets = [4, 0], sizes = [28, 16], strides = [1, 1]} : vector<38x16xf32> to vector<28x16xf32>
    %c15 = arith.constant 15 : index
    %c0_204 = arith.constant 0 : index
    %c0_205 = arith.constant 0 : index
    %510 = vector.load %arg18[%c15, %c0_204, %c0_205] : memref<33x16x16xbf16, #tpu.memory_space<vmem>>, vector<1x16x16xbf16>
    %511 = vector.shape_cast %510 : vector<1x16x16xbf16> to vector<16x16xbf16>
    %512 = arith.truncf %509 : vector<28x16xf32> to vector<28x16xbf16>
    %cst_206 = arith.constant dense<0.000000e+00> : vector<28x16xf32>
    %513 = tpu.matmul %512, %511, %cst_206 {dimension_numbers = #tpu.dot_dimension_numbers<[1], [0], [0], [1], [0, 0, 1, 1], [], []>} : vector<28x16xbf16>, vector<16x16xbf16>, vector<28x16xf32> -> vector<28x16xf32>
    %514 = arith.addf %508, %513 : vector<28x16xf32>
    %515 = vector.extract_strided_slice %485 {offsets = [5, 0], sizes = [28, 16], strides = [1, 1]} : vector<38x16xf32> to vector<28x16xf32>
    %c16 = arith.constant 16 : index
    %c0_207 = arith.constant 0 : index
    %c0_208 = arith.constant 0 : index
    %516 = vector.load %arg18[%c16, %c0_207, %c0_208] : memref<33x16x16xbf16, #tpu.memory_space<vmem>>, vector<1x16x16xbf16>
    %517 = vector.shape_cast %516 : vector<1x16x16xbf16> to vector<16x16xbf16>
    %518 = arith.truncf %515 : vector<28x16xf32> to vector<28x16xbf16>
    %cst_209 = arith.constant dense<0.000000e+00> : vector<28x16xf32>
    %519 = tpu.matmul %518, %517, %cst_209 {dimension_numbers = #tpu.dot_dimension_numbers<[1], [0], [0], [1], [0, 0, 1, 1], [], []>} : vector<28x16xbf16>, vector<16x16xbf16>, vector<28x16xf32> -> vector<28x16xf32>
    %520 = arith.addf %514, %519 : vector<28x16xf32>
    %521 = vector.extract_strided_slice %485 {offsets = [6, 0], sizes = [28, 16], strides = [1, 1]} : vector<38x16xf32> to vector<28x16xf32>
    %c17 = arith.constant 17 : index
    %c0_210 = arith.constant 0 : index
    %c0_211 = arith.constant 0 : index
    %522 = vector.load %arg18[%c17, %c0_210, %c0_211] : memref<33x16x16xbf16, #tpu.memory_space<vmem>>, vector<1x16x16xbf16>
    %523 = vector.shape_cast %522 : vector<1x16x16xbf16> to vector<16x16xbf16>
    %524 = arith.truncf %521 : vector<28x16xf32> to vector<28x16xbf16>
    %cst_212 = arith.constant dense<0.000000e+00> : vector<28x16xf32>
    %525 = tpu.matmul %524, %523, %cst_212 {dimension_numbers = #tpu.dot_dimension_numbers<[1], [0], [0], [1], [0, 0, 1, 1], [], []>} : vector<28x16xbf16>, vector<16x16xbf16>, vector<28x16xf32> -> vector<28x16xf32>
    %526 = arith.addf %520, %525 : vector<28x16xf32>
    %527 = vector.extract_strided_slice %485 {offsets = [7, 0], sizes = [28, 16], strides = [1, 1]} : vector<38x16xf32> to vector<28x16xf32>
    %c18 = arith.constant 18 : index
    %c0_213 = arith.constant 0 : index
    %c0_214 = arith.constant 0 : index
    %528 = vector.load %arg18[%c18, %c0_213, %c0_214] : memref<33x16x16xbf16, #tpu.memory_space<vmem>>, vector<1x16x16xbf16>
    %529 = vector.shape_cast %528 : vector<1x16x16xbf16> to vector<16x16xbf16>
    %530 = arith.truncf %527 : vector<28x16xf32> to vector<28x16xbf16>
    %cst_215 = arith.constant dense<0.000000e+00> : vector<28x16xf32>
    %531 = tpu.matmul %530, %529, %cst_215 {dimension_numbers = #tpu.dot_dimension_numbers<[1], [0], [0], [1], [0, 0, 1, 1], [], []>} : vector<28x16xbf16>, vector<16x16xbf16>, vector<28x16xf32> -> vector<28x16xf32>
    %532 = arith.addf %526, %531 : vector<28x16xf32>
    %533 = vector.extract_strided_slice %485 {offsets = [8, 0], sizes = [28, 16], strides = [1, 1]} : vector<38x16xf32> to vector<28x16xf32>
    %c19 = arith.constant 19 : index
    %c0_216 = arith.constant 0 : index
    %c0_217 = arith.constant 0 : index
    %534 = vector.load %arg18[%c19, %c0_216, %c0_217] : memref<33x16x16xbf16, #tpu.memory_space<vmem>>, vector<1x16x16xbf16>
    %535 = vector.shape_cast %534 : vector<1x16x16xbf16> to vector<16x16xbf16>
    %536 = arith.truncf %533 : vector<28x16xf32> to vector<28x16xbf16>
    %cst_218 = arith.constant dense<0.000000e+00> : vector<28x16xf32>
    %537 = tpu.matmul %536, %535, %cst_218 {dimension_numbers = #tpu.dot_dimension_numbers<[1], [0], [0], [1], [0, 0, 1, 1], [], []>} : vector<28x16xbf16>, vector<16x16xbf16>, vector<28x16xf32> -> vector<28x16xf32>
    %538 = arith.addf %532, %537 : vector<28x16xf32>
    %539 = vector.extract_strided_slice %485 {offsets = [9, 0], sizes = [28, 16], strides = [1, 1]} : vector<38x16xf32> to vector<28x16xf32>
    %c20 = arith.constant 20 : index
    %c0_219 = arith.constant 0 : index
    %c0_220 = arith.constant 0 : index
    %540 = vector.load %arg18[%c20, %c0_219, %c0_220] : memref<33x16x16xbf16, #tpu.memory_space<vmem>>, vector<1x16x16xbf16>
    %541 = vector.shape_cast %540 : vector<1x16x16xbf16> to vector<16x16xbf16>
    %542 = arith.truncf %539 : vector<28x16xf32> to vector<28x16xbf16>
    %cst_221 = arith.constant dense<0.000000e+00> : vector<28x16xf32>
    %543 = tpu.matmul %542, %541, %cst_221 {dimension_numbers = #tpu.dot_dimension_numbers<[1], [0], [0], [1], [0, 0, 1, 1], [], []>} : vector<28x16xbf16>, vector<16x16xbf16>, vector<28x16xf32> -> vector<28x16xf32>
    %544 = arith.addf %538, %543 : vector<28x16xf32>
    %545 = vector.extract_strided_slice %485 {offsets = [10, 0], sizes = [28, 16], strides = [1, 1]} : vector<38x16xf32> to vector<28x16xf32>
    %c21 = arith.constant 21 : index
    %c0_222 = arith.constant 0 : index
    %c0_223 = arith.constant 0 : index
    %546 = vector.load %arg18[%c21, %c0_222, %c0_223] : memref<33x16x16xbf16, #tpu.memory_space<vmem>>, vector<1x16x16xbf16>
    %547 = vector.shape_cast %546 : vector<1x16x16xbf16> to vector<16x16xbf16>
    %548 = arith.truncf %545 : vector<28x16xf32> to vector<28x16xbf16>
    %cst_224 = arith.constant dense<0.000000e+00> : vector<28x16xf32>
    %549 = tpu.matmul %548, %547, %cst_224 {dimension_numbers = #tpu.dot_dimension_numbers<[1], [0], [0], [1], [0, 0, 1, 1], [], []>} : vector<28x16xbf16>, vector<16x16xbf16>, vector<28x16xf32> -> vector<28x16xf32>
    %550 = arith.addf %544, %549 : vector<28x16xf32>
    %cst_225 = arith.constant 0.000000e+00 : f32
    %551 = vector.broadcast %cst_225 : f32 to vector<28x16xf32>
    %552 = arith.cmpf oge, %550, %551 : vector<28x16xf32>
    %cst_226 = arith.constant 0.00999999977 : f32
    %553 = vector.broadcast %cst_226 : f32 to vector<28x16xf32>
    %554 = arith.mulf %553, %550 : vector<28x16xf32>
    %555 = arith.select %552, %550, %554 : vector<28x16xi1>, vector<28x16xf32>
    %556 = vector.extract_strided_slice %555 {offsets = [0, 0], sizes = [18, 16], strides = [1, 1]} : vector<28x16xf32> to vector<18x16xf32>
    %c22 = arith.constant 22 : index
    %c0_227 = arith.constant 0 : index
    %c0_228 = arith.constant 0 : index
    %557 = vector.load %arg18[%c22, %c0_227, %c0_228] : memref<33x16x16xbf16, #tpu.memory_space<vmem>>, vector<1x16x16xbf16>
    %558 = vector.shape_cast %557 : vector<1x16x16xbf16> to vector<16x16xbf16>
    %559 = arith.truncf %556 : vector<18x16xf32> to vector<18x16xbf16>
    %cst_229 = arith.constant dense<0.000000e+00> : vector<18x16xf32>
    %560 = tpu.matmul %559, %558, %cst_229 {dimension_numbers = #tpu.dot_dimension_numbers<[1], [0], [0], [1], [0, 0, 1, 1], [], []>} : vector<18x16xbf16>, vector<16x16xbf16>, vector<18x16xf32> -> vector<18x16xf32>
    %561 = vector.extract_strided_slice %555 {offsets = [1, 0], sizes = [18, 16], strides = [1, 1]} : vector<28x16xf32> to vector<18x16xf32>
    %c23 = arith.constant 23 : index
    %c0_230 = arith.constant 0 : index
    %c0_231 = arith.constant 0 : index
    %562 = vector.load %arg18[%c23, %c0_230, %c0_231] : memref<33x16x16xbf16, #tpu.memory_space<vmem>>, vector<1x16x16xbf16>
    %563 = vector.shape_cast %562 : vector<1x16x16xbf16> to vector<16x16xbf16>
    %564 = arith.truncf %561 : vector<18x16xf32> to vector<18x16xbf16>
    %cst_232 = arith.constant dense<0.000000e+00> : vector<18x16xf32>
    %565 = tpu.matmul %564, %563, %cst_232 {dimension_numbers = #tpu.dot_dimension_numbers<[1], [0], [0], [1], [0, 0, 1, 1], [], []>} : vector<18x16xbf16>, vector<16x16xbf16>, vector<18x16xf32> -> vector<18x16xf32>
    %566 = arith.addf %560, %565 : vector<18x16xf32>
    %567 = vector.extract_strided_slice %555 {offsets = [2, 0], sizes = [18, 16], strides = [1, 1]} : vector<28x16xf32> to vector<18x16xf32>
    %c24 = arith.constant 24 : index
    %c0_233 = arith.constant 0 : index
    %c0_234 = arith.constant 0 : index
    %568 = vector.load %arg18[%c24, %c0_233, %c0_234] : memref<33x16x16xbf16, #tpu.memory_space<vmem>>, vector<1x16x16xbf16>
    %569 = vector.shape_cast %568 : vector<1x16x16xbf16> to vector<16x16xbf16>
    %570 = arith.truncf %567 : vector<18x16xf32> to vector<18x16xbf16>
    %cst_235 = arith.constant dense<0.000000e+00> : vector<18x16xf32>
    %571 = tpu.matmul %570, %569, %cst_235 {dimension_numbers = #tpu.dot_dimension_numbers<[1], [0], [0], [1], [0, 0, 1, 1], [], []>} : vector<18x16xbf16>, vector<16x16xbf16>, vector<18x16xf32> -> vector<18x16xf32>
    %572 = arith.addf %566, %571 : vector<18x16xf32>
    %573 = vector.extract_strided_slice %555 {offsets = [3, 0], sizes = [18, 16], strides = [1, 1]} : vector<28x16xf32> to vector<18x16xf32>
    %c25 = arith.constant 25 : index
    %c0_236 = arith.constant 0 : index
    %c0_237 = arith.constant 0 : index
    %574 = vector.load %arg18[%c25, %c0_236, %c0_237] : memref<33x16x16xbf16, #tpu.memory_space<vmem>>, vector<1x16x16xbf16>
    %575 = vector.shape_cast %574 : vector<1x16x16xbf16> to vector<16x16xbf16>
    %576 = arith.truncf %573 : vector<18x16xf32> to vector<18x16xbf16>
    %cst_238 = arith.constant dense<0.000000e+00> : vector<18x16xf32>
    %577 = tpu.matmul %576, %575, %cst_238 {dimension_numbers = #tpu.dot_dimension_numbers<[1], [0], [0], [1], [0, 0, 1, 1], [], []>} : vector<18x16xbf16>, vector<16x16xbf16>, vector<18x16xf32> -> vector<18x16xf32>
    %578 = arith.addf %572, %577 : vector<18x16xf32>
    %579 = vector.extract_strided_slice %555 {offsets = [4, 0], sizes = [18, 16], strides = [1, 1]} : vector<28x16xf32> to vector<18x16xf32>
    %c26 = arith.constant 26 : index
    %c0_239 = arith.constant 0 : index
    %c0_240 = arith.constant 0 : index
    %580 = vector.load %arg18[%c26, %c0_239, %c0_240] : memref<33x16x16xbf16, #tpu.memory_space<vmem>>, vector<1x16x16xbf16>
    %581 = vector.shape_cast %580 : vector<1x16x16xbf16> to vector<16x16xbf16>
    %582 = arith.truncf %579 : vector<18x16xf32> to vector<18x16xbf16>
    %cst_241 = arith.constant dense<0.000000e+00> : vector<18x16xf32>
    %583 = tpu.matmul %582, %581, %cst_241 {dimension_numbers = #tpu.dot_dimension_numbers<[1], [0], [0], [1], [0, 0, 1, 1], [], []>} : vector<18x16xbf16>, vector<16x16xbf16>, vector<18x16xf32> -> vector<18x16xf32>
    %584 = arith.addf %578, %583 : vector<18x16xf32>
    %585 = vector.extract_strided_slice %555 {offsets = [5, 0], sizes = [18, 16], strides = [1, 1]} : vector<28x16xf32> to vector<18x16xf32>
    %c27 = arith.constant 27 : index
    %c0_242 = arith.constant 0 : index
    %c0_243 = arith.constant 0 : index
    %586 = vector.load %arg18[%c27, %c0_242, %c0_243] : memref<33x16x16xbf16, #tpu.memory_space<vmem>>, vector<1x16x16xbf16>
    %587 = vector.shape_cast %586 : vector<1x16x16xbf16> to vector<16x16xbf16>
    %588 = arith.truncf %585 : vector<18x16xf32> to vector<18x16xbf16>
    %cst_244 = arith.constant dense<0.000000e+00> : vector<18x16xf32>
    %589 = tpu.matmul %588, %587, %cst_244 {dimension_numbers = #tpu.dot_dimension_numbers<[1], [0], [0], [1], [0, 0, 1, 1], [], []>} : vector<18x16xbf16>, vector<16x16xbf16>, vector<18x16xf32> -> vector<18x16xf32>
    %590 = arith.addf %584, %589 : vector<18x16xf32>
    %591 = vector.extract_strided_slice %555 {offsets = [6, 0], sizes = [18, 16], strides = [1, 1]} : vector<28x16xf32> to vector<18x16xf32>
    %c28 = arith.constant 28 : index
    %c0_245 = arith.constant 0 : index
    %c0_246 = arith.constant 0 : index
    %592 = vector.load %arg18[%c28, %c0_245, %c0_246] : memref<33x16x16xbf16, #tpu.memory_space<vmem>>, vector<1x16x16xbf16>
    %593 = vector.shape_cast %592 : vector<1x16x16xbf16> to vector<16x16xbf16>
    %594 = arith.truncf %591 : vector<18x16xf32> to vector<18x16xbf16>
    %cst_247 = arith.constant dense<0.000000e+00> : vector<18x16xf32>
    %595 = tpu.matmul %594, %593, %cst_247 {dimension_numbers = #tpu.dot_dimension_numbers<[1], [0], [0], [1], [0, 0, 1, 1], [], []>} : vector<18x16xbf16>, vector<16x16xbf16>, vector<18x16xf32> -> vector<18x16xf32>
    %596 = arith.addf %590, %595 : vector<18x16xf32>
    %597 = vector.extract_strided_slice %555 {offsets = [7, 0], sizes = [18, 16], strides = [1, 1]} : vector<28x16xf32> to vector<18x16xf32>
    %c29 = arith.constant 29 : index
    %c0_248 = arith.constant 0 : index
    %c0_249 = arith.constant 0 : index
    %598 = vector.load %arg18[%c29, %c0_248, %c0_249] : memref<33x16x16xbf16, #tpu.memory_space<vmem>>, vector<1x16x16xbf16>
    %599 = vector.shape_cast %598 : vector<1x16x16xbf16> to vector<16x16xbf16>
    %600 = arith.truncf %597 : vector<18x16xf32> to vector<18x16xbf16>
    %cst_250 = arith.constant dense<0.000000e+00> : vector<18x16xf32>
    %601 = tpu.matmul %600, %599, %cst_250 {dimension_numbers = #tpu.dot_dimension_numbers<[1], [0], [0], [1], [0, 0, 1, 1], [], []>} : vector<18x16xbf16>, vector<16x16xbf16>, vector<18x16xf32> -> vector<18x16xf32>
    %602 = arith.addf %596, %601 : vector<18x16xf32>
    %603 = vector.extract_strided_slice %555 {offsets = [8, 0], sizes = [18, 16], strides = [1, 1]} : vector<28x16xf32> to vector<18x16xf32>
    %c30 = arith.constant 30 : index
    %c0_251 = arith.constant 0 : index
    %c0_252 = arith.constant 0 : index
    %604 = vector.load %arg18[%c30, %c0_251, %c0_252] : memref<33x16x16xbf16, #tpu.memory_space<vmem>>, vector<1x16x16xbf16>
    %605 = vector.shape_cast %604 : vector<1x16x16xbf16> to vector<16x16xbf16>
    %606 = arith.truncf %603 : vector<18x16xf32> to vector<18x16xbf16>
    %cst_253 = arith.constant dense<0.000000e+00> : vector<18x16xf32>
    %607 = tpu.matmul %606, %605, %cst_253 {dimension_numbers = #tpu.dot_dimension_numbers<[1], [0], [0], [1], [0, 0, 1, 1], [], []>} : vector<18x16xbf16>, vector<16x16xbf16>, vector<18x16xf32> -> vector<18x16xf32>
    %608 = arith.addf %602, %607 : vector<18x16xf32>
    %609 = vector.extract_strided_slice %555 {offsets = [9, 0], sizes = [18, 16], strides = [1, 1]} : vector<28x16xf32> to vector<18x16xf32>
    %c31 = arith.constant 31 : index
    %c0_254 = arith.constant 0 : index
    %c0_255 = arith.constant 0 : index
    %610 = vector.load %arg18[%c31, %c0_254, %c0_255] : memref<33x16x16xbf16, #tpu.memory_space<vmem>>, vector<1x16x16xbf16>
    %611 = vector.shape_cast %610 : vector<1x16x16xbf16> to vector<16x16xbf16>
    %612 = arith.truncf %609 : vector<18x16xf32> to vector<18x16xbf16>
    %cst_256 = arith.constant dense<0.000000e+00> : vector<18x16xf32>
    %613 = tpu.matmul %612, %611, %cst_256 {dimension_numbers = #tpu.dot_dimension_numbers<[1], [0], [0], [1], [0, 0, 1, 1], [], []>} : vector<18x16xbf16>, vector<16x16xbf16>, vector<18x16xf32> -> vector<18x16xf32>
    %614 = arith.addf %608, %613 : vector<18x16xf32>
    %615 = vector.extract_strided_slice %555 {offsets = [10, 0], sizes = [18, 16], strides = [1, 1]} : vector<28x16xf32> to vector<18x16xf32>
    %c32 = arith.constant 32 : index
    %c0_257 = arith.constant 0 : index
    %c0_258 = arith.constant 0 : index
    %616 = vector.load %arg18[%c32, %c0_257, %c0_258] : memref<33x16x16xbf16, #tpu.memory_space<vmem>>, vector<1x16x16xbf16>
    %617 = vector.shape_cast %616 : vector<1x16x16xbf16> to vector<16x16xbf16>
    %618 = arith.truncf %615 : vector<18x16xf32> to vector<18x16xbf16>
    %cst_259 = arith.constant dense<0.000000e+00> : vector<18x16xf32>
    %619 = tpu.matmul %618, %617, %cst_259 {dimension_numbers = #tpu.dot_dimension_numbers<[1], [0], [0], [1], [0, 0, 1, 1], [], []>} : vector<18x16xbf16>, vector<16x16xbf16>, vector<18x16xf32> -> vector<18x16xf32>
    %620 = arith.addf %614, %619 : vector<18x16xf32>
    %cst_260 = arith.constant 0.000000e+00 : f32
    %621 = vector.broadcast %cst_260 : f32 to vector<18x16xf32>
    %622 = arith.cmpf oge, %620, %621 : vector<18x16xf32>
    %cst_261 = arith.constant 0.00999999977 : f32
    %623 = vector.broadcast %cst_261 : f32 to vector<18x16xf32>
    %624 = arith.mulf %623, %620 : vector<18x16xf32>
    %625 = arith.select %622, %620, %624 : vector<18x16xi1>, vector<18x16xf32>
    %626 = vector.extract_strided_slice %415 {offsets = [30, 0], sizes = [18, 16], strides = [1, 1]} : vector<48x16xf32> to vector<18x16xf32>
    %627 = arith.addf %625, %626 : vector<18x16xf32>
    %628 = vector.extract_strided_slice %1 {offsets = [38, 0], sizes = [10, 16], strides = [1, 1]} : vector<48x16xf32> to vector<10x16xf32>
    %629 = vector.extract_strided_slice %1 {offsets = [47, 0], sizes = [1, 16], strides = [1, 1]} : vector<48x16xf32> to vector<1x16xf32>
    %c0_262 = arith.constant 0 : index
    %c0_263 = arith.constant 0 : index
    %630 = vector.load %arg19[%c0_262, %c0_263] : memref<10x10xbf16, #tpu.memory_space<vmem>>, vector<10x10xbf16>
    %631 = arith.truncf %628 : vector<10x16xf32> to vector<10x16xbf16>
    %cst_264 = arith.constant dense<0.000000e+00> : vector<10x16xf32>
    %632 = tpu.matmul %630, %631, %cst_264 {dimension_numbers = #tpu.dot_dimension_numbers<[1], [0], [0], [1], [0, 0, 1, 1], [], []>} : vector<10x10xbf16>, vector<10x16xbf16>, vector<10x16xf32> -> vector<10x16xf32>
    %c0_265 = arith.constant 0 : index
    %c0_266 = arith.constant 0 : index
    %633 = vector.load %arg20[%c0_265, %c0_266] : memref<10x1xf32, #tpu.memory_space<vmem>>, vector<10x1xf32>
    %634 = vector.broadcast %633 : vector<10x1xf32> to vector<10x16xf32>
    %635 = vector.broadcast %629 : vector<1x16xf32> to vector<10x16xf32>
    %636 = arith.mulf %634, %635 : vector<10x16xf32>
    %637 = arith.addf %632, %636 : vector<10x16xf32>
    %c0_267 = arith.constant 0 : index
    %c0_268 = arith.constant 0 : index
    %638 = vector.load %arg21[%c0_267, %c0_268] : memref<10x18xbf16, #tpu.memory_space<vmem>>, vector<10x18xbf16>
    %639 = arith.truncf %627 : vector<18x16xf32> to vector<18x16xbf16>
    %cst_269 = arith.constant dense<0.000000e+00> : vector<10x16xf32>
    %640 = tpu.matmul %638, %639, %cst_269 {dimension_numbers = #tpu.dot_dimension_numbers<[1], [0], [0], [1], [0, 0, 1, 1], [], []>} : vector<10x18xbf16>, vector<18x16xbf16>, vector<10x16xf32> -> vector<10x16xf32>
    %641 = arith.addf %640, %637 : vector<10x16xf32>
    %642 = tpu.concatenate %637, %641 in 0 : vector<10x16xf32>, vector<10x16xf32> -> vector<20x16xf32>
    %c0_270 = arith.constant 0 : index
    %c0_271 = arith.constant 0 : index
    %643 = vector.load %arg23[%c0_270, %c0_271] : memref<32x20xbf16, #tpu.memory_space<vmem>>, vector<32x20xbf16>
    %c0_272 = arith.constant 0 : index
    %c0_273 = arith.constant 0 : index
    %644 = vector.load %arg24[%c0_272, %c0_273] : memref<16x16xbf16, #tpu.memory_space<vmem>>, vector<16x16xbf16>
    %c0_274 = arith.constant 0 : index
    %c0_275 = arith.constant 0 : index
    %645 = vector.load %arg25[%c0_274, %c0_275] : memref<32x1xf32, #tpu.memory_space<vmem>>, vector<32x1xf32>
    %646 = arith.truncf %642 : vector<20x16xf32> to vector<20x16xbf16>
    %cst_276 = arith.constant dense<0.000000e+00> : vector<32x16xf32>
    %647 = tpu.matmul %643, %646, %cst_276 {dimension_numbers = #tpu.dot_dimension_numbers<[1], [0], [0], [1], [0, 0, 1, 1], [], []>} : vector<32x20xbf16>, vector<20x16xbf16>, vector<32x16xf32> -> vector<32x16xf32>
    %648 = arith.truncf %647 : vector<32x16xf32> to vector<32x16xbf16>
    %cst_277 = arith.constant dense<0.000000e+00> : vector<32x16xf32>
    %649 = tpu.matmul %648, %644, %cst_277 {dimension_numbers = #tpu.dot_dimension_numbers<[1], [0], [0], [1], [0, 0, 1, 1], [], []>} : vector<32x16xbf16>, vector<16x16xbf16>, vector<32x16xf32> -> vector<32x16xf32>
    %650 = vector.broadcast %645 : vector<32x1xf32> to vector<32x16xf32>
    %651 = arith.addf %649, %650 : vector<32x16xf32>
    %c0_278 = arith.constant 0 : index
    %c0_279 = arith.constant 0 : index
    %652 = vector.load %arg26[%c0_278, %c0_279] : memref<32x16xf32, #tpu.memory_space<vmem>>, vector<32x16xf32>
    %653 = arith.mulf %651, %652 : vector<32x16xf32>
    %c0_280 = arith.constant 0 : index
    %c0_281 = arith.constant 0 : index
    %654 = vector.load %arg27[%c0_280, %c0_281] : memref<32x16xf32, #tpu.memory_space<vmem>>, vector<32x16xf32>
    %655 = arith.addf %653, %654 : vector<32x16xf32>
    %656 = math.tanh %655 : vector<32x16xf32>
    %c0_282 = arith.constant 0 : index
    %c0_283 = arith.constant 0 : index
    %c0_284 = arith.constant 0 : index
    %657 = vector.load %arg28[%c0_282, %c0_283, %c0_284] : memref<4x32x32xbf16, #tpu.memory_space<vmem>>, vector<1x32x32xbf16>
    %658 = vector.shape_cast %657 : vector<1x32x32xbf16> to vector<32x32xbf16>
    %c0_285 = arith.constant 0 : index
    %c0_286 = arith.constant 0 : index
    %c0_287 = arith.constant 0 : index
    %659 = vector.load %arg29[%c0_285, %c0_286, %c0_287] : memref<4x16x16xbf16, #tpu.memory_space<vmem>>, vector<1x16x16xbf16>
    %660 = vector.shape_cast %659 : vector<1x16x16xbf16> to vector<16x16xbf16>
    %c0_288 = arith.constant 0 : index
    %c0_289 = arith.constant 0 : index
    %c0_290 = arith.constant 0 : index
    %661 = vector.load %arg30[%c0_288, %c0_289, %c0_290] : memref<4x32x1xf32, #tpu.memory_space<vmem>>, vector<1x32x1xf32>
    %662 = vector.shape_cast %661 : vector<1x32x1xf32> to vector<32x1xf32>
    %663 = arith.truncf %656 : vector<32x16xf32> to vector<32x16xbf16>
    %cst_291 = arith.constant dense<0.000000e+00> : vector<32x16xf32>
    %664 = tpu.matmul %658, %663, %cst_291 {dimension_numbers = #tpu.dot_dimension_numbers<[1], [0], [0], [1], [0, 0, 1, 1], [], []>} : vector<32x32xbf16>, vector<32x16xbf16>, vector<32x16xf32> -> vector<32x16xf32>
    %665 = arith.truncf %664 : vector<32x16xf32> to vector<32x16xbf16>
    %cst_292 = arith.constant dense<0.000000e+00> : vector<32x16xf32>
    %666 = tpu.matmul %665, %660, %cst_292 {dimension_numbers = #tpu.dot_dimension_numbers<[1], [0], [0], [1], [0, 0, 1, 1], [], []>} : vector<32x16xbf16>, vector<16x16xbf16>, vector<32x16xf32> -> vector<32x16xf32>
    %667 = vector.broadcast %662 : vector<32x1xf32> to vector<32x16xf32>
    %668 = arith.addf %666, %667 : vector<32x16xf32>
    %c0_293 = arith.constant 0 : index
    %c0_294 = arith.constant 0 : index
    %c0_295 = arith.constant 0 : index
    %669 = vector.load %arg31[%c0_293, %c0_294, %c0_295] : memref<4x32x16xf32, #tpu.memory_space<vmem>>, vector<1x32x16xf32>
    %670 = vector.shape_cast %669 : vector<1x32x16xf32> to vector<32x16xf32>
    %671 = arith.mulf %668, %670 : vector<32x16xf32>
    %c0_296 = arith.constant 0 : index
    %c0_297 = arith.constant 0 : index
    %c0_298 = arith.constant 0 : index
    %672 = vector.load %arg32[%c0_296, %c0_297, %c0_298] : memref<4x32x16xf32, #tpu.memory_space<vmem>>, vector<1x32x16xf32>
    %673 = vector.shape_cast %672 : vector<1x32x16xf32> to vector<32x16xf32>
    %674 = arith.addf %671, %673 : vector<32x16xf32>
    %675 = math.tanh %674 : vector<32x16xf32>
    %c1_299 = arith.constant 1 : index
    %c0_300 = arith.constant 0 : index
    %c0_301 = arith.constant 0 : index
    %676 = vector.load %arg28[%c1_299, %c0_300, %c0_301] : memref<4x32x32xbf16, #tpu.memory_space<vmem>>, vector<1x32x32xbf16>
    %677 = vector.shape_cast %676 : vector<1x32x32xbf16> to vector<32x32xbf16>
    %c1_302 = arith.constant 1 : index
    %c0_303 = arith.constant 0 : index
    %c0_304 = arith.constant 0 : index
    %678 = vector.load %arg29[%c1_302, %c0_303, %c0_304] : memref<4x16x16xbf16, #tpu.memory_space<vmem>>, vector<1x16x16xbf16>
    %679 = vector.shape_cast %678 : vector<1x16x16xbf16> to vector<16x16xbf16>
    %c1_305 = arith.constant 1 : index
    %c0_306 = arith.constant 0 : index
    %c0_307 = arith.constant 0 : index
    %680 = vector.load %arg30[%c1_305, %c0_306, %c0_307] : memref<4x32x1xf32, #tpu.memory_space<vmem>>, vector<1x32x1xf32>
    %681 = vector.shape_cast %680 : vector<1x32x1xf32> to vector<32x1xf32>
    %682 = arith.truncf %675 : vector<32x16xf32> to vector<32x16xbf16>
    %cst_308 = arith.constant dense<0.000000e+00> : vector<32x16xf32>
    %683 = tpu.matmul %677, %682, %cst_308 {dimension_numbers = #tpu.dot_dimension_numbers<[1], [0], [0], [1], [0, 0, 1, 1], [], []>} : vector<32x32xbf16>, vector<32x16xbf16>, vector<32x16xf32> -> vector<32x16xf32>
    %684 = arith.truncf %683 : vector<32x16xf32> to vector<32x16xbf16>
    %cst_309 = arith.constant dense<0.000000e+00> : vector<32x16xf32>
    %685 = tpu.matmul %684, %679, %cst_309 {dimension_numbers = #tpu.dot_dimension_numbers<[1], [0], [0], [1], [0, 0, 1, 1], [], []>} : vector<32x16xbf16>, vector<16x16xbf16>, vector<32x16xf32> -> vector<32x16xf32>
    %686 = vector.broadcast %681 : vector<32x1xf32> to vector<32x16xf32>
    %687 = arith.addf %685, %686 : vector<32x16xf32>
    %c1_310 = arith.constant 1 : index
    %c0_311 = arith.constant 0 : index
    %c0_312 = arith.constant 0 : index
    %688 = vector.load %arg31[%c1_310, %c0_311, %c0_312] : memref<4x32x16xf32, #tpu.memory_space<vmem>>, vector<1x32x16xf32>
    %689 = vector.shape_cast %688 : vector<1x32x16xf32> to vector<32x16xf32>
    %690 = arith.mulf %687, %689 : vector<32x16xf32>
    %c1_313 = arith.constant 1 : index
    %c0_314 = arith.constant 0 : index
    %c0_315 = arith.constant 0 : index
    %691 = vector.load %arg32[%c1_313, %c0_314, %c0_315] : memref<4x32x16xf32, #tpu.memory_space<vmem>>, vector<1x32x16xf32>
    %692 = vector.shape_cast %691 : vector<1x32x16xf32> to vector<32x16xf32>
    %693 = arith.addf %690, %692 : vector<32x16xf32>
    %694 = math.tanh %693 : vector<32x16xf32>
    %695 = arith.addf %694, %656 : vector<32x16xf32>
    %c2_316 = arith.constant 2 : index
    %c0_317 = arith.constant 0 : index
    %c0_318 = arith.constant 0 : index
    %696 = vector.load %arg28[%c2_316, %c0_317, %c0_318] : memref<4x32x32xbf16, #tpu.memory_space<vmem>>, vector<1x32x32xbf16>
    %697 = vector.shape_cast %696 : vector<1x32x32xbf16> to vector<32x32xbf16>
    %c2_319 = arith.constant 2 : index
    %c0_320 = arith.constant 0 : index
    %c0_321 = arith.constant 0 : index
    %698 = vector.load %arg29[%c2_319, %c0_320, %c0_321] : memref<4x16x16xbf16, #tpu.memory_space<vmem>>, vector<1x16x16xbf16>
    %699 = vector.shape_cast %698 : vector<1x16x16xbf16> to vector<16x16xbf16>
    %c2_322 = arith.constant 2 : index
    %c0_323 = arith.constant 0 : index
    %c0_324 = arith.constant 0 : index
    %700 = vector.load %arg30[%c2_322, %c0_323, %c0_324] : memref<4x32x1xf32, #tpu.memory_space<vmem>>, vector<1x32x1xf32>
    %701 = vector.shape_cast %700 : vector<1x32x1xf32> to vector<32x1xf32>
    %702 = arith.truncf %695 : vector<32x16xf32> to vector<32x16xbf16>
    %cst_325 = arith.constant dense<0.000000e+00> : vector<32x16xf32>
    %703 = tpu.matmul %697, %702, %cst_325 {dimension_numbers = #tpu.dot_dimension_numbers<[1], [0], [0], [1], [0, 0, 1, 1], [], []>} : vector<32x32xbf16>, vector<32x16xbf16>, vector<32x16xf32> -> vector<32x16xf32>
    %704 = arith.truncf %703 : vector<32x16xf32> to vector<32x16xbf16>
    %cst_326 = arith.constant dense<0.000000e+00> : vector<32x16xf32>
    %705 = tpu.matmul %704, %699, %cst_326 {dimension_numbers = #tpu.dot_dimension_numbers<[1], [0], [0], [1], [0, 0, 1, 1], [], []>} : vector<32x16xbf16>, vector<16x16xbf16>, vector<32x16xf32> -> vector<32x16xf32>
    %706 = vector.broadcast %701 : vector<32x1xf32> to vector<32x16xf32>
    %707 = arith.addf %705, %706 : vector<32x16xf32>
    %c2_327 = arith.constant 2 : index
    %c0_328 = arith.constant 0 : index
    %c0_329 = arith.constant 0 : index
    %708 = vector.load %arg31[%c2_327, %c0_328, %c0_329] : memref<4x32x16xf32, #tpu.memory_space<vmem>>, vector<1x32x16xf32>
    %709 = vector.shape_cast %708 : vector<1x32x16xf32> to vector<32x16xf32>
    %710 = arith.mulf %707, %709 : vector<32x16xf32>
    %c2_330 = arith.constant 2 : index
    %c0_331 = arith.constant 0 : index
    %c0_332 = arith.constant 0 : index
    %711 = vector.load %arg32[%c2_330, %c0_331, %c0_332] : memref<4x32x16xf32, #tpu.memory_space<vmem>>, vector<1x32x16xf32>
    %712 = vector.shape_cast %711 : vector<1x32x16xf32> to vector<32x16xf32>
    %713 = arith.addf %710, %712 : vector<32x16xf32>
    %714 = math.tanh %713 : vector<32x16xf32>
    %c3_333 = arith.constant 3 : index
    %c0_334 = arith.constant 0 : index
    %c0_335 = arith.constant 0 : index
    %715 = vector.load %arg28[%c3_333, %c0_334, %c0_335] : memref<4x32x32xbf16, #tpu.memory_space<vmem>>, vector<1x32x32xbf16>
    %716 = vector.shape_cast %715 : vector<1x32x32xbf16> to vector<32x32xbf16>
    %c3_336 = arith.constant 3 : index
    %c0_337 = arith.constant 0 : index
    %c0_338 = arith.constant 0 : index
    %717 = vector.load %arg29[%c3_336, %c0_337, %c0_338] : memref<4x16x16xbf16, #tpu.memory_space<vmem>>, vector<1x16x16xbf16>
    %718 = vector.shape_cast %717 : vector<1x16x16xbf16> to vector<16x16xbf16>
    %c3_339 = arith.constant 3 : index
    %c0_340 = arith.constant 0 : index
    %c0_341 = arith.constant 0 : index
    %719 = vector.load %arg30[%c3_339, %c0_340, %c0_341] : memref<4x32x1xf32, #tpu.memory_space<vmem>>, vector<1x32x1xf32>
    %720 = vector.shape_cast %719 : vector<1x32x1xf32> to vector<32x1xf32>
    %721 = arith.truncf %714 : vector<32x16xf32> to vector<32x16xbf16>
    %cst_342 = arith.constant dense<0.000000e+00> : vector<32x16xf32>
    %722 = tpu.matmul %716, %721, %cst_342 {dimension_numbers = #tpu.dot_dimension_numbers<[1], [0], [0], [1], [0, 0, 1, 1], [], []>} : vector<32x32xbf16>, vector<32x16xbf16>, vector<32x16xf32> -> vector<32x16xf32>
    %723 = arith.truncf %722 : vector<32x16xf32> to vector<32x16xbf16>
    %cst_343 = arith.constant dense<0.000000e+00> : vector<32x16xf32>
    %724 = tpu.matmul %723, %718, %cst_343 {dimension_numbers = #tpu.dot_dimension_numbers<[1], [0], [0], [1], [0, 0, 1, 1], [], []>} : vector<32x16xbf16>, vector<16x16xbf16>, vector<32x16xf32> -> vector<32x16xf32>
    %725 = vector.broadcast %720 : vector<32x1xf32> to vector<32x16xf32>
    %726 = arith.addf %724, %725 : vector<32x16xf32>
    %c3_344 = arith.constant 3 : index
    %c0_345 = arith.constant 0 : index
    %c0_346 = arith.constant 0 : index
    %727 = vector.load %arg31[%c3_344, %c0_345, %c0_346] : memref<4x32x16xf32, #tpu.memory_space<vmem>>, vector<1x32x16xf32>
    %728 = vector.shape_cast %727 : vector<1x32x16xf32> to vector<32x16xf32>
    %729 = arith.mulf %726, %728 : vector<32x16xf32>
    %c3_347 = arith.constant 3 : index
    %c0_348 = arith.constant 0 : index
    %c0_349 = arith.constant 0 : index
    %730 = vector.load %arg32[%c3_347, %c0_348, %c0_349] : memref<4x32x16xf32, #tpu.memory_space<vmem>>, vector<1x32x16xf32>
    %731 = vector.shape_cast %730 : vector<1x32x16xf32> to vector<32x16xf32>
    %732 = arith.addf %729, %731 : vector<32x16xf32>
    %733 = math.tanh %732 : vector<32x16xf32>
    %734 = arith.addf %733, %695 : vector<32x16xf32>
    %c0_350 = arith.constant 0 : index
    %c0_351 = arith.constant 0 : index
    %735 = vector.load %arg33[%c0_350, %c0_351] : memref<20x32xbf16, #tpu.memory_space<vmem>>, vector<20x32xbf16>
    %c0_352 = arith.constant 0 : index
    %c0_353 = arith.constant 0 : index
    %736 = vector.load %arg34[%c0_352, %c0_353] : memref<16x16xbf16, #tpu.memory_space<vmem>>, vector<16x16xbf16>
    %c0_354 = arith.constant 0 : index
    %c0_355 = arith.constant 0 : index
    %737 = vector.load %arg35[%c0_354, %c0_355] : memref<20x1xf32, #tpu.memory_space<vmem>>, vector<20x1xf32>
    %738 = arith.truncf %734 : vector<32x16xf32> to vector<32x16xbf16>
    %cst_356 = arith.constant dense<0.000000e+00> : vector<20x16xf32>
    %739 = tpu.matmul %735, %738, %cst_356 {dimension_numbers = #tpu.dot_dimension_numbers<[1], [0], [0], [1], [0, 0, 1, 1], [], []>} : vector<20x32xbf16>, vector<32x16xbf16>, vector<20x16xf32> -> vector<20x16xf32>
    %740 = arith.truncf %739 : vector<20x16xf32> to vector<20x16xbf16>
    %cst_357 = arith.constant dense<0.000000e+00> : vector<20x16xf32>
    %741 = tpu.matmul %740, %736, %cst_357 {dimension_numbers = #tpu.dot_dimension_numbers<[1], [0], [0], [1], [0, 0, 1, 1], [], []>} : vector<20x16xbf16>, vector<16x16xbf16>, vector<20x16xf32> -> vector<20x16xf32>
    %742 = vector.broadcast %737 : vector<20x1xf32> to vector<20x16xf32>
    %743 = arith.addf %741, %742 : vector<20x16xf32>
    %744 = arith.addf %743, %642 : vector<20x16xf32>
    %c0_358 = arith.constant 0 : index
    %c0_359 = arith.constant 0 : index
    %745 = vector.load %arg22[%c0_358, %c0_359] : memref<18x10xbf16, #tpu.memory_space<vmem>>, vector<18x10xbf16>
    %746 = vector.extract_strided_slice %744 {offsets = [0, 0], sizes = [10, 16], strides = [1, 1]} : vector<20x16xf32> to vector<10x16xf32>
    %747 = arith.truncf %746 : vector<10x16xf32> to vector<10x16xbf16>
    %cst_360 = arith.constant dense<0.000000e+00> : vector<18x16xf32>
    %748 = tpu.matmul %745, %747, %cst_360 {dimension_numbers = #tpu.dot_dimension_numbers<[1], [0], [0], [1], [0, 0, 1, 1], [], []>} : vector<18x10xbf16>, vector<10x16xbf16>, vector<18x16xf32> -> vector<18x16xf32>
    %c0_361 = arith.constant 0 : index
    %c0_362 = arith.constant 0 : index
    %c0_363 = arith.constant 0 : index
    %749 = vector.load %arg36[%c0_361, %c0_362, %c0_363] : memref<1x18x16xf32, #tpu.memory_space<vmem>>, vector<1x18x16xf32>
    %750 = vector.shape_cast %749 : vector<1x18x16xf32> to vector<18x16xf32>
    %751 = vector.shape_cast %748 : vector<18x16xf32> to vector<1x18x16xf32>
    tpu.vector_store %arg36[%c0_361, %c0_362, %c0_363], %751 {strides = array<i32>} : memref<1x18x16xf32, #tpu.memory_space<vmem>>, vector<1x18x16xf32>,
    return
  }
  func.func @transform_0(%arg0: i32) -> (i32, i32, i32) {
    %c0_i32 = arith.constant 0 : i32
    %c0_i32_0 = arith.constant 0 : i32
    %c0_i32_1 = arith.constant 0 : i32
    return %arg0, %c0_i32, %c0_i32_0 : i32, i32, i32
  }
  func.func @transform_1(%arg0: i32) -> (i32, i32) {
    %c0_i32 = arith.constant 0 : i32
    %c0_i32_0 = arith.constant 0 : i32
    %c0_i32_1 = arith.constant 0 : i32
    return %c0_i32, %c0_i32_0 : i32, i32
  }
  func.func @transform_2(%arg0: i32) -> (i32, i32) {
    %c0_i32 = arith.constant 0 : i32
    %c0_i32_0 = arith.constant 0 : i32
    %c0_i32_1 = arith.constant 0 : i32
    return %c0_i32, %c0_i32_0 : i32, i32
  }
  func.func @transform_3(%arg0: i32) -> (i32, i32) {
    %c0_i32 = arith.constant 0 : i32
    %c0_i32_0 = arith.constant 0 : i32
    %c0_i32_1 = arith.constant 0 : i32
    return %c0_i32, %c0_i32_0 : i32, i32
  }
  func.func @transform_4(%arg0: i32) -> (i32, i32, i32) {
    %c0_i32 = arith.constant 0 : i32
    %c0_i32_0 = arith.constant 0 : i32
    %c0_i32_1 = arith.constant 0 : i32
    %c0_i32_2 = arith.constant 0 : i32
    return %c0_i32, %c0_i32_0, %c0_i32_1 : i32, i32, i32
  }
  func.func @transform_5(%arg0: i32) -> (i32, i32, i32) {
    %c0_i32 = arith.constant 0 : i32
    %c0_i32_0 = arith.constant 0 : i32
    %c0_i32_1 = arith.constant 0 : i32
    %c0_i32_2 = arith.constant 0 : i32
    return %c0_i32, %c0_i32_0, %c0_i32_1 : i32, i32, i32
  }
  func.func @transform_6(%arg0: i32) -> (i32, i32, i32) {
    %c0_i32 = arith.constant 0 : i32
    %c0_i32_0 = arith.constant 0 : i32
    %c0_i32_1 = arith.constant 0 : i32
    %c0_i32_2 = arith.constant 0 : i32
    return %c0_i32, %c0_i32_0, %c0_i32_1 : i32, i32, i32
  }
  func.func @transform_7(%arg0: i32) -> (i32, i32, i32) {
    %c0_i32 = arith.constant 0 : i32
    %c0_i32_0 = arith.constant 0 : i32
    %c0_i32_1 = arith.constant 0 : i32
    %c0_i32_2 = arith.constant 0 : i32
    return %c0_i32, %c0_i32_0, %c0_i32_1 : i32, i32, i32
  }
  func.func @transform_8(%arg0: i32) -> (i32, i32, i32) {
    %c0_i32 = arith.constant 0 : i32
    %c0_i32_0 = arith.constant 0 : i32
    %c0_i32_1 = arith.constant 0 : i32
    %c0_i32_2 = arith.constant 0 : i32
    return %c0_i32, %c0_i32_0, %c0_i32_1 : i32, i32, i32
  }
  func.func @transform_9(%arg0: i32) -> (i32, i32, i32) {
    %c0_i32 = arith.constant 0 : i32
    %c0_i32_0 = arith.constant 0 : i32
    %c0_i32_1 = arith.constant 0 : i32
    %c0_i32_2 = arith.constant 0 : i32
    return %c0_i32, %c0_i32_0, %c0_i32_1 : i32, i32, i32
  }
  func.func @transform_10(%arg0: i32) -> (i32, i32, i32) {
    %c0_i32 = arith.constant 0 : i32
    %c0_i32_0 = arith.constant 0 : i32
    %c0_i32_1 = arith.constant 0 : i32
    %c0_i32_2 = arith.constant 0 : i32
    return %c0_i32, %c0_i32_0, %c0_i32_1 : i32, i32, i32
  }
  func.func @transform_11(%arg0: i32) -> (i32, i32, i32) {
    %c0_i32 = arith.constant 0 : i32
    %c0_i32_0 = arith.constant 0 : i32
    %c0_i32_1 = arith.constant 0 : i32
    %c0_i32_2 = arith.constant 0 : i32
    return %c0_i32, %c0_i32_0, %c0_i32_1 : i32, i32, i32
  }
  func.func @transform_12(%arg0: i32) -> (i32, i32, i32) {
    %c0_i32 = arith.constant 0 : i32
    %c0_i32_0 = arith.constant 0 : i32
    %c0_i32_1 = arith.constant 0 : i32
    %c0_i32_2 = arith.constant 0 : i32
    return %c0_i32, %c0_i32_0, %c0_i32_1 : i32, i32, i32
  }
  func.func @transform_13(%arg0: i32) -> (i32, i32, i32) {
    %c0_i32 = arith.constant 0 : i32
    %c0_i32_0 = arith.constant 0 : i32
    %c0_i32_1 = arith.constant 0 : i32
    %c0_i32_2 = arith.constant 0 : i32
    return %c0_i32, %c0_i32_0, %c0_i32_1 : i32, i32, i32
  }
  func.func @transform_14(%arg0: i32) -> (i32, i32) {
    %c0_i32 = arith.constant 0 : i32
    %c0_i32_0 = arith.constant 0 : i32
    %c0_i32_1 = arith.constant 0 : i32
    return %c0_i32, %c0_i32_0 : i32, i32
  }
  func.func @transform_15(%arg0: i32) -> (i32, i32) {
    %c0_i32 = arith.constant 0 : i32
    %c0_i32_0 = arith.constant 0 : i32
    %c0_i32_1 = arith.constant 0 : i32
    return %c0_i32, %c0_i32_0 : i32, i32
  }
  func.func @transform_16(%arg0: i32) -> (i32, i32) {
    %c0_i32 = arith.constant 0 : i32
    %c0_i32_0 = arith.constant 0 : i32
    %c0_i32_1 = arith.constant 0 : i32
    return %c0_i32, %c0_i32_0 : i32, i32
  }
  func.func @transform_17(%arg0: i32) -> (i32, i32, i32) {
    %c0_i32 = arith.constant 0 : i32
    %c0_i32_0 = arith.constant 0 : i32
    %c0_i32_1 = arith.constant 0 : i32
    %c0_i32_2 = arith.constant 0 : i32
    return %c0_i32, %c0_i32_0, %c0_i32_1 : i32, i32, i32
  }
  func.func @transform_18(%arg0: i32) -> (i32, i32) {
    %c0_i32 = arith.constant 0 : i32
    %c0_i32_0 = arith.constant 0 : i32
    %c0_i32_1 = arith.constant 0 : i32
    return %c0_i32, %c0_i32_0 : i32, i32
  }
  func.func @transform_19(%arg0: i32) -> (i32, i32) {
    %c0_i32 = arith.constant 0 : i32
    %c0_i32_0 = arith.constant 0 : i32
    %c0_i32_1 = arith.constant 0 : i32
    return %c0_i32, %c0_i32_0 : i32, i32
  }
  func.func @transform_20(%arg0: i32) -> (i32, i32) {
    %c0_i32 = arith.constant 0 : i32
    %c0_i32_0 = arith.constant 0 : i32
    %c0_i32_1 = arith.constant 0 : i32
    return %c0_i32, %c0_i32_0 : i32, i32
  }
  func.func @transform_21(%arg0: i32) -> (i32, i32) {
    %c0_i32 = arith.constant 0 : i32
    %c0_i32_0 = arith.constant 0 : i32
    %c0_i32_1 = arith.constant 0 : i32
    return %c0_i32, %c0_i32_0 : i32, i32
  }
  func.func @transform_22(%arg0: i32) -> (i32, i32) {
    %c0_i32 = arith.constant 0 : i32
    %c0_i32_0 = arith.constant 0 : i32
    %c0_i32_1 = arith.constant 0 : i32
    return %c0_i32, %c0_i32_0 : i32, i32
  }
  func.func @transform_23(%arg0: i32) -> (i32, i32) {
    %c0_i32 = arith.constant 0 : i32
    %c0_i32_0 = arith.constant 0 : i32
    %c0_i32_1 = arith.constant 0 : i32
    return %c0_i32, %c0_i32_0 : i32, i32
  }
  func.func @transform_24(%arg0: i32) -> (i32, i32) {
    %c0_i32 = arith.constant 0 : i32
    %c0_i32_0 = arith.constant 0 : i32
    %c0_i32_1 = arith.constant 0 : i32
    return %c0_i32, %c0_i32_0 : i32, i32
  }
  func.func @transform_25(%arg0: i32) -> (i32, i32) {
    %c0_i32 = arith.constant 0 : i32
    %c0_i32_0 = arith.constant 0 : i32
    %c0_i32_1 = arith.constant 0 : i32
    return %c0_i32, %c0_i32_0 : i32, i32
  }
  func.func @transform_26(%arg0: i32) -> (i32, i32) {
    %c0_i32 = arith.constant 0 : i32
    %c0_i32_0 = arith.constant 0 : i32
    %c0_i32_1 = arith.constant 0 : i32
    return %c0_i32, %c0_i32_0 : i32, i32
  }
  func.func @transform_27(%arg0: i32) -> (i32, i32, i32) {
    %c0_i32 = arith.constant 0 : i32
    %c0_i32_0 = arith.constant 0 : i32
    %c0_i32_1 = arith.constant 0 : i32
    %c0_i32_2 = arith.constant 0 : i32
    return %c0_i32, %c0_i32_0, %c0_i32_1 : i32, i32, i32
  }
  func.func @transform_28(%arg0: i32) -> (i32, i32, i32) {
    %c0_i32 = arith.constant 0 : i32
    %c0_i32_0 = arith.constant 0 : i32
    %c0_i32_1 = arith.constant 0 : i32
    %c0_i32_2 = arith.constant 0 : i32
    return %c0_i32, %c0_i32_0, %c0_i32_1 : i32, i32, i32
  }
  func.func @transform_29(%arg0: i32) -> (i32, i32, i32) {
    %c0_i32 = arith.constant 0 : i32
    %c0_i32_0 = arith.constant 0 : i32
    %c0_i32_1 = arith.constant 0 : i32
    %c0_i32_2 = arith.constant 0 : i32
    return %c0_i32, %c0_i32_0, %c0_i32_1 : i32, i32, i32
  }
  func.func @transform_30(%arg0: i32) -> (i32, i32, i32) {
    %c0_i32 = arith.constant 0 : i32
    %c0_i32_0 = arith.constant 0 : i32
    %c0_i32_1 = arith.constant 0 : i32
    %c0_i32_2 = arith.constant 0 : i32
    return %c0_i32, %c0_i32_0, %c0_i32_1 : i32, i32, i32
  }
  func.func @transform_31(%arg0: i32) -> (i32, i32, i32) {
    %c0_i32 = arith.constant 0 : i32
    %c0_i32_0 = arith.constant 0 : i32
    %c0_i32_1 = arith.constant 0 : i32
    %c0_i32_2 = arith.constant 0 : i32
    return %c0_i32, %c0_i32_0, %c0_i32_1 : i32, i32, i32
  }
  func.func @transform_32(%arg0: i32) -> (i32, i32) {
    %c0_i32 = arith.constant 0 : i32
    %c0_i32_0 = arith.constant 0 : i32
    %c0_i32_1 = arith.constant 0 : i32
    return %c0_i32, %c0_i32_0 : i32, i32
  }
  func.func @transform_33(%arg0: i32) -> (i32, i32) {
    %c0_i32 = arith.constant 0 : i32
    %c0_i32_0 = arith.constant 0 : i32
    %c0_i32_1 = arith.constant 0 : i32
    return %c0_i32, %c0_i32_0 : i32, i32
  }
  func.func @transform_34(%arg0: i32) -> (i32, i32) {
    %c0_i32 = arith.constant 0 : i32
    %c0_i32_0 = arith.constant 0 : i32
    %c0_i32_1 = arith.constant 0 : i32
    return %c0_i32, %c0_i32_0 : i32, i32
  }
  func.func @transform_35(%arg0: i32) -> (i32, i32, i32) {
    %c0_i32 = arith.constant 0 : i32
    %c0_i32_0 = arith.constant 0 : i32
    %c0_i32_1 = arith.constant 0 : i32
    return %arg0, %c0_i32, %c0_i32_0 : i32, i32, i32
  }
}

</mosaic_0001>

<llo_original>
// kernel: _lambda_.1
$region0: #{_lambda_.1}
  #allocation0 [shape = 'u32[]', space=smem, size = 0x4, offset = 0x4, fixed_abs, tag = 'smem constant byte address 0x4 - core index']
  #allocation1 [shape = 'u32[72,128]{1,0:T(1,128)}', space=vmem, size = 0x9000, scoped, tag = 'internal scratch']
  %s0 = inlined_call_operand.smem [shape: u32[36], index: -1, kind: input, shape index: {}]
  %s1 = sld [smem:[%s0]]
  %s2 = scalar_lea.smem %s0, 1
  %s3 = sld [smem:[%s2]]
  %s4 = scalar_lea.smem %s0, 2
  %s5 = sld [smem:[%s4]]
  %s6 = scalar_lea.smem %s0, 3
  %s7 = sld [smem:[%s6]]
  %s8 = scalar_lea.smem %s0, 4
  %s9 = sld [smem:[%s8]]
  %s10 = scalar_lea.smem %s0, 5
  %s11 = sld [smem:[%s10]]
  %s12 = scalar_lea.smem %s0, 6
  %s13 = sld [smem:[%s12]]
  %s14 = scalar_lea.smem %s0, 7
  %s15 = sld [smem:[%s14]]
  %s16 = scalar_lea.smem %s0, 8
  %s17 = sld [smem:[%s16]]
  %s18 = scalar_lea.smem %s0, 9
  %s19 = sld [smem:[%s18]]
  %s20 = scalar_lea.smem %s0, 10
  %s21 = sld [smem:[%s20]]
  %s22 = scalar_lea.smem %s0, 11
  %s23 = sld [smem:[%s22]]
  %s24 = scalar_lea.smem %s0, 12
  %s25 = sld [smem:[%s24]]
  %s26 = scalar_lea.smem %s0, 13
  %s27 = sld [smem:[%s26]]
  %s28 = scalar_lea.smem %s0, 14
  %s29 = sld [smem:[%s28]]
  %s30 = scalar_lea.smem %s0, 15
  %s31 = sld [smem:[%s30]]
  %s32 = scalar_lea.smem %s0, 16
  %s33 = sld [smem:[%s32]]
  %s34 = scalar_lea.smem %s0, 17
  %s35 = sld [smem:[%s34]]
  %s36 = scalar_lea.smem %s0, 18
  %s37 = sld [smem:[%s36]]
  %s38 = scalar_lea.smem %s0, 19
  %s39 = sld [smem:[%s38]]
  %s40 = scalar_lea.smem %s0, 20
  %s41 = sld [smem:[%s40]]
  %s42 = scalar_lea.smem %s0, 21
  %s43 = sld [smem:[%s42]]
  %s44 = scalar_lea.smem %s0, 22
  %s45 = sld [smem:[%s44]]
  %s46 = scalar_lea.smem %s0, 23
  %s47 = sld [smem:[%s46]]
  %s48 = scalar_lea.smem %s0, 24
  %s49 = sld [smem:[%s48]]
  %s50 = scalar_lea.smem %s0, 25
  %s51 = sld [smem:[%s50]]
  %s52 = scalar_lea.smem %s0, 26
  %s53 = sld [smem:[%s52]]
  %s54 = scalar_lea.smem %s0, 27
  %s55 = sld [smem:[%s54]]
  %s56 = scalar_lea.smem %s0, 28
  %s57 = sld [smem:[%s56]]
  %s58 = scalar_lea.smem %s0, 29
  %s59 = sld [smem:[%s58]]
  %s60 = scalar_lea.smem %s0, 30
  %s61 = sld [smem:[%s60]]
  %s62 = scalar_lea.smem %s0, 31
  %s63 = sld [smem:[%s62]]
  %s64 = scalar_lea.smem %s0, 32
  %s65 = sld [smem:[%s64]]
  %s66 = scalar_lea.smem %s0, 33
  %s67 = sld [smem:[%s66]]
  %s68 = scalar_lea.smem %s0, 34
  %s69 = sld [smem:[%s68]]
  %s70 = scalar_lea.smem %s0, 35
  %s71 = sld [smem:[%s70]]
  %s72 = sld [smem:[#allocation0]]
  $region173: #{_lambda_.1} parent=0
    _
  %s74 = ssub.s32 1, %s72
  %s75 = scalar_select 0, %s74, %s72
  loop: start=0, step=1, limit=4
  $region2: #{_lambda_.1} parent=0 // loop_pre_header
    _
  $region3: #{_lambda_.1} parent=0 // loop_header
    %s77 = sphi 0, %s81
    %p78 = scmp.ge.s32.totalorder %s77, 4
    %s87 = sphi 0, %s89
    %s90 = sphi 0, %s87
    %s91 = sphi 0, %s90
    %s107 = sphi 0, %s91
    %s111 = sphi 0, %s111
    %s113 = sphi 0, %s111
    %s114 = sphi 0, %s113
    %s128 = sphi 0, %s114
    %s132 = sphi 0, %s132
    %s134 = sphi 0, %s132
    %s135 = sphi 0, %s134
    %s149 = sphi 0, %s135
    %s153 = sphi 0, %s153
    %s155 = sphi 0, %s153
    %s156 = sphi 0, %s155
    %s170 = sphi 0, %s156
    %s174 = sphi 0, %s174
    %s176 = sphi 0, %s174
    %s177 = sphi 0, %s176
    %s191 = sphi 0, %s177
    %s195 = sphi 0, %s195
    %s197 = sphi 0, %s195
    %s198 = sphi 0, %s197
    %s212 = sphi 0, %s198
    %s216 = sphi 0, %s216
    %s218 = sphi 0, %s216
    %s219 = sphi 0, %s218
    %s233 = sphi 0, %s219
    %s237 = sphi 0, %s237
    %s239 = sphi 0, %s237
    %s240 = sphi 0, %s239
    %s254 = sphi 0, %s240
    %s258 = sphi 0, %s258
    %s260 = sphi 0, %s258
    %s261 = sphi 0, %s260
    %s275 = sphi 0, %s261
    %s279 = sphi 0, %s279
    %s281 = sphi 0, %s279
    %s282 = sphi 0, %s281
    %s296 = sphi 0, %s282
    %s300 = sphi 0, %s300
    %s302 = sphi 0, %s300
    %s303 = sphi 0, %s302
    %s317 = sphi 0, %s303
    %s321 = sphi 0, %s321
    %s323 = sphi 0, %s321
    %s324 = sphi 0, %s323
    %s338 = sphi 0, %s324
    %s342 = sphi 0, %s342
    %s344 = sphi 0, %s342
    %s345 = sphi 0, %s344
    %s359 = sphi 0, %s345
    %s363 = sphi 0, %s363
    %s365 = sphi 0, %s363
    %s366 = sphi 0, %s365
    %s380 = sphi 0, %s366
    %s384 = sphi 0, %s384
    %s386 = sphi 0, %s384
    %s387 = sphi 0, %s386
    %s401 = sphi 0, %s387
    %s405 = sphi 0, %s405
    %s407 = sphi 0, %s405
    %s408 = sphi 0, %s407
    %s422 = sphi 0, %s408
    %s426 = sphi 0, %s426
    %s428 = sphi 0, %s426
    %s429 = sphi 0, %s428
    %s443 = sphi 0, %s429
    %s447 = sphi 0, %s447
    %s449 = sphi 0, %s447
    %s450 = sphi 0, %s449
    %s464 = sphi 0, %s450
    %s468 = sphi 0, %s468
    %s470 = sphi 0, %s468
    %s471 = sphi 0, %s470
    %s485 = sphi 0, %s471
    %s489 = sphi 0, %s489
    %s491 = sphi 0, %s489
    %s492 = sphi 0, %s491
    %s506 = sphi 0, %s492
    %s510 = sphi 0, %s510
    %s512 = sphi 0, %s510
    %s513 = sphi 0, %s512
    %s527 = sphi 0, %s513
    %s531 = sphi 0, %s531
    %s533 = sphi 0, %s531
    %s534 = sphi 0, %s533
    %s548 = sphi 0, %s534
    %s552 = sphi 0, %s552
    %s554 = sphi 0, %s552
    %s555 = sphi 0, %s554
    %s569 = sphi 0, %s555
    %s573 = sphi 0, %s573
    %s575 = sphi 0, %s573
    %s576 = sphi 0, %s575
    %s590 = sphi 0, %s576
    %s594 = sphi 0, %s594
    %s596 = sphi 0, %s594
    %s597 = sphi 0, %s596
    %s611 = sphi 0, %s597
    %s615 = sphi 0, %s615
    %s617 = sphi 0, %s615
    %s618 = sphi 0, %s617
    %s632 = sphi 0, %s618
    %s636 = sphi 0, %s636
    %s638 = sphi 0, %s636
    %s639 = sphi 0, %s638
    %s653 = sphi 0, %s639
    %s657 = sphi 0, %s657
    %s659 = sphi 0, %s657
    %s660 = sphi 0, %s659
    %s674 = sphi 0, %s660
    %s678 = sphi 0, %s678
    %s680 = sphi 0, %s678
    %s681 = sphi 0, %s680
    %s695 = sphi 0, %s681
    %s699 = sphi 0, %s699
    %s701 = sphi 0, %s699
    %s702 = sphi 0, %s701
    %s716 = sphi 0, %s702
    %s720 = sphi 0, %s720
    %s722 = sphi 0, %s720
    %s723 = sphi 0, %s722
    %s737 = sphi 0, %s723
    %s741 = sphi 0, %s741
    %s743 = sphi 0, %s741
    %s744 = sphi 0, %s743
    %s758 = sphi 0, %s744
    %s762 = sphi 0, %s762
    %s764 = sphi 0, %s762
    %s765 = sphi 0, %s764
    %s779 = sphi 0, %s765
    %s783 = sphi 0, %s783
    %s785 = sphi 0, %s783
    %s786 = sphi 0, %s785
    %s800 = sphi 0, %s786
    %s804 = sphi 0, %s804
    %s806 = sphi 0, %s804
    %s807 = sphi 0, %s806
    %s821 = sphi 0, %s807
    %s827 = sphi 0, %s829
    %s830 = sphi 0, %s827
    %s831 = sphi 0, %s830
    %s847 = sphi 0, %s831
  $region4: #{_lambda_.1} parent=0 // loop_header_branch
    %80 = sbr.rel (%p78) target = $region8
  $region5: #{_lambda_.1} parent=0 // loop_body
    %s82 = ssub.s32 %s77, 1
    %s83 = ssub.s32 %s77, 2
    %s84 = sadd.s32 %s77, 1
    %s85 = ssub.s32 %s77, %s84
    %p86 = scmp.eq.s32.totalorder %s85, 0
    %s88 = sadd.s32 %s87, 1
    %s89 = scalar_select %p86, %s87, %s88
    %p92 = pneg %p86
    %p93 = scmp.eq.s32.totalorder %s77, 1
    %p94 = por %p92, %p93
    %p95 = scmp.ne.s32.totalorder %s87, %s90
    %p96 = scmp.eq.s32.totalorder %s77, 0
    %p97 = por %p95, %p96
    %p98 = scmp.ne.s32.totalorder %s87, %s90
    %p99 = scmp.eq.s32.totalorder %s82, 1
    %p100 = por %p98, %p99
    %p101 = scmp.ne.s32.totalorder %s90, %s91
    %p102 = scmp.eq.s32.totalorder %s82, 0
    %p103 = por %p101, %p102
    %p104 = scmp.ne.s32.totalorder %s90, %s91
    %p105 = scmp.eq.s32.totalorder %s83, 1
    %p106 = por %p104, %p105
    %p108 = scmp.ne.s32.totalorder %s91, %s107
    %p109 = scmp.eq.s32.totalorder %s83, 0
    %p110 = por %p108, %p109
    %s112 = sadd.s32 %s111, 1
    %p115 = scmp.eq.s32.totalorder %s77, 1
    %p116 = scmp.ne.s32.totalorder %s111, %s113
    %p117 = scmp.eq.s32.totalorder %s77, 0
    %p118 = por %p116, %p117
    %p119 = scmp.ne.s32.totalorder %s111, %s113
    %p120 = scmp.eq.s32.totalorder %s82, 1
    %p121 = por %p119, %p120
    %p122 = scmp.ne.s32.totalorder %s113, %s114
    %p123 = scmp.eq.s32.totalorder %s82, 0
    %p124 = por %p122, %p123
    %p125 = scmp.ne.s32.totalorder %s113, %s114
    %p126 = scmp.eq.s32.totalorder %s83, 1
    %p127 = por %p125, %p126
    %p129 = scmp.ne.s32.totalorder %s114, %s128
    %p130 = scmp.eq.s32.totalorder %s83, 0
    %p131 = por %p129, %p130
    %s133 = sadd.s32 %s132, 1
    %p136 = scmp.eq.s32.totalorder %s77, 1
    %p137 = scmp.ne.s32.totalorder %s132, %s134
    %p138 = scmp.eq.s32.totalorder %s77, 0
    %p139 = por %p137, %p138
    %p140 = scmp.ne.s32.totalorder %s132, %s134
    %p141 = scmp.eq.s32.totalorder %s82, 1
    %p142 = por %p140, %p141
    %p143 = scmp.ne.s32.totalorder %s134, %s135
    %p144 = scmp.eq.s32.totalorder %s82, 0
    %p145 = por %p143, %p144
    %p146 = scmp.ne.s32.totalorder %s134, %s135
    %p147 = scmp.eq.s32.totalorder %s83, 1
    %p148 = por %p146, %p147
    %p150 = scmp.ne.s32.totalorder %s135, %s149
    %p151 = scmp.eq.s32.totalorder %s83, 0
    %p152 = por %p150, %p151
    %s154 = sadd.s32 %s153, 1
    %p157 = scmp.eq.s32.totalorder %s77, 1
    %p158 = scmp.ne.s32.totalorder %s153, %s155
    %p159 = scmp.eq.s32.totalorder %s77, 0
    %p160 = por %p158, %p159
    %p161 = scmp.ne.s32.totalorder %s153, %s155
    %p162 = scmp.eq.s32.totalorder %s82, 1
    %p163 = por %p161, %p162
    %p164 = scmp.ne.s32.totalorder %s155, %s156
    %p165 = scmp.eq.s32.totalorder %s82, 0
    %p166 = por %p164, %p165
    %p167 = scmp.ne.s32.totalorder %s155, %s156
    %p168 = scmp.eq.s32.totalorder %s83, 1
    %p169 = por %p167, %p168
    %p171 = scmp.ne.s32.totalorder %s156, %s170
    %p172 = scmp.eq.s32.totalorder %s83, 0
    %p173 = por %p171, %p172
    %s175 = sadd.s32 %s174, 1
    %p178 = scmp.eq.s32.totalorder %s77, 1
    %p179 = scmp.ne.s32.totalorder %s174, %s176
    %p180 = scmp.eq.s32.totalorder %s77, 0
    %p181 = por %p179, %p180
    %p182 = scmp.ne.s32.totalorder %s174, %s176
    %p183 = scmp.eq.s32.totalorder %s82, 1
    %p184 = por %p182, %p183
    %p185 = scmp.ne.s32.totalorder %s176, %s177
    %p186 = scmp.eq.s32.totalorder %s82, 0
    %p187 = por %p185, %p186
    %p188 = scmp.ne.s32.totalorder %s176, %s177
    %p189 = scmp.eq.s32.totalorder %s83, 1
    %p190 = por %p188, %p189
    %p192 = scmp.ne.s32.totalorder %s177, %s191
    %p193 = scmp.eq.s32.totalorder %s83, 0
    %p194 = por %p192, %p193
    %s196 = sadd.s32 %s195, 1
    %p199 = scmp.eq.s32.totalorder %s77, 1
    %p200 = scmp.ne.s32.totalorder %s195, %s197
    %p201 = scmp.eq.s32.totalorder %s77, 0
    %p202 = por %p200, %p201
    %p203 = scmp.ne.s32.totalorder %s195, %s197
    %p204 = scmp.eq.s32.totalorder %s82, 1
    %p205 = por %p203, %p204
    %p206 = scmp.ne.s32.totalorder %s197, %s198
    %p207 = scmp.eq.s32.totalorder %s82, 0
    %p208 = por %p206, %p207
    %p209 = scmp.ne.s32.totalorder %s197, %s198
    %p210 = scmp.eq.s32.totalorder %s83, 1
    %p211 = por %p209, %p210
    %p213 = scmp.ne.s32.totalorder %s198, %s212
    %p214 = scmp.eq.s32.totalorder %s83, 0
    %p215 = por %p213, %p214
    %s217 = sadd.s32 %s216, 1
    %p220 = scmp.eq.s32.totalorder %s77, 1
    %p221 = scmp.ne.s32.totalorder %s216, %s218
    %p222 = scmp.eq.s32.totalorder %s77, 0
    %p223 = por %p221, %p222
    %p224 = scmp.ne.s32.totalorder %s216, %s218
    %p225 = scmp.eq.s32.totalorder %s82, 1
    %p226 = por %p224, %p225
    %p227 = scmp.ne.s32.totalorder %s218, %s219
    %p228 = scmp.eq.s32.totalorder %s82, 0
    %p229 = por %p227, %p228
    %p230 = scmp.ne.s32.totalorder %s218, %s219
    %p231 = scmp.eq.s32.totalorder %s83, 1
    %p232 = por %p230, %p231
    %p234 = scmp.ne.s32.totalorder %s219, %s233
    %p235 = scmp.eq.s32.totalorder %s83, 0
    %p236 = por %p234, %p235
    %s238 = sadd.s32 %s237, 1
    %p241 = scmp.eq.s32.totalorder %s77, 1
    %p242 = scmp.ne.s32.totalorder %s237, %s239
    %p243 = scmp.eq.s32.totalorder %s77, 0
    %p244 = por %p242, %p243
    %p245 = scmp.ne.s32.totalorder %s237, %s239
    %p246 = scmp.eq.s32.totalorder %s82, 1
    %p247 = por %p245, %p246
    %p248 = scmp.ne.s32.totalorder %s239, %s240
    %p249 = scmp.eq.s32.totalorder %s82, 0
    %p250 = por %p248, %p249
    %p251 = scmp.ne.s32.totalorder %s239, %s240
    %p252 = scmp.eq.s32.totalorder %s83, 1
    %p253 = por %p251, %p252
    %p255 = scmp.ne.s32.totalorder %s240, %s254
    %p256 = scmp.eq.s32.totalorder %s83, 0
    %p257 = por %p255, %p256
    %s259 = sadd.s32 %s258, 1
    %p262 = scmp.eq.s32.totalorder %s77, 1
    %p263 = scmp.ne.s32.totalorder %s258, %s260
    %p264 = scmp.eq.s32.totalorder %s77, 0
    %p265 = por %p263, %p264
    %p266 = scmp.ne.s32.totalorder %s258, %s260
    %p267 = scmp.eq.s32.totalorder %s82, 1
    %p268 = por %p266, %p267
    %p269 = scmp.ne.s32.totalorder %s260, %s261
    %p270 = scmp.eq.s32.totalorder %s82, 0
    %p271 = por %p269, %p270
    %p272 = scmp.ne.s32.totalorder %s260, %s261
    %p273 = scmp.eq.s32.totalorder %s83, 1
    %p274 = por %p272, %p273
    %p276 = scmp.ne.s32.totalorder %s261, %s275
    %p277 = scmp.eq.s32.totalorder %s83, 0
    %p278 = por %p276, %p277
    %s280 = sadd.s32 %s279, 1
    %p283 = scmp.eq.s32.totalorder %s77, 1
    %p284 = scmp.ne.s32.totalorder %s279, %s281
    %p285 = scmp.eq.s32.totalorder %s77, 0
    %p286 = por %p284, %p285
    %p287 = scmp.ne.s32.totalorder %s279, %s281
    %p288 = scmp.eq.s32.totalorder %s82, 1
    %p289 = por %p287, %p288
    %p290 = scmp.ne.s32.totalorder %s281, %s282
    %p291 = scmp.eq.s32.totalorder %s82, 0
    %p292 = por %p290, %p291
    %p293 = scmp.ne.s32.totalorder %s281, %s282
    %p294 = scmp.eq.s32.totalorder %s83, 1
    %p295 = por %p293, %p294
    %p297 = scmp.ne.s32.totalorder %s282, %s296
    %p298 = scmp.eq.s32.totalorder %s83, 0
    %p299 = por %p297, %p298
    %s301 = sadd.s32 %s300, 1
    %p304 = scmp.eq.s32.totalorder %s77, 1
    %p305 = scmp.ne.s32.totalorder %s300, %s302
    %p306 = scmp.eq.s32.totalorder %s77, 0
    %p307 = por %p305, %p306
    %p308 = scmp.ne.s32.totalorder %s300, %s302
    %p309 = scmp.eq.s32.totalorder %s82, 1
    %p310 = por %p308, %p309
    %p311 = scmp.ne.s32.totalorder %s302, %s303
    %p312 = scmp.eq.s32.totalorder %s82, 0
    %p313 = por %p311, %p312
    %p314 = scmp.ne.s32.totalorder %s302, %s303
    %p315 = scmp.eq.s32.totalorder %s83, 1
    %p316 = por %p314, %p315
    %p318 = scmp.ne.s32.totalorder %s303, %s317
    %p319 = scmp.eq.s32.totalorder %s83, 0
    %p320 = por %p318, %p319
    %s322 = sadd.s32 %s321, 1
    %p325 = scmp.eq.s32.totalorder %s77, 1
    %p326 = scmp.ne.s32.totalorder %s321, %s323
    %p327 = scmp.eq.s32.totalorder %s77, 0
    %p328 = por %p326, %p327
    %p329 = scmp.ne.s32.totalorder %s321, %s323
    %p330 = scmp.eq.s32.totalorder %s82, 1
    %p331 = por %p329, %p330
    %p332 = scmp.ne.s32.totalorder %s323, %s324
    %p333 = scmp.eq.s32.totalorder %s82, 0
    %p334 = por %p332, %p333
    %p335 = scmp.ne.s32.totalorder %s323, %s324
    %p336 = scmp.eq.s32.totalorder %s83, 1
    %p337 = por %p335, %p336
    %p339 = scmp.ne.s32.totalorder %s324, %s338
    %p340 = scmp.eq.s32.totalorder %s83, 0
    %p341 = por %p339, %p340
    %s343 = sadd.s32 %s342, 1
    %p346 = scmp.eq.s32.totalorder %s77, 1
    %p347 = scmp.ne.s32.totalorder %s342, %s344
    %p348 = scmp.eq.s32.totalorder %s77, 0
    %p349 = por %p347, %p348
    %p350 = scmp.ne.s32.totalorder %s342, %s344
    %p351 = scmp.eq.s32.totalorder %s82, 1
    %p352 = por %p350, %p351
    %p353 = scmp.ne.s32.totalorder %s344, %s345
    %p354 = scmp.eq.s32.totalorder %s82, 0
    %p355 = por %p353, %p354
    %p356 = scmp.ne.s32.totalorder %s344, %s345
    %p357 = scmp.eq.s32.totalorder %s83, 1
    %p358 = por %p356, %p357
    %p360 = scmp.ne.s32.totalorder %s345, %s359
    %p361 = scmp.eq.s32.totalorder %s83, 0
    %p362 = por %p360, %p361
    %s364 = sadd.s32 %s363, 1
    %p367 = scmp.eq.s32.totalorder %s77, 1
    %p368 = scmp.ne.s32.totalorder %s363, %s365
    %p369 = scmp.eq.s32.totalorder %s77, 0
    %p370 = por %p368, %p369
    %p371 = scmp.ne.s32.totalorder %s363, %s365
    %p372 = scmp.eq.s32.totalorder %s82, 1
    %p373 = por %p371, %p372
    %p374 = scmp.ne.s32.totalorder %s365, %s366
    %p375 = scmp.eq.s32.totalorder %s82, 0
    %p376 = por %p374, %p375
    %p377 = scmp.ne.s32.totalorder %s365, %s366
    %p378 = scmp.eq.s32.totalorder %s83, 1
    %p379 = por %p377, %p378
    %p381 = scmp.ne.s32.totalorder %s366, %s380
    %p382 = scmp.eq.s32.totalorder %s83, 0
    %p383 = por %p381, %p382
    %s385 = sadd.s32 %s384, 1
    %p388 = scmp.eq.s32.totalorder %s77, 1
    %p389 = scmp.ne.s32.totalorder %s384, %s386
    %p390 = scmp.eq.s32.totalorder %s77, 0
    %p391 = por %p389, %p390
    %p392 = scmp.ne.s32.totalorder %s384, %s386
    %p393 = scmp.eq.s32.totalorder %s82, 1
    %p394 = por %p392, %p393
    %p395 = scmp.ne.s32.totalorder %s386, %s387
    %p396 = scmp.eq.s32.totalorder %s82, 0
    %p397 = por %p395, %p396
    %p398 = scmp.ne.s32.totalorder %s386, %s387
    %p399 = scmp.eq.s32.totalorder %s83, 1
    %p400 = por %p398, %p399
    %p402 = scmp.ne.s32.totalorder %s387, %s401
    %p403 = scmp.eq.s32.totalorder %s83, 0
    %p404 = por %p402, %p403
    %s406 = sadd.s32 %s405, 1
    %p409 = scmp.eq.s32.totalorder %s77, 1
    %p410 = scmp.ne.s32.totalorder %s405, %s407
    %p411 = scmp.eq.s32.totalorder %s77, 0
    %p412 = por %p410, %p411
    %p413 = scmp.ne.s32.totalorder %s405, %s407
    %p414 = scmp.eq.s32.totalorder %s82, 1
    %p415 = por %p413, %p414
    %p416 = scmp.ne.s32.totalorder %s407, %s408
    %p417 = scmp.eq.s32.totalorder %s82, 0
    %p418 = por %p416, %p417
    %p419 = scmp.ne.s32.totalorder %s407, %s408
    %p420 = scmp.eq.s32.totalorder %s83, 1
    %p421 = por %p419, %p420
    %p423 = scmp.ne.s32.totalorder %s408, %s422
    %p424 = scmp.eq.s32.totalorder %s83, 0
    %p425 = por %p423, %p424
    %s427 = sadd.s32 %s426, 1
    %p430 = scmp.eq.s32.totalorder %s77, 1
    %p431 = scmp.ne.s32.totalorder %s426, %s428
    %p432 = scmp.eq.s32.totalorder %s77, 0
    %p433 = por %p431, %p432
    %p434 = scmp.ne.s32.totalorder %s426, %s428
    %p435 = scmp.eq.s32.totalorder %s82, 1
    %p436 = por %p434, %p435
    %p437 = scmp.ne.s32.totalorder %s428, %s429
    %p438 = scmp.eq.s32.totalorder %s82, 0
    %p439 = por %p437, %p438
    %p440 = scmp.ne.s32.totalorder %s428, %s429
    %p441 = scmp.eq.s32.totalorder %s83, 1
    %p442 = por %p440, %p441
    %p444 = scmp.ne.s32.totalorder %s429, %s443
    %p445 = scmp.eq.s32.totalorder %s83, 0
    %p446 = por %p444, %p445
    %s448 = sadd.s32 %s447, 1
    %p451 = scmp.eq.s32.totalorder %s77, 1
    %p452 = scmp.ne.s32.totalorder %s447, %s449
    %p453 = scmp.eq.s32.totalorder %s77, 0
    %p454 = por %p452, %p453
    %p455 = scmp.ne.s32.totalorder %s447, %s449
    %p456 = scmp.eq.s32.totalorder %s82, 1
    %p457 = por %p455, %p456
    %p458 = scmp.ne.s32.totalorder %s449, %s450
    %p459 = scmp.eq.s32.totalorder %s82, 0
    %p460 = por %p458, %p459
    %p461 = scmp.ne.s32.totalorder %s449, %s450
    %p462 = scmp.eq.s32.totalorder %s83, 1
    %p463 = por %p461, %p462
    %p465 = scmp.ne.s32.totalorder %s450, %s464
    %p466 = scmp.eq.s32.totalorder %s83, 0
    %p467 = por %p465, %p466
    %s469 = sadd.s32 %s468, 1
    %p472 = scmp.eq.s32.totalorder %s77, 1
    %p473 = scmp.ne.s32.totalorder %s468, %s470
    %p474 = scmp.eq.s32.totalorder %s77, 0
    %p475 = por %p473, %p474
    %p476 = scmp.ne.s32.totalorder %s468, %s470
    %p477 = scmp.eq.s32.totalorder %s82, 1
    %p478 = por %p476, %p477
    %p479 = scmp.ne.s32.totalorder %s470, %s471
    %p480 = scmp.eq.s32.totalorder %s82, 0
    %p481 = por %p479, %p480
    %p482 = scmp.ne.s32.totalorder %s470, %s471
    %p483 = scmp.eq.s32.totalorder %s83, 1
    %p484 = por %p482, %p483
    %p486 = scmp.ne.s32.totalorder %s471, %s485
    %p487 = scmp.eq.s32.totalorder %s83, 0
    %p488 = por %p486, %p487
    %s490 = sadd.s32 %s489, 1
    %p493 = scmp.eq.s32.totalorder %s77, 1
    %p494 = scmp.ne.s32.totalorder %s489, %s491
    %p495 = scmp.eq.s32.totalorder %s77, 0
    %p496 = por %p494, %p495
    %p497 = scmp.ne.s32.totalorder %s489, %s491
    %p498 = scmp.eq.s32.totalorder %s82, 1
    %p499 = por %p497, %p498
    %p500 = scmp.ne.s32.totalorder %s491, %s492
    %p501 = scmp.eq.s32.totalorder %s82, 0
    %p502 = por %p500, %p501
    %p503 = scmp.ne.s32.totalorder %s491, %s492
    %p504 = scmp.eq.s32.totalorder %s83, 1
    %p505 = por %p503, %p504
    %p507 = scmp.ne.s32.totalorder %s492, %s506
    %p508 = scmp.eq.s32.totalorder %s83, 0
    %p509 = por %p507, %p508
    %s511 = sadd.s32 %s510, 1
    %p514 = scmp.eq.s32.totalorder %s77, 1
    %p515 = scmp.ne.s32.totalorder %s510, %s512
    %p516 = scmp.eq.s32.totalorder %s77, 0
    %p517 = por %p515, %p516
    %p518 = scmp.ne.s32.totalorder %s510, %s512
    %p519 = scmp.eq.s32.totalorder %s82, 1
    %p520 = por %p518, %p519
    %p521 = scmp.ne.s32.totalorder %s512, %s513
    %p522 = scmp.eq.s32.totalorder %s82, 0
    %p523 = por %p521, %p522
    %p524 = scmp.ne.s32.totalorder %s512, %s513
    %p525 = scmp.eq.s32.totalorder %s83, 1
    %p526 = por %p524, %p525
    %p528 = scmp.ne.s32.totalorder %s513, %s527
    %p529 = scmp.eq.s32.totalorder %s83, 0
    %p530 = por %p528, %p529
    %s532 = sadd.s32 %s531, 1
    %p535 = scmp.eq.s32.totalorder %s77, 1
    %p536 = scmp.ne.s32.totalorder %s531, %s533
    %p537 = scmp.eq.s32.totalorder %s77, 0
    %p538 = por %p536, %p537
    %p539 = scmp.ne.s32.totalorder %s531, %s533
    %p540 = scmp.eq.s32.totalorder %s82, 1
    %p541 = por %p539, %p540
    %p542 = scmp.ne.s32.totalorder %s533, %s534
    %p543 = scmp.eq.s32.totalorder %s82, 0
    %p544 = por %p542, %p543
    %p545 = scmp.ne.s32.totalorder %s533, %s534
    %p546 = scmp.eq.s32.totalorder %s83, 1
    %p547 = por %p545, %p546
    %p549 = scmp.ne.s32.totalorder %s534, %s548
    %p550 = scmp.eq.s32.totalorder %s83, 0
    %p551 = por %p549, %p550
    %s553 = sadd.s32 %s552, 1
    %p556 = scmp.eq.s32.totalorder %s77, 1
    %p557 = scmp.ne.s32.totalorder %s552, %s554
    %p558 = scmp.eq.s32.totalorder %s77, 0
    %p559 = por %p557, %p558
    %p560 = scmp.ne.s32.totalorder %s552, %s554
    %p561 = scmp.eq.s32.totalorder %s82, 1
    %p562 = por %p560, %p561
    %p563 = scmp.ne.s32.totalorder %s554, %s555
    %p564 = scmp.eq.s32.totalorder %s82, 0
    %p565 = por %p563, %p564
    %p566 = scmp.ne.s32.totalorder %s554, %s555
    %p567 = scmp.eq.s32.totalorder %s83, 1
    %p568 = por %p566, %p567
    %p570 = scmp.ne.s32.totalorder %s555, %s569
    %p571 = scmp.eq.s32.totalorder %s83, 0
    %p572 = por %p570, %p571
    %s574 = sadd.s32 %s573, 1
    %p577 = scmp.eq.s32.totalorder %s77, 1
    %p578 = scmp.ne.s32.totalorder %s573, %s575
    %p579 = scmp.eq.s32.totalorder %s77, 0
    %p580 = por %p578, %p579
    %p581 = scmp.ne.s32.totalorder %s573, %s575
    %p582 = scmp.eq.s32.totalorder %s82, 1
    %p583 = por %p581, %p582
    %p584 = scmp.ne.s32.totalorder %s575, %s576
    %p585 = scmp.eq.s32.totalorder %s82, 0
    %p586 = por %p584, %p585
    %p587 = scmp.ne.s32.totalorder %s575, %s576
    %p588 = scmp.eq.s32.totalorder %s83, 1
    %p589 = por %p587, %p588
    %p591 = scmp.ne.s32.totalorder %s576, %s590
    %p592 = scmp.eq.s32.totalorder %s83, 0
    %p593 = por %p591, %p592
    %s595 = sadd.s32 %s594, 1
    %p598 = scmp.eq.s32.totalorder %s77, 1
    %p599 = scmp.ne.s32.totalorder %s594, %s596
    %p600 = scmp.eq.s32.totalorder %s77, 0
    %p601 = por %p599, %p600
    %p602 = scmp.ne.s32.totalorder %s594, %s596
    %p603 = scmp.eq.s32.totalorder %s82, 1
    %p604 = por %p602, %p603
    %p605 = scmp.ne.s32.totalorder %s596, %s597
    %p606 = scmp.eq.s32.totalorder %s82, 0
    %p607 = por %p605, %p606
    %p608 = scmp.ne.s32.totalorder %s596, %s597
    %p609 = scmp.eq.s32.totalorder %s83, 1
    %p610 = por %p608, %p609
    %p612 = scmp.ne.s32.totalorder %s597, %s611
    %p613 = scmp.eq.s32.totalorder %s83, 0
    %p614 = por %p612, %p613
    %s616 = sadd.s32 %s615, 1
    %p619 = scmp.eq.s32.totalorder %s77, 1
    %p620 = scmp.ne.s32.totalorder %s615, %s617
    %p621 = scmp.eq.s32.totalorder %s77, 0
    %p622 = por %p620, %p621
    %p623 = scmp.ne.s32.totalorder %s615, %s617
    %p624 = scmp.eq.s32.totalorder %s82, 1
    %p625 = por %p623, %p624
    %p626 = scmp.ne.s32.totalorder %s617, %s618
    %p627 = scmp.eq.s32.totalorder %s82, 0
    %p628 = por %p626, %p627
    %p629 = scmp.ne.s32.totalorder %s617, %s618
    %p630 = scmp.eq.s32.totalorder %s83, 1
    %p631 = por %p629, %p630
    %p633 = scmp.ne.s32.totalorder %s618, %s632
    %p634 = scmp.eq.s32.totalorder %s83, 0
    %p635 = por %p633, %p634
    %s637 = sadd.s32 %s636, 1
    %p640 = scmp.eq.s32.totalorder %s77, 1
    %p641 = scmp.ne.s32.totalorder %s636, %s638
    %p642 = scmp.eq.s32.totalorder %s77, 0
    %p643 = por %p641, %p642
    %p644 = scmp.ne.s32.totalorder %s636, %s638
    %p645 = scmp.eq.s32.totalorder %s82, 1
    %p646 = por %p644, %p645
    %p647 = scmp.ne.s32.totalorder %s638, %s639
    %p648 = scmp.eq.s32.totalorder %s82, 0
    %p649 = por %p647, %p648
    %p650 = scmp.ne.s32.totalorder %s638, %s639
    %p651 = scmp.eq.s32.totalorder %s83, 1
    %p652 = por %p650, %p651
    %p654 = scmp.ne.s32.totalorder %s639, %s653
    %p655 = scmp.eq.s32.totalorder %s83, 0
    %p656 = por %p654, %p655
    %s658 = sadd.s32 %s657, 1
    %p661 = scmp.eq.s32.totalorder %s77, 1
    %p662 = scmp.ne.s32.totalorder %s657, %s659
    %p663 = scmp.eq.s32.totalorder %s77, 0
    %p664 = por %p662, %p663
    %p665 = scmp.ne.s32.totalorder %s657, %s659
    %p666 = scmp.eq.s32.totalorder %s82, 1
    %p667 = por %p665, %p666
    %p668 = scmp.ne.s32.totalorder %s659, %s660
    %p669 = scmp.eq.s32.totalorder %s82, 0
    %p670 = por %p668, %p669
    %p671 = scmp.ne.s32.totalorder %s659, %s660
    %p672 = scmp.eq.s32.totalorder %s83, 1
    %p673 = por %p671, %p672
    %p675 = scmp.ne.s32.totalorder %s660, %s674
    %p676 = scmp.eq.s32.totalorder %s83, 0
    %p677 = por %p675, %p676
    %s679 = sadd.s32 %s678, 1
    %p682 = scmp.eq.s32.totalorder %s77, 1
    %p683 = scmp.ne.s32.totalorder %s678, %s680
    %p684 = scmp.eq.s32.totalorder %s77, 0
    %p685 = por %p683, %p684
    %p686 = scmp.ne.s32.totalorder %s678, %s680
    %p687 = scmp.eq.s32.totalorder %s82, 1
    %p688 = por %p686, %p687
    %p689 = scmp.ne.s32.totalorder %s680, %s681
    %p690 = scmp.eq.s32.totalorder %s82, 0
    %p691 = por %p689, %p690
    %p692 = scmp.ne.s32.totalorder %s680, %s681
    %p693 = scmp.eq.s32.totalorder %s83, 1
    %p694 = por %p692, %p693
    %p696 = scmp.ne.s32.totalorder %s681, %s695
    %p697 = scmp.eq.s32.totalorder %s83, 0
    %p698 = por %p696, %p697
    %s700 = sadd.s32 %s699, 1
    %p703 = scmp.eq.s32.totalorder %s77, 1
    %p704 = scmp.ne.s32.totalorder %s699, %s701
    %p705 = scmp.eq.s32.totalorder %s77, 0
    %p706 = por %p704, %p705
    %p707 = scmp.ne.s32.totalorder %s699, %s701
    %p708 = scmp.eq.s32.totalorder %s82, 1
    %p709 = por %p707, %p708
    %p710 = scmp.ne.s32.totalorder %s701, %s702
    %p711 = scmp.eq.s32.totalorder %s82, 0
    %p712 = por %p710, %p711
    %p713 = scmp.ne.s32.totalorder %s701, %s702
    %p714 = scmp.eq.s32.totalorder %s83, 1
    %p715 = por %p713, %p714
    %p717 = scmp.ne.s32.totalorder %s702, %s716
    %p718 = scmp.eq.s32.totalorder %s83, 0
    %p719 = por %p717, %p718
    %s721 = sadd.s32 %s720, 1
    %p724 = scmp.eq.s32.totalorder %s77, 1
    %p725 = scmp.ne.s32.totalorder %s720, %s722
    %p726 = scmp.eq.s32.totalorder %s77, 0
    %p727 = por %p725, %p726
    %p728 = scmp.ne.s32.totalorder %s720, %s722
    %p729 = scmp.eq.s32.totalorder %s82, 1
    %p730 = por %p728, %p729
    %p731 = scmp.ne.s32.totalorder %s722, %s723
    %p732 = scmp.eq.s32.totalorder %s82, 0
    %p733 = por %p731, %p732
    %p734 = scmp.ne.s32.totalorder %s722, %s723
    %p735 = scmp.eq.s32.totalorder %s83, 1
    %p736 = por %p734, %p735
    %p738 = scmp.ne.s32.totalorder %s723, %s737
    %p739 = scmp.eq.s32.totalorder %s83, 0
    %p740 = por %p738, %p739
    %s742 = sadd.s32 %s741, 1
    %p745 = scmp.eq.s32.totalorder %s77, 1
    %p746 = scmp.ne.s32.totalorder %s741, %s743
    %p747 = scmp.eq.s32.totalorder %s77, 0
    %p748 = por %p746, %p747
    %p749 = scmp.ne.s32.totalorder %s741, %s743
    %p750 = scmp.eq.s32.totalorder %s82, 1
    %p751 = por %p749, %p750
    %p752 = scmp.ne.s32.totalorder %s743, %s744
    %p753 = scmp.eq.s32.totalorder %s82, 0
    %p754 = por %p752, %p753
    %p755 = scmp.ne.s32.totalorder %s743, %s744
    %p756 = scmp.eq.s32.totalorder %s83, 1
    %p757 = por %p755, %p756
    %p759 = scmp.ne.s32.totalorder %s744, %s758
    %p760 = scmp.eq.s32.totalorder %s83, 0
    %p761 = por %p759, %p760
    %s763 = sadd.s32 %s762, 1
    %p766 = scmp.eq.s32.totalorder %s77, 1
    %p767 = scmp.ne.s32.totalorder %s762, %s764
    %p768 = scmp.eq.s32.totalorder %s77, 0
    %p769 = por %p767, %p768
    %p770 = scmp.ne.s32.totalorder %s762, %s764
    %p771 = scmp.eq.s32.totalorder %s82, 1
    %p772 = por %p770, %p771
    %p773 = scmp.ne.s32.totalorder %s764, %s765
    %p774 = scmp.eq.s32.totalorder %s82, 0
    %p775 = por %p773, %p774
    %p776 = scmp.ne.s32.totalorder %s764, %s765
    %p777 = scmp.eq.s32.totalorder %s83, 1
    %p778 = por %p776, %p777
    %p780 = scmp.ne.s32.totalorder %s765, %s779
    %p781 = scmp.eq.s32.totalorder %s83, 0
    %p782 = por %p780, %p781
    %s784 = sadd.s32 %s783, 1
    %p787 = scmp.eq.s32.totalorder %s77, 1
    %p788 = scmp.ne.s32.totalorder %s783, %s785
    %p789 = scmp.eq.s32.totalorder %s77, 0
    %p790 = por %p788, %p789
    %p791 = scmp.ne.s32.totalorder %s783, %s785
    %p792 = scmp.eq.s32.totalorder %s82, 1
    %p793 = por %p791, %p792
    %p794 = scmp.ne.s32.totalorder %s785, %s786
    %p795 = scmp.eq.s32.totalorder %s82, 0
    %p796 = por %p794, %p795
    %p797 = scmp.ne.s32.totalorder %s785, %s786
    %p798 = scmp.eq.s32.totalorder %s83, 1
    %p799 = por %p797, %p798
    %p801 = scmp.ne.s32.totalorder %s786, %s800
    %p802 = scmp.eq.s32.totalorder %s83, 0
    %p803 = por %p801, %p802
    %s805 = sadd.s32 %s804, 1
    %p808 = scmp.eq.s32.totalorder %s77, 1
    %p809 = scmp.ne.s32.totalorder %s804, %s806
    %p810 = scmp.eq.s32.totalorder %s77, 0
    %p811 = por %p809, %p810
    %p812 = scmp.ne.s32.totalorder %s804, %s806
    %p813 = scmp.eq.s32.totalorder %s82, 1
    %p814 = por %p812, %p813
    %p815 = scmp.ne.s32.totalorder %s806, %s807
    %p816 = scmp.eq.s32.totalorder %s82, 0
    %p817 = por %p815, %p816
    %p818 = scmp.ne.s32.totalorder %s806, %s807
    %p819 = scmp.eq.s32.totalorder %s83, 1
    %p820 = por %p818, %p819
    %p822 = scmp.ne.s32.totalorder %s807, %s821
    %p823 = scmp.eq.s32.totalorder %s83, 0
    %p824 = por %p822, %p823
    %s825 = ssub.s32 %s77, %s84
    %p826 = scmp.eq.s32.totalorder %s825, 0
    %s828 = sadd.s32 %s827, 1
    %s829 = scalar_select %p826, %s827, %s828
    %p832 = pneg %p826
    %p833 = scmp.eq.s32.totalorder %s77, 1
    %p834 = por %p832, %p833
    %p835 = scmp.ne.s32.totalorder %s827, %s830
    %p836 = scmp.eq.s32.totalorder %s77, 0
    %p837 = por %p835, %p836
    %p838 = scmp.ne.s32.totalorder %s827, %s830
    %p839 = scmp.eq.s32.totalorder %s82, 1
    %p840 = por %p838, %p839
    %p841 = scmp.ne.s32.totalorder %s830, %s831
    %p842 = scmp.eq.s32.totalorder %s82, 0
    %p843 = por %p841, %p842
    %p844 = scmp.ne.s32.totalorder %s830, %s831
    %p845 = scmp.eq.s32.totalorder %s83, 1
    %p846 = por %p844, %p845
    %p848 = scmp.ne.s32.totalorder %s831, %s847
    %p849 = scmp.eq.s32.totalorder %s83, 0
    %p850 = por %p848, %p849
    %p851 = scmp.le.s32.totalorder 1, %s77
    %p852 = scmp.lt.s32.totalorder %s77, 3
    %p853 = pnand %p851, %p852
    %p854 = pneg %p853
    // Predicated region
    $region9: #{_lambda_.1} parent=5 // pred_check
      _
    $region10: #{_lambda_.1} parent=5 // pred_check_branch
      %856 = sbr.rel (%p853) target = $region12
    $region11: #{_lambda_.1} parent=5 // pred_region
      %s857 = ssub.s32 %s77, 1
      // Predicated region
      $region13: #{_lambda_.1} parent=11 // pred_check
        %p858 = pneg %p124
      $region14: #{_lambda_.1} parent=11 // pred_check_branch
        %860 = sbr.rel (%p858) target = $region16
      $region15: #{_lambda_.1} parent=11 // pred_region
        _
      $region16: #{_lambda_.1} parent=11 // pred_fallthru
        _
      // Predicated region
      $region17: #{_lambda_.1} parent=11 // pred_check
        %p861 = pneg %p145
      $region18: #{_lambda_.1} parent=11 // pred_check_branch
        %863 = sbr.rel (%p861) target = $region20
      $region19: #{_lambda_.1} parent=11 // pred_region
        _
      $region20: #{_lambda_.1} parent=11 // pred_fallthru
        _
      // Predicated region
      $region21: #{_lambda_.1} parent=11 // pred_check
        %p864 = pneg %p166
      $region22: #{_lambda_.1} parent=11 // pred_check_branch
        %866 = sbr.rel (%p864) target = $region24
      $region23: #{_lambda_.1} parent=11 // pred_region
        _
      $region24: #{_lambda_.1} parent=11 // pred_fallthru
        _
      // Predicated region
      $region25: #{_lambda_.1} parent=11 // pred_check
        %p867 = pneg %p187
      $region26: #{_lambda_.1} parent=11 // pred_check_branch
        %869 = sbr.rel (%p867) target = $region28
      $region27: #{_lambda_.1} parent=11 // pred_region
        _
      $region28: #{_lambda_.1} parent=11 // pred_fallthru
        _
      // Predicated region
      $region29: #{_lambda_.1} parent=11 // pred_check
        %p870 = pneg %p208
      $region30: #{_lambda_.1} parent=11 // pred_check_branch
        %872 = sbr.rel (%p870) target = $region32
      $region31: #{_lambda_.1} parent=11 // pred_region
        _
      $region32: #{_lambda_.1} parent=11 // pred_fallthru
        _
      // Predicated region
      $region33: #{_lambda_.1} parent=11 // pred_check
        %p873 = pneg %p229
      $region34: #{_lambda_.1} parent=11 // pred_check_branch
        %875 = sbr.rel (%p873) target = $region36
      $region35: #{_lambda_.1} parent=11 // pred_region
        _
      $region36: #{_lambda_.1} parent=11 // pred_fallthru
        _
      // Predicated region
      $region37: #{_lambda_.1} parent=11 // pred_check
        %p876 = pneg %p250
      $region38: #{_lambda_.1} parent=11 // pred_check_branch
        %878 = sbr.rel (%p876) target = $region40
      $region39: #{_lambda_.1} parent=11 // pred_region
        _
      $region40: #{_lambda_.1} parent=11 // pred_fallthru
        _
      // Predicated region
      $region41: #{_lambda_.1} parent=11 // pred_check
        %p879 = pneg %p271
      $region42: #{_lambda_.1} parent=11 // pred_check_branch
        %881 = sbr.rel (%p879) target = $region44
      $region43: #{_lambda_.1} parent=11 // pred_region
        _
      $region44: #{_lambda_.1} parent=11 // pred_fallthru
        _
      // Predicated region
      $region45: #{_lambda_.1} parent=11 // pred_check
        %p882 = pneg %p292
      $region46: #{_lambda_.1} parent=11 // pred_check_branch
        %884 = sbr.rel (%p882) target = $region48
      $region47: #{_lambda_.1} parent=11 // pred_region
        _
      $region48: #{_lambda_.1} parent=11 // pred_fallthru
        _
      // Predicated region
      $region49: #{_lambda_.1} parent=11 // pred_check
        %p885 = pneg %p313
      $region50: #{_lambda_.1} parent=11 // pred_check_branch
        %887 = sbr.rel (%p885) target = $region52
      $region51: #{_lambda_.1} parent=11 // pred_region
        _
      $region52: #{_lambda_.1} parent=11 // pred_fallthru
        _
      // Predicated region
      $region53: #{_lambda_.1} parent=11 // pred_check
        %p888 = pneg %p334
      $region54: #{_lambda_.1} parent=11 // pred_check_branch
        %890 = sbr.rel (%p888) target = $region56
      $region55: #{_lambda_.1} parent=11 // pred_region
        _
      $region56: #{_lambda_.1} parent=11 // pred_fallthru
        _
      // Predicated region
      $region57: #{_lambda_.1} parent=11 // pred_check
        %p891 = pneg %p355
      $region58: #{_lambda_.1} parent=11 // pred_check_branch
        %893 = sbr.rel (%p891) target = $region60
      $region59: #{_lambda_.1} parent=11 // pred_region
        _
      $region60: #{_lambda_.1} parent=11 // pred_fallthru
        _
      // Predicated region
      $region61: #{_lambda_.1} parent=11 // pred_check
        %p894 = pneg %p376
      $region62: #{_lambda_.1} parent=11 // pred_check_branch
        %896 = sbr.rel (%p894) target = $region64
      $region63: #{_lambda_.1} parent=11 // pred_region
        _
      $region64: #{_lambda_.1} parent=11 // pred_fallthru
        _
      // Predicated region
      $region65: #{_lambda_.1} parent=11 // pred_check
        %p897 = pneg %p397
      $region66: #{_lambda_.1} parent=11 // pred_check_branch
        %899 = sbr.rel (%p897) target = $region68
      $region67: #{_lambda_.1} parent=11 // pred_region
        _
      $region68: #{_lambda_.1} parent=11 // pred_fallthru
        _
      // Predicated region
      $region69: #{_lambda_.1} parent=11 // pred_check
        %p900 = pneg %p418
      $region70: #{_lambda_.1} parent=11 // pred_check_branch
        %902 = sbr.rel (%p900) target = $region72
      $region71: #{_lambda_.1} parent=11 // pred_region
        _
      $region72: #{_lambda_.1} parent=11 // pred_fallthru
        _
      // Predicated region
      $region73: #{_lambda_.1} parent=11 // pred_check
        %p903 = pneg %p439
      $region74: #{_lambda_.1} parent=11 // pred_check_branch
        %905 = sbr.rel (%p903) target = $region76
      $region75: #{_lambda_.1} parent=11 // pred_region
        _
      $region76: #{_lambda_.1} parent=11 // pred_fallthru
        _
      // Predicated region
      $region77: #{_lambda_.1} parent=11 // pred_check
        %p906 = pneg %p460
      $region78: #{_lambda_.1} parent=11 // pred_check_branch
        %908 = sbr.rel (%p906) target = $region80
      $region79: #{_lambda_.1} parent=11 // pred_region
        _
      $region80: #{_lambda_.1} parent=11 // pred_fallthru
        _
      // Predicated region
      $region81: #{_lambda_.1} parent=11 // pred_check
        %p909 = pneg %p481
      $region82: #{_lambda_.1} parent=11 // pred_check_branch
        %911 = sbr.rel (%p909) target = $region84
      $region83: #{_lambda_.1} parent=11 // pred_region
        _
      $region84: #{_lambda_.1} parent=11 // pred_fallthru
        _
      // Predicated region
      $region85: #{_lambda_.1} parent=11 // pred_check
        %p912 = pneg %p502
      $region86: #{_lambda_.1} parent=11 // pred_check_branch
        %914 = sbr.rel (%p912) target = $region88
      $region87: #{_lambda_.1} parent=11 // pred_region
        _
      $region88: #{_lambda_.1} parent=11 // pred_fallthru
        _
      // Predicated region
      $region89: #{_lambda_.1} parent=11 // pred_check
        %p915 = pneg %p523
      $region90: #{_lambda_.1} parent=11 // pred_check_branch
        %917 = sbr.rel (%p915) target = $region92
      $region91: #{_lambda_.1} parent=11 // pred_region
        _
      $region92: #{_lambda_.1} parent=11 // pred_fallthru
        _
      // Predicated region
      $region93: #{_lambda_.1} parent=11 // pred_check
        %p918 = pneg %p544
      $region94: #{_lambda_.1} parent=11 // pred_check_branch
        %920 = sbr.rel (%p918) target = $region96
      $region95: #{_lambda_.1} parent=11 // pred_region
        _
      $region96: #{_lambda_.1} parent=11 // pred_fallthru
        _
      // Predicated region
      $region97: #{_lambda_.1} parent=11 // pred_check
        %p921 = pneg %p565
      $region98: #{_lambda_.1} parent=11 // pred_check_branch
        %923 = sbr.rel (%p921) target = $region100
      $region99: #{_lambda_.1} parent=11 // pred_region
        _
      $region100: #{_lambda_.1} parent=11 // pred_fallthru
        _
      // Predicated region
      $region101: #{_lambda_.1} parent=11 // pred_check
        %p924 = pneg %p586
      $region102: #{_lambda_.1} parent=11 // pred_check_branch
        %926 = sbr.rel (%p924) target = $region104
      $region103: #{_lambda_.1} parent=11 // pred_region
        _
      $region104: #{_lambda_.1} parent=11 // pred_fallthru
        _
      // Predicated region
      $region105: #{_lambda_.1} parent=11 // pred_check
        %p927 = pneg %p607
      $region106: #{_lambda_.1} parent=11 // pred_check_branch
        %929 = sbr.rel (%p927) target = $region108
      $region107: #{_lambda_.1} parent=11 // pred_region
        _
      $region108: #{_lambda_.1} parent=11 // pred_fallthru
        _
      // Predicated region
      $region109: #{_lambda_.1} parent=11 // pred_check
        %p930 = pneg %p628
      $region110: #{_lambda_.1} parent=11 // pred_check_branch
        %932 = sbr.rel (%p930) target = $region112
      $region111: #{_lambda_.1} parent=11 // pred_region
        _
      $region112: #{_lambda_.1} parent=11 // pred_fallthru
        _
      // Predicated region
      $region113: #{_lambda_.1} parent=11 // pred_check
        %p933 = pneg %p649
      $region114: #{_lambda_.1} parent=11 // pred_check_branch
        %935 = sbr.rel (%p933) target = $region116
      $region115: #{_lambda_.1} parent=11 // pred_region
        _
      $region116: #{_lambda_.1} parent=11 // pred_fallthru
        _
      // Predicated region
      $region117: #{_lambda_.1} parent=11 // pred_check
        %p936 = pneg %p670
      $region118: #{_lambda_.1} parent=11 // pred_check_branch
        %938 = sbr.rel (%p936) target = $region120
      $region119: #{_lambda_.1} parent=11 // pred_region
        _
      $region120: #{_lambda_.1} parent=11 // pred_fallthru
        _
      // Predicated region
      $region121: #{_lambda_.1} parent=11 // pred_check
        %p939 = pneg %p691
      $region122: #{_lambda_.1} parent=11 // pred_check_branch
        %941 = sbr.rel (%p939) target = $region124
      $region123: #{_lambda_.1} parent=11 // pred_region
        _
      $region124: #{_lambda_.1} parent=11 // pred_fallthru
        _
      // Predicated region
      $region125: #{_lambda_.1} parent=11 // pred_check
        %p942 = pneg %p712
      $region126: #{_lambda_.1} parent=11 // pred_check_branch
        %944 = sbr.rel (%p942) target = $region128
      $region127: #{_lambda_.1} parent=11 // pred_region
        _
      $region128: #{_lambda_.1} parent=11 // pred_fallthru
        _
      // Predicated region
      $region129: #{_lambda_.1} parent=11 // pred_check
        %p945 = pneg %p733
      $region130: #{_lambda_.1} parent=11 // pred_check_branch
        %947 = sbr.rel (%p945) target = $region132
      $region131: #{_lambda_.1} parent=11 // pred_region
        _
      $region132: #{_lambda_.1} parent=11 // pred_fallthru
        _
      // Predicated region
      $region133: #{_lambda_.1} parent=11 // pred_check
        %p948 = pneg %p754
      $region134: #{_lambda_.1} parent=11 // pred_check_branch
        %950 = sbr.rel (%p948) target = $region136
      $region135: #{_lambda_.1} parent=11 // pred_region
        _
      $region136: #{_lambda_.1} parent=11 // pred_fallthru
        _
      // Predicated region
      $region137: #{_lambda_.1} parent=11 // pred_check
        %p951 = pneg %p775
      $region138: #{_lambda_.1} parent=11 // pred_check_branch
        %953 = sbr.rel (%p951) target = $region140
      $region139: #{_lambda_.1} parent=11 // pred_region
        _
      $region140: #{_lambda_.1} parent=11 // pred_fallthru
        _
      // Predicated region
      $region141: #{_lambda_.1} parent=11 // pred_check
        %p954 = pneg %p796
      $region142: #{_lambda_.1} parent=11 // pred_check_branch
        %956 = sbr.rel (%p954) target = $region144
      $region143: #{_lambda_.1} parent=11 // pred_region
        _
      $region144: #{_lambda_.1} parent=11 // pred_fallthru
        _
      // Predicated region
      $region145: #{_lambda_.1} parent=11 // pred_check
        %p957 = pneg %p817
      $region146: #{_lambda_.1} parent=11 // pred_check_branch
        %959 = sbr.rel (%p957) target = $region148
      $region147: #{_lambda_.1} parent=11 // pred_region
        _
      $region148: #{_lambda_.1} parent=11 // pred_fallthru
        _
    $region12: #{_lambda_.1} parent=5 // pred_fallthru
      _
    %p960 = scmp.lt.s32.totalorder %s77, 2
    // Predicated region
    $region149: #{_lambda_.1} parent=5 // pred_check
      %p961 = pneg %p960
    $region150: #{_lambda_.1} parent=5 // pred_check_branch
      %963 = sbr.rel (%p961) target = $region152
    $region151: #{_lambda_.1} parent=5 // pred_region
      // Predicated region
      $region153: #{_lambda_.1} parent=151 // pred_check
        %p964 = pneg %p97
      $region154: #{_lambda_.1} parent=151 // pred_check_branch
        %966 = sbr.rel (%p964) target = $region156
      $region155: #{_lambda_.1} parent=151 // pred_region
        %p967 = scmp.lt.s32.totalorder %s77, 1
        %s968 = scalar_select %p967, %s77, 1
        %s969 = smul.addr %s968, 6
        %s970 = smul.addr %s969, 8
        %s971 = scalar_lea.vmem %s1, %s970
      $region156: #{_lambda_.1} parent=151 // pred_fallthru
        _
    $region152: #{_lambda_.1} parent=5 // pred_fallthru
      _
    %p972 = scmp.le.s32.totalorder 1, %s77
    %p973 = scmp.lt.s32.totalorder %s77, 3
    %p974 = pnand %p972, %p973
    %p975 = pneg %p974
    // Predicated region
    $region157: #{_lambda_.1} parent=5 // pred_check
      _
    $region158: #{_lambda_.1} parent=5 // pred_check_branch
      %977 = sbr.rel (%p974) target = $region160
    $region159: #{_lambda_.1} parent=5 // pred_region
      %s978 = ssub.s32 %s77, 1
      %p979 = scmp.lt.s32.totalorder %s82, 1
      %s980 = scalar_select %p979, %s82, 1
      %s981 = smul.addr %s980, 6
      %s982 = smul.addr %s981, 8
      %s983 = scalar_lea.vmem %s1, %s982
      %p984 = pneg %p103
      %p985 = pneg %p100
      %p986 = pneg %p124
      %p987 = pneg %p121
      %p988 = pneg %p145
      %p989 = pneg %p142
      %p990 = pneg %p166
      %p991 = pneg %p163
      %p992 = pneg %p187
      %p993 = pneg %p184
      %p994 = pneg %p208
      %p995 = pneg %p205
      %p996 = pneg %p229
      %p997 = pneg %p226
      %p998 = pneg %p250
      %p999 = pneg %p247
      %p1000 = pneg %p271
      %p1001 = pneg %p268
      %p1002 = pneg %p292
      %p1003 = pneg %p289
      %p1004 = pneg %p313
      %p1005 = pneg %p310
      %p1006 = pneg %p334
      %p1007 = pneg %p331
      %p1008 = pneg %p355
      %p1009 = pneg %p352
      %p1010 = pneg %p376
      %p1011 = pneg %p373
      %p1012 = pneg %p397
      %p1013 = pneg %p394
      %p1014 = pneg %p418
      %p1015 = pneg %p415
      %p1016 = pneg %p439
      %p1017 = pneg %p436
      %p1018 = pneg %p460
      %p1019 = pneg %p457
      %p1020 = pneg %p481
      %p1021 = pneg %p478
      %p1022 = pneg %p502
      %p1023 = pneg %p499
      %p1024 = pneg %p523
      %p1025 = pneg %p520
      %p1026 = pneg %p544
      %p1027 = pneg %p541
      %p1028 = pneg %p565
      %p1029 = pneg %p562
      %p1030 = pneg %p586
      %p1031 = pneg %p583
      %p1032 = pneg %p607
      %p1033 = pneg %p604
      %p1034 = pneg %p628
      %p1035 = pneg %p625
      %p1036 = pneg %p649
      %p1037 = pneg %p646
      %p1038 = pneg %p670
      %p1039 = pneg %p667
      %p1040 = pneg %p691
      %p1041 = pneg %p688
      %p1042 = pneg %p712
      %p1043 = pneg %p709
      %p1044 = pneg %p733
      %p1045 = pneg %p730
      %p1046 = pneg %p754
      %p1047 = pneg %p751
      %p1048 = pneg %p775
      %p1049 = pneg %p772
      %p1050 = pneg %p796
      %p1051 = pneg %p793
      %p1052 = pneg %p817
      %p1053 = pneg %p814
      %p1054 = pneg %p843
      %p1055 = pneg %p840
      %p1056 = scmp.lt.s32.totalorder %s82, 1
      %s1057 = scalar_select %p1056, %s82, 1
      %s1058 = smul.addr %s1057, 3
      %s1059 = smul.addr %s1058, 8
      %s1060 = scalar_lea.vmem %s71, %s1059
      %p1061 = scmp.lt.s32.totalorder %s82, 1
      %s1062 = scalar_select %p1061, %s82, 1
      %s1063 = smul.addr %s1062, 6
      %s1064 = smul.addr %s1063, 8
      %s1065 = scalar_lea.vmem %s1, %s1064
      %p1066 = scmp.lt.s32.totalorder %s82, 1
      %s1067 = scalar_select %p1066, %s82, 1
      %s1068 = smul.addr %s1067, 3
      %s1069 = smul.addr %s1068, 8
      %s1070 = scalar_lea.vmem %s71, %s1069
      %v1072 = vld [vmem:[%s1065] sm:$0xff]
      %v1073 = vld [vmem:[%s1065 + $0x8] sm:$0xff]
      %v1074 = vld [vmem:[%s1065 + $0x10] sm:$0xff]
      %v1075 = vld [vmem:[%s1065 + $0x18] sm:$0xff]
      %v1076 = vld [vmem:[%s1065 + $0x20] sm:$0xff]
      %v1077 = vld [vmem:[%s1065 + $0x28] sm:$0xff]
      %v1078 = vld [vmem:[%s5] sm:$0xf]
      %v1079 = vld [vmem:[%s5 + $0x4] sm:$0xf]
      %v1080 = vpack.c.bf16 %v1073, %v1072
      %v1081 = vpack.c.bf16 %v1075, %v1074
      %v1082 = vpack.c.bf16 %v1077, %v1076
      %v1083 = vld [vmem:[%s7] sm:$0x1]
      %v1085 = vperm.slane %v1083, 0
      %v1089 = vunpack.c.l.b16 %v1078
      %v1090 = vunpack.c.l.b16 %v1079
      %v1091 = vpack.c.b16 %v1090, %v1089
      %vm1093 = vcmask 130048
      %v1095 = vsel %vm1093, %v1080, 0
      %v1098 = vsel %vm1093, %v1081, 0
      %v1101 = vsel %vm1093, %v1082, 0
      %1103 = vmatpush.bf16.msra.mxu0 0
      %1104 = vmatpush.bf16.msra.mxu0 0
      %1105 = vmatpush.bf16.msra.mxu0 0
      %1106 = vmatpush.bf16.msra.mxu0 0
      %1107 = vmatpush.bf16.msra.mxu0 0
      %1108 = vmatpush.bf16.msra.mxu0 0
      %1109 = vmatpush.bf16.msra.mxu0 0
      %1110 = vmatpush.bf16.msra.mxu0 %v1091
      %1111 = vmatmul.bf16.gmra.mxu0 %v1095
      %v1112 = vpop.f32.mrf.mxu0
      %v1113 = vadd.f32 %v1085, %v1112
      %v1114 = vpop.f32.mrf.mxu0
      %v1115 = vadd.f32 %v1085, %v1114
      %1116 = vmatmul.bf16.gmra.mxu0 %v1098
      %v1117 = vpop.f32.mrf.mxu0
      %v1118 = vadd.f32 %v1085, %v1117
      %v1119 = vpop.f32.mrf.mxu0
      %v1120 = vadd.f32 %v1085, %v1119
      %1121 = vmatmul.bf16.gmra.mxu0 %v1101
      %v1122 = vpop.f32.mrf.mxu0
      %v1123 = vadd.f32 %v1085, %v1122
      %v1124 = vpop.f32.mrf.mxu0
      %v1125 = vadd.f32 %v1085, %v1124
      %1126 = vdwg.mxu0
      %v1127 = vld [vmem:[%s3] sm:$0xff]
      %v1128 = vld [vmem:[%s3 + $0x8] sm:$0xff]
      %v1129 = vld [vmem:[%s3 + $0x10] sm:$0xff]
      %v1130 = vld [vmem:[%s3 + $0x18] sm:$0xff]
      %v1131 = vld [vmem:[%s3 + $0x20] sm:$0xff]
      %v1132 = vld [vmem:[%s3 + $0x28] sm:$0xff]
      %v1133 = vadd.f32 %v1113, %v1127
      %v1134 = vadd.f32 %v1115, %v1128
      %v1135 = vadd.f32 %v1118, %v1129
      %v1136 = vadd.f32 %v1120, %v1130
      %v1137 = vadd.f32 %v1123, %v1131
      %v1138 = vadd.f32 %v1125, %v1132
      %v1139 = vld [vmem:[%s9] sm:$0x3]
      %vm1140 = vcmask 261120
      %v1141 = vsel %vm1140, %v1133, 0.0
      %1142 = vadd.xlane.f32.xlu0 %v1141
      %v1143 = vpop.xlane.xlu0 %1142
      %v1144 = vsel %vm1140, %v1134, 0.0
      %1145 = vadd.xlane.f32.xlu0 %v1144
      %v1146 = vpop.xlane.xlu0 %1145
      %v1147 = vsel %vm1140, %v1135, 0.0
      %1148 = vadd.xlane.f32.xlu0 %v1147
      %v1149 = vpop.xlane.xlu0 %1148
      %v1150 = vsel %vm1140, %v1136, 0.0
      %1151 = vadd.xlane.f32.xlu0 %v1150
      %v1152 = vpop.xlane.xlu0 %1151
      %v1153 = vsel %vm1140, %v1137, 0.0
      %1154 = vadd.xlane.f32.xlu0 %v1153
      %v1155 = vpop.xlane.xlu0 %1154
      %v1156 = vsel %vm1140, %v1138, 0.0
      %1157 = vadd.xlane.f32.xlu0 %v1156
      %v1158 = vpop.xlane.xlu0 %1157
      %v1159 = vrcp.pop 32.0
      %v1160 = vmul.f32 32.0, %v1159
      %v1161 = vsub.f32 1.0, %v1160
      %v1162 = vmul.f32 %v1159, %v1161
      %v1163 = vadd.f32 %v1159, %v1162
      %vm1164 = vweird.f32 %v1159
      %v1165 = vsel %vm1164, %v1159, %v1163
      %v1166 = vmul.f32 %v1143, %v1165
      %v1167 = vmul.f32 %v1146, %v1165
      %v1168 = vmul.f32 %v1149, %v1165
      %v1169 = vmul.f32 %v1152, %v1165
      %v1170 = vmul.f32 %v1155, %v1165
      %v1171 = vmul.f32 %v1158, %v1165
      %v1172 = vsub.f32 %v1133, %v1166
      %v1173 = vsub.f32 %v1134, %v1167
      %v1174 = vsub.f32 %v1135, %v1168
      %v1175 = vsub.f32 %v1136, %v1169
      %v1176 = vsub.f32 %v1137, %v1170
      %v1177 = vsub.f32 %v1138, %v1171
      %v1178 = vmul.f32 %v1172, %v1172
      %v1179 = vmul.f32 %v1173, %v1173
      %v1180 = vmul.f32 %v1174, %v1174
      %v1181 = vmul.f32 %v1175, %v1175
      %v1182 = vmul.f32 %v1176, %v1176
      %v1183 = vmul.f32 %v1177, %v1177
      %v1184 = vsel %vm1140, %v1178, 0.0
      %1185 = vadd.xlane.f32.xlu0 %v1184
      %v1186 = vpop.xlane.xlu0 %1185
      %v1187 = vsel %vm1140, %v1179, 0.0
      %1188 = vadd.xlane.f32.xlu0 %v1187
      %v1189 = vpop.xlane.xlu0 %1188
      %v1190 = vsel %vm1140, %v1180, 0.0
      %1191 = vadd.xlane.f32.xlu0 %v1190
      %v1192 = vpop.xlane.xlu0 %1191
      %v1193 = vsel %vm1140, %v1181, 0.0
      %1194 = vadd.xlane.f32.xlu0 %v1193
      %v1195 = vpop.xlane.xlu0 %1194
      %v1196 = vsel %vm1140, %v1182, 0.0
      %1197 = vadd.xlane.f32.xlu0 %v1196
      %v1198 = vpop.xlane.xlu0 %1197
      %v1199 = vsel %vm1140, %v1183, 0.0
      %1200 = vadd.xlane.f32.xlu0 %v1199
      %v1201 = vpop.xlane.xlu0 %1200
      %v1202 = vrcp.pop 31.0
      %v1203 = vmul.f32 31.0, %v1202
      %v1204 = vsub.f32 1.0, %v1203
      %v1205 = vmul.f32 %v1202, %v1204
      %v1206 = vadd.f32 %v1202, %v1205
      %vm1207 = vweird.f32 %v1202
      %v1208 = vsel %vm1207, %v1202, %v1206
      %v1209 = vmul.f32 %v1186, %v1208
      %v1210 = vmul.f32 %v1189, %v1208
      %v1211 = vmul.f32 %v1192, %v1208
      %v1212 = vmul.f32 %v1195, %v1208
      %v1213 = vmul.f32 %v1198, %v1208
      %v1214 = vmul.f32 %v1201, %v1208
      %v1215 = vrsqrt.pop %v1209
      %v1216 = vmul.f32 %v1215, %v1209
      %v1217 = vmul.f32 %v1216, %v1215
      %v1218 = vmul.f32 0.5, %v1217
      %v1219 = vsub.f32 1.5, %v1218
      %v1220 = vmul.f32 %v1215, %v1219
      %v1221 = vmul.f32 %v1209, %v1220
      %vm1222 = vcmp.eq.f32.partialorder %v1209, inf
      %v1223 = vsel %vm1222, %v1209, %v1221
      %vm1224 = vcmp.eq.f32.partialorder %v1209, 0.0
      %v1225 = vand.u32 %v1209, 2147483648
      %v1226 = vsel %vm1224, %v1225, %v1223
      %v1227 = vrsqrt.pop %v1210
      %v1228 = vmul.f32 %v1227, %v1210
      %v1229 = vmul.f32 %v1228, %v1227
      %v1230 = vmul.f32 0.5, %v1229
      %v1231 = vsub.f32 1.5, %v1230
      %v1232 = vmul.f32 %v1227, %v1231
      %v1233 = vmul.f32 %v1210, %v1232
      %vm1234 = vcmp.eq.f32.partialorder %v1210, inf
      %v1235 = vsel %vm1234, %v1210, %v1233
      %vm1236 = vcmp.eq.f32.partialorder %v1210, 0.0
      %v1237 = vand.u32 %v1210, 2147483648
      %v1238 = vsel %vm1236, %v1237, %v1235
      %v1239 = vrsqrt.pop %v1211
      %v1240 = vmul.f32 %v1239, %v1211
      %v1241 = vmul.f32 %v1240, %v1239
      %v1242 = vmul.f32 0.5, %v1241
      %v1243 = vsub.f32 1.5, %v1242
      %v1244 = vmul.f32 %v1239, %v1243
      %v1245 = vmul.f32 %v1211, %v1244
      %vm1246 = vcmp.eq.f32.partialorder %v1211, inf
      %v1247 = vsel %vm1246, %v1211, %v1245
      %vm1248 = vcmp.eq.f32.partialorder %v1211, 0.0
      %v1249 = vand.u32 %v1211, 2147483648
      %v1250 = vsel %vm1248, %v1249, %v1247
      %v1251 = vrsqrt.pop %v1212
      %v1252 = vmul.f32 %v1251, %v1212
      %v1253 = vmul.f32 %v1252, %v1251
      %v1254 = vmul.f32 0.5, %v1253
      %v1255 = vsub.f32 1.5, %v1254
      %v1256 = vmul.f32 %v1251, %v1255
      %v1257 = vmul.f32 %v1212, %v1256
      %vm1258 = vcmp.eq.f32.partialorder %v1212, inf
      %v1259 = vsel %vm1258, %v1212, %v1257
      %vm1260 = vcmp.eq.f32.partialorder %v1212, 0.0
      %v1261 = vand.u32 %v1212, 2147483648
      %v1262 = vsel %vm1260, %v1261, %v1259
      %v1263 = vrsqrt.pop %v1213
      %v1264 = vmul.f32 %v1263, %v1213
      %v1265 = vmul.f32 %v1264, %v1263
      %v1266 = vmul.f32 0.5, %v1265
      %v1267 = vsub.f32 1.5, %v1266
      %v1268 = vmul.f32 %v1263, %v1267
      %v1269 = vmul.f32 %v1213, %v1268
      %vm1270 = vcmp.eq.f32.partialorder %v1213, inf
      %v1271 = vsel %vm1270, %v1213, %v1269
      %vm1272 = vcmp.eq.f32.partialorder %v1213, 0.0
      %v1273 = vand.u32 %v1213, 2147483648
      %v1274 = vsel %vm1272, %v1273, %v1271
      %v1275 = vrsqrt.pop %v1214
      %v1276 = vmul.f32 %v1275, %v1214
      %v1277 = vmul.f32 %v1276, %v1275
      %v1278 = vmul.f32 0.5, %v1277
      %v1279 = vsub.f32 1.5, %v1278
      %v1280 = vmul.f32 %v1275, %v1279
      %v1281 = vmul.f32 %v1214, %v1280
      %vm1282 = vcmp.eq.f32.partialorder %v1214, inf
      %v1283 = vsel %vm1282, %v1214, %v1281
      %vm1284 = vcmp.eq.f32.partialorder %v1214, 0.0
      %v1285 = vand.u32 %v1214, 2147483648
      %v1286 = vsel %vm1284, %v1285, %v1283
      %v1287 = vadd.f32 %v1226, 1e-06
      %v1288 = vadd.f32 %v1238, 1e-06
      %v1289 = vadd.f32 %v1250, 1e-06
      %v1290 = vadd.f32 %v1262, 1e-06
      %v1291 = vadd.f32 %v1274, 1e-06
      %v1292 = vadd.f32 %v1286, 1e-06
      %v1293 = vrcp.pop %v1287
      %v1294 = vrcp.pop %v1288
      %v1295 = vrcp.pop %v1289
      %v1296 = vrcp.pop %v1290
      %v1297 = vrcp.pop %v1291
      %v1298 = vrcp.pop %v1292
      %v1299 = vperm.slane %v1139, 0
      %v1300 = vmul.f32 %v1299, %v1172
      %v1301 = vmul.f32 %v1299, %v1173
      %v1302 = vmul.f32 %v1299, %v1174
      %v1303 = vmul.f32 %v1299, %v1175
      %v1304 = vmul.f32 %v1299, %v1176
      %v1305 = vmul.f32 %v1299, %v1177
      %v1306 = vmul.f32 %v1300, %v1293
      %v1307 = vmul.f32 %v1301, %v1294
      %v1308 = vmul.f32 %v1302, %v1295
      %v1309 = vmul.f32 %v1303, %v1296
      %v1310 = vmul.f32 %v1304, %v1297
      %v1311 = vmul.f32 %v1305, %v1298
      %v1312 = vperm.slane %v1139, 1
      %v1313 = vadd.f32 %v1306, %v1312
      %v1314 = vadd.f32 %v1307, %v1312
      %v1315 = vadd.f32 %v1308, %v1312
      %v1316 = vadd.f32 %v1309, %v1312
      %v1317 = vadd.f32 %v1310, %v1312
      %v1318 = vadd.f32 %v1311, %v1312
      %v1319 = vld [vmem:[%s11] sm:$0xf]
      %v1320 = vld [vmem:[%s11 + $0x4] sm:$0xf]
      %v1321 = vld [vmem:[%s11 + $0x8] sm:$0xf]
      %v1322 = vld [vmem:[%s11 + $0xc] sm:$0xf]
      %v1323 = vpack.c.bf16 %v1314, %v1313
      %v1324 = vpack.c.bf16 %v1316, %v1315
      %v1325 = vpack.c.bf16 %v1318, %v1317
      %v1326 = vld [vmem:[%s13] sm:$0x1]
      %v1328 = vperm.slane %v1326, 0
      %v1334 = vunpack.c.l.b16 %v1319
      %v1335 = vunpack.c.l.b16 %v1320
      %v1336 = vunpack.c.l.b16 %v1321
      %v1337 = vunpack.c.l.b16 %v1322
      %v1338 = vpack.c.b16 %v1335, %v1334
      %v1339 = vpack.c.b16 %v1337, %v1336
      %v1343 = vsel %vm1140, %v1323, 0
      %v1346 = vsel %vm1140, %v1324, 0
      %v1349 = vsel %vm1140, %v1325, 0
      %1351 = vmatpush.bf16.msra.mxu0 0
      %1352 = vmatpush.bf16.msra.mxu0 0
      %1353 = vmatpush.bf16.msra.mxu0 0
      %1354 = vmatpush.bf16.msra.mxu0 0
      %1355 = vmatpush.bf16.msra.mxu0 0
      %1356 = vmatpush.bf16.msra.mxu0 0
      %1357 = vmatpush.bf16.msra.mxu0 %v1339
      %1358 = vmatpush.bf16.msra.mxu0 %v1338
      %1359 = vmatmul.bf16.gmra.mxu0 %v1343
      %v1360 = vpop.f32.mrf.mxu0
      %v1361 = vadd.f32 %v1328, %v1360
      %v1362 = vpop.f32.mrf.mxu0
      %v1363 = vadd.f32 %v1328, %v1362
      %1364 = vmatmul.bf16.gmra.mxu0 %v1346
      %v1365 = vpop.f32.mrf.mxu0
      %v1366 = vadd.f32 %v1328, %v1365
      %v1367 = vpop.f32.mrf.mxu0
      %v1368 = vadd.f32 %v1328, %v1367
      %1369 = vmatmul.bf16.gmra.mxu0 %v1349
      %v1370 = vpop.f32.mrf.mxu0
      %v1371 = vadd.f32 %v1328, %v1370
      %v1372 = vpop.f32.mrf.mxu0
      %v1373 = vadd.f32 %v1328, %v1372
      %1374 = vdwg.mxu0
      %v1375 = vld [vmem:[%s15] sm:$0xf]
      %v1376 = vld [vmem:[%s15 + $0x4] sm:$0xf]
      %v1377 = vld [vmem:[%s15 + $0x8] sm:$0xf]
      %v1378 = vld [vmem:[%s15 + $0xc] sm:$0xf]
      %v1379 = vpack.c.bf16 %v1363, %v1361
      %v1380 = vpack.c.bf16 %v1368, %v1366
      %v1381 = vpack.c.bf16 %v1373, %v1371
      %1385 = vrot.lane.b32.xlu0 %v1379, 96
      %v1386 = vpop.permute.xlu0 %1385
      %1387 = vrot.lane.b32.xlu0 %v1380, 96
      %v1388 = vpop.permute.xlu0 %1387
      %1389 = vrot.lane.b32.xlu0 %v1381, 96
      %v1390 = vpop.permute.xlu0 %1389
      %vm1391 = vcmask 64512
      %v1393 = vsel %vm1391, %v1379, 0
      %v1396 = vsel %vm1391, %v1380, 0
      %v1399 = vsel %vm1391, %v1381, 0
      %v1402 = vsel %vm1391, %v1386, 0
      %v1405 = vsel %vm1391, %v1388, 0
      %v1408 = vsel %vm1391, %v1390, 0
      %1410 = vmatpush.bf16.xpose.msra.mxu0 0
      %1411 = vmatpush.bf16.xpose.msra.mxu0 0
      %1412 = vmatpush.bf16.xpose.msra.mxu0 0
      %1413 = vmatpush.bf16.xpose.msra.mxu0 0
      %1414 = vmatpush.bf16.xpose.msra.mxu0 0
      %1415 = vmatpush.bf16.xpose.msra.mxu0 %v1408
      %1416 = vmatpush.bf16.xpose.msra.mxu0 %v1405
      %1417 = vmatpush.bf16.xpose.msra.mxu0 %v1402
      %1418 = vmatmul.bf16.gmra.mxu0 %v1393
      %v1419 = vpop.f32.mrf.mxu0
      %v1420 = vadd.f32 0.0, %v1419
      %v1421 = vpop.f32.mrf.mxu0
      %v1422 = vadd.f32 0.0, %v1421
      %1423 = vmatmul.bf16.gmra.mxu0 %v1396
      %v1424 = vpop.f32.mrf.mxu0
      %v1425 = vadd.f32 0.0, %v1424
      %v1426 = vpop.f32.mrf.mxu0
      %v1427 = vadd.f32 0.0, %v1426
      %1428 = vmatmul.bf16.gmra.mxu0 %v1399
      %v1429 = vpop.f32.mrf.mxu0
      %v1430 = vadd.f32 0.0, %v1429
      %v1431 = vpop.f32.mrf.mxu0
      %v1432 = vadd.f32 0.0, %v1431
      %1433 = vdwg.mxu0
      %v1434 = vmul.f32 %v1420, 0.35355338
      %v1435 = vmul.f32 %v1422, 0.35355338
      %v1436 = vmul.f32 %v1425, 0.35355338
      %v1437 = vmul.f32 %v1427, 0.35355338
      %v1438 = vmul.f32 %v1430, 0.35355338
      %v1439 = vmul.f32 %v1432, 0.35355338
      %vm1440 = vcmask 392192
      %v1441 = vsel %vm1440, %v1434, -inf
      %1442 = vmax.xlane.f32.xlu0 %v1441
      %v1443 = vpop.xlane.xlu0 %1442
      %v1444 = vsel %vm1440, %v1435, -inf
      %1445 = vmax.xlane.f32.xlu0 %v1444
      %v1446 = vpop.xlane.xlu0 %1445
      %v1447 = vsel %vm1440, %v1436, -inf
      %1448 = vmax.xlane.f32.xlu0 %v1447
      %v1449 = vpop.xlane.xlu0 %1448
      %v1450 = vsel %vm1440, %v1437, -inf
      %1451 = vmax.xlane.f32.xlu0 %v1450
      %v1452 = vpop.xlane.xlu0 %1451
      %v1453 = vsel %vm1440, %v1438, -inf
      %1454 = vmax.xlane.f32.xlu0 %v1453
      %v1455 = vpop.xlane.xlu0 %1454
      %v1456 = vsel %vm1440, %v1439, -inf
      %1457 = vmax.xlane.f32.xlu0 %v1456
      %v1458 = vpop.xlane.xlu0 %1457
      %v1459 = vsub.f32 %v1434, %v1443
      %v1460 = vsub.f32 %v1435, %v1446
      %v1461 = vsub.f32 %v1436, %v1449
      %v1462 = vsub.f32 %v1437, %v1452
      %v1463 = vsub.f32 %v1438, %v1455
      %v1464 = vsub.f32 %v1439, %v1458
      %v1465 = vmul.f32 %v1459, 1.442695
      %v1466 = vpow.pop %v1465
      %v1467 = vmul.f32 %v1460, 1.442695
      %v1468 = vpow.pop %v1467
      %v1469 = vmul.f32 %v1461, 1.442695
      %v1470 = vpow.pop %v1469
      %v1471 = vmul.f32 %v1462, 1.442695
      %v1472 = vpow.pop %v1471
      %v1473 = vmul.f32 %v1463, 1.442695
      %v1474 = vpow.pop %v1473
      %v1475 = vmul.f32 %v1464, 1.442695
      %v1476 = vpow.pop %v1475
      %v1477 = vsel %vm1440, %v1466, 0.0
      %1478 = vadd.xlane.f32.xlu0 %v1477
      %v1479 = vpop.xlane.xlu0 %1478
      %v1480 = vsel %vm1440, %v1468, 0.0
      %1481 = vadd.xlane.f32.xlu0 %v1480
      %v1482 = vpop.xlane.xlu0 %1481
      %v1483 = vsel %vm1440, %v1470, 0.0
      %1484 = vadd.xlane.f32.xlu0 %v1483
      %v1485 = vpop.xlane.xlu0 %1484
      %v1486 = vsel %vm1440, %v1472, 0.0
      %1487 = vadd.xlane.f32.xlu0 %v1486
      %v1488 = vpop.xlane.xlu0 %1487
      %v1489 = vsel %vm1440, %v1474, 0.0
      %1490 = vadd.xlane.f32.xlu0 %v1489
      %v1491 = vpop.xlane.xlu0 %1490
      %v1492 = vsel %vm1440, %v1476, 0.0
      %1493 = vadd.xlane.f32.xlu0 %v1492
      %v1494 = vpop.xlane.xlu0 %1493
      %v1495 = vrcp.pop %v1479
      %v1496 = vrcp.pop %v1482
      %v1497 = vrcp.pop %v1485
      %v1498 = vrcp.pop %v1488
      %v1499 = vrcp.pop %v1491
      %v1500 = vrcp.pop %v1494
      %v1501 = vmul.f32 %v1466, %v1495
      %v1502 = vmul.f32 %v1468, %v1496
      %v1503 = vmul.f32 %v1470, %v1497
      %v1504 = vmul.f32 %v1472, %v1498
      %v1505 = vmul.f32 %v1474, %v1499
      %v1506 = vmul.f32 %v1476, %v1500
      %v1507 = vpack.c.bf16 %v1502, %v1501
      %v1508 = vpack.c.bf16 %v1504, %v1503
      %v1509 = vpack.c.bf16 %v1506, %v1505
      %1510 = vrot.lane.b32.xlu0 %v1379, 64
      %v1511 = vpop.permute.xlu0 %1510
      %1512 = vrot.lane.b32.xlu0 %v1380, 64
      %v1513 = vpop.permute.xlu0 %1512
      %1514 = vrot.lane.b32.xlu0 %v1381, 64
      %v1515 = vpop.permute.xlu0 %1514
      %v1520 = vsel %vm1440, %v1507, 0
      %v1523 = vsel %vm1440, %v1508, 0
      %v1526 = vsel %vm1440, %v1509, 0
      %1528 = vmatpush.bf16.msra.mxu0 0
      %1529 = vmatpush.bf16.msra.mxu0 0
      %1530 = vmatpush.bf16.msra.mxu0 0
      %1531 = vmatpush.bf16.msra.mxu0 0
      %1532 = vmatpush.bf16.msra.mxu0 0
      %1533 = vmatpush.bf16.msra.mxu0 %v1515
      %1534 = vmatpush.bf16.msra.mxu0 %v1513
      %1535 = vmatpush.bf16.msra.mxu0 %v1511
      %1536 = vmatmul.bf16.gmra.mxu0 %v1520
      %v1537 = vpop.f32.mrf.mxu0
      %v1538 = vadd.f32 0.0, %v1537
      %v1539 = vpop.f32.mrf.mxu0
      %v1540 = vadd.f32 0.0, %v1539
      %1541 = vmatmul.bf16.gmra.mxu0 %v1523
      %v1542 = vpop.f32.mrf.mxu0
      %v1543 = vadd.f32 0.0, %v1542
      %v1544 = vpop.f32.mrf.mxu0
      %v1545 = vadd.f32 0.0, %v1544
      %1546 = vmatmul.bf16.gmra.mxu0 %v1526
      %v1547 = vpop.f32.mrf.mxu0
      %v1548 = vadd.f32 0.0, %v1547
      %v1549 = vpop.f32.mrf.mxu0
      %v1550 = vadd.f32 0.0, %v1549
      %1551 = vdwg.mxu0
      %v1552 = vpack.c.bf16 %v1540, %v1538
      %v1553 = vpack.c.bf16 %v1545, %v1543
      %v1554 = vpack.c.bf16 %v1550, %v1548
      %1555 = vrot.lane.b32.xlu0 %v1379, 120
      %v1556 = vpop.permute.xlu0 %1555
      %1557 = vrot.lane.b32.xlu0 %v1380, 120
      %v1558 = vpop.permute.xlu0 %1557
      %1559 = vrot.lane.b32.xlu0 %v1381, 120
      %v1560 = vpop.permute.xlu0 %1559
      %1561 = vrot.lane.b32.xlu0 %v1379, 88
      %v1562 = vpop.permute.xlu0 %1561
      %1563 = vrot.lane.b32.xlu0 %v1380, 88
      %v1564 = vpop.permute.xlu0 %1563
      %1565 = vrot.lane.b32.xlu0 %v1381, 88
      %v1566 = vpop.permute.xlu0 %1565
      %v1568 = vsel %vm1391, %v1556, 0
      %v1571 = vsel %vm1391, %v1558, 0
      %v1574 = vsel %vm1391, %v1560, 0
      %v1577 = vsel %vm1391, %v1562, 0
      %v1580 = vsel %vm1391, %v1564, 0
      %v1583 = vsel %vm1391, %v1566, 0
      %1585 = vmatpush.bf16.xpose.msra.mxu0 0
      %1586 = vmatpush.bf16.xpose.msra.mxu0 0
      %1587 = vmatpush.bf16.xpose.msra.mxu0 0
      %1588 = vmatpush.bf16.xpose.msra.mxu0 0
      %1589 = vmatpush.bf16.xpose.msra.mxu0 0
      %1590 = vmatpush.bf16.xpose.msra.mxu0 %v1583
      %1591 = vmatpush.bf16.xpose.msra.mxu0 %v1580
      %1592 = vmatpush.bf16.xpose.msra.mxu0 %v1577
      %1593 = vmatmul.bf16.gmra.mxu0 %v1568
      %v1594 = vpop.f32.mrf.mxu0
      %v1595 = vadd.f32 0.0, %v1594
      %v1596 = vpop.f32.mrf.mxu0
      %v1597 = vadd.f32 0.0, %v1596
      %1598 = vmatmul.bf16.gmra.mxu0 %v1571
      %v1599 = vpop.f32.mrf.mxu0
      %v1600 = vadd.f32 0.0, %v1599
      %v1601 = vpop.f32.mrf.mxu0
      %v1602 = vadd.f32 0.0, %v1601
      %1603 = vmatmul.bf16.gmra.mxu0 %v1574
      %v1604 = vpop.f32.mrf.mxu0
      %v1605 = vadd.f32 0.0, %v1604
      %v1606 = vpop.f32.mrf.mxu0
      %v1607 = vadd.f32 0.0, %v1606
      %1608 = vdwg.mxu0
      %v1609 = vmul.f32 %v1595, 0.35355338
      %v1610 = vmul.f32 %v1597, 0.35355338
      %v1611 = vmul.f32 %v1600, 0.35355338
      %v1612 = vmul.f32 %v1602, 0.35355338
      %v1613 = vmul.f32 %v1605, 0.35355338
      %v1614 = vmul.f32 %v1607, 0.35355338
      %v1615 = vsel %vm1440, %v1609, -inf
      %1616 = vmax.xlane.f32.xlu0 %v1615
      %v1617 = vpop.xlane.xlu0 %1616
      %v1618 = vsel %vm1440, %v1610, -inf
      %1619 = vmax.xlane.f32.xlu0 %v1618
      %v1620 = vpop.xlane.xlu0 %1619
      %v1621 = vsel %vm1440, %v1611, -inf
      %1622 = vmax.xlane.f32.xlu0 %v1621
      %v1623 = vpop.xlane.xlu0 %1622
      %v1624 = vsel %vm1440, %v1612, -inf
      %1625 = vmax.xlane.f32.xlu0 %v1624
      %v1626 = vpop.xlane.xlu0 %1625
      %v1627 = vsel %vm1440, %v1613, -inf
      %1628 = vmax.xlane.f32.xlu0 %v1627
      %v1629 = vpop.xlane.xlu0 %1628
      %v1630 = vsel %vm1440, %v1614, -inf
      %1631 = vmax.xlane.f32.xlu0 %v1630
      %v1632 = vpop.xlane.xlu0 %1631
      %v1633 = vsub.f32 %v1609, %v1617
      %v1634 = vsub.f32 %v1610, %v1620
      %v1635 = vsub.f32 %v1611, %v1623
      %v1636 = vsub.f32 %v1612, %v1626
      %v1637 = vsub.f32 %v1613, %v1629
      %v1638 = vsub.f32 %v1614, %v1632
      %v1639 = vmul.f32 %v1633, 1.442695
      %v1640 = vpow.pop %v1639
      %v1641 = vmul.f32 %v1634, 1.442695
      %v1642 = vpow.pop %v1641
      %v1643 = vmul.f32 %v1635, 1.442695
      %v1644 = vpow.pop %v1643
      %v1645 = vmul.f32 %v1636, 1.442695
      %v1646 = vpow.pop %v1645
      %v1647 = vmul.f32 %v1637, 1.442695
      %v1648 = vpow.pop %v1647
      %v1649 = vmul.f32 %v1638, 1.442695
      %v1650 = vpow.pop %v1649
      %v1651 = vsel %vm1440, %v1640, 0.0
      %1652 = vadd.xlane.f32.xlu0 %v1651
      %v1653 = vpop.xlane.xlu0 %1652
      %v1654 = vsel %vm1440, %v1642, 0.0
      %1655 = vadd.xlane.f32.xlu0 %v1654
      %v1656 = vpop.xlane.xlu0 %1655
      %v1657 = vsel %vm1440, %v1644, 0.0
      %1658 = vadd.xlane.f32.xlu0 %v1657
      %v1659 = vpop.xlane.xlu0 %1658
      %v1660 = vsel %vm1440, %v1646, 0.0
      %1661 = vadd.xlane.f32.xlu0 %v1660
      %v1662 = vpop.xlane.xlu0 %1661
      %v1663 = vsel %vm1440, %v1648, 0.0
      %1664 = vadd.xlane.f32.xlu0 %v1663
      %v1665 = vpop.xlane.xlu0 %1664
      %v1666 = vsel %vm1440, %v1650, 0.0
      %1667 = vadd.xlane.f32.xlu0 %v1666
      %v1668 = vpop.xlane.xlu0 %1667
      %v1669 = vrcp.pop %v1653
      %v1670 = vrcp.pop %v1656
      %v1671 = vrcp.pop %v1659
      %v1672 = vrcp.pop %v1662
      %v1673 = vrcp.pop %v1665
      %v1674 = vrcp.pop %v1668
      %v1675 = vmul.f32 %v1640, %v1669
      %v1676 = vmul.f32 %v1642, %v1670
      %v1677 = vmul.f32 %v1644, %v1671
      %v1678 = vmul.f32 %v1646, %v1672
      %v1679 = vmul.f32 %v1648, %v1673
      %v1680 = vmul.f32 %v1650, %v1674
      %v1681 = vpack.c.bf16 %v1676, %v1675
      %v1682 = vpack.c.bf16 %v1678, %v1677
      %v1683 = vpack.c.bf16 %v1680, %v1679
      %1684 = vrot.lane.b32.xlu0 %v1379, 56
      %v1685 = vpop.permute.xlu0 %1684
      %1686 = vrot.lane.b32.xlu0 %v1380, 56
      %v1687 = vpop.permute.xlu0 %1686
      %1688 = vrot.lane.b32.xlu0 %v1381, 56
      %v1689 = vpop.permute.xlu0 %1688
      %v1694 = vsel %vm1440, %v1681, 0
      %v1697 = vsel %vm1440, %v1682, 0
      %v1700 = vsel %vm1440, %v1683, 0
      %1702 = vmatpush.bf16.msra.mxu0 0
      %1703 = vmatpush.bf16.msra.mxu0 0
      %1704 = vmatpush.bf16.msra.mxu0 0
      %1705 = vmatpush.bf16.msra.mxu0 0
      %1706 = vmatpush.bf16.msra.mxu0 0
      %1707 = vmatpush.bf16.msra.mxu0 %v1689
      %1708 = vmatpush.bf16.msra.mxu0 %v1687
      %1709 = vmatpush.bf16.msra.mxu0 %v1685
      %1710 = vmatmul.bf16.gmra.mxu0 %v1694
      %v1711 = vpop.f32.mrf.mxu0
      %v1712 = vadd.f32 0.0, %v1711
      %v1713 = vpop.f32.mrf.mxu0
      %v1714 = vadd.f32 0.0, %v1713
      %1715 = vmatmul.bf16.gmra.mxu0 %v1697
      %v1716 = vpop.f32.mrf.mxu0
      %v1717 = vadd.f32 0.0, %v1716
      %v1718 = vpop.f32.mrf.mxu0
      %v1719 = vadd.f32 0.0, %v1718
      %1720 = vmatmul.bf16.gmra.mxu0 %v1700
      %v1721 = vpop.f32.mrf.mxu0
      %v1722 = vadd.f32 0.0, %v1721
      %v1723 = vpop.f32.mrf.mxu0
      %v1724 = vadd.f32 0.0, %v1723
      %1725 = vdwg.mxu0
      %v1726 = vpack.c.bf16 %v1714, %v1712
      %v1727 = vpack.c.bf16 %v1719, %v1717
      %v1728 = vpack.c.bf16 %v1724, %v1722
      %v1730 = vsel %vm1391, %v1726, 0
      %v1733 = vsel %vm1391, %v1727, 0
      %v1736 = vsel %vm1391, %v1728, 0
      %vm1738 = vcmask 1043456
      %v1740 = vsel %vm1738, %v1376, 0
      %1742 = vmatpush.bf16.msra.mxu0 0
      %1743 = vmatpush.bf16.msra.mxu0 0
      %1744 = vmatpush.bf16.msra.mxu0 0
      %1745 = vmatpush.bf16.msra.mxu0 0
      %1746 = vmatpush.bf16.msra.mxu0 0
      %1747 = vmatpush.bf16.msra.mxu0 0
      %1748 = vmatpush.bf16.msra.mxu0 0
      %1749 = vmatpush.bf16.msra.mxu0 %v1740
      %1750 = vmatmul.bf16.gmra.mxu0 %v1730
      %v1751 = vpop.f32.mrf.mxu0
      %v1752 = vadd.f32 0.0, %v1751
      %v1753 = vpop.f32.mrf.mxu0
      %v1754 = vadd.f32 0.0, %v1753
      %1755 = vmatmul.bf16.gmra.mxu0 %v1733
      %v1756 = vpop.f32.mrf.mxu0
      %v1757 = vadd.f32 0.0, %v1756
      %v1758 = vpop.f32.mrf.mxu0
      %v1759 = vadd.f32 0.0, %v1758
      %1760 = vmatmul.bf16.gmra.mxu0 %v1736
      %v1761 = vpop.f32.mrf.mxu0
      %v1762 = vadd.f32 0.0, %v1761
      %v1763 = vpop.f32.mrf.mxu0
      %v1764 = vadd.f32 0.0, %v1763
      %1765 = vdwg.mxu0
      %v1767 = vsel %vm1391, %v1552, 0
      %v1770 = vsel %vm1391, %v1553, 0
      %v1773 = vsel %vm1391, %v1554, 0
      %v1776 = vsel %vm1738, %v1375, 0
      %1778 = vmatpush.bf16.msra.mxu0 0
      %1779 = vmatpush.bf16.msra.mxu0 0
      %1780 = vmatpush.bf16.msra.mxu0 0
      %1781 = vmatpush.bf16.msra.mxu0 0
      %1782 = vmatpush.bf16.msra.mxu0 0
      %1783 = vmatpush.bf16.msra.mxu0 0
      %1784 = vmatpush.bf16.msra.mxu0 0
      %1785 = vmatpush.bf16.msra.mxu0 %v1776
      %1786 = vmatmul.bf16.gmra.mxu0 %v1767
      %v1787 = vpop.f32.mrf.mxu0
      %v1788 = vadd.f32 %v1752, %v1787
      %v1789 = vpop.f32.mrf.mxu0
      %v1790 = vadd.f32 %v1754, %v1789
      %1791 = vmatmul.bf16.gmra.mxu0 %v1770
      %v1792 = vpop.f32.mrf.mxu0
      %v1793 = vadd.f32 %v1757, %v1792
      %v1794 = vpop.f32.mrf.mxu0
      %v1795 = vadd.f32 %v1759, %v1794
      %1796 = vmatmul.bf16.gmra.mxu0 %v1773
      %v1797 = vpop.f32.mrf.mxu0
      %v1798 = vadd.f32 %v1762, %v1797
      %v1799 = vpop.f32.mrf.mxu0
      %v1800 = vadd.f32 %v1764, %v1799
      %1801 = vdwg.mxu0
      %1802 = vrot.lane.b32.xlu0 %v1379, 112
      %v1803 = vpop.permute.xlu0 %1802
      %1804 = vrot.lane.b32.xlu0 %v1380, 112
      %v1805 = vpop.permute.xlu0 %1804
      %1806 = vrot.lane.b32.xlu0 %v1381, 112
      %v1807 = vpop.permute.xlu0 %1806
      %1808 = vrot.lane.b32.xlu0 %v1379, 80
      %v1809 = vpop.permute.xlu0 %1808
      %1810 = vrot.lane.b32.xlu0 %v1380, 80
      %v1811 = vpop.permute.xlu0 %1810
      %1812 = vrot.lane.b32.xlu0 %v1381, 80
      %v1813 = vpop.permute.xlu0 %1812
      %v1815 = vsel %vm1391, %v1803, 0
      %v1818 = vsel %vm1391, %v1805, 0
      %v1821 = vsel %vm1391, %v1807, 0
      %v1824 = vsel %vm1391, %v1809, 0
      %v1827 = vsel %vm1391, %v1811, 0
      %v1830 = vsel %vm1391, %v1813, 0
      %1832 = vmatpush.bf16.xpose.msra.mxu0 0
      %1833 = vmatpush.bf16.xpose.msra.mxu0 0
      %1834 = vmatpush.bf16.xpose.msra.mxu0 0
      %1835 = vmatpush.bf16.xpose.msra.mxu0 0
      %1836 = vmatpush.bf16.xpose.msra.mxu0 0
      %1837 = vmatpush.bf16.xpose.msra.mxu0 %v1830
      %1838 = vmatpush.bf16.xpose.msra.mxu0 %v1827
      %1839 = vmatpush.bf16.xpose.msra.mxu0 %v1824
      %1840 = vmatmul.bf16.gmra.mxu0 %v1815
      %v1841 = vpop.f32.mrf.mxu0
      %v1842 = vadd.f32 0.0, %v1841
      %v1843 = vpop.f32.mrf.mxu0
      %v1844 = vadd.f32 0.0, %v1843
      %1845 = vmatmul.bf16.gmra.mxu0 %v1818
      %v1846 = vpop.f32.mrf.mxu0
      %v1847 = vadd.f32 0.0, %v1846
      %v1848 = vpop.f32.mrf.mxu0
      %v1849 = vadd.f32 0.0, %v1848
      %1850 = vmatmul.bf16.gmra.mxu0 %v1821
      %v1851 = vpop.f32.mrf.mxu0
      %v1852 = vadd.f32 0.0, %v1851
      %v1853 = vpop.f32.mrf.mxu0
      %v1854 = vadd.f32 0.0, %v1853
      %1855 = vdwg.mxu0
      %v1856 = vmul.f32 %v1842, 0.35355338
      %v1857 = vmul.f32 %v1844, 0.35355338
      %v1858 = vmul.f32 %v1847, 0.35355338
      %v1859 = vmul.f32 %v1849, 0.35355338
      %v1860 = vmul.f32 %v1852, 0.35355338
      %v1861 = vmul.f32 %v1854, 0.35355338
      %v1862 = vsel %vm1440, %v1856, -inf
      %1863 = vmax.xlane.f32.xlu0 %v1862
      %v1864 = vpop.xlane.xlu0 %1863
      %v1865 = vsel %vm1440, %v1857, -inf
      %1866 = vmax.xlane.f32.xlu0 %v1865
      %v1867 = vpop.xlane.xlu0 %1866
      %v1868 = vsel %vm1440, %v1858, -inf
      %1869 = vmax.xlane.f32.xlu0 %v1868
      %v1870 = vpop.xlane.xlu0 %1869
      %v1871 = vsel %vm1440, %v1859, -inf
      %1872 = vmax.xlane.f32.xlu0 %v1871
      %v1873 = vpop.xlane.xlu0 %1872
      %v1874 = vsel %vm1440, %v1860, -inf
      %1875 = vmax.xlane.f32.xlu0 %v1874
      %v1876 = vpop.xlane.xlu0 %1875
      %v1877 = vsel %vm1440, %v1861, -inf
      %1878 = vmax.xlane.f32.xlu0 %v1877
      %v1879 = vpop.xlane.xlu0 %1878
      %v1880 = vsub.f32 %v1856, %v1864
      %v1881 = vsub.f32 %v1857, %v1867
      %v1882 = vsub.f32 %v1858, %v1870
      %v1883 = vsub.f32 %v1859, %v1873
      %v1884 = vsub.f32 %v1860, %v1876
      %v1885 = vsub.f32 %v1861, %v1879
      %v1886 = vmul.f32 %v1880, 1.442695
      %v1887 = vpow.pop %v1886
      %v1888 = vmul.f32 %v1881, 1.442695
      %v1889 = vpow.pop %v1888
      %v1890 = vmul.f32 %v1882, 1.442695
      %v1891 = vpow.pop %v1890
      %v1892 = vmul.f32 %v1883, 1.442695
      %v1893 = vpow.pop %v1892
      %v1894 = vmul.f32 %v1884, 1.442695
      %v1895 = vpow.pop %v1894
      %v1896 = vmul.f32 %v1885, 1.442695
      %v1897 = vpow.pop %v1896
      %v1898 = vsel %vm1440, %v1887, 0.0
      %1899 = vadd.xlane.f32.xlu0 %v1898
      %v1900 = vpop.xlane.xlu0 %1899
      %v1901 = vsel %vm1440, %v1889, 0.0
      %1902 = vadd.xlane.f32.xlu0 %v1901
      %v1903 = vpop.xlane.xlu0 %1902
      %v1904 = vsel %vm1440, %v1891, 0.0
      %1905 = vadd.xlane.f32.xlu0 %v1904
      %v1906 = vpop.xlane.xlu0 %1905
      %v1907 = vsel %vm1440, %v1893, 0.0
      %1908 = vadd.xlane.f32.xlu0 %v1907
      %v1909 = vpop.xlane.xlu0 %1908
      %v1910 = vsel %vm1440, %v1895, 0.0
      %1911 = vadd.xlane.f32.xlu0 %v1910
      %v1912 = vpop.xlane.xlu0 %1911
      %v1913 = vsel %vm1440, %v1897, 0.0
      %1914 = vadd.xlane.f32.xlu0 %v1913
      %v1915 = vpop.xlane.xlu0 %1914
      %v1916 = vrcp.pop %v1900
      %v1917 = vrcp.pop %v1903
      %v1918 = vrcp.pop %v1906
      %v1919 = vrcp.pop %v1909
      %v1920 = vrcp.pop %v1912
      %v1921 = vrcp.pop %v1915
      %v1922 = vmul.f32 %v1887, %v1916
      %v1923 = vmul.f32 %v1889, %v1917
      %v1924 = vmul.f32 %v1891, %v1918
      %v1925 = vmul.f32 %v1893, %v1919
      %v1926 = vmul.f32 %v1895, %v1920
      %v1927 = vmul.f32 %v1897, %v1921
      %v1928 = vpack.c.bf16 %v1923, %v1922
      %v1929 = vpack.c.bf16 %v1925, %v1924
      %v1930 = vpack.c.bf16 %v1927, %v1926
      %1931 = vrot.lane.b32.xlu0 %v1379, 48
      %v1932 = vpop.permute.xlu0 %1931
      %1933 = vrot.lane.b32.xlu0 %v1380, 48
      %v1934 = vpop.permute.xlu0 %1933
      %1935 = vrot.lane.b32.xlu0 %v1381, 48
      %v1936 = vpop.permute.xlu0 %1935
      %v1941 = vsel %vm1440, %v1928, 0
      %v1944 = vsel %vm1440, %v1929, 0
      %v1947 = vsel %vm1440, %v1930, 0
      %1949 = vmatpush.bf16.msra.mxu0 0
      %1950 = vmatpush.bf16.msra.mxu0 0
      %1951 = vmatpush.bf16.msra.mxu0 0
      %1952 = vmatpush.bf16.msra.mxu0 0
      %1953 = vmatpush.bf16.msra.mxu0 0
      %1954 = vmatpush.bf16.msra.mxu0 %v1936
      %1955 = vmatpush.bf16.msra.mxu0 %v1934
      %1956 = vmatpush.bf16.msra.mxu0 %v1932
      %1957 = vmatmul.bf16.gmra.mxu0 %v1941
      %v1958 = vpop.f32.mrf.mxu0
      %v1959 = vadd.f32 0.0, %v1958
      %v1960 = vpop.f32.mrf.mxu0
      %v1961 = vadd.f32 0.0, %v1960
      %1962 = vmatmul.bf16.gmra.mxu0 %v1944
      %v1963 = vpop.f32.mrf.mxu0
      %v1964 = vadd.f32 0.0, %v1963
      %v1965 = vpop.f32.mrf.mxu0
      %v1966 = vadd.f32 0.0, %v1965
      %1967 = vmatmul.bf16.gmra.mxu0 %v1947
      %v1968 = vpop.f32.mrf.mxu0
      %v1969 = vadd.f32 0.0, %v1968
      %v1970 = vpop.f32.mrf.mxu0
      %v1971 = vadd.f32 0.0, %v1970
      %1972 = vdwg.mxu0
      %v1973 = vpack.c.bf16 %v1961, %v1959
      %v1974 = vpack.c.bf16 %v1966, %v1964
      %v1975 = vpack.c.bf16 %v1971, %v1969
      %v1977 = vsel %vm1391, %v1973, 0
      %v1980 = vsel %vm1391, %v1974, 0
      %v1983 = vsel %vm1391, %v1975, 0
      %v1986 = vsel %vm1738, %v1377, 0
      %1988 = vmatpush.bf16.msra.mxu0 0
      %1989 = vmatpush.bf16.msra.mxu0 0
      %1990 = vmatpush.bf16.msra.mxu0 0
      %1991 = vmatpush.bf16.msra.mxu0 0
      %1992 = vmatpush.bf16.msra.mxu0 0
      %1993 = vmatpush.bf16.msra.mxu0 0
      %1994 = vmatpush.bf16.msra.mxu0 0
      %1995 = vmatpush.bf16.msra.mxu0 %v1986
      %1996 = vmatmul.bf16.gmra.mxu0 %v1977
      %v1997 = vpop.f32.mrf.mxu0
      %v1998 = vadd.f32 0.0, %v1997
      %v1999 = vpop.f32.mrf.mxu0
      %v2000 = vadd.f32 0.0, %v1999
      %2001 = vmatmul.bf16.gmra.mxu0 %v1980
      %v2002 = vpop.f32.mrf.mxu0
      %v2003 = vadd.f32 0.0, %v2002
      %v2004 = vpop.f32.mrf.mxu0
      %v2005 = vadd.f32 0.0, %v2004
      %2006 = vmatmul.bf16.gmra.mxu0 %v1983
      %v2007 = vpop.f32.mrf.mxu0
      %v2008 = vadd.f32 0.0, %v2007
      %v2009 = vpop.f32.mrf.mxu0
      %v2010 = vadd.f32 0.0, %v2009
      %2011 = vdwg.mxu0
      %v2012 = vadd.f32 %v1788, %v1998
      %v2013 = vadd.f32 %v1790, %v2000
      %v2014 = vadd.f32 %v1793, %v2003
      %v2015 = vadd.f32 %v1795, %v2005
      %v2016 = vadd.f32 %v1798, %v2008
      %v2017 = vadd.f32 %v1800, %v2010
      %2018 = vrot.lane.b32.xlu0 %v1379, 104
      %v2019 = vpop.permute.xlu0 %2018
      %2020 = vrot.lane.b32.xlu0 %v1380, 104
      %v2021 = vpop.permute.xlu0 %2020
      %2022 = vrot.lane.b32.xlu0 %v1381, 104
      %v2023 = vpop.permute.xlu0 %2022
      %2024 = vrot.lane.b32.xlu0 %v1379, 72
      %v2025 = vpop.permute.xlu0 %2024
      %2026 = vrot.lane.b32.xlu0 %v1380, 72
      %v2027 = vpop.permute.xlu0 %2026
      %2028 = vrot.lane.b32.xlu0 %v1381, 72
      %v2029 = vpop.permute.xlu0 %2028
      %v2031 = vsel %vm1391, %v2019, 0
      %v2034 = vsel %vm1391, %v2021, 0
      %v2037 = vsel %vm1391, %v2023, 0
      %v2040 = vsel %vm1391, %v2025, 0
      %v2043 = vsel %vm1391, %v2027, 0
      %v2046 = vsel %vm1391, %v2029, 0
      %2048 = vmatpush.bf16.xpose.msra.mxu0 0
      %2049 = vmatpush.bf16.xpose.msra.mxu0 0
      %2050 = vmatpush.bf16.xpose.msra.mxu0 0
      %2051 = vmatpush.bf16.xpose.msra.mxu0 0
      %2052 = vmatpush.bf16.xpose.msra.mxu0 0
      %2053 = vmatpush.bf16.xpose.msra.mxu0 %v2046
      %2054 = vmatpush.bf16.xpose.msra.mxu0 %v2043
      %2055 = vmatpush.bf16.xpose.msra.mxu0 %v2040
      %2056 = vmatmul.bf16.gmra.mxu0 %v2031
      %v2057 = vpop.f32.mrf.mxu0
      %v2058 = vadd.f32 0.0, %v2057
      %v2059 = vpop.f32.mrf.mxu0
      %v2060 = vadd.f32 0.0, %v2059
      %2061 = vmatmul.bf16.gmra.mxu0 %v2034
      %v2062 = vpop.f32.mrf.mxu0
      %v2063 = vadd.f32 0.0, %v2062
      %v2064 = vpop.f32.mrf.mxu0
      %v2065 = vadd.f32 0.0, %v2064
      %2066 = vmatmul.bf16.gmra.mxu0 %v2037
      %v2067 = vpop.f32.mrf.mxu0
      %v2068 = vadd.f32 0.0, %v2067
      %v2069 = vpop.f32.mrf.mxu0
      %v2070 = vadd.f32 0.0, %v2069
      %2071 = vdwg.mxu0
      %v2072 = vmul.f32 %v2058, 0.35355338
      %v2073 = vmul.f32 %v2060, 0.35355338
      %v2074 = vmul.f32 %v2063, 0.35355338
      %v2075 = vmul.f32 %v2065, 0.35355338
      %v2076 = vmul.f32 %v2068, 0.35355338
      %v2077 = vmul.f32 %v2070, 0.35355338
      %v2078 = vsel %vm1440, %v2072, -inf
      %2079 = vmax.xlane.f32.xlu0 %v2078
      %v2080 = vpop.xlane.xlu0 %2079
      %v2081 = vsel %vm1440, %v2073, -inf
      %2082 = vmax.xlane.f32.xlu0 %v2081
      %v2083 = vpop.xlane.xlu0 %2082
      %v2084 = vsel %vm1440, %v2074, -inf
      %2085 = vmax.xlane.f32.xlu0 %v2084
      %v2086 = vpop.xlane.xlu0 %2085
      %v2087 = vsel %vm1440, %v2075, -inf
      %2088 = vmax.xlane.f32.xlu0 %v2087
      %v2089 = vpop.xlane.xlu0 %2088
      %v2090 = vsel %vm1440, %v2076, -inf
      %2091 = vmax.xlane.f32.xlu0 %v2090
      %v2092 = vpop.xlane.xlu0 %2091
      %v2093 = vsel %vm1440, %v2077, -inf
      %2094 = vmax.xlane.f32.xlu0 %v2093
      %v2095 = vpop.xlane.xlu0 %2094
      %v2096 = vsub.f32 %v2072, %v2080
      %v2097 = vsub.f32 %v2073, %v2083
      %v2098 = vsub.f32 %v2074, %v2086
      %v2099 = vsub.f32 %v2075, %v2089
      %v2100 = vsub.f32 %v2076, %v2092
      %v2101 = vsub.f32 %v2077, %v2095
      %v2102 = vmul.f32 %v2096, 1.442695
      %v2103 = vpow.pop %v2102
      %v2104 = vmul.f32 %v2097, 1.442695
      %v2105 = vpow.pop %v2104
      %v2106 = vmul.f32 %v2098, 1.442695
      %v2107 = vpow.pop %v2106
      %v2108 = vmul.f32 %v2099, 1.442695
      %v2109 = vpow.pop %v2108
      %v2110 = vmul.f32 %v2100, 1.442695
      %v2111 = vpow.pop %v2110
      %v2112 = vmul.f32 %v2101, 1.442695
      %v2113 = vpow.pop %v2112
      %v2114 = vsel %vm1440, %v2103, 0.0
      %2115 = vadd.xlane.f32.xlu0 %v2114
      %v2116 = vpop.xlane.xlu0 %2115
      %v2117 = vsel %vm1440, %v2105, 0.0
      %2118 = vadd.xlane.f32.xlu0 %v2117
      %v2119 = vpop.xlane.xlu0 %2118
      %v2120 = vsel %vm1440, %v2107, 0.0
      %2121 = vadd.xlane.f32.xlu0 %v2120
      %v2122 = vpop.xlane.xlu0 %2121
      %v2123 = vsel %vm1440, %v2109, 0.0
      %2124 = vadd.xlane.f32.xlu0 %v2123
      %v2125 = vpop.xlane.xlu0 %2124
      %v2126 = vsel %vm1440, %v2111, 0.0
      %2127 = vadd.xlane.f32.xlu0 %v2126
      %v2128 = vpop.xlane.xlu0 %2127
      %v2129 = vsel %vm1440, %v2113, 0.0
      %2130 = vadd.xlane.f32.xlu0 %v2129
      %v2131 = vpop.xlane.xlu0 %2130
      %v2132 = vrcp.pop %v2116
      %v2133 = vrcp.pop %v2119
      %v2134 = vrcp.pop %v2122
      %v2135 = vrcp.pop %v2125
      %v2136 = vrcp.pop %v2128
      %v2137 = vrcp.pop %v2131
      %v2138 = vmul.f32 %v2103, %v2132
      %v2139 = vmul.f32 %v2105, %v2133
      %v2140 = vmul.f32 %v2107, %v2134
      %v2141 = vmul.f32 %v2109, %v2135
      %v2142 = vmul.f32 %v2111, %v2136
      %v2143 = vmul.f32 %v2113, %v2137
      %v2144 = vpack.c.bf16 %v2139, %v2138
      %v2145 = vpack.c.bf16 %v2141, %v2140
      %v2146 = vpack.c.bf16 %v2143, %v2142
      %2147 = vrot.lane.b32.xlu0 %v1379, 40
      %v2148 = vpop.permute.xlu0 %2147
      %2149 = vrot.lane.b32.xlu0 %v1380, 40
      %v2150 = vpop.permute.xlu0 %2149
      %2151 = vrot.lane.b32.xlu0 %v1381, 40
      %v2152 = vpop.permute.xlu0 %2151
      %v2157 = vsel %vm1440, %v2144, 0
      %v2160 = vsel %vm1440, %v2145, 0
      %v2163 = vsel %vm1440, %v2146, 0
      %2165 = vmatpush.bf16.msra.mxu0 0
      %2166 = vmatpush.bf16.msra.mxu0 0
      %2167 = vmatpush.bf16.msra.mxu0 0
      %2168 = vmatpush.bf16.msra.mxu0 0
      %2169 = vmatpush.bf16.msra.mxu0 0
      %2170 = vmatpush.bf16.msra.mxu0 %v2152
      %2171 = vmatpush.bf16.msra.mxu0 %v2150
      %2172 = vmatpush.bf16.msra.mxu0 %v2148
      %2173 = vmatmul.bf16.gmra.mxu0 %v2157
      %v2174 = vpop.f32.mrf.mxu0
      %v2175 = vadd.f32 0.0, %v2174
      %v2176 = vpop.f32.mrf.mxu0
      %v2177 = vadd.f32 0.0, %v2176
      %2178 = vmatmul.bf16.gmra.mxu0 %v2160
      %v2179 = vpop.f32.mrf.mxu0
      %v2180 = vadd.f32 0.0, %v2179
      %v2181 = vpop.f32.mrf.mxu0
      %v2182 = vadd.f32 0.0, %v2181
      %2183 = vmatmul.bf16.gmra.mxu0 %v2163
      %v2184 = vpop.f32.mrf.mxu0
      %v2185 = vadd.f32 0.0, %v2184
      %v2186 = vpop.f32.mrf.mxu0
      %v2187 = vadd.f32 0.0, %v2186
      %2188 = vdwg.mxu0
      %v2189 = vpack.c.bf16 %v2177, %v2175
      %v2190 = vpack.c.bf16 %v2182, %v2180
      %v2191 = vpack.c.bf16 %v2187, %v2185
      %v2193 = vsel %vm1391, %v2189, 0
      %v2196 = vsel %vm1391, %v2190, 0
      %v2199 = vsel %vm1391, %v2191, 0
      %v2202 = vsel %vm1738, %v1378, 0
      %2204 = vmatpush.bf16.msra.mxu0 0
      %2205 = vmatpush.bf16.msra.mxu0 0
      %2206 = vmatpush.bf16.msra.mxu0 0
      %2207 = vmatpush.bf16.msra.mxu0 0
      %2208 = vmatpush.bf16.msra.mxu0 0
      %2209 = vmatpush.bf16.msra.mxu0 0
      %2210 = vmatpush.bf16.msra.mxu0 0
      %2211 = vmatpush.bf16.msra.mxu0 %v2202
      %2212 = vmatmul.bf16.gmra.mxu0 %v2193
      %v2213 = vpop.f32.mrf.mxu0
      %v2214 = vadd.f32 0.0, %v2213
      %v2215 = vpop.f32.mrf.mxu0
      %v2216 = vadd.f32 0.0, %v2215
      %2217 = vmatmul.bf16.gmra.mxu0 %v2196
      %v2218 = vpop.f32.mrf.mxu0
      %v2219 = vadd.f32 0.0, %v2218
      %v2220 = vpop.f32.mrf.mxu0
      %v2221 = vadd.f32 0.0, %v2220
      %2222 = vmatmul.bf16.gmra.mxu0 %v2199
      %v2223 = vpop.f32.mrf.mxu0
      %v2224 = vadd.f32 0.0, %v2223
      %v2225 = vpop.f32.mrf.mxu0
      %v2226 = vadd.f32 0.0, %v2225
      %2227 = vdwg.mxu0
      %v2228 = vadd.f32 %v2012, %v2214
      %v2229 = vadd.f32 %v2013, %v2216
      %v2230 = vadd.f32 %v2014, %v2219
      %v2231 = vadd.f32 %v2015, %v2221
      %v2232 = vadd.f32 %v2016, %v2224
      %v2233 = vadd.f32 %v2017, %v2226
      %v2234 = vadd.f32 %v1133, %v2228
      %v2235 = vadd.f32 %v1134, %v2229
      %v2236 = vadd.f32 %v1135, %v2230
      %v2237 = vadd.f32 %v1136, %v2231
      %v2238 = vadd.f32 %v1137, %v2232
      %v2239 = vadd.f32 %v1138, %v2233
      %v2240 = vld [vmem:[%s17] sm:$0x1]
      %v2242 = vperm.slane %v2240, 0
      %v2244 = vadd.f32 %v2234, %v2242
      %v2245 = vadd.f32 %v2235, %v2242
      %v2246 = vadd.f32 %v2236, %v2242
      %v2247 = vadd.f32 %v2237, %v2242
      %v2248 = vadd.f32 %v2238, %v2242
      %v2249 = vadd.f32 %v2239, %v2242
      %v2250 = vld [vmem:[%s19] sm:$0x3]
      %v2251 = vsel %vm1140, %v2244, 0.0
      %2252 = vadd.xlane.f32.xlu0 %v2251
      %v2253 = vpop.xlane.xlu0 %2252
      %v2254 = vsel %vm1140, %v2245, 0.0
      %2255 = vadd.xlane.f32.xlu0 %v2254
      %v2256 = vpop.xlane.xlu0 %2255
      %v2257 = vsel %vm1140, %v2246, 0.0
      %2258 = vadd.xlane.f32.xlu0 %v2257
      %v2259 = vpop.xlane.xlu0 %2258
      %v2260 = vsel %vm1140, %v2247, 0.0
      %2261 = vadd.xlane.f32.xlu0 %v2260
      %v2262 = vpop.xlane.xlu0 %2261
      %v2263 = vsel %vm1140, %v2248, 0.0
      %2264 = vadd.xlane.f32.xlu0 %v2263
      %v2265 = vpop.xlane.xlu0 %2264
      %v2266 = vsel %vm1140, %v2249, 0.0
      %2267 = vadd.xlane.f32.xlu0 %v2266
      %v2268 = vpop.xlane.xlu0 %2267
      %v2269 = vmul.f32 %v2253, %v1165
      %v2270 = vmul.f32 %v2256, %v1165
      %v2271 = vmul.f32 %v2259, %v1165
      %v2272 = vmul.f32 %v2262, %v1165
      %v2273 = vmul.f32 %v2265, %v1165
      %v2274 = vmul.f32 %v2268, %v1165
      %v2275 = vsub.f32 %v2244, %v2269
      %v2276 = vsub.f32 %v2245, %v2270
      %v2277 = vsub.f32 %v2246, %v2271
      %v2278 = vsub.f32 %v2247, %v2272
      %v2279 = vsub.f32 %v2248, %v2273
      %v2280 = vsub.f32 %v2249, %v2274
      %v2281 = vmul.f32 %v2275, %v2275
      %v2282 = vmul.f32 %v2276, %v2276
      %v2283 = vmul.f32 %v2277, %v2277
      %v2284 = vmul.f32 %v2278, %v2278
      %v2285 = vmul.f32 %v2279, %v2279
      %v2286 = vmul.f32 %v2280, %v2280
      %v2287 = vsel %vm1140, %v2281, 0.0
      %2288 = vadd.xlane.f32.xlu0 %v2287
      %v2289 = vpop.xlane.xlu0 %2288
      %v2290 = vsel %vm1140, %v2282, 0.0
      %2291 = vadd.xlane.f32.xlu0 %v2290
      %v2292 = vpop.xlane.xlu0 %2291
      %v2293 = vsel %vm1140, %v2283, 0.0
      %2294 = vadd.xlane.f32.xlu0 %v2293
      %v2295 = vpop.xlane.xlu0 %2294
      %v2296 = vsel %vm1140, %v2284, 0.0
      %2297 = vadd.xlane.f32.xlu0 %v2296
      %v2298 = vpop.xlane.xlu0 %2297
      %v2299 = vsel %vm1140, %v2285, 0.0
      %2300 = vadd.xlane.f32.xlu0 %v2299
      %v2301 = vpop.xlane.xlu0 %2300
      %v2302 = vsel %vm1140, %v2286, 0.0
      %2303 = vadd.xlane.f32.xlu0 %v2302
      %v2304 = vpop.xlane.xlu0 %2303
      %v2305 = vmul.f32 %v2289, %v1208
      %v2306 = vmul.f32 %v2292, %v1208
      %v2307 = vmul.f32 %v2295, %v1208
      %v2308 = vmul.f32 %v2298, %v1208
      %v2309 = vmul.f32 %v2301, %v1208
      %v2310 = vmul.f32 %v2304, %v1208
      %v2311 = vrsqrt.pop %v2305
      %v2312 = vmul.f32 %v2311, %v2305
      %v2313 = vmul.f32 %v2312, %v2311
      %v2314 = vmul.f32 0.5, %v2313
      %v2315 = vsub.f32 1.5, %v2314
      %v2316 = vmul.f32 %v2311, %v2315
      %v2317 = vmul.f32 %v2305, %v2316
      %vm2318 = vcmp.eq.f32.partialorder %v2305, inf
      %v2319 = vsel %vm2318, %v2305, %v2317
      %vm2320 = vcmp.eq.f32.partialorder %v2305, 0.0
      %v2321 = vand.u32 %v2305, 2147483648
      %v2322 = vsel %vm2320, %v2321, %v2319
      %v2323 = vrsqrt.pop %v2306
      %v2324 = vmul.f32 %v2323, %v2306
      %v2325 = vmul.f32 %v2324, %v2323
      %v2326 = vmul.f32 0.5, %v2325
      %v2327 = vsub.f32 1.5, %v2326
      %v2328 = vmul.f32 %v2323, %v2327
      %v2329 = vmul.f32 %v2306, %v2328
      %vm2330 = vcmp.eq.f32.partialorder %v2306, inf
      %v2331 = vsel %vm2330, %v2306, %v2329
      %vm2332 = vcmp.eq.f32.partialorder %v2306, 0.0
      %v2333 = vand.u32 %v2306, 2147483648
      %v2334 = vsel %vm2332, %v2333, %v2331
      %v2335 = vrsqrt.pop %v2307
      %v2336 = vmul.f32 %v2335, %v2307
      %v2337 = vmul.f32 %v2336, %v2335
      %v2338 = vmul.f32 0.5, %v2337
      %v2339 = vsub.f32 1.5, %v2338
      %v2340 = vmul.f32 %v2335, %v2339
      %v2341 = vmul.f32 %v2307, %v2340
      %vm2342 = vcmp.eq.f32.partialorder %v2307, inf
      %v2343 = vsel %vm2342, %v2307, %v2341
      %vm2344 = vcmp.eq.f32.partialorder %v2307, 0.0
      %v2345 = vand.u32 %v2307, 2147483648
      %v2346 = vsel %vm2344, %v2345, %v2343
      %v2347 = vrsqrt.pop %v2308
      %v2348 = vmul.f32 %v2347, %v2308
      %v2349 = vmul.f32 %v2348, %v2347
      %v2350 = vmul.f32 0.5, %v2349
      %v2351 = vsub.f32 1.5, %v2350
      %v2352 = vmul.f32 %v2347, %v2351
      %v2353 = vmul.f32 %v2308, %v2352
      %vm2354 = vcmp.eq.f32.partialorder %v2308, inf
      %v2355 = vsel %vm2354, %v2308, %v2353
      %vm2356 = vcmp.eq.f32.partialorder %v2308, 0.0
      %v2357 = vand.u32 %v2308, 2147483648
      %v2358 = vsel %vm2356, %v2357, %v2355
      %v2359 = vrsqrt.pop %v2309
      %v2360 = vmul.f32 %v2359, %v2309
      %v2361 = vmul.f32 %v2360, %v2359
      %v2362 = vmul.f32 0.5, %v2361
      %v2363 = vsub.f32 1.5, %v2362
      %v2364 = vmul.f32 %v2359, %v2363
      %v2365 = vmul.f32 %v2309, %v2364
      %vm2366 = vcmp.eq.f32.partialorder %v2309, inf
      %v2367 = vsel %vm2366, %v2309, %v2365
      %vm2368 = vcmp.eq.f32.partialorder %v2309, 0.0
      %v2369 = vand.u32 %v2309, 2147483648
      %v2370 = vsel %vm2368, %v2369, %v2367
      %v2371 = vrsqrt.pop %v2310
      %v2372 = vmul.f32 %v2371, %v2310
      %v2373 = vmul.f32 %v2372, %v2371
      %v2374 = vmul.f32 0.5, %v2373
      %v2375 = vsub.f32 1.5, %v2374
      %v2376 = vmul.f32 %v2371, %v2375
      %v2377 = vmul.f32 %v2310, %v2376
      %vm2378 = vcmp.eq.f32.partialorder %v2310, inf
      %v2379 = vsel %vm2378, %v2310, %v2377
      %vm2380 = vcmp.eq.f32.partialorder %v2310, 0.0
      %v2381 = vand.u32 %v2310, 2147483648
      %v2382 = vsel %vm2380, %v2381, %v2379
      %v2383 = vadd.f32 %v2322, 1e-06
      %v2384 = vadd.f32 %v2334, 1e-06
      %v2385 = vadd.f32 %v2346, 1e-06
      %v2386 = vadd.f32 %v2358, 1e-06
      %v2387 = vadd.f32 %v2370, 1e-06
      %v2388 = vadd.f32 %v2382, 1e-06
      %v2389 = vrcp.pop %v2383
      %v2390 = vrcp.pop %v2384
      %v2391 = vrcp.pop %v2385
      %v2392 = vrcp.pop %v2386
      %v2393 = vrcp.pop %v2387
      %v2394 = vrcp.pop %v2388
      %v2395 = vperm.slane %v2250, 0
      %v2396 = vmul.f32 %v2395, %v2275
      %v2397 = vmul.f32 %v2395, %v2276
      %v2398 = vmul.f32 %v2395, %v2277
      %v2399 = vmul.f32 %v2395, %v2278
      %v2400 = vmul.f32 %v2395, %v2279
      %v2401 = vmul.f32 %v2395, %v2280
      %v2402 = vmul.f32 %v2396, %v2389
      %v2403 = vmul.f32 %v2397, %v2390
      %v2404 = vmul.f32 %v2398, %v2391
      %v2405 = vmul.f32 %v2399, %v2392
      %v2406 = vmul.f32 %v2400, %v2393
      %v2407 = vmul.f32 %v2401, %v2394
      %v2408 = vperm.slane %v2250, 1
      %v2409 = vadd.f32 %v2402, %v2408
      %v2410 = vadd.f32 %v2403, %v2408
      %v2411 = vadd.f32 %v2404, %v2408
      %v2412 = vadd.f32 %v2405, %v2408
      %v2413 = vadd.f32 %v2406, %v2408
      %v2414 = vadd.f32 %v2407, %v2408
      %v2415 = vld [vmem:[%s21] sm:$0xf]
      %v2416 = vld [vmem:[%s21 + $0x4] sm:$0xf]
      %v2417 = vld [vmem:[%s21 + $0x8] sm:$0xf]
      %v2418 = vld [vmem:[%s21 + $0xc] sm:$0xf]
      %v2419 = vpack.c.bf16 %v2410, %v2409
      %v2420 = vpack.c.bf16 %v2412, %v2411
      %v2421 = vpack.c.bf16 %v2414, %v2413
      %v2422 = vld [vmem:[%s23] sm:$0x1]
      %v2424 = vperm.slane %v2422, 0
      %v2430 = vunpack.c.l.b16 %v2415
      %v2431 = vunpack.c.l.b16 %v2416
      %v2432 = vunpack.c.l.b16 %v2417
      %v2433 = vunpack.c.l.b16 %v2418
      %v2434 = vpack.c.b16 %v2431, %v2430
      %v2435 = vpack.c.b16 %v2433, %v2432
      %v2439 = vsel %vm1140, %v2419, 0
      %v2442 = vsel %vm1140, %v2420, 0
      %v2445 = vsel %vm1140, %v2421, 0
      %2447 = vmatpush.bf16.msra.mxu0 0
      %2448 = vmatpush.bf16.msra.mxu0 0
      %2449 = vmatpush.bf16.msra.mxu0 0
      %2450 = vmatpush.bf16.msra.mxu0 0
      %2451 = vmatpush.bf16.msra.mxu0 0
      %2452 = vmatpush.bf16.msra.mxu0 0
      %2453 = vmatpush.bf16.msra.mxu0 %v2435
      %2454 = vmatpush.bf16.msra.mxu0 %v2434
      %2455 = vmatmul.bf16.gmra.mxu0 %v2439
      %v2456 = vpop.f32.mrf.mxu0
      %v2457 = vadd.f32 %v2424, %v2456
      %v2458 = vpop.f32.mrf.mxu0
      %v2459 = vadd.f32 %v2424, %v2458
      %2460 = vmatmul.bf16.gmra.mxu0 %v2442
      %v2461 = vpop.f32.mrf.mxu0
      %v2462 = vadd.f32 %v2424, %v2461
      %v2463 = vpop.f32.mrf.mxu0
      %v2464 = vadd.f32 %v2424, %v2463
      %2465 = vmatmul.bf16.gmra.mxu0 %v2445
      %v2466 = vpop.f32.mrf.mxu0
      %v2467 = vadd.f32 %v2424, %v2466
      %v2468 = vpop.f32.mrf.mxu0
      %v2469 = vadd.f32 %v2424, %v2468
      %2470 = vdwg.mxu0
      %v2471 = vmax.f32 %v2457, 0.0
      %v2472 = vmax.f32 %v2459, 0.0
      %v2473 = vmax.f32 %v2462, 0.0
      %v2474 = vmax.f32 %v2464, 0.0
      %v2475 = vmax.f32 %v2467, 0.0
      %v2476 = vmax.f32 %v2469, 0.0
      %v2477 = vld [vmem:[%s25] sm:$0xf]
      %v2478 = vld [vmem:[%s25 + $0x4] sm:$0xf]
      %v2479 = vld [vmem:[%s25 + $0x8] sm:$0xf]
      %v2480 = vld [vmem:[%s25 + $0xc] sm:$0xf]
      %v2481 = vpack.c.bf16 %v2472, %v2471
      %v2482 = vpack.c.bf16 %v2474, %v2473
      %v2483 = vpack.c.bf16 %v2476, %v2475
      %v2488 = vunpack.c.l.b16 %v2477
      %v2489 = vunpack.c.l.b16 %v2478
      %v2490 = vunpack.c.l.b16 %v2479
      %v2491 = vunpack.c.l.b16 %v2480
      %v2492 = vpack.c.b16 %v2489, %v2488
      %v2493 = vpack.c.b16 %v2491, %v2490
      %v2497 = vsel %vm1140, %v2481, 0
      %v2500 = vsel %vm1140, %v2482, 0
      %v2503 = vsel %vm1140, %v2483, 0
      %2505 = vmatpush.bf16.msra.mxu0 0
      %2506 = vmatpush.bf16.msra.mxu0 0
      %2507 = vmatpush.bf16.msra.mxu0 0
      %2508 = vmatpush.bf16.msra.mxu0 0
      %2509 = vmatpush.bf16.msra.mxu0 0
      %2510 = vmatpush.bf16.msra.mxu0 0
      %2511 = vmatpush.bf16.msra.mxu0 %v2493
      %2512 = vmatpush.bf16.msra.mxu0 %v2492
      %2513 = vmatmul.bf16.gmra.mxu0 %v2497
      %v2514 = vpop.f32.mrf.mxu0
      %v2515 = vadd.f32 0.0, %v2514
      %v2516 = vpop.f32.mrf.mxu0
      %v2517 = vadd.f32 0.0, %v2516
      %2518 = vmatmul.bf16.gmra.mxu0 %v2500
      %v2519 = vpop.f32.mrf.mxu0
      %v2520 = vadd.f32 0.0, %v2519
      %v2521 = vpop.f32.mrf.mxu0
      %v2522 = vadd.f32 0.0, %v2521
      %2523 = vmatmul.bf16.gmra.mxu0 %v2503
      %v2524 = vpop.f32.mrf.mxu0
      %v2525 = vadd.f32 0.0, %v2524
      %v2526 = vpop.f32.mrf.mxu0
      %v2527 = vadd.f32 0.0, %v2526
      %2528 = vdwg.mxu0
      %v2529 = vadd.f32 %v2244, %v2515
      %v2530 = vadd.f32 %v2245, %v2517
      %v2531 = vadd.f32 %v2246, %v2520
      %v2532 = vadd.f32 %v2247, %v2522
      %v2533 = vadd.f32 %v2248, %v2525
      %v2534 = vadd.f32 %v2249, %v2527
      %v2535 = vld [vmem:[%s27] sm:$0x1]
      %v2537 = vperm.slane %v2535, 0
      %v2539 = vadd.f32 %v2529, %v2537
      %v2540 = vadd.f32 %v2530, %v2537
      %v2541 = vadd.f32 %v2531, %v2537
      %v2542 = vadd.f32 %v2532, %v2537
      %v2543 = vadd.f32 %v2533, %v2537
      %v2544 = vadd.f32 %v2534, %v2537
      %s2545 = scalar_lea.vmem %s9, 2
      %v2546 = vld [vmem:[%s2545] sm:$0x3]
      %v2547 = vsel %vm1140, %v2539, 0.0
      %2548 = vadd.xlane.f32.xlu0 %v2547
      %v2549 = vpop.xlane.xlu0 %2548
      %v2550 = vsel %vm1140, %v2540, 0.0
      %2551 = vadd.xlane.f32.xlu0 %v2550
      %v2552 = vpop.xlane.xlu0 %2551
      %v2553 = vsel %vm1140, %v2541, 0.0
      %2554 = vadd.xlane.f32.xlu0 %v2553
      %v2555 = vpop.xlane.xlu0 %2554
      %v2556 = vsel %vm1140, %v2542, 0.0
      %2557 = vadd.xlane.f32.xlu0 %v2556
      %v2558 = vpop.xlane.xlu0 %2557
      %v2559 = vsel %vm1140, %v2543, 0.0
      %2560 = vadd.xlane.f32.xlu0 %v2559
      %v2561 = vpop.xlane.xlu0 %2560
      %v2562 = vsel %vm1140, %v2544, 0.0
      %2563 = vadd.xlane.f32.xlu0 %v2562
      %v2564 = vpop.xlane.xlu0 %2563
      %v2565 = vmul.f32 %v2549, %v1165
      %v2566 = vmul.f32 %v2552, %v1165
      %v2567 = vmul.f32 %v2555, %v1165
      %v2568 = vmul.f32 %v2558, %v1165
      %v2569 = vmul.f32 %v2561, %v1165
      %v2570 = vmul.f32 %v2564, %v1165
      %v2571 = vsub.f32 %v2539, %v2565
      %v2572 = vsub.f32 %v2540, %v2566
      %v2573 = vsub.f32 %v2541, %v2567
      %v2574 = vsub.f32 %v2542, %v2568
      %v2575 = vsub.f32 %v2543, %v2569
      %v2576 = vsub.f32 %v2544, %v2570
      %v2577 = vmul.f32 %v2571, %v2571
      %v2578 = vmul.f32 %v2572, %v2572
      %v2579 = vmul.f32 %v2573, %v2573
      %v2580 = vmul.f32 %v2574, %v2574
      %v2581 = vmul.f32 %v2575, %v2575
      %v2582 = vmul.f32 %v2576, %v2576
      %v2583 = vsel %vm1140, %v2577, 0.0
      %2584 = vadd.xlane.f32.xlu0 %v2583
      %v2585 = vpop.xlane.xlu0 %2584
      %v2586 = vsel %vm1140, %v2578, 0.0
      %2587 = vadd.xlane.f32.xlu0 %v2586
      %v2588 = vpop.xlane.xlu0 %2587
      %v2589 = vsel %vm1140, %v2579, 0.0
      %2590 = vadd.xlane.f32.xlu0 %v2589
      %v2591 = vpop.xlane.xlu0 %2590
      %v2592 = vsel %vm1140, %v2580, 0.0
      %2593 = vadd.xlane.f32.xlu0 %v2592
      %v2594 = vpop.xlane.xlu0 %2593
      %v2595 = vsel %vm1140, %v2581, 0.0
      %2596 = vadd.xlane.f32.xlu0 %v2595
      %v2597 = vpop.xlane.xlu0 %2596
      %v2598 = vsel %vm1140, %v2582, 0.0
      %2599 = vadd.xlane.f32.xlu0 %v2598
      %v2600 = vpop.xlane.xlu0 %2599
      %v2601 = vmul.f32 %v2585, %v1208
      %v2602 = vmul.f32 %v2588, %v1208
      %v2603 = vmul.f32 %v2591, %v1208
      %v2604 = vmul.f32 %v2594, %v1208
      %v2605 = vmul.f32 %v2597, %v1208
      %v2606 = vmul.f32 %v2600, %v1208
      %v2607 = vrsqrt.pop %v2601
      %v2608 = vmul.f32 %v2607, %v2601
      %v2609 = vmul.f32 %v2608, %v2607
      %v2610 = vmul.f32 0.5, %v2609
      %v2611 = vsub.f32 1.5, %v2610
      %v2612 = vmul.f32 %v2607, %v2611
      %v2613 = vmul.f32 %v2601, %v2612
      %vm2614 = vcmp.eq.f32.partialorder %v2601, inf
      %v2615 = vsel %vm2614, %v2601, %v2613
      %vm2616 = vcmp.eq.f32.partialorder %v2601, 0.0
      %v2617 = vand.u32 %v2601, 2147483648
      %v2618 = vsel %vm2616, %v2617, %v2615
      %v2619 = vrsqrt.pop %v2602
      %v2620 = vmul.f32 %v2619, %v2602
      %v2621 = vmul.f32 %v2620, %v2619
      %v2622 = vmul.f32 0.5, %v2621
      %v2623 = vsub.f32 1.5, %v2622
      %v2624 = vmul.f32 %v2619, %v2623
      %v2625 = vmul.f32 %v2602, %v2624
      %vm2626 = vcmp.eq.f32.partialorder %v2602, inf
      %v2627 = vsel %vm2626, %v2602, %v2625
      %vm2628 = vcmp.eq.f32.partialorder %v2602, 0.0
      %v2629 = vand.u32 %v2602, 2147483648
      %v2630 = vsel %vm2628, %v2629, %v2627
      %v2631 = vrsqrt.pop %v2603
      %v2632 = vmul.f32 %v2631, %v2603
      %v2633 = vmul.f32 %v2632, %v2631
      %v2634 = vmul.f32 0.5, %v2633
      %v2635 = vsub.f32 1.5, %v2634
      %v2636 = vmul.f32 %v2631, %v2635
      %v2637 = vmul.f32 %v2603, %v2636
      %vm2638 = vcmp.eq.f32.partialorder %v2603, inf
      %v2639 = vsel %vm2638, %v2603, %v2637
      %vm2640 = vcmp.eq.f32.partialorder %v2603, 0.0
      %v2641 = vand.u32 %v2603, 2147483648
      %v2642 = vsel %vm2640, %v2641, %v2639
      %v2643 = vrsqrt.pop %v2604
      %v2644 = vmul.f32 %v2643, %v2604
      %v2645 = vmul.f32 %v2644, %v2643
      %v2646 = vmul.f32 0.5, %v2645
      %v2647 = vsub.f32 1.5, %v2646
      %v2648 = vmul.f32 %v2643, %v2647
      %v2649 = vmul.f32 %v2604, %v2648
      %vm2650 = vcmp.eq.f32.partialorder %v2604, inf
      %v2651 = vsel %vm2650, %v2604, %v2649
      %vm2652 = vcmp.eq.f32.partialorder %v2604, 0.0
      %v2653 = vand.u32 %v2604, 2147483648
      %v2654 = vsel %vm2652, %v2653, %v2651
      %v2655 = vrsqrt.pop %v2605
      %v2656 = vmul.f32 %v2655, %v2605
      %v2657 = vmul.f32 %v2656, %v2655
      %v2658 = vmul.f32 0.5, %v2657
      %v2659 = vsub.f32 1.5, %v2658
      %v2660 = vmul.f32 %v2655, %v2659
      %v2661 = vmul.f32 %v2605, %v2660
      %vm2662 = vcmp.eq.f32.partialorder %v2605, inf
      %v2663 = vsel %vm2662, %v2605, %v2661
      %vm2664 = vcmp.eq.f32.partialorder %v2605, 0.0
      %v2665 = vand.u32 %v2605, 2147483648
      %v2666 = vsel %vm2664, %v2665, %v2663
      %v2667 = vrsqrt.pop %v2606
      %v2668 = vmul.f32 %v2667, %v2606
      %v2669 = vmul.f32 %v2668, %v2667
      %v2670 = vmul.f32 0.5, %v2669
      %v2671 = vsub.f32 1.5, %v2670
      %v2672 = vmul.f32 %v2667, %v2671
      %v2673 = vmul.f32 %v2606, %v2672
      %vm2674 = vcmp.eq.f32.partialorder %v2606, inf
      %v2675 = vsel %vm2674, %v2606, %v2673
      %vm2676 = vcmp.eq.f32.partialorder %v2606, 0.0
      %v2677 = vand.u32 %v2606, 2147483648
      %v2678 = vsel %vm2676, %v2677, %v2675
      %v2679 = vadd.f32 %v2618, 1e-06
      %v2680 = vadd.f32 %v2630, 1e-06
      %v2681 = vadd.f32 %v2642, 1e-06
      %v2682 = vadd.f32 %v2654, 1e-06
      %v2683 = vadd.f32 %v2666, 1e-06
      %v2684 = vadd.f32 %v2678, 1e-06
      %v2685 = vrcp.pop %v2679
      %v2686 = vrcp.pop %v2680
      %v2687 = vrcp.pop %v2681
      %v2688 = vrcp.pop %v2682
      %v2689 = vrcp.pop %v2683
      %v2690 = vrcp.pop %v2684
      %v2691 = vperm.slane %v2546, 0
      %v2692 = vmul.f32 %v2691, %v2571
      %v2693 = vmul.f32 %v2691, %v2572
      %v2694 = vmul.f32 %v2691, %v2573
      %v2695 = vmul.f32 %v2691, %v2574
      %v2696 = vmul.f32 %v2691, %v2575
      %v2697 = vmul.f32 %v2691, %v2576
      %v2698 = vmul.f32 %v2692, %v2685
      %v2699 = vmul.f32 %v2693, %v2686
      %v2700 = vmul.f32 %v2694, %v2687
      %v2701 = vmul.f32 %v2695, %v2688
      %v2702 = vmul.f32 %v2696, %v2689
      %v2703 = vmul.f32 %v2697, %v2690
      %v2704 = vperm.slane %v2546, 1
      %v2705 = vadd.f32 %v2698, %v2704
      %v2706 = vadd.f32 %v2699, %v2704
      %v2707 = vadd.f32 %v2700, %v2704
      %v2708 = vadd.f32 %v2701, %v2704
      %v2709 = vadd.f32 %v2702, %v2704
      %v2710 = vadd.f32 %v2703, %v2704
      %s2711 = scalar_lea.vmem %s11, 16
      %v2712 = vld [vmem:[%s2711] sm:$0xf]
      %v2713 = vld [vmem:[%s2711 + $0x4] sm:$0xf]
      %v2714 = vld [vmem:[%s2711 + $0x8] sm:$0xf]
      %v2715 = vld [vmem:[%s2711 + $0xc] sm:$0xf]
      %v2716 = vpack.c.bf16 %v2706, %v2705
      %v2717 = vpack.c.bf16 %v2708, %v2707
      %v2718 = vpack.c.bf16 %v2710, %v2709
      %s2719 = scalar_lea.vmem %s13, 1
      %v2720 = vld [vmem:[%s2719] sm:$0x1]
      %v2722 = vperm.slane %v2720, 0
      %v2728 = vunpack.c.l.b16 %v2712
      %v2729 = vunpack.c.l.b16 %v2713
      %v2730 = vunpack.c.l.b16 %v2714
      %v2731 = vunpack.c.l.b16 %v2715
      %v2732 = vpack.c.b16 %v2729, %v2728
      %v2733 = vpack.c.b16 %v2731, %v2730
      %v2737 = vsel %vm1140, %v2716, 0
      %v2740 = vsel %vm1140, %v2717, 0
      %v2743 = vsel %vm1140, %v2718, 0
      %2745 = vmatpush.bf16.msra.mxu0 0
      %2746 = vmatpush.bf16.msra.mxu0 0
      %2747 = vmatpush.bf16.msra.mxu0 0
      %2748 = vmatpush.bf16.msra.mxu0 0
      %2749 = vmatpush.bf16.msra.mxu0 0
      %2750 = vmatpush.bf16.msra.mxu0 0
      %2751 = vmatpush.bf16.msra.mxu0 %v2733
      %2752 = vmatpush.bf16.msra.mxu0 %v2732
      %2753 = vmatmul.bf16.gmra.mxu0 %v2737
      %v2754 = vpop.f32.mrf.mxu0
      %v2755 = vadd.f32 %v2722, %v2754
      %v2756 = vpop.f32.mrf.mxu0
      %v2757 = vadd.f32 %v2722, %v2756
      %2758 = vmatmul.bf16.gmra.mxu0 %v2740
      %v2759 = vpop.f32.mrf.mxu0
      %v2760 = vadd.f32 %v2722, %v2759
      %v2761 = vpop.f32.mrf.mxu0
      %v2762 = vadd.f32 %v2722, %v2761
      %2763 = vmatmul.bf16.gmra.mxu0 %v2743
      %v2764 = vpop.f32.mrf.mxu0
      %v2765 = vadd.f32 %v2722, %v2764
      %v2766 = vpop.f32.mrf.mxu0
      %v2767 = vadd.f32 %v2722, %v2766
      %2768 = vdwg.mxu0
      %s2769 = scalar_lea.vmem %s15, 16
      %v2770 = vld [vmem:[%s2769] sm:$0xf]
      %v2771 = vld [vmem:[%s2769 + $0x4] sm:$0xf]
      %v2772 = vld [vmem:[%s2769 + $0x8] sm:$0xf]
      %v2773 = vld [vmem:[%s2769 + $0xc] sm:$0xf]
      %v2774 = vpack.c.bf16 %v2757, %v2755
      %v2775 = vpack.c.bf16 %v2762, %v2760
      %v2776 = vpack.c.bf16 %v2767, %v2765
      %2780 = vrot.lane.b32.xlu0 %v2774, 96
      %v2781 = vpop.permute.xlu0 %2780
      %2782 = vrot.lane.b32.xlu0 %v2775, 96
      %v2783 = vpop.permute.xlu0 %2782
      %2784 = vrot.lane.b32.xlu0 %v2776, 96
      %v2785 = vpop.permute.xlu0 %2784
      %v2787 = vsel %vm1391, %v2774, 0
      %v2790 = vsel %vm1391, %v2775, 0
      %v2793 = vsel %vm1391, %v2776, 0
      %v2796 = vsel %vm1391, %v2781, 0
      %v2799 = vsel %vm1391, %v2783, 0
      %v2802 = vsel %vm1391, %v2785, 0
      %2804 = vmatpush.bf16.xpose.msra.mxu0 0
      %2805 = vmatpush.bf16.xpose.msra.mxu0 0
      %2806 = vmatpush.bf16.xpose.msra.mxu0 0
      %2807 = vmatpush.bf16.xpose.msra.mxu0 0
      %2808 = vmatpush.bf16.xpose.msra.mxu0 0
      %2809 = vmatpush.bf16.xpose.msra.mxu0 %v2802
      %2810 = vmatpush.bf16.xpose.msra.mxu0 %v2799
      %2811 = vmatpush.bf16.xpose.msra.mxu0 %v2796
      %2812 = vmatmul.bf16.gmra.mxu0 %v2787
      %v2813 = vpop.f32.mrf.mxu0
      %v2814 = vadd.f32 0.0, %v2813
      %v2815 = vpop.f32.mrf.mxu0
      %v2816 = vadd.f32 0.0, %v2815
      %2817 = vmatmul.bf16.gmra.mxu0 %v2790
      %v2818 = vpop.f32.mrf.mxu0
      %v2819 = vadd.f32 0.0, %v2818
      %v2820 = vpop.f32.mrf.mxu0
      %v2821 = vadd.f32 0.0, %v2820
      %2822 = vmatmul.bf16.gmra.mxu0 %v2793
      %v2823 = vpop.f32.mrf.mxu0
      %v2824 = vadd.f32 0.0, %v2823
      %v2825 = vpop.f32.mrf.mxu0
      %v2826 = vadd.f32 0.0, %v2825
      %2827 = vdwg.mxu0
      %v2828 = vmul.f32 %v2814, 0.35355338
      %v2829 = vmul.f32 %v2816, 0.35355338
      %v2830 = vmul.f32 %v2819, 0.35355338
      %v2831 = vmul.f32 %v2821, 0.35355338
      %v2832 = vmul.f32 %v2824, 0.35355338
      %v2833 = vmul.f32 %v2826, 0.35355338
      %v2834 = vsel %vm1440, %v2828, -inf
      %2835 = vmax.xlane.f32.xlu0 %v2834
      %v2836 = vpop.xlane.xlu0 %2835
      %v2837 = vsel %vm1440, %v2829, -inf
      %2838 = vmax.xlane.f32.xlu0 %v2837
      %v2839 = vpop.xlane.xlu0 %2838
      %v2840 = vsel %vm1440, %v2830, -inf
      %2841 = vmax.xlane.f32.xlu0 %v2840
      %v2842 = vpop.xlane.xlu0 %2841
      %v2843 = vsel %vm1440, %v2831, -inf
      %2844 = vmax.xlane.f32.xlu0 %v2843
      %v2845 = vpop.xlane.xlu0 %2844
      %v2846 = vsel %vm1440, %v2832, -inf
      %2847 = vmax.xlane.f32.xlu0 %v2846
      %v2848 = vpop.xlane.xlu0 %2847
      %v2849 = vsel %vm1440, %v2833, -inf
      %2850 = vmax.xlane.f32.xlu0 %v2849
      %v2851 = vpop.xlane.xlu0 %2850
      %v2852 = vsub.f32 %v2828, %v2836
      %v2853 = vsub.f32 %v2829, %v2839
      %v2854 = vsub.f32 %v2830, %v2842
      %v2855 = vsub.f32 %v2831, %v2845
      %v2856 = vsub.f32 %v2832, %v2848
      %v2857 = vsub.f32 %v2833, %v2851
      %v2858 = vmul.f32 %v2852, 1.442695
      %v2859 = vpow.pop %v2858
      %v2860 = vmul.f32 %v2853, 1.442695
      %v2861 = vpow.pop %v2860
      %v2862 = vmul.f32 %v2854, 1.442695
      %v2863 = vpow.pop %v2862
      %v2864 = vmul.f32 %v2855, 1.442695
      %v2865 = vpow.pop %v2864
      %v2866 = vmul.f32 %v2856, 1.442695
      %v2867 = vpow.pop %v2866
      %v2868 = vmul.f32 %v2857, 1.442695
      %v2869 = vpow.pop %v2868
      %v2870 = vsel %vm1440, %v2859, 0.0
      %2871 = vadd.xlane.f32.xlu0 %v2870
      %v2872 = vpop.xlane.xlu0 %2871
      %v2873 = vsel %vm1440, %v2861, 0.0
      %2874 = vadd.xlane.f32.xlu0 %v2873
      %v2875 = vpop.xlane.xlu0 %2874
      %v2876 = vsel %vm1440, %v2863, 0.0
      %2877 = vadd.xlane.f32.xlu0 %v2876
      %v2878 = vpop.xlane.xlu0 %2877
      %v2879 = vsel %vm1440, %v2865, 0.0
      %2880 = vadd.xlane.f32.xlu0 %v2879
      %v2881 = vpop.xlane.xlu0 %2880
      %v2882 = vsel %vm1440, %v2867, 0.0
      %2883 = vadd.xlane.f32.xlu0 %v2882
      %v2884 = vpop.xlane.xlu0 %2883
      %v2885 = vsel %vm1440, %v2869, 0.0
      %2886 = vadd.xlane.f32.xlu0 %v2885
      %v2887 = vpop.xlane.xlu0 %2886
      %v2888 = vrcp.pop %v2872
      %v2889 = vrcp.pop %v2875
      %v2890 = vrcp.pop %v2878
      %v2891 = vrcp.pop %v2881
      %v2892 = vrcp.pop %v2884
      %v2893 = vrcp.pop %v2887
      %v2894 = vmul.f32 %v2859, %v2888
      %v2895 = vmul.f32 %v2861, %v2889
      %v2896 = vmul.f32 %v2863, %v2890
      %v2897 = vmul.f32 %v2865, %v2891
      %v2898 = vmul.f32 %v2867, %v2892
      %v2899 = vmul.f32 %v2869, %v2893
      %v2900 = vpack.c.bf16 %v2895, %v2894
      %v2901 = vpack.c.bf16 %v2897, %v2896
      %v2902 = vpack.c.bf16 %v2899, %v2898
      %2903 = vrot.lane.b32.xlu0 %v2774, 64
      %v2904 = vpop.permute.xlu0 %2903
      %2905 = vrot.lane.b32.xlu0 %v2775, 64
      %v2906 = vpop.permute.xlu0 %2905
      %2907 = vrot.lane.b32.xlu0 %v2776, 64
      %v2908 = vpop.permute.xlu0 %2907
      %v2913 = vsel %vm1440, %v2900, 0
      %v2916 = vsel %vm1440, %v2901, 0
      %v2919 = vsel %vm1440, %v2902, 0
      %2921 = vmatpush.bf16.msra.mxu0 0
      %2922 = vmatpush.bf16.msra.mxu0 0
      %2923 = vmatpush.bf16.msra.mxu0 0
      %2924 = vmatpush.bf16.msra.mxu0 0
      %2925 = vmatpush.bf16.msra.mxu0 0
      %2926 = vmatpush.bf16.msra.mxu0 %v2908
      %2927 = vmatpush.bf16.msra.mxu0 %v2906
      %2928 = vmatpush.bf16.msra.mxu0 %v2904
      %2929 = vmatmul.bf16.gmra.mxu0 %v2913
      %v2930 = vpop.f32.mrf.mxu0
      %v2931 = vadd.f32 0.0, %v2930
      %v2932 = vpop.f32.mrf.mxu0
      %v2933 = vadd.f32 0.0, %v2932
      %2934 = vmatmul.bf16.gmra.mxu0 %v2916
      %v2935 = vpop.f32.mrf.mxu0
      %v2936 = vadd.f32 0.0, %v2935
      %v2937 = vpop.f32.mrf.mxu0
      %v2938 = vadd.f32 0.0, %v2937
      %2939 = vmatmul.bf16.gmra.mxu0 %v2919
      %v2940 = vpop.f32.mrf.mxu0
      %v2941 = vadd.f32 0.0, %v2940
      %v2942 = vpop.f32.mrf.mxu0
      %v2943 = vadd.f32 0.0, %v2942
      %2944 = vdwg.mxu0
      %v2945 = vpack.c.bf16 %v2933, %v2931
      %v2946 = vpack.c.bf16 %v2938, %v2936
      %v2947 = vpack.c.bf16 %v2943, %v2941
      %2948 = vrot.lane.b32.xlu0 %v2774, 120
      %v2949 = vpop.permute.xlu0 %2948
      %2950 = vrot.lane.b32.xlu0 %v2775, 120
      %v2951 = vpop.permute.xlu0 %2950
      %2952 = vrot.lane.b32.xlu0 %v2776, 120
      %v2953 = vpop.permute.xlu0 %2952
      %2954 = vrot.lane.b32.xlu0 %v2774, 88
      %v2955 = vpop.permute.xlu0 %2954
      %2956 = vrot.lane.b32.xlu0 %v2775, 88
      %v2957 = vpop.permute.xlu0 %2956
      %2958 = vrot.lane.b32.xlu0 %v2776, 88
      %v2959 = vpop.permute.xlu0 %2958
      %v2961 = vsel %vm1391, %v2949, 0
      %v2964 = vsel %vm1391, %v2951, 0
      %v2967 = vsel %vm1391, %v2953, 0
      %v2970 = vsel %vm1391, %v2955, 0
      %v2973 = vsel %vm1391, %v2957, 0
      %v2976 = vsel %vm1391, %v2959, 0
      %2978 = vmatpush.bf16.xpose.msra.mxu0 0
      %2979 = vmatpush.bf16.xpose.msra.mxu0 0
      %2980 = vmatpush.bf16.xpose.msra.mxu0 0
      %2981 = vmatpush.bf16.xpose.msra.mxu0 0
      %2982 = vmatpush.bf16.xpose.msra.mxu0 0
      %2983 = vmatpush.bf16.xpose.msra.mxu0 %v2976
      %2984 = vmatpush.bf16.xpose.msra.mxu0 %v2973
      %2985 = vmatpush.bf16.xpose.msra.mxu0 %v2970
      %2986 = vmatmul.bf16.gmra.mxu0 %v2961
      %v2987 = vpop.f32.mrf.mxu0
      %v2988 = vadd.f32 0.0, %v2987
      %v2989 = vpop.f32.mrf.mxu0
      %v2990 = vadd.f32 0.0, %v2989
      %2991 = vmatmul.bf16.gmra.mxu0 %v2964
      %v2992 = vpop.f32.mrf.mxu0
      %v2993 = vadd.f32 0.0, %v2992
      %v2994 = vpop.f32.mrf.mxu0
      %v2995 = vadd.f32 0.0, %v2994
      %2996 = vmatmul.bf16.gmra.mxu0 %v2967
      %v2997 = vpop.f32.mrf.mxu0
      %v2998 = vadd.f32 0.0, %v2997
      %v2999 = vpop.f32.mrf.mxu0
      %v3000 = vadd.f32 0.0, %v2999
      %3001 = vdwg.mxu0
      %v3002 = vmul.f32 %v2988, 0.35355338
      %v3003 = vmul.f32 %v2990, 0.35355338
      %v3004 = vmul.f32 %v2993, 0.35355338
      %v3005 = vmul.f32 %v2995, 0.35355338
      %v3006 = vmul.f32 %v2998, 0.35355338
      %v3007 = vmul.f32 %v3000, 0.35355338
      %v3008 = vsel %vm1440, %v3002, -inf
      %3009 = vmax.xlane.f32.xlu0 %v3008
      %v3010 = vpop.xlane.xlu0 %3009
      %v3011 = vsel %vm1440, %v3003, -inf
      %3012 = vmax.xlane.f32.xlu0 %v3011
      %v3013 = vpop.xlane.xlu0 %3012
      %v3014 = vsel %vm1440, %v3004, -inf
      %3015 = vmax.xlane.f32.xlu0 %v3014
      %v3016 = vpop.xlane.xlu0 %3015
      %v3017 = vsel %vm1440, %v3005, -inf
      %3018 = vmax.xlane.f32.xlu0 %v3017
      %v3019 = vpop.xlane.xlu0 %3018
      %v3020 = vsel %vm1440, %v3006, -inf
      %3021 = vmax.xlane.f32.xlu0 %v3020
      %v3022 = vpop.xlane.xlu0 %3021
      %v3023 = vsel %vm1440, %v3007, -inf
      %3024 = vmax.xlane.f32.xlu0 %v3023
      %v3025 = vpop.xlane.xlu0 %3024
      %v3026 = vsub.f32 %v3002, %v3010
      %v3027 = vsub.f32 %v3003, %v3013
      %v3028 = vsub.f32 %v3004, %v3016
      %v3029 = vsub.f32 %v3005, %v3019
      %v3030 = vsub.f32 %v3006, %v3022
      %v3031 = vsub.f32 %v3007, %v3025
      %v3032 = vmul.f32 %v3026, 1.442695
      %v3033 = vpow.pop %v3032
      %v3034 = vmul.f32 %v3027, 1.442695
      %v3035 = vpow.pop %v3034
      %v3036 = vmul.f32 %v3028, 1.442695
      %v3037 = vpow.pop %v3036
      %v3038 = vmul.f32 %v3029, 1.442695
      %v3039 = vpow.pop %v3038
      %v3040 = vmul.f32 %v3030, 1.442695
      %v3041 = vpow.pop %v3040
      %v3042 = vmul.f32 %v3031, 1.442695
      %v3043 = vpow.pop %v3042
      %v3044 = vsel %vm1440, %v3033, 0.0
      %3045 = vadd.xlane.f32.xlu0 %v3044
      %v3046 = vpop.xlane.xlu0 %3045
      %v3047 = vsel %vm1440, %v3035, 0.0
      %3048 = vadd.xlane.f32.xlu0 %v3047
      %v3049 = vpop.xlane.xlu0 %3048
      %v3050 = vsel %vm1440, %v3037, 0.0
      %3051 = vadd.xlane.f32.xlu0 %v3050
      %v3052 = vpop.xlane.xlu0 %3051
      %v3053 = vsel %vm1440, %v3039, 0.0
      %3054 = vadd.xlane.f32.xlu0 %v3053
      %v3055 = vpop.xlane.xlu0 %3054
      %v3056 = vsel %vm1440, %v3041, 0.0
      %3057 = vadd.xlane.f32.xlu0 %v3056
      %v3058 = vpop.xlane.xlu0 %3057
      %v3059 = vsel %vm1440, %v3043, 0.0
      %3060 = vadd.xlane.f32.xlu0 %v3059
      %v3061 = vpop.xlane.xlu0 %3060
      %v3062 = vrcp.pop %v3046
      %v3063 = vrcp.pop %v3049
      %v3064 = vrcp.pop %v3052
      %v3065 = vrcp.pop %v3055
      %v3066 = vrcp.pop %v3058
      %v3067 = vrcp.pop %v3061
      %v3068 = vmul.f32 %v3033, %v3062
      %v3069 = vmul.f32 %v3035, %v3063
      %v3070 = vmul.f32 %v3037, %v3064
      %v3071 = vmul.f32 %v3039, %v3065
      %v3072 = vmul.f32 %v3041, %v3066
      %v3073 = vmul.f32 %v3043, %v3067
      %v3074 = vpack.c.bf16 %v3069, %v3068
      %v3075 = vpack.c.bf16 %v3071, %v3070
      %v3076 = vpack.c.bf16 %v3073, %v3072
      %3077 = vrot.lane.b32.xlu0 %v2774, 56
      %v3078 = vpop.permute.xlu0 %3077
      %3079 = vrot.lane.b32.xlu0 %v2775, 56
      %v3080 = vpop.permute.xlu0 %3079
      %3081 = vrot.lane.b32.xlu0 %v2776, 56
      %v3082 = vpop.permute.xlu0 %3081
      %v3087 = vsel %vm1440, %v3074, 0
      %v3090 = vsel %vm1440, %v3075, 0
      %v3093 = vsel %vm1440, %v3076, 0
      %3095 = vmatpush.bf16.msra.mxu0 0
      %3096 = vmatpush.bf16.msra.mxu0 0
      %3097 = vmatpush.bf16.msra.mxu0 0
      %3098 = vmatpush.bf16.msra.mxu0 0
      %3099 = vmatpush.bf16.msra.mxu0 0
      %3100 = vmatpush.bf16.msra.mxu0 %v3082
      %3101 = vmatpush.bf16.msra.mxu0 %v3080
      %3102 = vmatpush.bf16.msra.mxu0 %v3078
      %3103 = vmatmul.bf16.gmra.mxu0 %v3087
      %v3104 = vpop.f32.mrf.mxu0
      %v3105 = vadd.f32 0.0, %v3104
      %v3106 = vpop.f32.mrf.mxu0
      %v3107 = vadd.f32 0.0, %v3106
      %3108 = vmatmul.bf16.gmra.mxu0 %v3090
      %v3109 = vpop.f32.mrf.mxu0
      %v3110 = vadd.f32 0.0, %v3109
      %v3111 = vpop.f32.mrf.mxu0
      %v3112 = vadd.f32 0.0, %v3111
      %3113 = vmatmul.bf16.gmra.mxu0 %v3093
      %v3114 = vpop.f32.mrf.mxu0
      %v3115 = vadd.f32 0.0, %v3114
      %v3116 = vpop.f32.mrf.mxu0
      %v3117 = vadd.f32 0.0, %v3116
      %3118 = vdwg.mxu0
      %v3119 = vpack.c.bf16 %v3107, %v3105
      %v3120 = vpack.c.bf16 %v3112, %v3110
      %v3121 = vpack.c.bf16 %v3117, %v3115
      %v3123 = vsel %vm1391, %v3119, 0
      %v3126 = vsel %vm1391, %v3120, 0
      %v3129 = vsel %vm1391, %v3121, 0
      %v3132 = vsel %vm1738, %v2771, 0
      %3134 = vmatpush.bf16.msra.mxu0 0
      %3135 = vmatpush.bf16.msra.mxu0 0
      %3136 = vmatpush.bf16.msra.mxu0 0
      %3137 = vmatpush.bf16.msra.mxu0 0
      %3138 = vmatpush.bf16.msra.mxu0 0
      %3139 = vmatpush.bf16.msra.mxu0 0
      %3140 = vmatpush.bf16.msra.mxu0 0
      %3141 = vmatpush.bf16.msra.mxu0 %v3132
      %3142 = vmatmul.bf16.gmra.mxu0 %v3123
      %v3143 = vpop.f32.mrf.mxu0
      %v3144 = vadd.f32 0.0, %v3143
      %v3145 = vpop.f32.mrf.mxu0
      %v3146 = vadd.f32 0.0, %v3145
      %3147 = vmatmul.bf16.gmra.mxu0 %v3126
      %v3148 = vpop.f32.mrf.mxu0
      %v3149 = vadd.f32 0.0, %v3148
      %v3150 = vpop.f32.mrf.mxu0
      %v3151 = vadd.f32 0.0, %v3150
      %3152 = vmatmul.bf16.gmra.mxu0 %v3129
      %v3153 = vpop.f32.mrf.mxu0
      %v3154 = vadd.f32 0.0, %v3153
      %v3155 = vpop.f32.mrf.mxu0
      %v3156 = vadd.f32 0.0, %v3155
      %3157 = vdwg.mxu0
      %v3159 = vsel %vm1391, %v2945, 0
      %v3162 = vsel %vm1391, %v2946, 0
      %v3165 = vsel %vm1391, %v2947, 0
      %v3168 = vsel %vm1738, %v2770, 0
      %3170 = vmatpush.bf16.msra.mxu0 0
      %3171 = vmatpush.bf16.msra.mxu0 0
      %3172 = vmatpush.bf16.msra.mxu0 0
      %3173 = vmatpush.bf16.msra.mxu0 0
      %3174 = vmatpush.bf16.msra.mxu0 0
      %3175 = vmatpush.bf16.msra.mxu0 0
      %3176 = vmatpush.bf16.msra.mxu0 0
      %3177 = vmatpush.bf16.msra.mxu0 %v3168
      %3178 = vmatmul.bf16.gmra.mxu0 %v3159
      %v3179 = vpop.f32.mrf.mxu0
      %v3180 = vadd.f32 %v3144, %v3179
      %v3181 = vpop.f32.mrf.mxu0
      %v3182 = vadd.f32 %v3146, %v3181
      %3183 = vmatmul.bf16.gmra.mxu0 %v3162
      %v3184 = vpop.f32.mrf.mxu0
      %v3185 = vadd.f32 %v3149, %v3184
      %v3186 = vpop.f32.mrf.mxu0
      %v3187 = vadd.f32 %v3151, %v3186
      %3188 = vmatmul.bf16.gmra.mxu0 %v3165
      %v3189 = vpop.f32.mrf.mxu0
      %v3190 = vadd.f32 %v3154, %v3189
      %v3191 = vpop.f32.mrf.mxu0
      %v3192 = vadd.f32 %v3156, %v3191
      %3193 = vdwg.mxu0
      %3194 = vrot.lane.b32.xlu0 %v2774, 112
      %v3195 = vpop.permute.xlu0 %3194
      %3196 = vrot.lane.b32.xlu0 %v2775, 112
      %v3197 = vpop.permute.xlu0 %3196
      %3198 = vrot.lane.b32.xlu0 %v2776, 112
      %v3199 = vpop.permute.xlu0 %3198
      %3200 = vrot.lane.b32.xlu0 %v2774, 80
      %v3201 = vpop.permute.xlu0 %3200
      %3202 = vrot.lane.b32.xlu0 %v2775, 80
      %v3203 = vpop.permute.xlu0 %3202
      %3204 = vrot.lane.b32.xlu0 %v2776, 80
      %v3205 = vpop.permute.xlu0 %3204
      %v3207 = vsel %vm1391, %v3195, 0
      %v3210 = vsel %vm1391, %v3197, 0
      %v3213 = vsel %vm1391, %v3199, 0
      %v3216 = vsel %vm1391, %v3201, 0
      %v3219 = vsel %vm1391, %v3203, 0
      %v3222 = vsel %vm1391, %v3205, 0
      %3224 = vmatpush.bf16.xpose.msra.mxu0 0
      %3225 = vmatpush.bf16.xpose.msra.mxu0 0
      %3226 = vmatpush.bf16.xpose.msra.mxu0 0
      %3227 = vmatpush.bf16.xpose.msra.mxu0 0
      %3228 = vmatpush.bf16.xpose.msra.mxu0 0
      %3229 = vmatpush.bf16.xpose.msra.mxu0 %v3222
      %3230 = vmatpush.bf16.xpose.msra.mxu0 %v3219
      %3231 = vmatpush.bf16.xpose.msra.mxu0 %v3216
      %3232 = vmatmul.bf16.gmra.mxu0 %v3207
      %v3233 = vpop.f32.mrf.mxu0
      %v3234 = vadd.f32 0.0, %v3233
      %v3235 = vpop.f32.mrf.mxu0
      %v3236 = vadd.f32 0.0, %v3235
      %3237 = vmatmul.bf16.gmra.mxu0 %v3210
      %v3238 = vpop.f32.mrf.mxu0
      %v3239 = vadd.f32 0.0, %v3238
      %v3240 = vpop.f32.mrf.mxu0
      %v3241 = vadd.f32 0.0, %v3240
      %3242 = vmatmul.bf16.gmra.mxu0 %v3213
      %v3243 = vpop.f32.mrf.mxu0
      %v3244 = vadd.f32 0.0, %v3243
      %v3245 = vpop.f32.mrf.mxu0
      %v3246 = vadd.f32 0.0, %v3245
      %3247 = vdwg.mxu0
      %v3248 = vmul.f32 %v3234, 0.35355338
      %v3249 = vmul.f32 %v3236, 0.35355338
      %v3250 = vmul.f32 %v3239, 0.35355338
      %v3251 = vmul.f32 %v3241, 0.35355338
      %v3252 = vmul.f32 %v3244, 0.35355338
      %v3253 = vmul.f32 %v3246, 0.35355338
      %v3254 = vsel %vm1440, %v3248, -inf
      %3255 = vmax.xlane.f32.xlu0 %v3254
      %v3256 = vpop.xlane.xlu0 %3255
      %v3257 = vsel %vm1440, %v3249, -inf
      %3258 = vmax.xlane.f32.xlu0 %v3257
      %v3259 = vpop.xlane.xlu0 %3258
      %v3260 = vsel %vm1440, %v3250, -inf
      %3261 = vmax.xlane.f32.xlu0 %v3260
      %v3262 = vpop.xlane.xlu0 %3261
      %v3263 = vsel %vm1440, %v3251, -inf
      %3264 = vmax.xlane.f32.xlu0 %v3263
      %v3265 = vpop.xlane.xlu0 %3264
      %v3266 = vsel %vm1440, %v3252, -inf
      %3267 = vmax.xlane.f32.xlu0 %v3266
      %v3268 = vpop.xlane.xlu0 %3267
      %v3269 = vsel %vm1440, %v3253, -inf
      %3270 = vmax.xlane.f32.xlu0 %v3269
      %v3271 = vpop.xlane.xlu0 %3270
      %v3272 = vsub.f32 %v3248, %v3256
      %v3273 = vsub.f32 %v3249, %v3259
      %v3274 = vsub.f32 %v3250, %v3262
      %v3275 = vsub.f32 %v3251, %v3265
      %v3276 = vsub.f32 %v3252, %v3268
      %v3277 = vsub.f32 %v3253, %v3271
      %v3278 = vmul.f32 %v3272, 1.442695
      %v3279 = vpow.pop %v3278
      %v3280 = vmul.f32 %v3273, 1.442695
      %v3281 = vpow.pop %v3280
      %v3282 = vmul.f32 %v3274, 1.442695
      %v3283 = vpow.pop %v3282
      %v3284 = vmul.f32 %v3275, 1.442695
      %v3285 = vpow.pop %v3284
      %v3286 = vmul.f32 %v3276, 1.442695
      %v3287 = vpow.pop %v3286
      %v3288 = vmul.f32 %v3277, 1.442695
      %v3289 = vpow.pop %v3288
      %v3290 = vsel %vm1440, %v3279, 0.0
      %3291 = vadd.xlane.f32.xlu0 %v3290
      %v3292 = vpop.xlane.xlu0 %3291
      %v3293 = vsel %vm1440, %v3281, 0.0
      %3294 = vadd.xlane.f32.xlu0 %v3293
      %v3295 = vpop.xlane.xlu0 %3294
      %v3296 = vsel %vm1440, %v3283, 0.0
      %3297 = vadd.xlane.f32.xlu0 %v3296
      %v3298 = vpop.xlane.xlu0 %3297
      %v3299 = vsel %vm1440, %v3285, 0.0
      %3300 = vadd.xlane.f32.xlu0 %v3299
      %v3301 = vpop.xlane.xlu0 %3300
      %v3302 = vsel %vm1440, %v3287, 0.0
      %3303 = vadd.xlane.f32.xlu0 %v3302
      %v3304 = vpop.xlane.xlu0 %3303
      %v3305 = vsel %vm1440, %v3289, 0.0
      %3306 = vadd.xlane.f32.xlu0 %v3305
      %v3307 = vpop.xlane.xlu0 %3306
      %v3308 = vrcp.pop %v3292
      %v3309 = vrcp.pop %v3295
      %v3310 = vrcp.pop %v3298
      %v3311 = vrcp.pop %v3301
      %v3312 = vrcp.pop %v3304
      %v3313 = vrcp.pop %v3307
      %v3314 = vmul.f32 %v3279, %v3308
      %v3315 = vmul.f32 %v3281, %v3309
      %v3316 = vmul.f32 %v3283, %v3310
      %v3317 = vmul.f32 %v3285, %v3311
      %v3318 = vmul.f32 %v3287, %v3312
      %v3319 = vmul.f32 %v3289, %v3313
      %v3320 = vpack.c.bf16 %v3315, %v3314
      %v3321 = vpack.c.bf16 %v3317, %v3316
      %v3322 = vpack.c.bf16 %v3319, %v3318
      %3323 = vrot.lane.b32.xlu0 %v2774, 48
      %v3324 = vpop.permute.xlu0 %3323
      %3325 = vrot.lane.b32.xlu0 %v2775, 48
      %v3326 = vpop.permute.xlu0 %3325
      %3327 = vrot.lane.b32.xlu0 %v2776, 48
      %v3328 = vpop.permute.xlu0 %3327
      %v3333 = vsel %vm1440, %v3320, 0
      %v3336 = vsel %vm1440, %v3321, 0
      %v3339 = vsel %vm1440, %v3322, 0
      %3341 = vmatpush.bf16.msra.mxu0 0
      %3342 = vmatpush.bf16.msra.mxu0 0
      %3343 = vmatpush.bf16.msra.mxu0 0
      %3344 = vmatpush.bf16.msra.mxu0 0
      %3345 = vmatpush.bf16.msra.mxu0 0
      %3346 = vmatpush.bf16.msra.mxu0 %v3328
      %3347 = vmatpush.bf16.msra.mxu0 %v3326
      %3348 = vmatpush.bf16.msra.mxu0 %v3324
      %3349 = vmatmul.bf16.gmra.mxu0 %v3333
      %v3350 = vpop.f32.mrf.mxu0
      %v3351 = vadd.f32 0.0, %v3350
      %v3352 = vpop.f32.mrf.mxu0
      %v3353 = vadd.f32 0.0, %v3352
      %3354 = vmatmul.bf16.gmra.mxu0 %v3336
      %v3355 = vpop.f32.mrf.mxu0
      %v3356 = vadd.f32 0.0, %v3355
      %v3357 = vpop.f32.mrf.mxu0
      %v3358 = vadd.f32 0.0, %v3357
      %3359 = vmatmul.bf16.gmra.mxu0 %v3339
      %v3360 = vpop.f32.mrf.mxu0
      %v3361 = vadd.f32 0.0, %v3360
      %v3362 = vpop.f32.mrf.mxu0
      %v3363 = vadd.f32 0.0, %v3362
      %3364 = vdwg.mxu0
      %v3365 = vpack.c.bf16 %v3353, %v3351
      %v3366 = vpack.c.bf16 %v3358, %v3356
      %v3367 = vpack.c.bf16 %v3363, %v3361
      %v3369 = vsel %vm1391, %v3365, 0
      %v3372 = vsel %vm1391, %v3366, 0
      %v3375 = vsel %vm1391, %v3367, 0
      %v3378 = vsel %vm1738, %v2772, 0
      %3380 = vmatpush.bf16.msra.mxu0 0
      %3381 = vmatpush.bf16.msra.mxu0 0
      %3382 = vmatpush.bf16.msra.mxu0 0
      %3383 = vmatpush.bf16.msra.mxu0 0
      %3384 = vmatpush.bf16.msra.mxu0 0
      %3385 = vmatpush.bf16.msra.mxu0 0
      %3386 = vmatpush.bf16.msra.mxu0 0
      %3387 = vmatpush.bf16.msra.mxu0 %v3378
      %3388 = vmatmul.bf16.gmra.mxu0 %v3369
      %v3389 = vpop.f32.mrf.mxu0
      %v3390 = vadd.f32 0.0, %v3389
      %v3391 = vpop.f32.mrf.mxu0
      %v3392 = vadd.f32 0.0, %v3391
      %3393 = vmatmul.bf16.gmra.mxu0 %v3372
      %v3394 = vpop.f32.mrf.mxu0
      %v3395 = vadd.f32 0.0, %v3394
      %v3396 = vpop.f32.mrf.mxu0
      %v3397 = vadd.f32 0.0, %v3396
      %3398 = vmatmul.bf16.gmra.mxu0 %v3375
      %v3399 = vpop.f32.mrf.mxu0
      %v3400 = vadd.f32 0.0, %v3399
      %v3401 = vpop.f32.mrf.mxu0
      %v3402 = vadd.f32 0.0, %v3401
      %3403 = vdwg.mxu0
      %v3404 = vadd.f32 %v3180, %v3390
      %v3405 = vadd.f32 %v3182, %v3392
      %v3406 = vadd.f32 %v3185, %v3395
      %v3407 = vadd.f32 %v3187, %v3397
      %v3408 = vadd.f32 %v3190, %v3400
      %v3409 = vadd.f32 %v3192, %v3402
      %3410 = vrot.lane.b32.xlu0 %v2774, 104
      %v3411 = vpop.permute.xlu0 %3410
      %3412 = vrot.lane.b32.xlu0 %v2775, 104
      %v3413 = vpop.permute.xlu0 %3412
      %3414 = vrot.lane.b32.xlu0 %v2776, 104
      %v3415 = vpop.permute.xlu0 %3414
      %3416 = vrot.lane.b32.xlu0 %v2774, 72
      %v3417 = vpop.permute.xlu0 %3416
      %3418 = vrot.lane.b32.xlu0 %v2775, 72
      %v3419 = vpop.permute.xlu0 %3418
      %3420 = vrot.lane.b32.xlu0 %v2776, 72
      %v3421 = vpop.permute.xlu0 %3420
      %v3423 = vsel %vm1391, %v3411, 0
      %v3426 = vsel %vm1391, %v3413, 0
      %v3429 = vsel %vm1391, %v3415, 0
      %v3432 = vsel %vm1391, %v3417, 0
      %v3435 = vsel %vm1391, %v3419, 0
      %v3438 = vsel %vm1391, %v3421, 0
      %3440 = vmatpush.bf16.xpose.msra.mxu0 0
      %3441 = vmatpush.bf16.xpose.msra.mxu0 0
      %3442 = vmatpush.bf16.xpose.msra.mxu0 0
      %3443 = vmatpush.bf16.xpose.msra.mxu0 0
      %3444 = vmatpush.bf16.xpose.msra.mxu0 0
      %3445 = vmatpush.bf16.xpose.msra.mxu0 %v3438
      %3446 = vmatpush.bf16.xpose.msra.mxu0 %v3435
      %3447 = vmatpush.bf16.xpose.msra.mxu0 %v3432
      %3448 = vmatmul.bf16.gmra.mxu0 %v3423
      %v3449 = vpop.f32.mrf.mxu0
      %v3450 = vadd.f32 0.0, %v3449
      %v3451 = vpop.f32.mrf.mxu0
      %v3452 = vadd.f32 0.0, %v3451
      %3453 = vmatmul.bf16.gmra.mxu0 %v3426
      %v3454 = vpop.f32.mrf.mxu0
      %v3455 = vadd.f32 0.0, %v3454
      %v3456 = vpop.f32.mrf.mxu0
      %v3457 = vadd.f32 0.0, %v3456
      %3458 = vmatmul.bf16.gmra.mxu0 %v3429
      %v3459 = vpop.f32.mrf.mxu0
      %v3460 = vadd.f32 0.0, %v3459
      %v3461 = vpop.f32.mrf.mxu0
      %v3462 = vadd.f32 0.0, %v3461
      %3463 = vdwg.mxu0
      %v3464 = vmul.f32 %v3450, 0.35355338
      %v3465 = vmul.f32 %v3452, 0.35355338
      %v3466 = vmul.f32 %v3455, 0.35355338
      %v3467 = vmul.f32 %v3457, 0.35355338
      %v3468 = vmul.f32 %v3460, 0.35355338
      %v3469 = vmul.f32 %v3462, 0.35355338
      %v3470 = vsel %vm1440, %v3464, -inf
      %3471 = vmax.xlane.f32.xlu0 %v3470
      %v3472 = vpop.xlane.xlu0 %3471
      %v3473 = vsel %vm1440, %v3465, -inf
      %3474 = vmax.xlane.f32.xlu0 %v3473
      %v3475 = vpop.xlane.xlu0 %3474
      %v3476 = vsel %vm1440, %v3466, -inf
      %3477 = vmax.xlane.f32.xlu0 %v3476
      %v3478 = vpop.xlane.xlu0 %3477
      %v3479 = vsel %vm1440, %v3467, -inf
      %3480 = vmax.xlane.f32.xlu0 %v3479
      %v3481 = vpop.xlane.xlu0 %3480
      %v3482 = vsel %vm1440, %v3468, -inf
      %3483 = vmax.xlane.f32.xlu0 %v3482
      %v3484 = vpop.xlane.xlu0 %3483
      %v3485 = vsel %vm1440, %v3469, -inf
      %3486 = vmax.xlane.f32.xlu0 %v3485
      %v3487 = vpop.xlane.xlu0 %3486
      %v3488 = vsub.f32 %v3464, %v3472
      %v3489 = vsub.f32 %v3465, %v3475
      %v3490 = vsub.f32 %v3466, %v3478
      %v3491 = vsub.f32 %v3467, %v3481
      %v3492 = vsub.f32 %v3468, %v3484
      %v3493 = vsub.f32 %v3469, %v3487
      %v3494 = vmul.f32 %v3488, 1.442695
      %v3495 = vpow.pop %v3494
      %v3496 = vmul.f32 %v3489, 1.442695
      %v3497 = vpow.pop %v3496
      %v3498 = vmul.f32 %v3490, 1.442695
      %v3499 = vpow.pop %v3498
      %v3500 = vmul.f32 %v3491, 1.442695
      %v3501 = vpow.pop %v3500
      %v3502 = vmul.f32 %v3492, 1.442695
      %v3503 = vpow.pop %v3502
      %v3504 = vmul.f32 %v3493, 1.442695
      %v3505 = vpow.pop %v3504
      %v3506 = vsel %vm1440, %v3495, 0.0
      %3507 = vadd.xlane.f32.xlu0 %v3506
      %v3508 = vpop.xlane.xlu0 %3507
      %v3509 = vsel %vm1440, %v3497, 0.0
      %3510 = vadd.xlane.f32.xlu0 %v3509
      %v3511 = vpop.xlane.xlu0 %3510
      %v3512 = vsel %vm1440, %v3499, 0.0
      %3513 = vadd.xlane.f32.xlu0 %v3512
      %v3514 = vpop.xlane.xlu0 %3513
      %v3515 = vsel %vm1440, %v3501, 0.0
      %3516 = vadd.xlane.f32.xlu0 %v3515
      %v3517 = vpop.xlane.xlu0 %3516
      %v3518 = vsel %vm1440, %v3503, 0.0
      %3519 = vadd.xlane.f32.xlu0 %v3518
      %v3520 = vpop.xlane.xlu0 %3519
      %v3521 = vsel %vm1440, %v3505, 0.0
      %3522 = vadd.xlane.f32.xlu0 %v3521
      %v3523 = vpop.xlane.xlu0 %3522
      %v3524 = vrcp.pop %v3508
      %v3525 = vrcp.pop %v3511
      %v3526 = vrcp.pop %v3514
      %v3527 = vrcp.pop %v3517
      %v3528 = vrcp.pop %v3520
      %v3529 = vrcp.pop %v3523
      %v3530 = vmul.f32 %v3495, %v3524
      %v3531 = vmul.f32 %v3497, %v3525
      %v3532 = vmul.f32 %v3499, %v3526
      %v3533 = vmul.f32 %v3501, %v3527
      %v3534 = vmul.f32 %v3503, %v3528
      %v3535 = vmul.f32 %v3505, %v3529
      %v3536 = vpack.c.bf16 %v3531, %v3530
      %v3537 = vpack.c.bf16 %v3533, %v3532
      %v3538 = vpack.c.bf16 %v3535, %v3534
      %3539 = vrot.lane.b32.xlu0 %v2774, 40
      %v3540 = vpop.permute.xlu0 %3539
      %3541 = vrot.lane.b32.xlu0 %v2775, 40
      %v3542 = vpop.permute.xlu0 %3541
      %3543 = vrot.lane.b32.xlu0 %v2776, 40
      %v3544 = vpop.permute.xlu0 %3543
      %v3549 = vsel %vm1440, %v3536, 0
      %v3552 = vsel %vm1440, %v3537, 0
      %v3555 = vsel %vm1440, %v3538, 0
      %3557 = vmatpush.bf16.msra.mxu0 0
      %3558 = vmatpush.bf16.msra.mxu0 0
      %3559 = vmatpush.bf16.msra.mxu0 0
      %3560 = vmatpush.bf16.msra.mxu0 0
      %3561 = vmatpush.bf16.msra.mxu0 0
      %3562 = vmatpush.bf16.msra.mxu0 %v3544
      %3563 = vmatpush.bf16.msra.mxu0 %v3542
      %3564 = vmatpush.bf16.msra.mxu0 %v3540
      %3565 = vmatmul.bf16.gmra.mxu0 %v3549
      %v3566 = vpop.f32.mrf.mxu0
      %v3567 = vadd.f32 0.0, %v3566
      %v3568 = vpop.f32.mrf.mxu0
      %v3569 = vadd.f32 0.0, %v3568
      %3570 = vmatmul.bf16.gmra.mxu0 %v3552
      %v3571 = vpop.f32.mrf.mxu0
      %v3572 = vadd.f32 0.0, %v3571
      %v3573 = vpop.f32.mrf.mxu0
      %v3574 = vadd.f32 0.0, %v3573
      %3575 = vmatmul.bf16.gmra.mxu0 %v3555
      %v3576 = vpop.f32.mrf.mxu0
      %v3577 = vadd.f32 0.0, %v3576
      %v3578 = vpop.f32.mrf.mxu0
      %v3579 = vadd.f32 0.0, %v3578
      %3580 = vdwg.mxu0
      %v3581 = vpack.c.bf16 %v3569, %v3567
      %v3582 = vpack.c.bf16 %v3574, %v3572
      %v3583 = vpack.c.bf16 %v3579, %v3577
      %v3585 = vsel %vm1391, %v3581, 0
      %v3588 = vsel %vm1391, %v3582, 0
      %v3591 = vsel %vm1391, %v3583, 0
      %v3594 = vsel %vm1738, %v2773, 0
      %3596 = vmatpush.bf16.msra.mxu0 0
      %3597 = vmatpush.bf16.msra.mxu0 0
      %3598 = vmatpush.bf16.msra.mxu0 0
      %3599 = vmatpush.bf16.msra.mxu0 0
      %3600 = vmatpush.bf16.msra.mxu0 0
      %3601 = vmatpush.bf16.msra.mxu0 0
      %3602 = vmatpush.bf16.msra.mxu0 0
      %3603 = vmatpush.bf16.msra.mxu0 %v3594
      %3604 = vmatmul.bf16.gmra.mxu0 %v3585
      %v3605 = vpop.f32.mrf.mxu0
      %v3606 = vadd.f32 0.0, %v3605
      %v3607 = vpop.f32.mrf.mxu0
      %v3608 = vadd.f32 0.0, %v3607
      %3609 = vmatmul.bf16.gmra.mxu0 %v3588
      %v3610 = vpop.f32.mrf.mxu0
      %v3611 = vadd.f32 0.0, %v3610
      %v3612 = vpop.f32.mrf.mxu0
      %v3613 = vadd.f32 0.0, %v3612
      %3614 = vmatmul.bf16.gmra.mxu0 %v3591
      %v3615 = vpop.f32.mrf.mxu0
      %v3616 = vadd.f32 0.0, %v3615
      %v3617 = vpop.f32.mrf.mxu0
      %v3618 = vadd.f32 0.0, %v3617
      %3619 = vdwg.mxu0
      %v3620 = vadd.f32 %v3404, %v3606
      %v3621 = vadd.f32 %v3405, %v3608
      %v3622 = vadd.f32 %v3406, %v3611
      %v3623 = vadd.f32 %v3407, %v3613
      %v3624 = vadd.f32 %v3408, %v3616
      %v3625 = vadd.f32 %v3409, %v3618
      %v3626 = vadd.f32 %v2539, %v3620
      %v3627 = vadd.f32 %v2540, %v3621
      %v3628 = vadd.f32 %v2541, %v3622
      %v3629 = vadd.f32 %v2542, %v3623
      %v3630 = vadd.f32 %v2543, %v3624
      %v3631 = vadd.f32 %v2544, %v3625
      %s3632 = scalar_lea.vmem %s17, 1
      %v3633 = vld [vmem:[%s3632] sm:$0x1]
      %v3635 = vperm.slane %v3633, 0
      %v3637 = vadd.f32 %v3626, %v3635
      %v3638 = vadd.f32 %v3627, %v3635
      %v3639 = vadd.f32 %v3628, %v3635
      %v3640 = vadd.f32 %v3629, %v3635
      %v3641 = vadd.f32 %v3630, %v3635
      %v3642 = vadd.f32 %v3631, %v3635
      %s3643 = scalar_lea.vmem %s19, 2
      %v3644 = vld [vmem:[%s3643] sm:$0x3]
      %v3645 = vsel %vm1140, %v3637, 0.0
      %3646 = vadd.xlane.f32.xlu0 %v3645
      %v3647 = vpop.xlane.xlu0 %3646
      %v3648 = vsel %vm1140, %v3638, 0.0
      %3649 = vadd.xlane.f32.xlu0 %v3648
      %v3650 = vpop.xlane.xlu0 %3649
      %v3651 = vsel %vm1140, %v3639, 0.0
      %3652 = vadd.xlane.f32.xlu0 %v3651
      %v3653 = vpop.xlane.xlu0 %3652
      %v3654 = vsel %vm1140, %v3640, 0.0
      %3655 = vadd.xlane.f32.xlu0 %v3654
      %v3656 = vpop.xlane.xlu0 %3655
      %v3657 = vsel %vm1140, %v3641, 0.0
      %3658 = vadd.xlane.f32.xlu0 %v3657
      %v3659 = vpop.xlane.xlu0 %3658
      %v3660 = vsel %vm1140, %v3642, 0.0
      %3661 = vadd.xlane.f32.xlu0 %v3660
      %v3662 = vpop.xlane.xlu0 %3661
      %v3663 = vmul.f32 %v3647, %v1165
      %v3664 = vmul.f32 %v3650, %v1165
      %v3665 = vmul.f32 %v3653, %v1165
      %v3666 = vmul.f32 %v3656, %v1165
      %v3667 = vmul.f32 %v3659, %v1165
      %v3668 = vmul.f32 %v3662, %v1165
      %v3669 = vsub.f32 %v3637, %v3663
      %v3670 = vsub.f32 %v3638, %v3664
      %v3671 = vsub.f32 %v3639, %v3665
      %v3672 = vsub.f32 %v3640, %v3666
      %v3673 = vsub.f32 %v3641, %v3667
      %v3674 = vsub.f32 %v3642, %v3668
      %v3675 = vmul.f32 %v3669, %v3669
      %v3676 = vmul.f32 %v3670, %v3670
      %v3677 = vmul.f32 %v3671, %v3671
      %v3678 = vmul.f32 %v3672, %v3672
      %v3679 = vmul.f32 %v3673, %v3673
      %v3680 = vmul.f32 %v3674, %v3674
      %v3681 = vsel %vm1140, %v3675, 0.0
      %3682 = vadd.xlane.f32.xlu0 %v3681
      %v3683 = vpop.xlane.xlu0 %3682
      %v3684 = vsel %vm1140, %v3676, 0.0
      %3685 = vadd.xlane.f32.xlu0 %v3684
      %v3686 = vpop.xlane.xlu0 %3685
      %v3687 = vsel %vm1140, %v3677, 0.0
      %3688 = vadd.xlane.f32.xlu0 %v3687
      %v3689 = vpop.xlane.xlu0 %3688
      %v3690 = vsel %vm1140, %v3678, 0.0
      %3691 = vadd.xlane.f32.xlu0 %v3690
      %v3692 = vpop.xlane.xlu0 %3691
      %v3693 = vsel %vm1140, %v3679, 0.0
      %3694 = vadd.xlane.f32.xlu0 %v3693
      %v3695 = vpop.xlane.xlu0 %3694
      %v3696 = vsel %vm1140, %v3680, 0.0
      %3697 = vadd.xlane.f32.xlu0 %v3696
      %v3698 = vpop.xlane.xlu0 %3697
      %v3699 = vmul.f32 %v3683, %v1208
      %v3700 = vmul.f32 %v3686, %v1208
      %v3701 = vmul.f32 %v3689, %v1208
      %v3702 = vmul.f32 %v3692, %v1208
      %v3703 = vmul.f32 %v3695, %v1208
      %v3704 = vmul.f32 %v3698, %v1208
      %v3705 = vrsqrt.pop %v3699
      %v3706 = vmul.f32 %v3705, %v3699
      %v3707 = vmul.f32 %v3706, %v3705
      %v3708 = vmul.f32 0.5, %v3707
      %v3709 = vsub.f32 1.5, %v3708
      %v3710 = vmul.f32 %v3705, %v3709
      %v3711 = vmul.f32 %v3699, %v3710
      %vm3712 = vcmp.eq.f32.partialorder %v3699, inf
      %v3713 = vsel %vm3712, %v3699, %v3711
      %vm3714 = vcmp.eq.f32.partialorder %v3699, 0.0
      %v3715 = vand.u32 %v3699, 2147483648
      %v3716 = vsel %vm3714, %v3715, %v3713
      %v3717 = vrsqrt.pop %v3700
      %v3718 = vmul.f32 %v3717, %v3700
      %v3719 = vmul.f32 %v3718, %v3717
      %v3720 = vmul.f32 0.5, %v3719
      %v3721 = vsub.f32 1.5, %v3720
      %v3722 = vmul.f32 %v3717, %v3721
      %v3723 = vmul.f32 %v3700, %v3722
      %vm3724 = vcmp.eq.f32.partialorder %v3700, inf
      %v3725 = vsel %vm3724, %v3700, %v3723
      %vm3726 = vcmp.eq.f32.partialorder %v3700, 0.0
      %v3727 = vand.u32 %v3700, 2147483648
      %v3728 = vsel %vm3726, %v3727, %v3725
      %v3729 = vrsqrt.pop %v3701
      %v3730 = vmul.f32 %v3729, %v3701
      %v3731 = vmul.f32 %v3730, %v3729
      %v3732 = vmul.f32 0.5, %v3731
      %v3733 = vsub.f32 1.5, %v3732
      %v3734 = vmul.f32 %v3729, %v3733
      %v3735 = vmul.f32 %v3701, %v3734
      %vm3736 = vcmp.eq.f32.partialorder %v3701, inf
      %v3737 = vsel %vm3736, %v3701, %v3735
      %vm3738 = vcmp.eq.f32.partialorder %v3701, 0.0
      %v3739 = vand.u32 %v3701, 2147483648
      %v3740 = vsel %vm3738, %v3739, %v3737
      %v3741 = vrsqrt.pop %v3702
      %v3742 = vmul.f32 %v3741, %v3702
      %v3743 = vmul.f32 %v3742, %v3741
      %v3744 = vmul.f32 0.5, %v3743
      %v3745 = vsub.f32 1.5, %v3744
      %v3746 = vmul.f32 %v3741, %v3745
      %v3747 = vmul.f32 %v3702, %v3746
      %vm3748 = vcmp.eq.f32.partialorder %v3702, inf
      %v3749 = vsel %vm3748, %v3702, %v3747
      %vm3750 = vcmp.eq.f32.partialorder %v3702, 0.0
      %v3751 = vand.u32 %v3702, 2147483648
      %v3752 = vsel %vm3750, %v3751, %v3749
      %v3753 = vrsqrt.pop %v3703
      %v3754 = vmul.f32 %v3753, %v3703
      %v3755 = vmul.f32 %v3754, %v3753
      %v3756 = vmul.f32 0.5, %v3755
      %v3757 = vsub.f32 1.5, %v3756
      %v3758 = vmul.f32 %v3753, %v3757
      %v3759 = vmul.f32 %v3703, %v3758
      %vm3760 = vcmp.eq.f32.partialorder %v3703, inf
      %v3761 = vsel %vm3760, %v3703, %v3759
      %vm3762 = vcmp.eq.f32.partialorder %v3703, 0.0
      %v3763 = vand.u32 %v3703, 2147483648
      %v3764 = vsel %vm3762, %v3763, %v3761
      %v3765 = vrsqrt.pop %v3704
      %v3766 = vmul.f32 %v3765, %v3704
      %v3767 = vmul.f32 %v3766, %v3765
      %v3768 = vmul.f32 0.5, %v3767
      %v3769 = vsub.f32 1.5, %v3768
      %v3770 = vmul.f32 %v3765, %v3769
      %v3771 = vmul.f32 %v3704, %v3770
      %vm3772 = vcmp.eq.f32.partialorder %v3704, inf
      %v3773 = vsel %vm3772, %v3704, %v3771
      %vm3774 = vcmp.eq.f32.partialorder %v3704, 0.0
      %v3775 = vand.u32 %v3704, 2147483648
      %v3776 = vsel %vm3774, %v3775, %v3773
      %v3777 = vadd.f32 %v3716, 1e-06
      %v3778 = vadd.f32 %v3728, 1e-06
      %v3779 = vadd.f32 %v3740, 1e-06
      %v3780 = vadd.f32 %v3752, 1e-06
      %v3781 = vadd.f32 %v3764, 1e-06
      %v3782 = vadd.f32 %v3776, 1e-06
      %v3783 = vrcp.pop %v3777
      %v3784 = vrcp.pop %v3778
      %v3785 = vrcp.pop %v3779
      %v3786 = vrcp.pop %v3780
      %v3787 = vrcp.pop %v3781
      %v3788 = vrcp.pop %v3782
      %v3789 = vperm.slane %v3644, 0
      %v3790 = vmul.f32 %v3789, %v3669
      %v3791 = vmul.f32 %v3789, %v3670
      %v3792 = vmul.f32 %v3789, %v3671
      %v3793 = vmul.f32 %v3789, %v3672
      %v3794 = vmul.f32 %v3789, %v3673
      %v3795 = vmul.f32 %v3789, %v3674
      %v3796 = vmul.f32 %v3790, %v3783
      %v3797 = vmul.f32 %v3791, %v3784
      %v3798 = vmul.f32 %v3792, %v3785
      %v3799 = vmul.f32 %v3793, %v3786
      %v3800 = vmul.f32 %v3794, %v3787
      %v3801 = vmul.f32 %v3795, %v3788
      %v3802 = vperm.slane %v3644, 1
      %v3803 = vadd.f32 %v3796, %v3802
      %v3804 = vadd.f32 %v3797, %v3802
      %v3805 = vadd.f32 %v3798, %v3802
      %v3806 = vadd.f32 %v3799, %v3802
      %v3807 = vadd.f32 %v3800, %v3802
      %v3808 = vadd.f32 %v3801, %v3802
      %s3809 = scalar_lea.vmem %s21, 16
      %v3810 = vld [vmem:[%s3809] sm:$0xf]
      %v3811 = vld [vmem:[%s3809 + $0x4] sm:$0xf]
      %v3812 = vld [vmem:[%s3809 + $0x8] sm:$0xf]
      %v3813 = vld [vmem:[%s3809 + $0xc] sm:$0xf]
      %v3814 = vpack.c.bf16 %v3804, %v3803
      %v3815 = vpack.c.bf16 %v3806, %v3805
      %v3816 = vpack.c.bf16 %v3808, %v3807
      %s3817 = scalar_lea.vmem %s23, 1
      %v3818 = vld [vmem:[%s3817] sm:$0x1]
      %v3820 = vperm.slane %v3818, 0
      %v3826 = vunpack.c.l.b16 %v3810
      %v3827 = vunpack.c.l.b16 %v3811
      %v3828 = vunpack.c.l.b16 %v3812
      %v3829 = vunpack.c.l.b16 %v3813
      %v3830 = vpack.c.b16 %v3827, %v3826
      %v3831 = vpack.c.b16 %v3829, %v3828
      %v3835 = vsel %vm1140, %v3814, 0
      %v3838 = vsel %vm1140, %v3815, 0
      %v3841 = vsel %vm1140, %v3816, 0
      %3843 = vmatpush.bf16.msra.mxu0 0
      %3844 = vmatpush.bf16.msra.mxu0 0
      %3845 = vmatpush.bf16.msra.mxu0 0
      %3846 = vmatpush.bf16.msra.mxu0 0
      %3847 = vmatpush.bf16.msra.mxu0 0
      %3848 = vmatpush.bf16.msra.mxu0 0
      %3849 = vmatpush.bf16.msra.mxu0 %v3831
      %3850 = vmatpush.bf16.msra.mxu0 %v3830
      %3851 = vmatmul.bf16.gmra.mxu0 %v3835
      %v3852 = vpop.f32.mrf.mxu0
      %v3853 = vadd.f32 %v3820, %v3852
      %v3854 = vpop.f32.mrf.mxu0
      %v3855 = vadd.f32 %v3820, %v3854
      %3856 = vmatmul.bf16.gmra.mxu0 %v3838
      %v3857 = vpop.f32.mrf.mxu0
      %v3858 = vadd.f32 %v3820, %v3857
      %v3859 = vpop.f32.mrf.mxu0
      %v3860 = vadd.f32 %v3820, %v3859
      %3861 = vmatmul.bf16.gmra.mxu0 %v3841
      %v3862 = vpop.f32.mrf.mxu0
      %v3863 = vadd.f32 %v3820, %v3862
      %v3864 = vpop.f32.mrf.mxu0
      %v3865 = vadd.f32 %v3820, %v3864
      %3866 = vdwg.mxu0
      %v3867 = vmax.f32 %v3853, 0.0
      %v3868 = vmax.f32 %v3855, 0.0
      %v3869 = vmax.f32 %v3858, 0.0
      %v3870 = vmax.f32 %v3860, 0.0
      %v3871 = vmax.f32 %v3863, 0.0
      %v3872 = vmax.f32 %v3865, 0.0
      %s3873 = scalar_lea.vmem %s25, 16
      %v3874 = vld [vmem:[%s3873] sm:$0xf]
      %v3875 = vld [vmem:[%s3873 + $0x4] sm:$0xf]
      %v3876 = vld [vmem:[%s3873 + $0x8] sm:$0xf]
      %v3877 = vld [vmem:[%s3873 + $0xc] sm:$0xf]
      %v3878 = vpack.c.bf16 %v3868, %v3867
      %v3879 = vpack.c.bf16 %v3870, %v3869
      %v3880 = vpack.c.bf16 %v3872, %v3871
      %v3885 = vunpack.c.l.b16 %v3874
      %v3886 = vunpack.c.l.b16 %v3875
      %v3887 = vunpack.c.l.b16 %v3876
      %v3888 = vunpack.c.l.b16 %v3877
      %v3889 = vpack.c.b16 %v3886, %v3885
      %v3890 = vpack.c.b16 %v3888, %v3887
      %v3894 = vsel %vm1140, %v3878, 0
      %v3897 = vsel %vm1140, %v3879, 0
      %v3900 = vsel %vm1140, %v3880, 0
      %3902 = vmatpush.bf16.msra.mxu0 0
      %3903 = vmatpush.bf16.msra.mxu0 0
      %3904 = vmatpush.bf16.msra.mxu0 0
      %3905 = vmatpush.bf16.msra.mxu0 0
      %3906 = vmatpush.bf16.msra.mxu0 0
      %3907 = vmatpush.bf16.msra.mxu0 0
      %3908 = vmatpush.bf16.msra.mxu0 %v3890
      %3909 = vmatpush.bf16.msra.mxu0 %v3889
      %3910 = vmatmul.bf16.gmra.mxu0 %v3894
      %v3911 = vpop.f32.mrf.mxu0
      %v3912 = vadd.f32 0.0, %v3911
      %v3913 = vpop.f32.mrf.mxu0
      %v3914 = vadd.f32 0.0, %v3913
      %3915 = vmatmul.bf16.gmra.mxu0 %v3897
      %v3916 = vpop.f32.mrf.mxu0
      %v3917 = vadd.f32 0.0, %v3916
      %v3918 = vpop.f32.mrf.mxu0
      %v3919 = vadd.f32 0.0, %v3918
      %3920 = vmatmul.bf16.gmra.mxu0 %v3900
      %v3921 = vpop.f32.mrf.mxu0
      %v3922 = vadd.f32 0.0, %v3921
      %v3923 = vpop.f32.mrf.mxu0
      %v3924 = vadd.f32 0.0, %v3923
      %3925 = vdwg.mxu0
      %v3926 = vadd.f32 %v3637, %v3912
      %v3927 = vadd.f32 %v3638, %v3914
      %v3928 = vadd.f32 %v3639, %v3917
      %v3929 = vadd.f32 %v3640, %v3919
      %v3930 = vadd.f32 %v3641, %v3922
      %v3931 = vadd.f32 %v3642, %v3924
      %s3932 = scalar_lea.vmem %s27, 1
      %v3933 = vld [vmem:[%s3932] sm:$0x1]
      %v3935 = vperm.slane %v3933, 0
      %v3937 = vadd.f32 %v3926, %v3935
      %v3938 = vadd.f32 %v3927, %v3935
      %v3939 = vadd.f32 %v3928, %v3935
      %v3940 = vadd.f32 %v3929, %v3935
      %v3941 = vadd.f32 %v3930, %v3935
      %v3942 = vadd.f32 %v3931, %v3935
      %v3943 = vld [vmem:[%s29] sm:$0x3]
      %v3944 = vsel %vm1140, %v3937, 0.0
      %3945 = vadd.xlane.f32.xlu0 %v3944
      %v3946 = vpop.xlane.xlu0 %3945
      %v3947 = vsel %vm1140, %v3938, 0.0
      %3948 = vadd.xlane.f32.xlu0 %v3947
      %v3949 = vpop.xlane.xlu0 %3948
      %v3950 = vsel %vm1140, %v3939, 0.0
      %3951 = vadd.xlane.f32.xlu0 %v3950
      %v3952 = vpop.xlane.xlu0 %3951
      %v3953 = vsel %vm1140, %v3940, 0.0
      %3954 = vadd.xlane.f32.xlu0 %v3953
      %v3955 = vpop.xlane.xlu0 %3954
      %v3956 = vsel %vm1140, %v3941, 0.0
      %3957 = vadd.xlane.f32.xlu0 %v3956
      %v3958 = vpop.xlane.xlu0 %3957
      %v3959 = vsel %vm1140, %v3942, 0.0
      %3960 = vadd.xlane.f32.xlu0 %v3959
      %v3961 = vpop.xlane.xlu0 %3960
      %v3962 = vmul.f32 %v3946, %v1165
      %v3963 = vmul.f32 %v3949, %v1165
      %v3964 = vmul.f32 %v3952, %v1165
      %v3965 = vmul.f32 %v3955, %v1165
      %v3966 = vmul.f32 %v3958, %v1165
      %v3967 = vmul.f32 %v3961, %v1165
      %v3968 = vsub.f32 %v3937, %v3962
      %v3969 = vsub.f32 %v3938, %v3963
      %v3970 = vsub.f32 %v3939, %v3964
      %v3971 = vsub.f32 %v3940, %v3965
      %v3972 = vsub.f32 %v3941, %v3966
      %v3973 = vsub.f32 %v3942, %v3967
      %v3974 = vmul.f32 %v3968, %v3968
      %v3975 = vmul.f32 %v3969, %v3969
      %v3976 = vmul.f32 %v3970, %v3970
      %v3977 = vmul.f32 %v3971, %v3971
      %v3978 = vmul.f32 %v3972, %v3972
      %v3979 = vmul.f32 %v3973, %v3973
      %v3980 = vsel %vm1140, %v3974, 0.0
      %3981 = vadd.xlane.f32.xlu0 %v3980
      %v3982 = vpop.xlane.xlu0 %3981
      %v3983 = vsel %vm1140, %v3975, 0.0
      %3984 = vadd.xlane.f32.xlu0 %v3983
      %v3985 = vpop.xlane.xlu0 %3984
      %v3986 = vsel %vm1140, %v3976, 0.0
      %3987 = vadd.xlane.f32.xlu0 %v3986
      %v3988 = vpop.xlane.xlu0 %3987
      %v3989 = vsel %vm1140, %v3977, 0.0
      %3990 = vadd.xlane.f32.xlu0 %v3989
      %v3991 = vpop.xlane.xlu0 %3990
      %v3992 = vsel %vm1140, %v3978, 0.0
      %3993 = vadd.xlane.f32.xlu0 %v3992
      %v3994 = vpop.xlane.xlu0 %3993
      %v3995 = vsel %vm1140, %v3979, 0.0
      %3996 = vadd.xlane.f32.xlu0 %v3995
      %v3997 = vpop.xlane.xlu0 %3996
      %v3998 = vmul.f32 %v3982, %v1208
      %v3999 = vmul.f32 %v3985, %v1208
      %v4000 = vmul.f32 %v3988, %v1208
      %v4001 = vmul.f32 %v3991, %v1208
      %v4002 = vmul.f32 %v3994, %v1208
      %v4003 = vmul.f32 %v3997, %v1208
      %v4004 = vrsqrt.pop %v3998
      %v4005 = vmul.f32 %v4004, %v3998
      %v4006 = vmul.f32 %v4005, %v4004
      %v4007 = vmul.f32 0.5, %v4006
      %v4008 = vsub.f32 1.5, %v4007
      %v4009 = vmul.f32 %v4004, %v4008
      %v4010 = vmul.f32 %v3998, %v4009
      %vm4011 = vcmp.eq.f32.partialorder %v3998, inf
      %v4012 = vsel %vm4011, %v3998, %v4010
      %vm4013 = vcmp.eq.f32.partialorder %v3998, 0.0
      %v4014 = vand.u32 %v3998, 2147483648
      %v4015 = vsel %vm4013, %v4014, %v4012
      %v4016 = vrsqrt.pop %v3999
      %v4017 = vmul.f32 %v4016, %v3999
      %v4018 = vmul.f32 %v4017, %v4016
      %v4019 = vmul.f32 0.5, %v4018
      %v4020 = vsub.f32 1.5, %v4019
      %v4021 = vmul.f32 %v4016, %v4020
      %v4022 = vmul.f32 %v3999, %v4021
      %vm4023 = vcmp.eq.f32.partialorder %v3999, inf
      %v4024 = vsel %vm4023, %v3999, %v4022
      %vm4025 = vcmp.eq.f32.partialorder %v3999, 0.0
      %v4026 = vand.u32 %v3999, 2147483648
      %v4027 = vsel %vm4025, %v4026, %v4024
      %v4028 = vrsqrt.pop %v4000
      %v4029 = vmul.f32 %v4028, %v4000
      %v4030 = vmul.f32 %v4029, %v4028
      %v4031 = vmul.f32 0.5, %v4030
      %v4032 = vsub.f32 1.5, %v4031
      %v4033 = vmul.f32 %v4028, %v4032
      %v4034 = vmul.f32 %v4000, %v4033
      %vm4035 = vcmp.eq.f32.partialorder %v4000, inf
      %v4036 = vsel %vm4035, %v4000, %v4034
      %vm4037 = vcmp.eq.f32.partialorder %v4000, 0.0
      %v4038 = vand.u32 %v4000, 2147483648
      %v4039 = vsel %vm4037, %v4038, %v4036
      %v4040 = vrsqrt.pop %v4001
      %v4041 = vmul.f32 %v4040, %v4001
      %v4042 = vmul.f32 %v4041, %v4040
      %v4043 = vmul.f32 0.5, %v4042
      %v4044 = vsub.f32 1.5, %v4043
      %v4045 = vmul.f32 %v4040, %v4044
      %v4046 = vmul.f32 %v4001, %v4045
      %vm4047 = vcmp.eq.f32.partialorder %v4001, inf
      %v4048 = vsel %vm4047, %v4001, %v4046
      %vm4049 = vcmp.eq.f32.partialorder %v4001, 0.0
      %v4050 = vand.u32 %v4001, 2147483648
      %v4051 = vsel %vm4049, %v4050, %v4048
      %v4052 = vrsqrt.pop %v4002
      %v4053 = vmul.f32 %v4052, %v4002
      %v4054 = vmul.f32 %v4053, %v4052
      %v4055 = vmul.f32 0.5, %v4054
      %v4056 = vsub.f32 1.5, %v4055
      %v4057 = vmul.f32 %v4052, %v4056
      %v4058 = vmul.f32 %v4002, %v4057
      %vm4059 = vcmp.eq.f32.partialorder %v4002, inf
      %v4060 = vsel %vm4059, %v4002, %v4058
      %vm4061 = vcmp.eq.f32.partialorder %v4002, 0.0
      %v4062 = vand.u32 %v4002, 2147483648
      %v4063 = vsel %vm4061, %v4062, %v4060
      %v4064 = vrsqrt.pop %v4003
      %v4065 = vmul.f32 %v4064, %v4003
      %v4066 = vmul.f32 %v4065, %v4064
      %v4067 = vmul.f32 0.5, %v4066
      %v4068 = vsub.f32 1.5, %v4067
      %v4069 = vmul.f32 %v4064, %v4068
      %v4070 = vmul.f32 %v4003, %v4069
      %vm4071 = vcmp.eq.f32.partialorder %v4003, inf
      %v4072 = vsel %vm4071, %v4003, %v4070
      %vm4073 = vcmp.eq.f32.partialorder %v4003, 0.0
      %v4074 = vand.u32 %v4003, 2147483648
      %v4075 = vsel %vm4073, %v4074, %v4072
      %v4076 = vadd.f32 %v4015, 1e-06
      %v4077 = vadd.f32 %v4027, 1e-06
      %v4078 = vadd.f32 %v4039, 1e-06
      %v4079 = vadd.f32 %v4051, 1e-06
      %v4080 = vadd.f32 %v4063, 1e-06
      %v4081 = vadd.f32 %v4075, 1e-06
      %v4082 = vrcp.pop %v4076
      %v4083 = vrcp.pop %v4077
      %v4084 = vrcp.pop %v4078
      %v4085 = vrcp.pop %v4079
      %v4086 = vrcp.pop %v4080
      %v4087 = vrcp.pop %v4081
      %v4088 = vperm.slane %v3943, 0
      %v4089 = vmul.f32 %v4088, %v3968
      %v4090 = vmul.f32 %v4088, %v3969
      %v4091 = vmul.f32 %v4088, %v3970
      %v4092 = vmul.f32 %v4088, %v3971
      %v4093 = vmul.f32 %v4088, %v3972
      %v4094 = vmul.f32 %v4088, %v3973
      %v4095 = vmul.f32 %v4089, %v4082
      %v4096 = vmul.f32 %v4090, %v4083
      %v4097 = vmul.f32 %v4091, %v4084
      %v4098 = vmul.f32 %v4092, %v4085
      %v4099 = vmul.f32 %v4093, %v4086
      %v4100 = vmul.f32 %v4094, %v4087
      %v4101 = vperm.slane %v3943, 1
      %v4102 = vadd.f32 %v4095, %v4101
      %v4103 = vadd.f32 %v4096, %v4101
      %v4104 = vadd.f32 %v4097, %v4101
      %v4105 = vadd.f32 %v4098, %v4101
      %v4106 = vadd.f32 %v4099, %v4101
      %v4107 = vadd.f32 %v4100, %v4101
      %v4108 = vld [vmem:[%s31] sm:$0xf]
      %v4109 = vld [vmem:[%s31 + $0x4] sm:$0xf]
      %v4110 = vld [vmem:[%s31 + $0x8] sm:$0xf]
      %v4111 = vld [vmem:[%s31 + $0xc] sm:$0xf]
      %v4112 = vpack.c.bf16 %v4103, %v4102
      %v4113 = vpack.c.bf16 %v4105, %v4104
      %v4114 = vpack.c.bf16 %v4107, %v4106
      %v4115 = vld [vmem:[%s33] sm:$0x1]
      %v4117 = vperm.slane %v4115, 0
      %v4123 = vunpack.c.l.b16 %v4108
      %v4124 = vunpack.c.l.b16 %v4109
      %v4125 = vunpack.c.l.b16 %v4110
      %v4126 = vunpack.c.l.b16 %v4111
      %v4127 = vpack.c.b16 %v4124, %v4123
      %v4128 = vpack.c.b16 %v4126, %v4125
      %v4132 = vsel %vm1140, %v4112, 0
      %v4135 = vsel %vm1140, %v4113, 0
      %v4138 = vsel %vm1140, %v4114, 0
      %4140 = vmatpush.bf16.msra.mxu0 0
      %4141 = vmatpush.bf16.msra.mxu0 0
      %4142 = vmatpush.bf16.msra.mxu0 0
      %4143 = vmatpush.bf16.msra.mxu0 0
      %4144 = vmatpush.bf16.msra.mxu0 0
      %4145 = vmatpush.bf16.msra.mxu0 0
      %4146 = vmatpush.bf16.msra.mxu0 %v4128
      %4147 = vmatpush.bf16.msra.mxu0 %v4127
      %4148 = vmatmul.bf16.gmra.mxu0 %v4132
      %v4149 = vpop.f32.mrf.mxu0
      %v4150 = vadd.f32 %v4117, %v4149
      %v4151 = vpop.f32.mrf.mxu0
      %v4152 = vadd.f32 %v4117, %v4151
      %4153 = vmatmul.bf16.gmra.mxu0 %v4135
      %v4154 = vpop.f32.mrf.mxu0
      %v4155 = vadd.f32 %v4117, %v4154
      %v4156 = vpop.f32.mrf.mxu0
      %v4157 = vadd.f32 %v4117, %v4156
      %4158 = vmatmul.bf16.gmra.mxu0 %v4138
      %v4159 = vpop.f32.mrf.mxu0
      %v4160 = vadd.f32 %v4117, %v4159
      %v4161 = vpop.f32.mrf.mxu0
      %v4162 = vadd.f32 %v4117, %v4161
      %4163 = vdwg.mxu0
      %v4164 = vld [vmem:[%s35] sm:$0xf]
      %v4165 = vld [vmem:[%s35 + $0x4] sm:$0xf]
      %v4166 = vpack.c.bf16 %v4152, %v4150
      %v4167 = vpack.c.bf16 %v4157, %v4155
      %v4168 = vpack.c.bf16 %v4160, %v4160
      %s4169 = scalar_lea.vmem %s35, 8
      %v4170 = vld [vmem:[%s4169] sm:$0xf]
      %v4171 = vld [vmem:[%s4169 + $0x4] sm:$0xf]
      %vm4172 = vsmask.f32 7424
      %v4174 = vshrl.u32 %v4166, 16
      %v4176 = vshll.u32 %v4166, 16
      %v4178 = vrot.slane %v4176, 1
      %v4179 = vor.u32 %v4174, %v4178
      %v4181 = vshll.u32 %v4167, 16
      %v4183 = vrot.slane %v4181, 1
      %v4184 = vsel %vm4172, %v4179, %v4183
      %v4185 = vshrl.u32 %v4167, 16
      %v4187 = vor.u32 %v4185, %v4183
      %v4189 = vshll.u32 %v4168, 16
      %v4191 = vrot.slane %v4189, 1
      %v4192 = vsel %vm4172, %v4187, %v4191
      %v4193 = vshrl.u32 %v4168, 16
      %v4195 = vor.u32 %v4193, %v4191
      %v4198 = vunpack.c.l.b16 %v4170
      %v4199 = vunpack.c.l.b16 %v4171
      %v4200 = vpack.c.b16 %v4199, %v4198
      %v4203 = vsel %vm1093, %v4184, 0
      %v4206 = vsel %vm1093, %v4192, 0
      %v4209 = vsel %vm1093, %v4195, 0
      %4211 = vmatpush.bf16.msra.mxu0 0
      %4212 = vmatpush.bf16.msra.mxu0 0
      %4213 = vmatpush.bf16.msra.mxu0 0
      %4214 = vmatpush.bf16.msra.mxu0 0
      %4215 = vmatpush.bf16.msra.mxu0 0
      %4216 = vmatpush.bf16.msra.mxu0 0
      %4217 = vmatpush.bf16.msra.mxu0 0
      %4218 = vmatpush.bf16.msra.mxu0 %v4200
      %4219 = vmatmul.bf16.gmra.mxu0 %v4203
      %v4220 = vpop.f32.mrf.mxu0
      %v4221 = vadd.f32 0.0, %v4220
      %v4222 = vpop.f32.mrf.mxu0
      %v4223 = vadd.f32 0.0, %v4222
      %4224 = vmatmul.bf16.gmra.mxu0 %v4206
      %v4225 = vpop.f32.mrf.mxu0
      %v4226 = vadd.f32 0.0, %v4225
      %v4227 = vpop.f32.mrf.mxu0
      %v4228 = vadd.f32 0.0, %v4227
      %4229 = vmatmul.bf16.gmra.mxu0 %v4209
      %v4230 = vpop.f32.mrf.mxu0
      %v4231 = vadd.f32 0.0, %v4230
      %v4232 = vpop.f32.mrf.mxu0
      %4233 = vdwg.mxu0
      %v4236 = vunpack.c.l.b16 %v4164
      %v4237 = vunpack.c.l.b16 %v4165
      %v4238 = vpack.c.b16 %v4237, %v4236
      %v4240 = vsel %vm1093, %v4166, 0
      %v4242 = vsel %vm1093, %v4167, 0
      %v4244 = vsel %vm1093, %v4168, 0
      %4246 = vmatpush.bf16.msra.mxu0 0
      %4247 = vmatpush.bf16.msra.mxu0 0
      %4248 = vmatpush.bf16.msra.mxu0 0
      %4249 = vmatpush.bf16.msra.mxu0 0
      %4250 = vmatpush.bf16.msra.mxu0 0
      %4251 = vmatpush.bf16.msra.mxu0 0
      %4252 = vmatpush.bf16.msra.mxu0 0
      %4253 = vmatpush.bf16.msra.mxu0 %v4238
      %4254 = vmatmul.bf16.gmra.mxu0 %v4240
      %v4255 = vpop.f32.mrf.mxu0
      %v4256 = vadd.f32 %v4221, %v4255
      %v4257 = vpop.f32.mrf.mxu0
      %v4258 = vadd.f32 %v4223, %v4257
      %4259 = vmatmul.bf16.gmra.mxu0 %v4242
      %v4260 = vpop.f32.mrf.mxu0
      %v4261 = vadd.f32 %v4226, %v4260
      %v4262 = vpop.f32.mrf.mxu0
      %v4263 = vadd.f32 %v4228, %v4262
      %4264 = vmatmul.bf16.gmra.mxu0 %v4244
      %v4265 = vpop.f32.mrf.mxu0
      %v4266 = vadd.f32 %v4231, %v4265
      %v4267 = vpop.f32.mrf.mxu0
      %4268 = vdwg.mxu0
      %s4269 = scalar_lea.vmem %s35, 16
      %v4270 = vld [vmem:[%s4269] sm:$0xf]
      %v4271 = vld [vmem:[%s4269 + $0x4] sm:$0xf]
      %vm4275 = vcmask 1046528
      %v4276 = vrot.slane %v4166, 1
      %v4277 = vrot.slane %v4167, 1
      %v4278 = vsel %vm4275, %v4276, %v4277
      %v4279 = vrot.slane %v4168, 1
      %v4280 = vsel %vm4275, %v4277, %v4279
      %v4283 = vunpack.c.l.b16 %v4270
      %v4284 = vunpack.c.l.b16 %v4271
      %v4285 = vpack.c.b16 %v4284, %v4283
      %v4288 = vsel %vm1093, %v4278, 0
      %v4291 = vsel %vm1093, %v4280, 0
      %v4294 = vsel %vm1093, %v4279, 0
      %4296 = vmatpush.bf16.msra.mxu0 0
      %4297 = vmatpush.bf16.msra.mxu0 0
      %4298 = vmatpush.bf16.msra.mxu0 0
      %4299 = vmatpush.bf16.msra.mxu0 0
      %4300 = vmatpush.bf16.msra.mxu0 0
      %4301 = vmatpush.bf16.msra.mxu0 0
      %4302 = vmatpush.bf16.msra.mxu0 0
      %4303 = vmatpush.bf16.msra.mxu0 %v4285
      %4304 = vmatmul.bf16.gmra.mxu0 %v4288
      %v4305 = vpop.f32.mrf.mxu0
      %v4306 = vadd.f32 0.0, %v4305
      %v4307 = vpop.f32.mrf.mxu0
      %v4308 = vadd.f32 0.0, %v4307
      %4309 = vmatmul.bf16.gmra.mxu0 %v4291
      %v4310 = vpop.f32.mrf.mxu0
      %v4311 = vadd.f32 0.0, %v4310
      %v4312 = vpop.f32.mrf.mxu0
      %v4313 = vadd.f32 0.0, %v4312
      %4314 = vmatmul.bf16.gmra.mxu0 %v4294
      %v4315 = vpop.f32.mrf.mxu0
      %v4316 = vadd.f32 0.0, %v4315
      %v4317 = vpop.f32.mrf.mxu0
      %4318 = vdwg.mxu0
      %v4319 = vadd.f32 %v4256, %v4306
      %v4320 = vadd.f32 %v4258, %v4308
      %v4321 = vadd.f32 %v4261, %v4311
      %v4322 = vadd.f32 %v4263, %v4313
      %v4323 = vadd.f32 %v4266, %v4316
      %s4324 = scalar_lea.vmem %s35, 24
      %v4325 = vld [vmem:[%s4324] sm:$0xf]
      %v4326 = vld [vmem:[%s4324 + $0x4] sm:$0xf]
      %v4327 = vpack.c.bf16 %v4162, %v4160
      %vm4328 = vsmask.f32 6400
      %v4329 = vrot.slane %v4174, 1
      %v4330 = vrot.slane %v4176, 2
      %v4331 = vor.u32 %v4329, %v4330
      %v4332 = vrot.slane %v4185, 1
      %v4333 = vrot.slane %v4181, 2
      %v4334 = vor.u32 %v4332, %v4333
      %v4335 = vsel %vm4328, %v4331, %v4334
      %v4337 = vshrl.u32 %v4327, 16
      %v4339 = vrot.slane %v4337, 1
      %v4340 = vshll.u32 %v4327, 16
      %v4342 = vrot.slane %v4340, 2
      %v4343 = vor.u32 %v4339, %v4342
      %v4344 = vsel %vm4328, %v4334, %v4343
      %v4347 = vunpack.c.l.b16 %v4325
      %v4348 = vunpack.c.l.b16 %v4326
      %v4349 = vpack.c.b16 %v4348, %v4347
      %v4352 = vsel %vm1093, %v4335, 0
      %v4355 = vsel %vm1093, %v4344, 0
      %v4358 = vsel %vm1093, %v4343, 0
      %4360 = vmatpush.bf16.msra.mxu0 0
      %4361 = vmatpush.bf16.msra.mxu0 0
      %4362 = vmatpush.bf16.msra.mxu0 0
      %4363 = vmatpush.bf16.msra.mxu0 0
      %4364 = vmatpush.bf16.msra.mxu0 0
      %4365 = vmatpush.bf16.msra.mxu0 0
      %4366 = vmatpush.bf16.msra.mxu0 0
      %4367 = vmatpush.bf16.msra.mxu0 %v4349
      %4368 = vmatmul.bf16.gmra.mxu0 %v4352
      %v4369 = vpop.f32.mrf.mxu0
      %v4370 = vadd.f32 0.0, %v4369
      %v4371 = vpop.f32.mrf.mxu0
      %v4372 = vadd.f32 0.0, %v4371
      %4373 = vmatmul.bf16.gmra.mxu0 %v4355
      %v4374 = vpop.f32.mrf.mxu0
      %v4375 = vadd.f32 0.0, %v4374
      %v4376 = vpop.f32.mrf.mxu0
      %v4377 = vadd.f32 0.0, %v4376
      %4378 = vmatmul.bf16.gmra.mxu0 %v4358
      %v4379 = vpop.f32.mrf.mxu0
      %v4380 = vadd.f32 0.0, %v4379
      %v4381 = vpop.f32.mrf.mxu0
      %4382 = vdwg.mxu0
      %v4383 = vadd.f32 %v4319, %v4370
      %v4384 = vadd.f32 %v4320, %v4372
      %v4385 = vadd.f32 %v4321, %v4375
      %v4386 = vadd.f32 %v4322, %v4377
      %v4387 = vadd.f32 %v4323, %v4380
      %s4388 = scalar_lea.vmem %s35, 32
      %v4389 = vld [vmem:[%s4388] sm:$0xf]
      %v4390 = vld [vmem:[%s4388 + $0x4] sm:$0xf]
      %vm4392 = vcmask 1045504
      %v4393 = vrot.slane %v4166, 2
      %v4394 = vrot.slane %v4167, 2
      %v4395 = vsel %vm4392, %v4393, %v4394
      %v4396 = vrot.slane %v4327, 2
      %v4397 = vsel %vm4392, %v4394, %v4396
      %v4400 = vunpack.c.l.b16 %v4389
      %v4401 = vunpack.c.l.b16 %v4390
      %v4402 = vpack.c.b16 %v4401, %v4400
      %v4405 = vsel %vm1093, %v4395, 0
      %v4408 = vsel %vm1093, %v4397, 0
      %v4411 = vsel %vm1093, %v4396, 0
      %4413 = vmatpush.bf16.msra.mxu0 0
      %4414 = vmatpush.bf16.msra.mxu0 0
      %4415 = vmatpush.bf16.msra.mxu0 0
      %4416 = vmatpush.bf16.msra.mxu0 0
      %4417 = vmatpush.bf16.msra.mxu0 0
      %4418 = vmatpush.bf16.msra.mxu0 0
      %4419 = vmatpush.bf16.msra.mxu0 0
      %4420 = vmatpush.bf16.msra.mxu0 %v4402
      %4421 = vmatmul.bf16.gmra.mxu0 %v4405
      %v4422 = vpop.f32.mrf.mxu0
      %v4423 = vadd.f32 0.0, %v4422
      %v4424 = vpop.f32.mrf.mxu0
      %v4425 = vadd.f32 0.0, %v4424
      %4426 = vmatmul.bf16.gmra.mxu0 %v4408
      %v4427 = vpop.f32.mrf.mxu0
      %v4428 = vadd.f32 0.0, %v4427
      %v4429 = vpop.f32.mrf.mxu0
      %v4430 = vadd.f32 0.0, %v4429
      %4431 = vmatmul.bf16.gmra.mxu0 %v4411
      %v4432 = vpop.f32.mrf.mxu0
      %v4433 = vadd.f32 0.0, %v4432
      %v4434 = vpop.f32.mrf.mxu0
      %4435 = vdwg.mxu0
      %v4436 = vadd.f32 %v4383, %v4423
      %v4437 = vadd.f32 %v4384, %v4425
      %v4438 = vadd.f32 %v4385, %v4428
      %v4439 = vadd.f32 %v4386, %v4430
      %v4440 = vadd.f32 %v4387, %v4433
      %s4441 = scalar_lea.vmem %s35, 40
      %v4442 = vld [vmem:[%s4441] sm:$0xf]
      %v4443 = vld [vmem:[%s4441 + $0x4] sm:$0xf]
      %vm4444 = vsmask.f32 5376
      %v4445 = vrot.slane %v4174, 2
      %v4446 = vrot.slane %v4176, 3
      %v4447 = vor.u32 %v4445, %v4446
      %v4448 = vrot.slane %v4185, 2
      %v4449 = vrot.slane %v4181, 3
      %v4450 = vor.u32 %v4448, %v4449
      %v4451 = vsel %vm4444, %v4447, %v4450
      %v4452 = vrot.slane %v4337, 2
      %v4453 = vrot.slane %v4340, 3
      %v4454 = vor.u32 %v4452, %v4453
      %v4455 = vsel %vm4444, %v4450, %v4454
      %v4458 = vunpack.c.l.b16 %v4442
      %v4459 = vunpack.c.l.b16 %v4443
      %v4460 = vpack.c.b16 %v4459, %v4458
      %v4463 = vsel %vm1093, %v4451, 0
      %v4466 = vsel %vm1093, %v4455, 0
      %v4469 = vsel %vm1093, %v4454, 0
      %4471 = vmatpush.bf16.msra.mxu0 0
      %4472 = vmatpush.bf16.msra.mxu0 0
      %4473 = vmatpush.bf16.msra.mxu0 0
      %4474 = vmatpush.bf16.msra.mxu0 0
      %4475 = vmatpush.bf16.msra.mxu0 0
      %4476 = vmatpush.bf16.msra.mxu0 0
      %4477 = vmatpush.bf16.msra.mxu0 0
      %4478 = vmatpush.bf16.msra.mxu0 %v4460
      %4479 = vmatmul.bf16.gmra.mxu0 %v4463
      %v4480 = vpop.f32.mrf.mxu0
      %v4481 = vadd.f32 0.0, %v4480
      %v4482 = vpop.f32.mrf.mxu0
      %v4483 = vadd.f32 0.0, %v4482
      %4484 = vmatmul.bf16.gmra.mxu0 %v4466
      %v4485 = vpop.f32.mrf.mxu0
      %v4486 = vadd.f32 0.0, %v4485
      %v4487 = vpop.f32.mrf.mxu0
      %v4488 = vadd.f32 0.0, %v4487
      %4489 = vmatmul.bf16.gmra.mxu0 %v4469
      %v4490 = vpop.f32.mrf.mxu0
      %v4491 = vadd.f32 0.0, %v4490
      %v4492 = vpop.f32.mrf.mxu0
      %4493 = vdwg.mxu0
      %v4494 = vadd.f32 %v4436, %v4481
      %v4495 = vadd.f32 %v4437, %v4483
      %v4496 = vadd.f32 %v4438, %v4486
      %v4497 = vadd.f32 %v4439, %v4488
      %v4498 = vadd.f32 %v4440, %v4491
      %s4499 = scalar_lea.vmem %s35, 48
      %v4500 = vld [vmem:[%s4499] sm:$0xf]
      %v4501 = vld [vmem:[%s4499 + $0x4] sm:$0xf]
      %vm4502 = vcmask 1044480
      %v4503 = vrot.slane %v4166, 3
      %v4504 = vrot.slane %v4167, 3
      %v4505 = vsel %vm4502, %v4503, %v4504
      %v4506 = vrot.slane %v4327, 3
      %v4507 = vsel %vm4502, %v4504, %v4506
      %v4510 = vunpack.c.l.b16 %v4500
      %v4511 = vunpack.c.l.b16 %v4501
      %v4512 = vpack.c.b16 %v4511, %v4510
      %v4515 = vsel %vm1093, %v4505, 0
      %v4518 = vsel %vm1093, %v4507, 0
      %v4521 = vsel %vm1093, %v4506, 0
      %4523 = vmatpush.bf16.msra.mxu0 0
      %4524 = vmatpush.bf16.msra.mxu0 0
      %4525 = vmatpush.bf16.msra.mxu0 0
      %4526 = vmatpush.bf16.msra.mxu0 0
      %4527 = vmatpush.bf16.msra.mxu0 0
      %4528 = vmatpush.bf16.msra.mxu0 0
      %4529 = vmatpush.bf16.msra.mxu0 0
      %4530 = vmatpush.bf16.msra.mxu0 %v4512
      %4531 = vmatmul.bf16.gmra.mxu0 %v4515
      %v4532 = vpop.f32.mrf.mxu0
      %v4533 = vadd.f32 0.0, %v4532
      %v4534 = vpop.f32.mrf.mxu0
      %v4535 = vadd.f32 0.0, %v4534
      %4536 = vmatmul.bf16.gmra.mxu0 %v4518
      %v4537 = vpop.f32.mrf.mxu0
      %v4538 = vadd.f32 0.0, %v4537
      %v4539 = vpop.f32.mrf.mxu0
      %v4540 = vadd.f32 0.0, %v4539
      %4541 = vmatmul.bf16.gmra.mxu0 %v4521
      %v4542 = vpop.f32.mrf.mxu0
      %v4543 = vadd.f32 0.0, %v4542
      %v4544 = vpop.f32.mrf.mxu0
      %4545 = vdwg.mxu0
      %v4546 = vadd.f32 %v4494, %v4533
      %v4547 = vadd.f32 %v4495, %v4535
      %v4548 = vadd.f32 %v4496, %v4538
      %v4549 = vadd.f32 %v4497, %v4540
      %v4550 = vadd.f32 %v4498, %v4543
      %s4551 = scalar_lea.vmem %s35, 56
      %v4552 = vld [vmem:[%s4551] sm:$0xf]
      %v4553 = vld [vmem:[%s4551 + $0x4] sm:$0xf]
      %vm4554 = vsmask.f32 4352
      %v4555 = vrot.slane %v4174, 3
      %v4556 = vrot.slane %v4176, 4
      %v4557 = vor.u32 %v4555, %v4556
      %v4558 = vrot.slane %v4185, 3
      %v4559 = vrot.slane %v4181, 4
      %v4560 = vor.u32 %v4558, %v4559
      %v4561 = vsel %vm4554, %v4557, %v4560
      %v4562 = vrot.slane %v4337, 3
      %v4563 = vrot.slane %v4340, 4
      %v4564 = vor.u32 %v4562, %v4563
      %v4565 = vsel %vm4554, %v4560, %v4564
      %v4568 = vunpack.c.l.b16 %v4552
      %v4569 = vunpack.c.l.b16 %v4553
      %v4570 = vpack.c.b16 %v4569, %v4568
      %v4573 = vsel %vm1093, %v4561, 0
      %v4576 = vsel %vm1093, %v4565, 0
      %v4579 = vsel %vm1093, %v4564, 0
      %4581 = vmatpush.bf16.msra.mxu0 0
      %4582 = vmatpush.bf16.msra.mxu0 0
      %4583 = vmatpush.bf16.msra.mxu0 0
      %4584 = vmatpush.bf16.msra.mxu0 0
      %4585 = vmatpush.bf16.msra.mxu0 0
      %4586 = vmatpush.bf16.msra.mxu0 0
      %4587 = vmatpush.bf16.msra.mxu0 0
      %4588 = vmatpush.bf16.msra.mxu0 %v4570
      %4589 = vmatmul.bf16.gmra.mxu0 %v4573
      %v4590 = vpop.f32.mrf.mxu0
      %v4591 = vadd.f32 0.0, %v4590
      %v4592 = vpop.f32.mrf.mxu0
      %v4593 = vadd.f32 0.0, %v4592
      %4594 = vmatmul.bf16.gmra.mxu0 %v4576
      %v4595 = vpop.f32.mrf.mxu0
      %v4596 = vadd.f32 0.0, %v4595
      %v4597 = vpop.f32.mrf.mxu0
      %v4598 = vadd.f32 0.0, %v4597
      %4599 = vmatmul.bf16.gmra.mxu0 %v4579
      %v4600 = vpop.f32.mrf.mxu0
      %v4601 = vadd.f32 0.0, %v4600
      %v4602 = vpop.f32.mrf.mxu0
      %4603 = vdwg.mxu0
      %v4604 = vadd.f32 %v4546, %v4591
      %v4605 = vadd.f32 %v4547, %v4593
      %v4606 = vadd.f32 %v4548, %v4596
      %v4607 = vadd.f32 %v4549, %v4598
      %v4608 = vadd.f32 %v4550, %v4601
      %s4609 = scalar_lea.vmem %s35, 64
      %v4610 = vld [vmem:[%s4609] sm:$0xf]
      %v4611 = vld [vmem:[%s4609 + $0x4] sm:$0xf]
      %v4612 = vpack.c.bf16 %v4155, %v4152
      %v4613 = vpack.c.bf16 %v4160, %v4157
      %v4614 = vpack.c.bf16 %v4162, %v4162
      %v4617 = vunpack.c.l.b16 %v4610
      %v4618 = vunpack.c.l.b16 %v4611
      %v4619 = vpack.c.b16 %v4618, %v4617
      %v4622 = vsel %vm1093, %v4612, 0
      %v4625 = vsel %vm1093, %v4613, 0
      %v4628 = vsel %vm1093, %v4614, 0
      %4630 = vmatpush.bf16.msra.mxu0 0
      %4631 = vmatpush.bf16.msra.mxu0 0
      %4632 = vmatpush.bf16.msra.mxu0 0
      %4633 = vmatpush.bf16.msra.mxu0 0
      %4634 = vmatpush.bf16.msra.mxu0 0
      %4635 = vmatpush.bf16.msra.mxu0 0
      %4636 = vmatpush.bf16.msra.mxu0 0
      %4637 = vmatpush.bf16.msra.mxu0 %v4619
      %4638 = vmatmul.bf16.gmra.mxu0 %v4622
      %v4639 = vpop.f32.mrf.mxu0
      %v4640 = vadd.f32 0.0, %v4639
      %v4641 = vpop.f32.mrf.mxu0
      %v4642 = vadd.f32 0.0, %v4641
      %4643 = vmatmul.bf16.gmra.mxu0 %v4625
      %v4644 = vpop.f32.mrf.mxu0
      %v4645 = vadd.f32 0.0, %v4644
      %v4646 = vpop.f32.mrf.mxu0
      %v4647 = vadd.f32 0.0, %v4646
      %4648 = vmatmul.bf16.gmra.mxu0 %v4628
      %v4649 = vpop.f32.mrf.mxu0
      %v4650 = vadd.f32 0.0, %v4649
      %v4651 = vpop.f32.mrf.mxu0
      %4652 = vdwg.mxu0
      %v4653 = vadd.f32 %v4604, %v4640
      %v4654 = vadd.f32 %v4605, %v4642
      %v4655 = vadd.f32 %v4606, %v4645
      %v4656 = vadd.f32 %v4607, %v4647
      %v4657 = vadd.f32 %v4608, %v4650
      %s4658 = scalar_lea.vmem %s35, 72
      %v4659 = vld [vmem:[%s4658] sm:$0xf]
      %v4660 = vld [vmem:[%s4658 + $0x4] sm:$0xf]
      %v4661 = vshrl.u32 %v4612, 16
      %v4663 = vshll.u32 %v4612, 16
      %v4665 = vrot.slane %v4663, 1
      %v4666 = vor.u32 %v4661, %v4665
      %v4667 = vshll.u32 %v4613, 16
      %v4669 = vrot.slane %v4667, 1
      %v4670 = vsel %vm4172, %v4666, %v4669
      %v4671 = vshrl.u32 %v4613, 16
      %v4673 = vor.u32 %v4671, %v4669
      %v4674 = vshll.u32 %v4614, 16
      %v4676 = vrot.slane %v4674, 1
      %v4677 = vsel %vm4172, %v4673, %v4676
      %v4678 = vshrl.u32 %v4614, 16
      %v4680 = vor.u32 %v4678, %v4676
      %v4683 = vunpack.c.l.b16 %v4659
      %v4684 = vunpack.c.l.b16 %v4660
      %v4685 = vpack.c.b16 %v4684, %v4683
      %v4688 = vsel %vm1093, %v4670, 0
      %v4691 = vsel %vm1093, %v4677, 0
      %v4694 = vsel %vm1093, %v4680, 0
      %4696 = vmatpush.bf16.msra.mxu0 0
      %4697 = vmatpush.bf16.msra.mxu0 0
      %4698 = vmatpush.bf16.msra.mxu0 0
      %4699 = vmatpush.bf16.msra.mxu0 0
      %4700 = vmatpush.bf16.msra.mxu0 0
      %4701 = vmatpush.bf16.msra.mxu0 0
      %4702 = vmatpush.bf16.msra.mxu0 0
      %4703 = vmatpush.bf16.msra.mxu0 %v4685
      %4704 = vmatmul.bf16.gmra.mxu0 %v4688
      %v4705 = vpop.f32.mrf.mxu0
      %v4706 = vadd.f32 0.0, %v4705
      %v4707 = vpop.f32.mrf.mxu0
      %v4708 = vadd.f32 0.0, %v4707
      %4709 = vmatmul.bf16.gmra.mxu0 %v4691
      %v4710 = vpop.f32.mrf.mxu0
      %v4711 = vadd.f32 0.0, %v4710
      %v4712 = vpop.f32.mrf.mxu0
      %v4713 = vadd.f32 0.0, %v4712
      %4714 = vmatmul.bf16.gmra.mxu0 %v4694
      %v4715 = vpop.f32.mrf.mxu0
      %v4716 = vadd.f32 0.0, %v4715
      %v4717 = vpop.f32.mrf.mxu0
      %4718 = vdwg.mxu0
      %v4719 = vadd.f32 %v4653, %v4706
      %v4720 = vadd.f32 %v4654, %v4708
      %v4721 = vadd.f32 %v4655, %v4711
      %v4722 = vadd.f32 %v4656, %v4713
      %v4723 = vadd.f32 %v4657, %v4716
      %s4724 = scalar_lea.vmem %s35, 80
      %v4725 = vld [vmem:[%s4724] sm:$0xf]
      %v4726 = vld [vmem:[%s4724 + $0x4] sm:$0xf]
      %v4730 = vrot.slane %v4612, 1
      %v4731 = vrot.slane %v4613, 1
      %v4732 = vsel %vm4275, %v4730, %v4731
      %v4733 = vrot.slane %v4614, 1
      %v4734 = vsel %vm4275, %v4731, %v4733
      %v4737 = vunpack.c.l.b16 %v4725
      %v4738 = vunpack.c.l.b16 %v4726
      %v4739 = vpack.c.b16 %v4738, %v4737
      %v4742 = vsel %vm1093, %v4732, 0
      %v4745 = vsel %vm1093, %v4734, 0
      %v4748 = vsel %vm1093, %v4733, 0
      %4750 = vmatpush.bf16.msra.mxu0 0
      %4751 = vmatpush.bf16.msra.mxu0 0
      %4752 = vmatpush.bf16.msra.mxu0 0
      %4753 = vmatpush.bf16.msra.mxu0 0
      %4754 = vmatpush.bf16.msra.mxu0 0
      %4755 = vmatpush.bf16.msra.mxu0 0
      %4756 = vmatpush.bf16.msra.mxu0 0
      %4757 = vmatpush.bf16.msra.mxu0 %v4739
      %4758 = vmatmul.bf16.gmra.mxu0 %v4742
      %v4759 = vpop.f32.mrf.mxu0
      %v4760 = vadd.f32 0.0, %v4759
      %v4761 = vpop.f32.mrf.mxu0
      %v4762 = vadd.f32 0.0, %v4761
      %4763 = vmatmul.bf16.gmra.mxu0 %v4745
      %v4764 = vpop.f32.mrf.mxu0
      %v4765 = vadd.f32 0.0, %v4764
      %v4766 = vpop.f32.mrf.mxu0
      %v4767 = vadd.f32 0.0, %v4766
      %4768 = vmatmul.bf16.gmra.mxu0 %v4748
      %v4769 = vpop.f32.mrf.mxu0
      %v4770 = vadd.f32 0.0, %v4769
      %v4771 = vpop.f32.mrf.mxu0
      %4772 = vdwg.mxu0
      %v4773 = vadd.f32 %v4719, %v4760
      %v4774 = vadd.f32 %v4720, %v4762
      %v4775 = vadd.f32 %v4721, %v4765
      %v4776 = vadd.f32 %v4722, %v4767
      %v4777 = vadd.f32 %v4723, %v4770
      %vm4778 = vcmp.ge.f32.partialorder %v4773, 0.0
      %vm4779 = vcmp.ge.f32.partialorder %v4774, 0.0
      %vm4780 = vcmp.ge.f32.partialorder %v4775, 0.0
      %vm4781 = vcmp.ge.f32.partialorder %v4776, 0.0
      %vm4782 = vcmp.ge.f32.partialorder %v4777, 0.0
      %v4783 = vmul.f32 %v4773, 0.01
      %v4784 = vmul.f32 %v4774, 0.01
      %v4785 = vmul.f32 %v4775, 0.01
      %v4786 = vmul.f32 %v4776, 0.01
      %v4787 = vmul.f32 %v4777, 0.01
      %v4788 = vsel %vm4778, %v4773, %v4783
      %v4789 = vsel %vm4779, %v4774, %v4784
      %v4790 = vsel %vm4780, %v4775, %v4785
      %v4791 = vsel %vm4781, %v4776, %v4786
      %v4792 = vsel %vm4782, %v4777, %v4787
      %s4793 = scalar_lea.vmem %s35, 88
      %v4794 = vld [vmem:[%s4793] sm:$0xf]
      %v4795 = vld [vmem:[%s4793 + $0x4] sm:$0xf]
      %v4796 = vpack.c.bf16 %v4789, %v4788
      %v4797 = vpack.c.bf16 %v4791, %v4790
      %s4798 = scalar_lea.vmem %s35, 96
      %v4799 = vld [vmem:[%s4798] sm:$0xf]
      %v4800 = vld [vmem:[%s4798 + $0x4] sm:$0xf]
      %v4802 = vshrl.u32 %v4796, 16
      %v4804 = vshll.u32 %v4796, 16
      %v4806 = vrot.slane %v4804, 1
      %v4807 = vor.u32 %v4802, %v4806
      %v4809 = vshll.u32 %v4797, 16
      %v4811 = vrot.slane %v4809, 1
      %v4812 = vsel %vm4172, %v4807, %v4811
      %v4813 = vshrl.u32 %v4797, 16
      %v4815 = vor.u32 %v4813, %v4811
      %v4818 = vunpack.c.l.b16 %v4799
      %v4819 = vunpack.c.l.b16 %v4800
      %v4820 = vpack.c.b16 %v4819, %v4818
      %v4823 = vsel %vm1093, %v4812, 0
      %v4826 = vsel %vm1093, %v4815, 0
      %4828 = vmatpush.bf16.msra.mxu0 0
      %4829 = vmatpush.bf16.msra.mxu0 0
      %4830 = vmatpush.bf16.msra.mxu0 0
      %4831 = vmatpush.bf16.msra.mxu0 0
      %4832 = vmatpush.bf16.msra.mxu0 0
      %4833 = vmatpush.bf16.msra.mxu0 0
      %4834 = vmatpush.bf16.msra.mxu0 0
      %4835 = vmatpush.bf16.msra.mxu0 %v4820
      %4836 = vmatmul.bf16.gmra.mxu0 %v4823
      %v4837 = vpop.f32.mrf.mxu0
      %v4838 = vadd.f32 0.0, %v4837
      %v4839 = vpop.f32.mrf.mxu0
      %v4840 = vadd.f32 0.0, %v4839
      %4841 = vmatmul.bf16.gmra.mxu0 %v4826
      %v4842 = vpop.f32.mrf.mxu0
      %v4843 = vadd.f32 0.0, %v4842
      %v4844 = vpop.f32.mrf.mxu0
      %v4845 = vadd.f32 0.0, %v4844
      %4846 = vdwg.mxu0
      %v4849 = vunpack.c.l.b16 %v4794
      %v4850 = vunpack.c.l.b16 %v4795
      %v4851 = vpack.c.b16 %v4850, %v4849
      %v4853 = vsel %vm1093, %v4796, 0
      %v4855 = vsel %vm1093, %v4797, 0
      %4857 = vmatpush.bf16.msra.mxu0 0
      %4858 = vmatpush.bf16.msra.mxu0 0
      %4859 = vmatpush.bf16.msra.mxu0 0
      %4860 = vmatpush.bf16.msra.mxu0 0
      %4861 = vmatpush.bf16.msra.mxu0 0
      %4862 = vmatpush.bf16.msra.mxu0 0
      %4863 = vmatpush.bf16.msra.mxu0 0
      %4864 = vmatpush.bf16.msra.mxu0 %v4851
      %4865 = vmatmul.bf16.gmra.mxu0 %v4853
      %v4866 = vpop.f32.mrf.mxu0
      %v4867 = vadd.f32 %v4838, %v4866
      %v4868 = vpop.f32.mrf.mxu0
      %v4869 = vadd.f32 %v4840, %v4868
      %4870 = vmatmul.bf16.gmra.mxu0 %v4855
      %v4871 = vpop.f32.mrf.mxu0
      %v4872 = vadd.f32 %v4843, %v4871
      %v4873 = vpop.f32.mrf.mxu0
      %v4874 = vadd.f32 %v4845, %v4873
      %4875 = vdwg.mxu0
      %s4876 = scalar_lea.vmem %s35, 104
      %v4877 = vld [vmem:[%s4876] sm:$0xf]
      %v4878 = vld [vmem:[%s4876 + $0x4] sm:$0xf]
      %v4881 = vrot.slane %v4796, 1
      %v4882 = vrot.slane %v4797, 1
      %v4883 = vsel %vm4275, %v4881, %v4882
      %v4886 = vunpack.c.l.b16 %v4877
      %v4887 = vunpack.c.l.b16 %v4878
      %v4888 = vpack.c.b16 %v4887, %v4886
      %v4891 = vsel %vm1093, %v4883, 0
      %v4894 = vsel %vm1093, %v4882, 0
      %4896 = vmatpush.bf16.msra.mxu0 0
      %4897 = vmatpush.bf16.msra.mxu0 0
      %4898 = vmatpush.bf16.msra.mxu0 0
      %4899 = vmatpush.bf16.msra.mxu0 0
      %4900 = vmatpush.bf16.msra.mxu0 0
      %4901 = vmatpush.bf16.msra.mxu0 0
      %4902 = vmatpush.bf16.msra.mxu0 0
      %4903 = vmatpush.bf16.msra.mxu0 %v4888
      %4904 = vmatmul.bf16.gmra.mxu0 %v4891
      %v4905 = vpop.f32.mrf.mxu0
      %v4906 = vadd.f32 0.0, %v4905
      %v4907 = vpop.f32.mrf.mxu0
      %v4908 = vadd.f32 0.0, %v4907
      %4909 = vmatmul.bf16.gmra.mxu0 %v4894
      %v4910 = vpop.f32.mrf.mxu0
      %v4911 = vadd.f32 0.0, %v4910
      %v4912 = vpop.f32.mrf.mxu0
      %v4913 = vadd.f32 0.0, %v4912
      %4914 = vdwg.mxu0
      %v4915 = vadd.f32 %v4867, %v4906
      %v4916 = vadd.f32 %v4869, %v4908
      %v4917 = vadd.f32 %v4872, %v4911
      %v4918 = vadd.f32 %v4874, %v4913
      %s4919 = scalar_lea.vmem %s35, 112
      %v4920 = vld [vmem:[%s4919] sm:$0xf]
      %v4921 = vld [vmem:[%s4919 + $0x4] sm:$0xf]
      %v4922 = vrot.slane %v4802, 1
      %v4923 = vrot.slane %v4804, 2
      %v4924 = vor.u32 %v4922, %v4923
      %v4925 = vrot.slane %v4813, 1
      %v4926 = vrot.slane %v4809, 2
      %v4927 = vor.u32 %v4925, %v4926
      %v4928 = vsel %vm4328, %v4924, %v4927
      %v4931 = vunpack.c.l.b16 %v4920
      %v4932 = vunpack.c.l.b16 %v4921
      %v4933 = vpack.c.b16 %v4932, %v4931
      %v4936 = vsel %vm1093, %v4928, 0
      %v4939 = vsel %vm1093, %v4927, 0
      %4941 = vmatpush.bf16.msra.mxu0 0
      %4942 = vmatpush.bf16.msra.mxu0 0
      %4943 = vmatpush.bf16.msra.mxu0 0
      %4944 = vmatpush.bf16.msra.mxu0 0
      %4945 = vmatpush.bf16.msra.mxu0 0
      %4946 = vmatpush.bf16.msra.mxu0 0
      %4947 = vmatpush.bf16.msra.mxu0 0
      %4948 = vmatpush.bf16.msra.mxu0 %v4933
      %4949 = vmatmul.bf16.gmra.mxu0 %v4936
      %v4950 = vpop.f32.mrf.mxu0
      %v4951 = vadd.f32 0.0, %v4950
      %v4952 = vpop.f32.mrf.mxu0
      %v4953 = vadd.f32 0.0, %v4952
      %4954 = vmatmul.bf16.gmra.mxu0 %v4939
      %v4955 = vpop.f32.mrf.mxu0
      %v4956 = vadd.f32 0.0, %v4955
      %v4957 = vpop.f32.mrf.mxu0
      %v4958 = vadd.f32 0.0, %v4957
      %4959 = vdwg.mxu0
      %v4960 = vadd.f32 %v4915, %v4951
      %v4961 = vadd.f32 %v4916, %v4953
      %v4962 = vadd.f32 %v4917, %v4956
      %v4963 = vadd.f32 %v4918, %v4958
      %s4964 = scalar_lea.vmem %s35, 120
      %v4965 = vld [vmem:[%s4964] sm:$0xf]
      %v4966 = vld [vmem:[%s4964 + $0x4] sm:$0xf]
      %v4967 = vrot.slane %v4796, 2
      %v4968 = vrot.slane %v4797, 2
      %v4969 = vsel %vm4392, %v4967, %v4968
      %v4972 = vunpack.c.l.b16 %v4965
      %v4973 = vunpack.c.l.b16 %v4966
      %v4974 = vpack.c.b16 %v4973, %v4972
      %v4977 = vsel %vm1093, %v4969, 0
      %v4980 = vsel %vm1093, %v4968, 0
      %4982 = vmatpush.bf16.msra.mxu0 0
      %4983 = vmatpush.bf16.msra.mxu0 0
      %4984 = vmatpush.bf16.msra.mxu0 0
      %4985 = vmatpush.bf16.msra.mxu0 0
      %4986 = vmatpush.bf16.msra.mxu0 0
      %4987 = vmatpush.bf16.msra.mxu0 0
      %4988 = vmatpush.bf16.msra.mxu0 0
      %4989 = vmatpush.bf16.msra.mxu0 %v4974
      %4990 = vmatmul.bf16.gmra.mxu0 %v4977
      %v4991 = vpop.f32.mrf.mxu0
      %v4992 = vadd.f32 0.0, %v4991
      %v4993 = vpop.f32.mrf.mxu0
      %v4994 = vadd.f32 0.0, %v4993
      %4995 = vmatmul.bf16.gmra.mxu0 %v4980
      %v4996 = vpop.f32.mrf.mxu0
      %v4997 = vadd.f32 0.0, %v4996
      %v4998 = vpop.f32.mrf.mxu0
      %v4999 = vadd.f32 0.0, %v4998
      %5000 = vdwg.mxu0
      %v5001 = vadd.f32 %v4960, %v4992
      %v5002 = vadd.f32 %v4961, %v4994
      %v5003 = vadd.f32 %v4962, %v4997
      %v5004 = vadd.f32 %v4963, %v4999
      %s5005 = scalar_lea.vmem %s35, 128
      %v5006 = vld [vmem:[%s5005] sm:$0xf]
      %v5007 = vld [vmem:[%s5005 + $0x4] sm:$0xf]
      %v5008 = vpack.c.bf16 %v4792, %v4792
      %v5009 = vrot.slane %v4802, 2
      %v5010 = vrot.slane %v4804, 3
      %v5011 = vor.u32 %v5009, %v5010
      %v5012 = vrot.slane %v4813, 2
      %v5013 = vrot.slane %v4809, 3
      %v5014 = vor.u32 %v5012, %v5013
      %v5015 = vsel %vm4444, %v5011, %v5014
      %v5017 = vshll.u32 %v5008, 16
      %v5019 = vrot.slane %v5017, 3
      %v5020 = vsel %vm4444, %v5014, %v5019
      %v5023 = vunpack.c.l.b16 %v5006
      %v5024 = vunpack.c.l.b16 %v5007
      %v5025 = vpack.c.b16 %v5024, %v5023
      %v5028 = vsel %vm1093, %v5015, 0
      %v5031 = vsel %vm1093, %v5020, 0
      %5033 = vmatpush.bf16.msra.mxu0 0
      %5034 = vmatpush.bf16.msra.mxu0 0
      %5035 = vmatpush.bf16.msra.mxu0 0
      %5036 = vmatpush.bf16.msra.mxu0 0
      %5037 = vmatpush.bf16.msra.mxu0 0
      %5038 = vmatpush.bf16.msra.mxu0 0
      %5039 = vmatpush.bf16.msra.mxu0 0
      %5040 = vmatpush.bf16.msra.mxu0 %v5025
      %5041 = vmatmul.bf16.gmra.mxu0 %v5028
      %v5042 = vpop.f32.mrf.mxu0
      %v5043 = vadd.f32 0.0, %v5042
      %v5044 = vpop.f32.mrf.mxu0
      %v5045 = vadd.f32 0.0, %v5044
      %5046 = vmatmul.bf16.gmra.mxu0 %v5031
      %v5047 = vpop.f32.mrf.mxu0
      %v5048 = vadd.f32 0.0, %v5047
      %v5049 = vpop.f32.mrf.mxu0
      %v5050 = vadd.f32 0.0, %v5049
      %5051 = vdwg.mxu0
      %v5052 = vadd.f32 %v5001, %v5043
      %v5053 = vadd.f32 %v5002, %v5045
      %v5054 = vadd.f32 %v5003, %v5048
      %v5055 = vadd.f32 %v5004, %v5050
      %s5056 = scalar_lea.vmem %s35, 136
      %v5057 = vld [vmem:[%s5056] sm:$0xf]
      %v5058 = vld [vmem:[%s5056 + $0x4] sm:$0xf]
      %v5060 = vrot.slane %v4796, 3
      %v5061 = vrot.slane %v4797, 3
      %v5062 = vsel %vm4502, %v5060, %v5061
      %v5063 = vrot.slane %v5008, 3
      %v5064 = vsel %vm4502, %v5061, %v5063
      %v5067 = vunpack.c.l.b16 %v5057
      %v5068 = vunpack.c.l.b16 %v5058
      %v5069 = vpack.c.b16 %v5068, %v5067
      %v5072 = vsel %vm1093, %v5062, 0
      %v5075 = vsel %vm1093, %v5064, 0
      %5077 = vmatpush.bf16.msra.mxu0 0
      %5078 = vmatpush.bf16.msra.mxu0 0
      %5079 = vmatpush.bf16.msra.mxu0 0
      %5080 = vmatpush.bf16.msra.mxu0 0
      %5081 = vmatpush.bf16.msra.mxu0 0
      %5082 = vmatpush.bf16.msra.mxu0 0
      %5083 = vmatpush.bf16.msra.mxu0 0
      %5084 = vmatpush.bf16.msra.mxu0 %v5069
      %5085 = vmatmul.bf16.gmra.mxu0 %v5072
      %v5086 = vpop.f32.mrf.mxu0
      %v5087 = vadd.f32 0.0, %v5086
      %v5088 = vpop.f32.mrf.mxu0
      %v5089 = vadd.f32 0.0, %v5088
      %5090 = vmatmul.bf16.gmra.mxu0 %v5075
      %v5091 = vpop.f32.mrf.mxu0
      %v5092 = vadd.f32 0.0, %v5091
      %v5093 = vpop.f32.mrf.mxu0
      %v5094 = vadd.f32 0.0, %v5093
      %5095 = vdwg.mxu0
      %v5096 = vadd.f32 %v5052, %v5087
      %v5097 = vadd.f32 %v5053, %v5089
      %v5098 = vadd.f32 %v5054, %v5092
      %v5099 = vadd.f32 %v5055, %v5094
      %s5100 = scalar_lea.vmem %s35, 144
      %v5101 = vld [vmem:[%s5100] sm:$0xf]
      %v5102 = vld [vmem:[%s5100 + $0x4] sm:$0xf]
      %v5103 = vrot.slane %v4802, 3
      %v5104 = vrot.slane %v4804, 4
      %v5105 = vor.u32 %v5103, %v5104
      %v5106 = vrot.slane %v4813, 3
      %v5107 = vrot.slane %v4809, 4
      %v5108 = vor.u32 %v5106, %v5107
      %v5109 = vsel %vm4554, %v5105, %v5108
      %v5110 = vshrl.u32 %v5008, 16
      %v5112 = vrot.slane %v5110, 3
      %v5113 = vrot.slane %v5017, 4
      %v5114 = vor.u32 %v5112, %v5113
      %v5115 = vsel %vm4554, %v5108, %v5114
      %v5118 = vunpack.c.l.b16 %v5101
      %v5119 = vunpack.c.l.b16 %v5102
      %v5120 = vpack.c.b16 %v5119, %v5118
      %v5123 = vsel %vm1093, %v5109, 0
      %v5126 = vsel %vm1093, %v5115, 0
      %5128 = vmatpush.bf16.msra.mxu0 0
      %5129 = vmatpush.bf16.msra.mxu0 0
      %5130 = vmatpush.bf16.msra.mxu0 0
      %5131 = vmatpush.bf16.msra.mxu0 0
      %5132 = vmatpush.bf16.msra.mxu0 0
      %5133 = vmatpush.bf16.msra.mxu0 0
      %5134 = vmatpush.bf16.msra.mxu0 0
      %5135 = vmatpush.bf16.msra.mxu0 %v5120
      %5136 = vmatmul.bf16.gmra.mxu0 %v5123
      %v5137 = vpop.f32.mrf.mxu0
      %v5138 = vadd.f32 0.0, %v5137
      %v5139 = vpop.f32.mrf.mxu0
      %v5140 = vadd.f32 0.0, %v5139
      %5141 = vmatmul.bf16.gmra.mxu0 %v5126
      %v5142 = vpop.f32.mrf.mxu0
      %v5143 = vadd.f32 0.0, %v5142
      %v5144 = vpop.f32.mrf.mxu0
      %v5145 = vadd.f32 0.0, %v5144
      %5146 = vdwg.mxu0
      %v5147 = vadd.f32 %v5096, %v5138
      %v5148 = vadd.f32 %v5097, %v5140
      %v5149 = vadd.f32 %v5098, %v5143
      %v5150 = vadd.f32 %v5099, %v5145
      %s5151 = scalar_lea.vmem %s35, 152
      %v5152 = vld [vmem:[%s5151] sm:$0xf]
      %v5153 = vld [vmem:[%s5151 + $0x4] sm:$0xf]
      %v5154 = vpack.c.bf16 %v4790, %v4789
      %v5155 = vpack.c.bf16 %v4792, %v4791
      %v5158 = vunpack.c.l.b16 %v5152
      %v5159 = vunpack.c.l.b16 %v5153
      %v5160 = vpack.c.b16 %v5159, %v5158
      %v5163 = vsel %vm1093, %v5154, 0
      %v5166 = vsel %vm1093, %v5155, 0
      %5168 = vmatpush.bf16.msra.mxu0 0
      %5169 = vmatpush.bf16.msra.mxu0 0
      %5170 = vmatpush.bf16.msra.mxu0 0
      %5171 = vmatpush.bf16.msra.mxu0 0
      %5172 = vmatpush.bf16.msra.mxu0 0
      %5173 = vmatpush.bf16.msra.mxu0 0
      %5174 = vmatpush.bf16.msra.mxu0 0
      %5175 = vmatpush.bf16.msra.mxu0 %v5160
      %5176 = vmatmul.bf16.gmra.mxu0 %v5163
      %v5177 = vpop.f32.mrf.mxu0
      %v5178 = vadd.f32 0.0, %v5177
      %v5179 = vpop.f32.mrf.mxu0
      %v5180 = vadd.f32 0.0, %v5179
      %5181 = vmatmul.bf16.gmra.mxu0 %v5166
      %v5182 = vpop.f32.mrf.mxu0
      %v5183 = vadd.f32 0.0, %v5182
      %v5184 = vpop.f32.mrf.mxu0
      %v5185 = vadd.f32 0.0, %v5184
      %5186 = vdwg.mxu0
      %v5187 = vadd.f32 %v5147, %v5178
      %v5188 = vadd.f32 %v5148, %v5180
      %v5189 = vadd.f32 %v5149, %v5183
      %v5190 = vadd.f32 %v5150, %v5185
      %s5191 = scalar_lea.vmem %s35, 160
      %v5192 = vld [vmem:[%s5191] sm:$0xf]
      %v5193 = vld [vmem:[%s5191 + $0x4] sm:$0xf]
      %v5194 = vshrl.u32 %v5154, 16
      %v5196 = vshll.u32 %v5154, 16
      %v5198 = vrot.slane %v5196, 1
      %v5199 = vor.u32 %v5194, %v5198
      %v5200 = vshll.u32 %v5155, 16
      %v5202 = vrot.slane %v5200, 1
      %v5203 = vsel %vm4172, %v5199, %v5202
      %v5204 = vshrl.u32 %v5155, 16
      %v5206 = vor.u32 %v5204, %v5202
      %v5209 = vunpack.c.l.b16 %v5192
      %v5210 = vunpack.c.l.b16 %v5193
      %v5211 = vpack.c.b16 %v5210, %v5209
      %v5214 = vsel %vm1093, %v5203, 0
      %v5217 = vsel %vm1093, %v5206, 0
      %5219 = vmatpush.bf16.msra.mxu0 0
      %5220 = vmatpush.bf16.msra.mxu0 0
      %5221 = vmatpush.bf16.msra.mxu0 0
      %5222 = vmatpush.bf16.msra.mxu0 0
      %5223 = vmatpush.bf16.msra.mxu0 0
      %5224 = vmatpush.bf16.msra.mxu0 0
      %5225 = vmatpush.bf16.msra.mxu0 0
      %5226 = vmatpush.bf16.msra.mxu0 %v5211
      %5227 = vmatmul.bf16.gmra.mxu0 %v5214
      %v5228 = vpop.f32.mrf.mxu0
      %v5229 = vadd.f32 0.0, %v5228
      %v5230 = vpop.f32.mrf.mxu0
      %v5231 = vadd.f32 0.0, %v5230
      %5232 = vmatmul.bf16.gmra.mxu0 %v5217
      %v5233 = vpop.f32.mrf.mxu0
      %v5234 = vadd.f32 0.0, %v5233
      %v5235 = vpop.f32.mrf.mxu0
      %v5236 = vadd.f32 0.0, %v5235
      %5237 = vdwg.mxu0
      %v5238 = vadd.f32 %v5187, %v5229
      %v5239 = vadd.f32 %v5188, %v5231
      %v5240 = vadd.f32 %v5189, %v5234
      %v5241 = vadd.f32 %v5190, %v5236
      %s5242 = scalar_lea.vmem %s35, 168
      %v5243 = vld [vmem:[%s5242] sm:$0xf]
      %v5244 = vld [vmem:[%s5242 + $0x4] sm:$0xf]
      %v5247 = vrot.slane %v5154, 1
      %v5248 = vrot.slane %v5155, 1
      %v5249 = vsel %vm4275, %v5247, %v5248
      %v5252 = vunpack.c.l.b16 %v5243
      %v5253 = vunpack.c.l.b16 %v5244
      %v5254 = vpack.c.b16 %v5253, %v5252
      %v5257 = vsel %vm1093, %v5249, 0
      %v5260 = vsel %vm1093, %v5248, 0
      %5262 = vmatpush.bf16.msra.mxu0 0
      %5263 = vmatpush.bf16.msra.mxu0 0
      %5264 = vmatpush.bf16.msra.mxu0 0
      %5265 = vmatpush.bf16.msra.mxu0 0
      %5266 = vmatpush.bf16.msra.mxu0 0
      %5267 = vmatpush.bf16.msra.mxu0 0
      %5268 = vmatpush.bf16.msra.mxu0 0
      %5269 = vmatpush.bf16.msra.mxu0 %v5254
      %5270 = vmatmul.bf16.gmra.mxu0 %v5257
      %v5271 = vpop.f32.mrf.mxu0
      %v5272 = vadd.f32 0.0, %v5271
      %v5273 = vpop.f32.mrf.mxu0
      %v5274 = vadd.f32 0.0, %v5273
      %5275 = vmatmul.bf16.gmra.mxu0 %v5260
      %v5276 = vpop.f32.mrf.mxu0
      %v5277 = vadd.f32 0.0, %v5276
      %v5278 = vpop.f32.mrf.mxu0
      %v5279 = vadd.f32 0.0, %v5278
      %5280 = vdwg.mxu0
      %v5281 = vadd.f32 %v5238, %v5272
      %v5282 = vadd.f32 %v5239, %v5274
      %v5283 = vadd.f32 %v5240, %v5277
      %v5284 = vadd.f32 %v5241, %v5279
      %vm5285 = vcmp.ge.f32.partialorder %v5281, 0.0
      %vm5286 = vcmp.ge.f32.partialorder %v5282, 0.0
      %vm5287 = vcmp.ge.f32.partialorder %v5283, 0.0
      %vm5288 = vcmp.ge.f32.partialorder %v5284, 0.0
      %v5289 = vmul.f32 %v5281, 0.01
      %v5290 = vmul.f32 %v5282, 0.01
      %v5291 = vmul.f32 %v5283, 0.01
      %v5292 = vmul.f32 %v5284, 0.01
      %v5293 = vsel %vm5285, %v5281, %v5289
      %v5294 = vsel %vm5286, %v5282, %v5290
      %v5295 = vsel %vm5287, %v5283, %v5291
      %v5296 = vsel %vm5288, %v5284, %v5292
      %s5297 = scalar_lea.vmem %s35, 176
      %v5298 = vld [vmem:[%s5297] sm:$0xf]
      %v5299 = vld [vmem:[%s5297 + $0x4] sm:$0xf]
      %v5300 = vpack.c.bf16 %v5294, %v5293
      %v5301 = vpack.c.bf16 %v5295, %v5295
      %s5302 = scalar_lea.vmem %s35, 184
      %v5303 = vld [vmem:[%s5302] sm:$0xf]
      %v5304 = vld [vmem:[%s5302 + $0x4] sm:$0xf]
      %v5306 = vshrl.u32 %v5300, 16
      %v5308 = vshll.u32 %v5300, 16
      %v5310 = vrot.slane %v5308, 1
      %v5311 = vor.u32 %v5306, %v5310
      %v5313 = vshll.u32 %v5301, 16
      %v5315 = vrot.slane %v5313, 1
      %v5316 = vsel %vm4172, %v5311, %v5315
      %v5317 = vshrl.u32 %v5301, 16
      %v5319 = vor.u32 %v5317, %v5315
      %v5322 = vunpack.c.l.b16 %v5303
      %v5323 = vunpack.c.l.b16 %v5304
      %v5324 = vpack.c.b16 %v5323, %v5322
      %v5327 = vsel %vm1093, %v5316, 0
      %v5330 = vsel %vm1093, %v5319, 0
      %5332 = vmatpush.bf16.msra.mxu0 0
      %5333 = vmatpush.bf16.msra.mxu0 0
      %5334 = vmatpush.bf16.msra.mxu0 0
      %5335 = vmatpush.bf16.msra.mxu0 0
      %5336 = vmatpush.bf16.msra.mxu0 0
      %5337 = vmatpush.bf16.msra.mxu0 0
      %5338 = vmatpush.bf16.msra.mxu0 0
      %5339 = vmatpush.bf16.msra.mxu0 %v5324
      %5340 = vmatmul.bf16.gmra.mxu0 %v5327
      %v5341 = vpop.f32.mrf.mxu0
      %v5342 = vadd.f32 0.0, %v5341
      %v5343 = vpop.f32.mrf.mxu0
      %v5344 = vadd.f32 0.0, %v5343
      %5345 = vmatmul.bf16.gmra.mxu0 %v5330
      %v5346 = vpop.f32.mrf.mxu0
      %v5347 = vadd.f32 0.0, %v5346
      %v5348 = vpop.f32.mrf.mxu0
      %5349 = vdwg.mxu0
      %v5352 = vunpack.c.l.b16 %v5298
      %v5353 = vunpack.c.l.b16 %v5299
      %v5354 = vpack.c.b16 %v5353, %v5352
      %v5356 = vsel %vm1093, %v5300, 0
      %v5358 = vsel %vm1093, %v5301, 0
      %5360 = vmatpush.bf16.msra.mxu0 0
      %5361 = vmatpush.bf16.msra.mxu0 0
      %5362 = vmatpush.bf16.msra.mxu0 0
      %5363 = vmatpush.bf16.msra.mxu0 0
      %5364 = vmatpush.bf16.msra.mxu0 0
      %5365 = vmatpush.bf16.msra.mxu0 0
      %5366 = vmatpush.bf16.msra.mxu0 0
      %5367 = vmatpush.bf16.msra.mxu0 %v5354
      %5368 = vmatmul.bf16.gmra.mxu0 %v5356
      %v5369 = vpop.f32.mrf.mxu0
      %v5370 = vadd.f32 %v5342, %v5369
      %v5371 = vpop.f32.mrf.mxu0
      %v5372 = vadd.f32 %v5344, %v5371
      %5373 = vmatmul.bf16.gmra.mxu0 %v5358
      %v5374 = vpop.f32.mrf.mxu0
      %v5375 = vadd.f32 %v5347, %v5374
      %v5376 = vpop.f32.mrf.mxu0
      %5377 = vdwg.mxu0
      %s5378 = scalar_lea.vmem %s35, 192
      %v5379 = vld [vmem:[%s5378] sm:$0xf]
      %v5380 = vld [vmem:[%s5378 + $0x4] sm:$0xf]
      %v5383 = vrot.slane %v5300, 1
      %v5384 = vrot.slane %v5301, 1
      %v5385 = vsel %vm4275, %v5383, %v5384
      %v5388 = vunpack.c.l.b16 %v5379
      %v5389 = vunpack.c.l.b16 %v5380
      %v5390 = vpack.c.b16 %v5389, %v5388
      %v5393 = vsel %vm1093, %v5385, 0
      %v5396 = vsel %vm1093, %v5384, 0
      %5398 = vmatpush.bf16.msra.mxu0 0
      %5399 = vmatpush.bf16.msra.mxu0 0
      %5400 = vmatpush.bf16.msra.mxu0 0
      %5401 = vmatpush.bf16.msra.mxu0 0
      %5402 = vmatpush.bf16.msra.mxu0 0
      %5403 = vmatpush.bf16.msra.mxu0 0
      %5404 = vmatpush.bf16.msra.mxu0 0
      %5405 = vmatpush.bf16.msra.mxu0 %v5390
      %5406 = vmatmul.bf16.gmra.mxu0 %v5393
      %v5407 = vpop.f32.mrf.mxu0
      %v5408 = vadd.f32 0.0, %v5407
      %v5409 = vpop.f32.mrf.mxu0
      %v5410 = vadd.f32 0.0, %v5409
      %5411 = vmatmul.bf16.gmra.mxu0 %v5396
      %v5412 = vpop.f32.mrf.mxu0
      %v5413 = vadd.f32 0.0, %v5412
      %v5414 = vpop.f32.mrf.mxu0
      %5415 = vdwg.mxu0
      %v5416 = vadd.f32 %v5370, %v5408
      %v5417 = vadd.f32 %v5372, %v5410
      %v5418 = vadd.f32 %v5375, %v5413
      %s5419 = scalar_lea.vmem %s35, 200
      %v5420 = vld [vmem:[%s5419] sm:$0xf]
      %v5421 = vld [vmem:[%s5419 + $0x4] sm:$0xf]
      %v5422 = vrot.slane %v5306, 1
      %v5423 = vrot.slane %v5308, 2
      %v5424 = vor.u32 %v5422, %v5423
      %v5425 = vrot.slane %v5317, 1
      %v5426 = vrot.slane %v5313, 2
      %v5427 = vor.u32 %v5425, %v5426
      %v5428 = vsel %vm4328, %v5424, %v5427
      %v5431 = vunpack.c.l.b16 %v5420
      %v5432 = vunpack.c.l.b16 %v5421
      %v5433 = vpack.c.b16 %v5432, %v5431
      %v5436 = vsel %vm1093, %v5428, 0
      %v5439 = vsel %vm1093, %v5427, 0
      %5441 = vmatpush.bf16.msra.mxu0 0
      %5442 = vmatpush.bf16.msra.mxu0 0
      %5443 = vmatpush.bf16.msra.mxu0 0
      %5444 = vmatpush.bf16.msra.mxu0 0
      %5445 = vmatpush.bf16.msra.mxu0 0
      %5446 = vmatpush.bf16.msra.mxu0 0
      %5447 = vmatpush.bf16.msra.mxu0 0
      %5448 = vmatpush.bf16.msra.mxu0 %v5433
      %5449 = vmatmul.bf16.gmra.mxu0 %v5436
      %v5450 = vpop.f32.mrf.mxu0
      %v5451 = vadd.f32 0.0, %v5450
      %v5452 = vpop.f32.mrf.mxu0
      %v5453 = vadd.f32 0.0, %v5452
      %5454 = vmatmul.bf16.gmra.mxu0 %v5439
      %v5455 = vpop.f32.mrf.mxu0
      %v5456 = vadd.f32 0.0, %v5455
      %v5457 = vpop.f32.mrf.mxu0
      %5458 = vdwg.mxu0
      %v5459 = vadd.f32 %v5416, %v5451
      %v5460 = vadd.f32 %v5417, %v5453
      %v5461 = vadd.f32 %v5418, %v5456
      %s5462 = scalar_lea.vmem %s35, 208
      %v5463 = vld [vmem:[%s5462] sm:$0xf]
      %v5464 = vld [vmem:[%s5462 + $0x4] sm:$0xf]
      %v5465 = vrot.slane %v5300, 2
      %v5466 = vrot.slane %v5301, 2
      %v5467 = vsel %vm4392, %v5465, %v5466
      %v5470 = vunpack.c.l.b16 %v5463
      %v5471 = vunpack.c.l.b16 %v5464
      %v5472 = vpack.c.b16 %v5471, %v5470
      %v5475 = vsel %vm1093, %v5467, 0
      %v5478 = vsel %vm1093, %v5466, 0
      %5480 = vmatpush.bf16.msra.mxu0 0
      %5481 = vmatpush.bf16.msra.mxu0 0
      %5482 = vmatpush.bf16.msra.mxu0 0
      %5483 = vmatpush.bf16.msra.mxu0 0
      %5484 = vmatpush.bf16.msra.mxu0 0
      %5485 = vmatpush.bf16.msra.mxu0 0
      %5486 = vmatpush.bf16.msra.mxu0 0
      %5487 = vmatpush.bf16.msra.mxu0 %v5472
      %5488 = vmatmul.bf16.gmra.mxu0 %v5475
      %v5489 = vpop.f32.mrf.mxu0
      %v5490 = vadd.f32 0.0, %v5489
      %v5491 = vpop.f32.mrf.mxu0
      %v5492 = vadd.f32 0.0, %v5491
      %5493 = vmatmul.bf16.gmra.mxu0 %v5478
      %v5494 = vpop.f32.mrf.mxu0
      %v5495 = vadd.f32 0.0, %v5494
      %v5496 = vpop.f32.mrf.mxu0
      %5497 = vdwg.mxu0
      %v5498 = vadd.f32 %v5459, %v5490
      %v5499 = vadd.f32 %v5460, %v5492
      %v5500 = vadd.f32 %v5461, %v5495
      %s5501 = scalar_lea.vmem %s35, 216
      %v5502 = vld [vmem:[%s5501] sm:$0xf]
      %v5503 = vld [vmem:[%s5501 + $0x4] sm:$0xf]
      %v5504 = vrot.slane %v5306, 2
      %v5505 = vrot.slane %v5308, 3
      %v5506 = vor.u32 %v5504, %v5505
      %v5507 = vrot.slane %v5317, 2
      %v5508 = vrot.slane %v5313, 3
      %v5509 = vor.u32 %v5507, %v5508
      %v5510 = vsel %vm4444, %v5506, %v5509
      %v5513 = vunpack.c.l.b16 %v5502
      %v5514 = vunpack.c.l.b16 %v5503
      %v5515 = vpack.c.b16 %v5514, %v5513
      %v5518 = vsel %vm1093, %v5510, 0
      %v5521 = vsel %vm1093, %v5509, 0
      %5523 = vmatpush.bf16.msra.mxu0 0
      %5524 = vmatpush.bf16.msra.mxu0 0
      %5525 = vmatpush.bf16.msra.mxu0 0
      %5526 = vmatpush.bf16.msra.mxu0 0
      %5527 = vmatpush.bf16.msra.mxu0 0
      %5528 = vmatpush.bf16.msra.mxu0 0
      %5529 = vmatpush.bf16.msra.mxu0 0
      %5530 = vmatpush.bf16.msra.mxu0 %v5515
      %5531 = vmatmul.bf16.gmra.mxu0 %v5518
      %v5532 = vpop.f32.mrf.mxu0
      %v5533 = vadd.f32 0.0, %v5532
      %v5534 = vpop.f32.mrf.mxu0
      %v5535 = vadd.f32 0.0, %v5534
      %5536 = vmatmul.bf16.gmra.mxu0 %v5521
      %v5537 = vpop.f32.mrf.mxu0
      %v5538 = vadd.f32 0.0, %v5537
      %v5539 = vpop.f32.mrf.mxu0
      %5540 = vdwg.mxu0
      %v5541 = vadd.f32 %v5498, %v5533
      %v5542 = vadd.f32 %v5499, %v5535
      %v5543 = vadd.f32 %v5500, %v5538
      %s5544 = scalar_lea.vmem %s35, 224
      %v5545 = vld [vmem:[%s5544] sm:$0xf]
      %v5546 = vld [vmem:[%s5544 + $0x4] sm:$0xf]
      %v5547 = vrot.slane %v5300, 3
      %v5548 = vrot.slane %v5301, 3
      %v5549 = vsel %vm4502, %v5547, %v5548
      %v5552 = vunpack.c.l.b16 %v5545
      %v5553 = vunpack.c.l.b16 %v5546
      %v5554 = vpack.c.b16 %v5553, %v5552
      %v5557 = vsel %vm1093, %v5549, 0
      %v5560 = vsel %vm1093, %v5548, 0
      %5562 = vmatpush.bf16.msra.mxu0 0
      %5563 = vmatpush.bf16.msra.mxu0 0
      %5564 = vmatpush.bf16.msra.mxu0 0
      %5565 = vmatpush.bf16.msra.mxu0 0
      %5566 = vmatpush.bf16.msra.mxu0 0
      %5567 = vmatpush.bf16.msra.mxu0 0
      %5568 = vmatpush.bf16.msra.mxu0 0
      %5569 = vmatpush.bf16.msra.mxu0 %v5554
      %5570 = vmatmul.bf16.gmra.mxu0 %v5557
      %v5571 = vpop.f32.mrf.mxu0
      %v5572 = vadd.f32 0.0, %v5571
      %v5573 = vpop.f32.mrf.mxu0
      %v5574 = vadd.f32 0.0, %v5573
      %5575 = vmatmul.bf16.gmra.mxu0 %v5560
      %v5576 = vpop.f32.mrf.mxu0
      %v5577 = vadd.f32 0.0, %v5576
      %v5578 = vpop.f32.mrf.mxu0
      %5579 = vdwg.mxu0
      %v5580 = vadd.f32 %v5541, %v5572
      %v5581 = vadd.f32 %v5542, %v5574
      %v5582 = vadd.f32 %v5543, %v5577
      %s5583 = scalar_lea.vmem %s35, 232
      %v5584 = vld [vmem:[%s5583] sm:$0xf]
      %v5585 = vld [vmem:[%s5583 + $0x4] sm:$0xf]
      %v5586 = vpack.c.bf16 %v5296, %v5295
      %v5587 = vrot.slane %v5306, 3
      %v5588 = vrot.slane %v5308, 4
      %v5589 = vor.u32 %v5587, %v5588
      %v5591 = vshrl.u32 %v5586, 16
      %v5593 = vrot.slane %v5591, 3
      %v5594 = vshll.u32 %v5586, 16
      %v5596 = vrot.slane %v5594, 4
      %v5597 = vor.u32 %v5593, %v5596
      %v5598 = vsel %vm4554, %v5589, %v5597
      %v5601 = vunpack.c.l.b16 %v5584
      %v5602 = vunpack.c.l.b16 %v5585
      %v5603 = vpack.c.b16 %v5602, %v5601
      %v5606 = vsel %vm1093, %v5598, 0
      %v5609 = vsel %vm1093, %v5597, 0
      %5611 = vmatpush.bf16.msra.mxu0 0
      %5612 = vmatpush.bf16.msra.mxu0 0
      %5613 = vmatpush.bf16.msra.mxu0 0
      %5614 = vmatpush.bf16.msra.mxu0 0
      %5615 = vmatpush.bf16.msra.mxu0 0
      %5616 = vmatpush.bf16.msra.mxu0 0
      %5617 = vmatpush.bf16.msra.mxu0 0
      %5618 = vmatpush.bf16.msra.mxu0 %v5603
      %5619 = vmatmul.bf16.gmra.mxu0 %v5606
      %v5620 = vpop.f32.mrf.mxu0
      %v5621 = vadd.f32 0.0, %v5620
      %v5622 = vpop.f32.mrf.mxu0
      %v5623 = vadd.f32 0.0, %v5622
      %5624 = vmatmul.bf16.gmra.mxu0 %v5609
      %v5625 = vpop.f32.mrf.mxu0
      %v5626 = vadd.f32 0.0, %v5625
      %v5627 = vpop.f32.mrf.mxu0
      %5628 = vdwg.mxu0
      %v5629 = vadd.f32 %v5580, %v5621
      %v5630 = vadd.f32 %v5581, %v5623
      %v5631 = vadd.f32 %v5582, %v5626
      %s5632 = scalar_lea.vmem %s35, 240
      %v5633 = vld [vmem:[%s5632] sm:$0xf]
      %v5634 = vld [vmem:[%s5632 + $0x4] sm:$0xf]
      %v5635 = vpack.c.bf16 %v5295, %v5294
      %v5636 = vpack.c.bf16 %v5296, %v5296
      %v5639 = vunpack.c.l.b16 %v5633
      %v5640 = vunpack.c.l.b16 %v5634
      %v5641 = vpack.c.b16 %v5640, %v5639
      %v5644 = vsel %vm1093, %v5635, 0
      %v5647 = vsel %vm1093, %v5636, 0
      %5649 = vmatpush.bf16.msra.mxu0 0
      %5650 = vmatpush.bf16.msra.mxu0 0
      %5651 = vmatpush.bf16.msra.mxu0 0
      %5652 = vmatpush.bf16.msra.mxu0 0
      %5653 = vmatpush.bf16.msra.mxu0 0
      %5654 = vmatpush.bf16.msra.mxu0 0
      %5655 = vmatpush.bf16.msra.mxu0 0
      %5656 = vmatpush.bf16.msra.mxu0 %v5641
      %5657 = vmatmul.bf16.gmra.mxu0 %v5644
      %v5658 = vpop.f32.mrf.mxu0
      %v5659 = vadd.f32 0.0, %v5658
      %v5660 = vpop.f32.mrf.mxu0
      %v5661 = vadd.f32 0.0, %v5660
      %5662 = vmatmul.bf16.gmra.mxu0 %v5647
      %v5663 = vpop.f32.mrf.mxu0
      %v5664 = vadd.f32 0.0, %v5663
      %v5665 = vpop.f32.mrf.mxu0
      %5666 = vdwg.mxu0
      %v5667 = vadd.f32 %v5629, %v5659
      %v5668 = vadd.f32 %v5630, %v5661
      %v5669 = vadd.f32 %v5631, %v5664
      %s5670 = scalar_lea.vmem %s35, 248
      %v5671 = vld [vmem:[%s5670] sm:$0xf]
      %v5672 = vld [vmem:[%s5670 + $0x4] sm:$0xf]
      %v5673 = vshrl.u32 %v5635, 16
      %v5675 = vshll.u32 %v5635, 16
      %v5677 = vrot.slane %v5675, 1
      %v5678 = vor.u32 %v5673, %v5677
      %v5679 = vshll.u32 %v5636, 16
      %v5681 = vrot.slane %v5679, 1
      %v5682 = vsel %vm4172, %v5678, %v5681
      %v5683 = vshrl.u32 %v5636, 16
      %v5685 = vor.u32 %v5683, %v5681
      %v5688 = vunpack.c.l.b16 %v5671
      %v5689 = vunpack.c.l.b16 %v5672
      %v5690 = vpack.c.b16 %v5689, %v5688
      %v5693 = vsel %vm1093, %v5682, 0
      %v5696 = vsel %vm1093, %v5685, 0
      %5698 = vmatpush.bf16.msra.mxu0 0
      %5699 = vmatpush.bf16.msra.mxu0 0
      %5700 = vmatpush.bf16.msra.mxu0 0
      %5701 = vmatpush.bf16.msra.mxu0 0
      %5702 = vmatpush.bf16.msra.mxu0 0
      %5703 = vmatpush.bf16.msra.mxu0 0
      %5704 = vmatpush.bf16.msra.mxu0 0
      %5705 = vmatpush.bf16.msra.mxu0 %v5690
      %5706 = vmatmul.bf16.gmra.mxu0 %v5693
      %v5707 = vpop.f32.mrf.mxu0
      %v5708 = vadd.f32 0.0, %v5707
      %v5709 = vpop.f32.mrf.mxu0
      %v5710 = vadd.f32 0.0, %v5709
      %5711 = vmatmul.bf16.gmra.mxu0 %v5696
      %v5712 = vpop.f32.mrf.mxu0
      %v5713 = vadd.f32 0.0, %v5712
      %v5714 = vpop.f32.mrf.mxu0
      %5715 = vdwg.mxu0
      %v5716 = vadd.f32 %v5667, %v5708
      %v5717 = vadd.f32 %v5668, %v5710
      %v5718 = vadd.f32 %v5669, %v5713
      %s5719 = scalar_lea.vmem %s35, 256
      %v5720 = vld [vmem:[%s5719] sm:$0xf]
      %v5721 = vld [vmem:[%s5719 + $0x4] sm:$0xf]
      %v5724 = vrot.slane %v5635, 1
      %v5725 = vrot.slane %v5636, 1
      %v5726 = vsel %vm4275, %v5724, %v5725
      %v5729 = vunpack.c.l.b16 %v5720
      %v5730 = vunpack.c.l.b16 %v5721
      %v5731 = vpack.c.b16 %v5730, %v5729
      %v5734 = vsel %vm1093, %v5726, 0
      %v5737 = vsel %vm1093, %v5725, 0
      %5739 = vmatpush.bf16.msra.mxu0 0
      %5740 = vmatpush.bf16.msra.mxu0 0
      %5741 = vmatpush.bf16.msra.mxu0 0
      %5742 = vmatpush.bf16.msra.mxu0 0
      %5743 = vmatpush.bf16.msra.mxu0 0
      %5744 = vmatpush.bf16.msra.mxu0 0
      %5745 = vmatpush.bf16.msra.mxu0 0
      %5746 = vmatpush.bf16.msra.mxu0 %v5731
      %5747 = vmatmul.bf16.gmra.mxu0 %v5734
      %v5748 = vpop.f32.mrf.mxu0
      %v5749 = vadd.f32 0.0, %v5748
      %v5750 = vpop.f32.mrf.mxu0
      %v5751 = vadd.f32 0.0, %v5750
      %5752 = vmatmul.bf16.gmra.mxu0 %v5737
      %v5753 = vpop.f32.mrf.mxu0
      %v5754 = vadd.f32 0.0, %v5753
      %v5755 = vpop.f32.mrf.mxu0
      %5756 = vdwg.mxu0
      %v5757 = vadd.f32 %v5716, %v5749
      %v5758 = vadd.f32 %v5717, %v5751
      %v5759 = vadd.f32 %v5718, %v5754
      %vm5760 = vcmp.ge.f32.partialorder %v5757, 0.0
      %vm5761 = vcmp.ge.f32.partialorder %v5758, 0.0
      %vm5762 = vcmp.ge.f32.partialorder %v5759, 0.0
      %v5763 = vmul.f32 %v5757, 0.01
      %v5764 = vmul.f32 %v5758, 0.01
      %v5765 = vmul.f32 %v5759, 0.01
      %v5766 = vsel %vm5760, %v5757, %v5763
      %v5767 = vsel %vm5761, %v5758, %v5764
      %v5768 = vsel %vm5762, %v5759, %v5765
      %vm5772 = vcmask 1041408
      %v5773 = vrot.slane %v4157, 6
      %v5774 = vrot.slane %v4160, 6
      %v5775 = vsel %vm5772, %v5773, %v5774
      %v5776 = vrot.slane %v4162, 6
      %v5777 = vsel %vm5772, %v5774, %v5776
      %v5781 = vadd.f32 %v5766, %v5775
      %v5782 = vadd.f32 %v5767, %v5777
      %v5783 = vadd.f32 %v5768, %v5776
      %v5784 = vld [vmem:[%s37] sm:$0xf]
      %v5785 = vld [vmem:[%s37 + $0x4] sm:$0x1]
      %v5786 = vld [vmem:[%s39] sm:$0xff]
      %v5787 = vld [vmem:[%s39 + $0x8] sm:$0x3]
      %5789 = vset.pattern.permute.xlu0 0
      %5790 = vperm.xlu0 %5789, %v5786
      %v5791 = vpop.permute.xlu0 %5790
      %5794 = vset.pattern.permute.xlu0 0
      %5795 = vperm.xlu0 %5794, %v5787
      %v5796 = vpop.permute.xlu0 %5795
      %v5798 = vperm.slane %v1077, 7
      %v5799 = vmul.f32 %v5791, %v5798
      %v5800 = vmul.f32 %v5796, %v5798
      %v5803 = vunpack.c.l.b16 %v5784
      %v5804 = vunpack.c.l.b16 %v5785
      %v5805 = vpack.c.b16 %v5804, %v5803
      %v5807 = vrot.slane %v1082, 3
      %vm5808 = vcmask 80896
      %v5810 = vsel %vm5808, %v5805, 0
      %vm5812 = vcmask 1044480
      %v5814 = vsel %vm5812, %v5807, 0
      %5816 = vmatpush.bf16.msra.mxu0 0
      %5817 = vmatpush.bf16.msra.mxu0 0
      %5818 = vmatpush.bf16.msra.mxu0 0
      %5819 = vmatpush.bf16.msra.mxu0 0
      %5820 = vmatpush.bf16.msra.mxu0 0
      %5821 = vmatpush.bf16.msra.mxu0 0
      %5822 = vmatpush.bf16.msra.mxu0 0
      %5823 = vmatpush.bf16.msra.mxu0 %v5814
      %5824 = vmatmul.bf16.gmra.mxu0 %v5810
      %v5825 = vpop.f32.mrf.mxu0
      %v5826 = vadd.f32 %v5799, %v5825
      %v5827 = vpop.f32.mrf.mxu0
      %v5828 = vadd.f32 %v5800, %v5827
      %5829 = vdwg.mxu0
      %v5830 = vld [vmem:[%s41] sm:$0xf]
      %v5831 = vld [vmem:[%s41 + $0x4] sm:$0x1]
      %v5832 = vpack.c.bf16 %v5782, %v5781
      %v5833 = vpack.c.bf16 %v5783, %v5783
      %v5836 = vunpack.c.l.b16 %v5830
      %v5837 = vunpack.c.l.b16 %v5831
      %v5838 = vpack.c.b16 %v5837, %v5836
      %vm5839 = vcmask 146432
      %v5841 = vsel %vm5839, %v5838, 0
      %vm5843 = vcmask 1040384
      %v5845 = vsel %vm5843, %v5833, 0
      %5847 = vmatpush.bf16.msra.mxu0 0
      %5848 = vmatpush.bf16.msra.mxu0 0
      %5849 = vmatpush.bf16.msra.mxu0 0
      %5850 = vmatpush.bf16.msra.mxu0 0
      %5851 = vmatpush.bf16.msra.mxu0 0
      %5852 = vmatpush.bf16.msra.mxu0 0
      %5853 = vmatpush.bf16.msra.mxu0 %v5845
      %5854 = vmatpush.bf16.msra.mxu0 %v5832
      %5855 = vmatmul.bf16.gmra.mxu0 %v5841
      %v5856 = vpop.f32.mrf.mxu0
      %v5857 = vadd.f32 %v5826, %v5856
      %v5858 = vpop.f32.mrf.mxu0
      %v5859 = vadd.f32 %v5828, %v5858
      %5860 = vdwg.mxu0
      %v5863 = vrot.slane %v5857, 6
      %v5864 = vrot.slane %v5859, 6
      %v5865 = vsel %vm5772, %v5863, %v5864
      %v5868 = vsel %vm5772, %v5828, %v5863
      %v5869 = vld [vmem:[%s45] sm:$0xf]
      %v5870 = vld [vmem:[%s45 + $0x4] sm:$0xf]
      %v5871 = vld [vmem:[%s45 + $0x8] sm:$0xf]
      %v5872 = vld [vmem:[%s45 + $0xc] sm:$0xf]
      %v5873 = vld [vmem:[%s47] sm:$0xf]
      %v5874 = vld [vmem:[%s47 + $0x4] sm:$0xf]
      %v5875 = vld [vmem:[%s49] sm:$0xff]
      %v5876 = vld [vmem:[%s49 + $0x8] sm:$0xff]
      %v5877 = vld [vmem:[%s49 + $0x10] sm:$0xff]
      %v5878 = vld [vmem:[%s49 + $0x18] sm:$0xff]
      %v5879 = vpack.c.bf16 %v5868, %v5826
      %v5880 = vpack.c.bf16 %v5865, %v5865
      %v5885 = vunpack.c.l.b16 %v5869
      %v5886 = vunpack.c.l.b16 %v5870
      %v5887 = vunpack.c.l.b16 %v5871
      %v5888 = vunpack.c.l.b16 %v5872
      %v5889 = vpack.c.b16 %v5886, %v5885
      %v5890 = vpack.c.b16 %v5888, %v5887
      %vm5891 = vcmask 162816
      %v5893 = vsel %vm5891, %v5889, 0
      %v5896 = vsel %vm5891, %v5890, 0
      %v5899 = vsel %vm5772, %v5880, 0
      %5901 = vmatpush.bf16.msra.mxu0 0
      %5902 = vmatpush.bf16.msra.mxu0 0
      %5903 = vmatpush.bf16.msra.mxu0 0
      %5904 = vmatpush.bf16.msra.mxu0 0
      %5905 = vmatpush.bf16.msra.mxu0 0
      %5906 = vmatpush.bf16.msra.mxu0 0
      %5907 = vmatpush.bf16.msra.mxu0 %v5899
      %5908 = vmatpush.bf16.msra.mxu0 %v5879
      %5909 = vmatmul.bf16.gmra.mxu0 %v5893
      %v5910 = vpop.f32.mrf.mxu0
      %v5911 = vadd.f32 0.0, %v5910
      %v5912 = vpop.f32.mrf.mxu0
      %v5913 = vadd.f32 0.0, %v5912
      %5914 = vmatmul.bf16.gmra.mxu0 %v5896
      %v5915 = vpop.f32.mrf.mxu0
      %v5916 = vadd.f32 0.0, %v5915
      %v5917 = vpop.f32.mrf.mxu0
      %v5918 = vadd.f32 0.0, %v5917
      %5919 = vdwg.mxu0
      %v5920 = vpack.c.bf16 %v5913, %v5911
      %v5921 = vpack.c.bf16 %v5918, %v5916
      %5923 = vset.pattern.permute.xlu0 0
      %5924 = vperm.xlu0 %5923, %v5875
      %v5925 = vpop.permute.xlu0 %5924
      %5928 = vset.pattern.permute.xlu0 0
      %5929 = vperm.xlu0 %5928, %v5876
      %v5930 = vpop.permute.xlu0 %5929
      %5933 = vset.pattern.permute.xlu0 0
      %5934 = vperm.xlu0 %5933, %v5877
      %v5935 = vpop.permute.xlu0 %5934
      %5938 = vset.pattern.permute.xlu0 0
      %5939 = vperm.xlu0 %5938, %v5878
      %v5940 = vpop.permute.xlu0 %5939
      %v5944 = vunpack.c.l.b16 %v5873
      %v5945 = vunpack.c.l.b16 %v5874
      %v5946 = vpack.c.b16 %v5945, %v5944
      %v5949 = vsel %vm1093, %v5920, 0
      %v5952 = vsel %vm1093, %v5921, 0
      %5954 = vmatpush.bf16.msra.mxu0 0
      %5955 = vmatpush.bf16.msra.mxu0 0
      %5956 = vmatpush.bf16.msra.mxu0 0
      %5957 = vmatpush.bf16.msra.mxu0 0
      %5958 = vmatpush.bf16.msra.mxu0 0
      %5959 = vmatpush.bf16.msra.mxu0 0
      %5960 = vmatpush.bf16.msra.mxu0 0
      %5961 = vmatpush.bf16.msra.mxu0 %v5946
      %5962 = vmatmul.bf16.gmra.mxu0 %v5949
      %v5963 = vpop.f32.mrf.mxu0
      %v5964 = vadd.f32 %v5925, %v5963
      %v5965 = vpop.f32.mrf.mxu0
      %v5966 = vadd.f32 %v5930, %v5965
      %5967 = vmatmul.bf16.gmra.mxu0 %v5952
      %v5968 = vpop.f32.mrf.mxu0
      %v5969 = vadd.f32 %v5935, %v5968
      %v5970 = vpop.f32.mrf.mxu0
      %v5971 = vadd.f32 %v5940, %v5970
      %5972 = vdwg.mxu0
      %v5973 = vld [vmem:[%s51] sm:$0xff]
      %v5974 = vld [vmem:[%s51 + $0x8] sm:$0xff]
      %v5975 = vld [vmem:[%s51 + $0x10] sm:$0xff]
      %v5976 = vld [vmem:[%s51 + $0x18] sm:$0xff]
      %v5977 = vmul.f32 %v5964, %v5973
      %v5978 = vmul.f32 %v5966, %v5974
      %v5979 = vmul.f32 %v5969, %v5975
      %v5980 = vmul.f32 %v5971, %v5976
      %v5981 = vld [vmem:[%s53] sm:$0xff]
      %v5982 = vld [vmem:[%s53 + $0x8] sm:$0xff]
      %v5983 = vld [vmem:[%s53 + $0x10] sm:$0xff]
      %v5984 = vld [vmem:[%s53 + $0x18] sm:$0xff]
      %v5985 = vadd.f32 %v5977, %v5981
      %v5986 = vadd.f32 %v5978, %v5982
      %v5987 = vadd.f32 %v5979, %v5983
      %v5988 = vadd.f32 %v5980, %v5984
      %v5989 = vtanh.pop %v5985
      %v5990 = vtanh.pop %v5986
      %v5991 = vtanh.pop %v5987
      %v5992 = vtanh.pop %v5988
      %v5993 = vld [vmem:[%s55] sm:$0xf]
      %v5994 = vld [vmem:[%s55 + $0x4] sm:$0xf]
      %v5995 = vld [vmem:[%s55 + $0x8] sm:$0xf]
      %v5996 = vld [vmem:[%s55 + $0xc] sm:$0xf]
      %v5997 = vld [vmem:[%s57] sm:$0xf]
      %v5998 = vld [vmem:[%s57 + $0x4] sm:$0xf]
      %v5999 = vld [vmem:[%s59] sm:$0xff]
      %v6000 = vld [vmem:[%s59 + $0x8] sm:$0xff]
      %v6001 = vld [vmem:[%s59 + $0x10] sm:$0xff]
      %v6002 = vld [vmem:[%s59 + $0x18] sm:$0xff]
      %v6003 = vpack.c.bf16 %v5990, %v5989
      %v6004 = vpack.c.bf16 %v5992, %v5991
      %v6009 = vunpack.c.l.b16 %v5993
      %v6010 = vunpack.c.l.b16 %v5994
      %v6011 = vunpack.c.l.b16 %v5995
      %v6012 = vunpack.c.l.b16 %v5996
      %v6013 = vpack.c.b16 %v6010, %v6009
      %v6014 = vpack.c.b16 %v6012, %v6011
      %v6016 = vsel %vm1140, %v6013, 0
      %v6019 = vsel %vm1140, %v6014, 0
      %6021 = vmatpush.bf16.msra.mxu0 0
      %6022 = vmatpush.bf16.msra.mxu0 0
      %6023 = vmatpush.bf16.msra.mxu0 0
      %6024 = vmatpush.bf16.msra.mxu0 0
      %6025 = vmatpush.bf16.msra.mxu0 0
      %6026 = vmatpush.bf16.msra.mxu0 0
      %6027 = vmatpush.bf16.msra.mxu0 %v6004
      %6028 = vmatpush.bf16.msra.mxu0 %v6003
      %6029 = vmatmul.bf16.gmra.mxu0 %v6016
      %v6030 = vpop.f32.mrf.mxu0
      %v6031 = vadd.f32 0.0, %v6030
      %v6032 = vpop.f32.mrf.mxu0
      %v6033 = vadd.f32 0.0, %v6032
      %6034 = vmatmul.bf16.gmra.mxu0 %v6019
      %v6035 = vpop.f32.mrf.mxu0
      %v6036 = vadd.f32 0.0, %v6035
      %v6037 = vpop.f32.mrf.mxu0
      %v6038 = vadd.f32 0.0, %v6037
      %6039 = vdwg.mxu0
      %v6040 = vpack.c.bf16 %v6033, %v6031
      %v6041 = vpack.c.bf16 %v6038, %v6036
      %6043 = vset.pattern.permute.xlu0 0
      %6044 = vperm.xlu0 %6043, %v5999
      %v6045 = vpop.permute.xlu0 %6044
      %6048 = vset.pattern.permute.xlu0 0
      %6049 = vperm.xlu0 %6048, %v6000
      %v6050 = vpop.permute.xlu0 %6049
      %6053 = vset.pattern.permute.xlu0 0
      %6054 = vperm.xlu0 %6053, %v6001
      %v6055 = vpop.permute.xlu0 %6054
      %6058 = vset.pattern.permute.xlu0 0
      %6059 = vperm.xlu0 %6058, %v6002
      %v6060 = vpop.permute.xlu0 %6059
      %v6064 = vunpack.c.l.b16 %v5997
      %v6065 = vunpack.c.l.b16 %v5998
      %v6066 = vpack.c.b16 %v6065, %v6064
      %v6069 = vsel %vm1093, %v6040, 0
      %v6072 = vsel %vm1093, %v6041, 0
      %6074 = vmatpush.bf16.msra.mxu0 0
      %6075 = vmatpush.bf16.msra.mxu0 0
      %6076 = vmatpush.bf16.msra.mxu0 0
      %6077 = vmatpush.bf16.msra.mxu0 0
      %6078 = vmatpush.bf16.msra.mxu0 0
      %6079 = vmatpush.bf16.msra.mxu0 0
      %6080 = vmatpush.bf16.msra.mxu0 0
      %6081 = vmatpush.bf16.msra.mxu0 %v6066
      %6082 = vmatmul.bf16.gmra.mxu0 %v6069
      %v6083 = vpop.f32.mrf.mxu0
      %v6084 = vadd.f32 %v6045, %v6083
      %v6085 = vpop.f32.mrf.mxu0
      %v6086 = vadd.f32 %v6050, %v6085
      %6087 = vmatmul.bf16.gmra.mxu0 %v6072
      %v6088 = vpop.f32.mrf.mxu0
      %v6089 = vadd.f32 %v6055, %v6088
      %v6090 = vpop.f32.mrf.mxu0
      %v6091 = vadd.f32 %v6060, %v6090
      %6092 = vdwg.mxu0
      %v6093 = vld [vmem:[%s61] sm:$0xff]
      %v6094 = vld [vmem:[%s61 + $0x8] sm:$0xff]
      %v6095 = vld [vmem:[%s61 + $0x10] sm:$0xff]
      %v6096 = vld [vmem:[%s61 + $0x18] sm:$0xff]
      %v6097 = vmul.f32 %v6084, %v6093
      %v6098 = vmul.f32 %v6086, %v6094
      %v6099 = vmul.f32 %v6089, %v6095
      %v6100 = vmul.f32 %v6091, %v6096
      %v6101 = vld [vmem:[%s63] sm:$0xff]
      %v6102 = vld [vmem:[%s63 + $0x8] sm:$0xff]
      %v6103 = vld [vmem:[%s63 + $0x10] sm:$0xff]
      %v6104 = vld [vmem:[%s63 + $0x18] sm:$0xff]
      %v6105 = vadd.f32 %v6097, %v6101
      %v6106 = vadd.f32 %v6098, %v6102
      %v6107 = vadd.f32 %v6099, %v6103
      %v6108 = vadd.f32 %v6100, %v6104
      %v6109 = vtanh.pop %v6105
      %v6110 = vtanh.pop %v6106
      %v6111 = vtanh.pop %v6107
      %v6112 = vtanh.pop %v6108
      %s6113 = scalar_lea.vmem %s55, 16
      %v6114 = vld [vmem:[%s6113] sm:$0xf]
      %v6115 = vld [vmem:[%s6113 + $0x4] sm:$0xf]
      %v6116 = vld [vmem:[%s6113 + $0x8] sm:$0xf]
      %v6117 = vld [vmem:[%s6113 + $0xc] sm:$0xf]
      %s6118 = scalar_lea.vmem %s57, 8
      %v6119 = vld [vmem:[%s6118] sm:$0xf]
      %v6120 = vld [vmem:[%s6118 + $0x4] sm:$0xf]
      %s6121 = scalar_lea.vmem %s59, 32
      %v6122 = vld [vmem:[%s6121] sm:$0xff]
      %v6123 = vld [vmem:[%s6121 + $0x8] sm:$0xff]
      %v6124 = vld [vmem:[%s6121 + $0x10] sm:$0xff]
      %v6125 = vld [vmem:[%s6121 + $0x18] sm:$0xff]
      %v6126 = vpack.c.bf16 %v6110, %v6109
      %v6127 = vpack.c.bf16 %v6112, %v6111
      %v6132 = vunpack.c.l.b16 %v6114
      %v6133 = vunpack.c.l.b16 %v6115
      %v6134 = vunpack.c.l.b16 %v6116
      %v6135 = vunpack.c.l.b16 %v6117
      %v6136 = vpack.c.b16 %v6133, %v6132
      %v6137 = vpack.c.b16 %v6135, %v6134
      %v6139 = vsel %vm1140, %v6136, 0
      %v6142 = vsel %vm1140, %v6137, 0
      %6144 = vmatpush.bf16.msra.mxu0 0
      %6145 = vmatpush.bf16.msra.mxu0 0
      %6146 = vmatpush.bf16.msra.mxu0 0
      %6147 = vmatpush.bf16.msra.mxu0 0
      %6148 = vmatpush.bf16.msra.mxu0 0
      %6149 = vmatpush.bf16.msra.mxu0 0
      %6150 = vmatpush.bf16.msra.mxu0 %v6127
      %6151 = vmatpush.bf16.msra.mxu0 %v6126
      %6152 = vmatmul.bf16.gmra.mxu0 %v6139
      %v6153 = vpop.f32.mrf.mxu0
      %v6154 = vadd.f32 0.0, %v6153
      %v6155 = vpop.f32.mrf.mxu0
      %v6156 = vadd.f32 0.0, %v6155
      %6157 = vmatmul.bf16.gmra.mxu0 %v6142
      %v6158 = vpop.f32.mrf.mxu0
      %v6159 = vadd.f32 0.0, %v6158
      %v6160 = vpop.f32.mrf.mxu0
      %v6161 = vadd.f32 0.0, %v6160
      %6162 = vdwg.mxu0
      %v6163 = vpack.c.bf16 %v6156, %v6154
      %v6164 = vpack.c.bf16 %v6161, %v6159
      %6166 = vset.pattern.permute.xlu0 0
      %6167 = vperm.xlu0 %6166, %v6122
      %v6168 = vpop.permute.xlu0 %6167
      %6171 = vset.pattern.permute.xlu0 0
      %6172 = vperm.xlu0 %6171, %v6123
      %v6173 = vpop.permute.xlu0 %6172
      %6176 = vset.pattern.permute.xlu0 0
      %6177 = vperm.xlu0 %6176, %v6124
      %v6178 = vpop.permute.xlu0 %6177
      %6181 = vset.pattern.permute.xlu0 0
      %6182 = vperm.xlu0 %6181, %v6125
      %v6183 = vpop.permute.xlu0 %6182
      %v6187 = vunpack.c.l.b16 %v6119
      %v6188 = vunpack.c.l.b16 %v6120
      %v6189 = vpack.c.b16 %v6188, %v6187
      %v6192 = vsel %vm1093, %v6163, 0
      %v6195 = vsel %vm1093, %v6164, 0
      %6197 = vmatpush.bf16.msra.mxu0 0
      %6198 = vmatpush.bf16.msra.mxu0 0
      %6199 = vmatpush.bf16.msra.mxu0 0
      %6200 = vmatpush.bf16.msra.mxu0 0
      %6201 = vmatpush.bf16.msra.mxu0 0
      %6202 = vmatpush.bf16.msra.mxu0 0
      %6203 = vmatpush.bf16.msra.mxu0 0
      %6204 = vmatpush.bf16.msra.mxu0 %v6189
      %6205 = vmatmul.bf16.gmra.mxu0 %v6192
      %v6206 = vpop.f32.mrf.mxu0
      %v6207 = vadd.f32 %v6168, %v6206
      %v6208 = vpop.f32.mrf.mxu0
      %v6209 = vadd.f32 %v6173, %v6208
      %6210 = vmatmul.bf16.gmra.mxu0 %v6195
      %v6211 = vpop.f32.mrf.mxu0
      %v6212 = vadd.f32 %v6178, %v6211
      %v6213 = vpop.f32.mrf.mxu0
      %v6214 = vadd.f32 %v6183, %v6213
      %6215 = vdwg.mxu0
      %s6216 = scalar_lea.vmem %s61, 32
      %v6217 = vld [vmem:[%s6216] sm:$0xff]
      %v6218 = vld [vmem:[%s6216 + $0x8] sm:$0xff]
      %v6219 = vld [vmem:[%s6216 + $0x10] sm:$0xff]
      %v6220 = vld [vmem:[%s6216 + $0x18] sm:$0xff]
      %v6221 = vmul.f32 %v6207, %v6217
      %v6222 = vmul.f32 %v6209, %v6218
      %v6223 = vmul.f32 %v6212, %v6219
      %v6224 = vmul.f32 %v6214, %v6220
      %s6225 = scalar_lea.vmem %s63, 32
      %v6226 = vld [vmem:[%s6225] sm:$0xff]
      %v6227 = vld [vmem:[%s6225 + $0x8] sm:$0xff]
      %v6228 = vld [vmem:[%s6225 + $0x10] sm:$0xff]
      %v6229 = vld [vmem:[%s6225 + $0x18] sm:$0xff]
      %v6230 = vadd.f32 %v6221, %v6226
      %v6231 = vadd.f32 %v6222, %v6227
      %v6232 = vadd.f32 %v6223, %v6228
      %v6233 = vadd.f32 %v6224, %v6229
      %v6234 = vtanh.pop %v6230
      %v6235 = vtanh.pop %v6231
      %v6236 = vtanh.pop %v6232
      %v6237 = vtanh.pop %v6233
      %v6238 = vadd.f32 %v6234, %v5989
      %v6239 = vadd.f32 %v6235, %v5990
      %v6240 = vadd.f32 %v6236, %v5991
      %v6241 = vadd.f32 %v6237, %v5992
      %s6242 = scalar_lea.vmem %s55, 32
      %v6243 = vld [vmem:[%s6242] sm:$0xf]
      %v6244 = vld [vmem:[%s6242 + $0x4] sm:$0xf]
      %v6245 = vld [vmem:[%s6242 + $0x8] sm:$0xf]
      %v6246 = vld [vmem:[%s6242 + $0xc] sm:$0xf]
      %s6247 = scalar_lea.vmem %s57, 16
      %v6248 = vld [vmem:[%s6247] sm:$0xf]
      %v6249 = vld [vmem:[%s6247 + $0x4] sm:$0xf]
      %s6250 = scalar_lea.vmem %s59, 64
      %v6251 = vld [vmem:[%s6250] sm:$0xff]
      %v6252 = vld [vmem:[%s6250 + $0x8] sm:$0xff]
      %v6253 = vld [vmem:[%s6250 + $0x10] sm:$0xff]
      %v6254 = vld [vmem:[%s6250 + $0x18] sm:$0xff]
      %v6255 = vpack.c.bf16 %v6239, %v6238
      %v6256 = vpack.c.bf16 %v6241, %v6240
      %v6261 = vunpack.c.l.b16 %v6243
      %v6262 = vunpack.c.l.b16 %v6244
      %v6263 = vunpack.c.l.b16 %v6245
      %v6264 = vunpack.c.l.b16 %v6246
      %v6265 = vpack.c.b16 %v6262, %v6261
      %v6266 = vpack.c.b16 %v6264, %v6263
      %v6268 = vsel %vm1140, %v6265, 0
      %v6271 = vsel %vm1140, %v6266, 0
      %6273 = vmatpush.bf16.msra.mxu0 0
      %6274 = vmatpush.bf16.msra.mxu0 0
      %6275 = vmatpush.bf16.msra.mxu0 0
      %6276 = vmatpush.bf16.msra.mxu0 0
      %6277 = vmatpush.bf16.msra.mxu0 0
      %6278 = vmatpush.bf16.msra.mxu0 0
      %6279 = vmatpush.bf16.msra.mxu0 %v6256
      %6280 = vmatpush.bf16.msra.mxu0 %v6255
      %6281 = vmatmul.bf16.gmra.mxu0 %v6268
      %v6282 = vpop.f32.mrf.mxu0
      %v6283 = vadd.f32 0.0, %v6282
      %v6284 = vpop.f32.mrf.mxu0
      %v6285 = vadd.f32 0.0, %v6284
      %6286 = vmatmul.bf16.gmra.mxu0 %v6271
      %v6287 = vpop.f32.mrf.mxu0
      %v6288 = vadd.f32 0.0, %v6287
      %v6289 = vpop.f32.mrf.mxu0
      %v6290 = vadd.f32 0.0, %v6289
      %6291 = vdwg.mxu0
      %v6292 = vpack.c.bf16 %v6285, %v6283
      %v6293 = vpack.c.bf16 %v6290, %v6288
      %6295 = vset.pattern.permute.xlu0 0
      %6296 = vperm.xlu0 %6295, %v6251
      %v6297 = vpop.permute.xlu0 %6296
      %6300 = vset.pattern.permute.xlu0 0
      %6301 = vperm.xlu0 %6300, %v6252
      %v6302 = vpop.permute.xlu0 %6301
      %6305 = vset.pattern.permute.xlu0 0
      %6306 = vperm.xlu0 %6305, %v6253
      %v6307 = vpop.permute.xlu0 %6306
      %6310 = vset.pattern.permute.xlu0 0
      %6311 = vperm.xlu0 %6310, %v6254
      %v6312 = vpop.permute.xlu0 %6311
      %v6316 = vunpack.c.l.b16 %v6248
      %v6317 = vunpack.c.l.b16 %v6249
      %v6318 = vpack.c.b16 %v6317, %v6316
      %v6321 = vsel %vm1093, %v6292, 0
      %v6324 = vsel %vm1093, %v6293, 0
      %6326 = vmatpush.bf16.msra.mxu0 0
      %6327 = vmatpush.bf16.msra.mxu0 0
      %6328 = vmatpush.bf16.msra.mxu0 0
      %6329 = vmatpush.bf16.msra.mxu0 0
      %6330 = vmatpush.bf16.msra.mxu0 0
      %6331 = vmatpush.bf16.msra.mxu0 0
      %6332 = vmatpush.bf16.msra.mxu0 0
      %6333 = vmatpush.bf16.msra.mxu0 %v6318
      %6334 = vmatmul.bf16.gmra.mxu0 %v6321
      %v6335 = vpop.f32.mrf.mxu0
      %v6336 = vadd.f32 %v6297, %v6335
      %v6337 = vpop.f32.mrf.mxu0
      %v6338 = vadd.f32 %v6302, %v6337
      %6339 = vmatmul.bf16.gmra.mxu0 %v6324
      %v6340 = vpop.f32.mrf.mxu0
      %v6341 = vadd.f32 %v6307, %v6340
      %v6342 = vpop.f32.mrf.mxu0
      %v6343 = vadd.f32 %v6312, %v6342
      %6344 = vdwg.mxu0
      %s6345 = scalar_lea.vmem %s61, 64
      %v6346 = vld [vmem:[%s6345] sm:$0xff]
      %v6347 = vld [vmem:[%s6345 + $0x8] sm:$0xff]
      %v6348 = vld [vmem:[%s6345 + $0x10] sm:$0xff]
      %v6349 = vld [vmem:[%s6345 + $0x18] sm:$0xff]
      %v6350 = vmul.f32 %v6336, %v6346
      %v6351 = vmul.f32 %v6338, %v6347
      %v6352 = vmul.f32 %v6341, %v6348
      %v6353 = vmul.f32 %v6343, %v6349
      %s6354 = scalar_lea.vmem %s63, 64
      %v6355 = vld [vmem:[%s6354] sm:$0xff]
      %v6356 = vld [vmem:[%s6354 + $0x8] sm:$0xff]
      %v6357 = vld [vmem:[%s6354 + $0x10] sm:$0xff]
      %v6358 = vld [vmem:[%s6354 + $0x18] sm:$0xff]
      %v6359 = vadd.f32 %v6350, %v6355
      %v6360 = vadd.f32 %v6351, %v6356
      %v6361 = vadd.f32 %v6352, %v6357
      %v6362 = vadd.f32 %v6353, %v6358
      %v6363 = vtanh.pop %v6359
      %v6364 = vtanh.pop %v6360
      %v6365 = vtanh.pop %v6361
      %v6366 = vtanh.pop %v6362
      %s6367 = scalar_lea.vmem %s55, 48
      %v6368 = vld [vmem:[%s6367] sm:$0xf]
      %v6369 = vld [vmem:[%s6367 + $0x4] sm:$0xf]
      %v6370 = vld [vmem:[%s6367 + $0x8] sm:$0xf]
      %v6371 = vld [vmem:[%s6367 + $0xc] sm:$0xf]
      %s6372 = scalar_lea.vmem %s57, 24
      %v6373 = vld [vmem:[%s6372] sm:$0xf]
      %v6374 = vld [vmem:[%s6372 + $0x4] sm:$0xf]
      %s6375 = scalar_lea.vmem %s59, 96
      %v6376 = vld [vmem:[%s6375] sm:$0xff]
      %v6377 = vld [vmem:[%s6375 + $0x8] sm:$0xff]
      %v6378 = vld [vmem:[%s6375 + $0x10] sm:$0xff]
      %v6379 = vld [vmem:[%s6375 + $0x18] sm:$0xff]
      %v6380 = vpack.c.bf16 %v6364, %v6363
      %v6381 = vpack.c.bf16 %v6366, %v6365
      %v6386 = vunpack.c.l.b16 %v6368
      %v6387 = vunpack.c.l.b16 %v6369
      %v6388 = vunpack.c.l.b16 %v6370
      %v6389 = vunpack.c.l.b16 %v6371
      %v6390 = vpack.c.b16 %v6387, %v6386
      %v6391 = vpack.c.b16 %v6389, %v6388
      %v6393 = vsel %vm1140, %v6390, 0
      %v6396 = vsel %vm1140, %v6391, 0
      %6398 = vmatpush.bf16.msra.mxu0 0
      %6399 = vmatpush.bf16.msra.mxu0 0
      %6400 = vmatpush.bf16.msra.mxu0 0
      %6401 = vmatpush.bf16.msra.mxu0 0
      %6402 = vmatpush.bf16.msra.mxu0 0
      %6403 = vmatpush.bf16.msra.mxu0 0
      %6404 = vmatpush.bf16.msra.mxu0 %v6381
      %6405 = vmatpush.bf16.msra.mxu0 %v6380
      %6406 = vmatmul.bf16.gmra.mxu0 %v6393
      %v6407 = vpop.f32.mrf.mxu0
      %v6408 = vadd.f32 0.0, %v6407
      %v6409 = vpop.f32.mrf.mxu0
      %v6410 = vadd.f32 0.0, %v6409
      %6411 = vmatmul.bf16.gmra.mxu0 %v6396
      %v6412 = vpop.f32.mrf.mxu0
      %v6413 = vadd.f32 0.0, %v6412
      %v6414 = vpop.f32.mrf.mxu0
      %v6415 = vadd.f32 0.0, %v6414
      %6416 = vdwg.mxu0
      %v6417 = vpack.c.bf16 %v6410, %v6408
      %v6418 = vpack.c.bf16 %v6415, %v6413
      %6420 = vset.pattern.permute.xlu0 0
      %6421 = vperm.xlu0 %6420, %v6376
      %v6422 = vpop.permute.xlu0 %6421
      %6425 = vset.pattern.permute.xlu0 0
      %6426 = vperm.xlu0 %6425, %v6377
      %v6427 = vpop.permute.xlu0 %6426
      %6430 = vset.pattern.permute.xlu0 0
      %6431 = vperm.xlu0 %6430, %v6378
      %v6432 = vpop.permute.xlu0 %6431
      %6435 = vset.pattern.permute.xlu0 0
      %6436 = vperm.xlu0 %6435, %v6379
      %v6437 = vpop.permute.xlu0 %6436
      %v6441 = vunpack.c.l.b16 %v6373
      %v6442 = vunpack.c.l.b16 %v6374
      %v6443 = vpack.c.b16 %v6442, %v6441
      %v6446 = vsel %vm1093, %v6417, 0
      %v6449 = vsel %vm1093, %v6418, 0
      %6451 = vmatpush.bf16.msra.mxu0 0
      %6452 = vmatpush.bf16.msra.mxu0 0
      %6453 = vmatpush.bf16.msra.mxu0 0
      %6454 = vmatpush.bf16.msra.mxu0 0
      %6455 = vmatpush.bf16.msra.mxu0 0
      %6456 = vmatpush.bf16.msra.mxu0 0
      %6457 = vmatpush.bf16.msra.mxu0 0
      %6458 = vmatpush.bf16.msra.mxu0 %v6443
      %6459 = vmatmul.bf16.gmra.mxu0 %v6446
      %v6460 = vpop.f32.mrf.mxu0
      %v6461 = vadd.f32 %v6422, %v6460
      %v6462 = vpop.f32.mrf.mxu0
      %v6463 = vadd.f32 %v6427, %v6462
      %6464 = vmatmul.bf16.gmra.mxu0 %v6449
      %v6465 = vpop.f32.mrf.mxu0
      %v6466 = vadd.f32 %v6432, %v6465
      %v6467 = vpop.f32.mrf.mxu0
      %v6468 = vadd.f32 %v6437, %v6467
      %6469 = vdwg.mxu0
      %s6470 = scalar_lea.vmem %s61, 96
      %v6471 = vld [vmem:[%s6470] sm:$0xff]
      %v6472 = vld [vmem:[%s6470 + $0x8] sm:$0xff]
      %v6473 = vld [vmem:[%s6470 + $0x10] sm:$0xff]
      %v6474 = vld [vmem:[%s6470 + $0x18] sm:$0xff]
      %v6475 = vmul.f32 %v6461, %v6471
      %v6476 = vmul.f32 %v6463, %v6472
      %v6477 = vmul.f32 %v6466, %v6473
      %v6478 = vmul.f32 %v6468, %v6474
      %s6479 = scalar_lea.vmem %s63, 96
      %v6480 = vld [vmem:[%s6479] sm:$0xff]
      %v6481 = vld [vmem:[%s6479 + $0x8] sm:$0xff]
      %v6482 = vld [vmem:[%s6479 + $0x10] sm:$0xff]
      %v6483 = vld [vmem:[%s6479 + $0x18] sm:$0xff]
      %v6484 = vadd.f32 %v6475, %v6480
      %v6485 = vadd.f32 %v6476, %v6481
      %v6486 = vadd.f32 %v6477, %v6482
      %v6487 = vadd.f32 %v6478, %v6483
      %v6488 = vtanh.pop %v6484
      %v6489 = vtanh.pop %v6485
      %v6490 = vtanh.pop %v6486
      %v6491 = vtanh.pop %v6487
      %v6492 = vadd.f32 %v6488, %v6238
      %v6493 = vadd.f32 %v6489, %v6239
      %v6494 = vadd.f32 %v6490, %v6240
      %v6495 = vadd.f32 %v6491, %v6241
      %v6496 = vld [vmem:[%s65] sm:$0xf]
      %v6497 = vld [vmem:[%s65 + $0x4] sm:$0xf]
      %v6498 = vld [vmem:[%s65 + $0x8] sm:$0x3]
      %v6499 = vld [vmem:[%s67] sm:$0xf]
      %v6500 = vld [vmem:[%s67 + $0x4] sm:$0xf]
      %v6501 = vld [vmem:[%s69] sm:$0xff]
      %v6502 = vld [vmem:[%s69 + $0x8] sm:$0xff]
      %v6503 = vld [vmem:[%s69 + $0x10] sm:$0xf]
      %v6504 = vpack.c.bf16 %v6493, %v6492
      %v6505 = vpack.c.bf16 %v6495, %v6494
      %v6509 = vunpack.c.l.b16 %v6496
      %v6510 = vunpack.c.l.b16 %v6497
      %v6511 = vunpack.c.l.b16 %v6498
      %v6512 = vpack.c.b16 %v6510, %v6509
      %v6513 = vpack.c.b16 %v6511, %v6511
      %v6515 = vsel %vm1140, %v6512, 0
      %v6518 = vsel %vm1140, %v6513, 0
      %6520 = vmatpush.bf16.msra.mxu0 0
      %6521 = vmatpush.bf16.msra.mxu0 0
      %6522 = vmatpush.bf16.msra.mxu0 0
      %6523 = vmatpush.bf16.msra.mxu0 0
      %6524 = vmatpush.bf16.msra.mxu0 0
      %6525 = vmatpush.bf16.msra.mxu0 0
      %6526 = vmatpush.bf16.msra.mxu0 %v6505
      %6527 = vmatpush.bf16.msra.mxu0 %v6504
      %6528 = vmatmul.bf16.gmra.mxu0 %v6515
      %v6529 = vpop.f32.mrf.mxu0
      %v6530 = vadd.f32 0.0, %v6529
      %v6531 = vpop.f32.mrf.mxu0
      %v6532 = vadd.f32 0.0, %v6531
      %6533 = vmatmul.bf16.gmra.mxu0 %v6518
      %v6534 = vpop.f32.mrf.mxu0
      %v6535 = vadd.f32 0.0, %v6534
      %v6536 = vpop.f32.mrf.mxu0
      %6537 = vdwg.mxu0
      %v6538 = vpack.c.bf16 %v6532, %v6530
      %v6539 = vpack.c.bf16 %v6535, %v6535
      %6541 = vset.pattern.permute.xlu0 0
      %6542 = vperm.xlu0 %6541, %v6501
      %v6543 = vpop.permute.xlu0 %6542
      %6546 = vset.pattern.permute.xlu0 0
      %6547 = vperm.xlu0 %6546, %v6502
      %v6548 = vpop.permute.xlu0 %6547
      %6551 = vset.pattern.permute.xlu0 0
      %6552 = vperm.xlu0 %6551, %v6503
      %v6553 = vpop.permute.xlu0 %6552
      %v6556 = vunpack.c.l.b16 %v6499
      %v6557 = vunpack.c.l.b16 %v6500
      %v6558 = vpack.c.b16 %v6557, %v6556
      %v6561 = vsel %vm1093, %v6538, 0
      %v6564 = vsel %vm1093, %v6539, 0
      %6566 = vmatpush.bf16.msra.mxu0 0
      %6567 = vmatpush.bf16.msra.mxu0 0
      %6568 = vmatpush.bf16.msra.mxu0 0
      %6569 = vmatpush.bf16.msra.mxu0 0
      %6570 = vmatpush.bf16.msra.mxu0 0
      %6571 = vmatpush.bf16.msra.mxu0 0
      %6572 = vmatpush.bf16.msra.mxu0 0
      %6573 = vmatpush.bf16.msra.mxu0 %v6558
      %6574 = vmatmul.bf16.gmra.mxu0 %v6561
      %v6575 = vpop.f32.mrf.mxu0
      %v6576 = vadd.f32 %v6543, %v6575
      %v6577 = vpop.f32.mrf.mxu0
      %v6578 = vadd.f32 %v6548, %v6577
      %6579 = vmatmul.bf16.gmra.mxu0 %v6564
      %v6580 = vpop.f32.mrf.mxu0
      %v6581 = vpop.f32.mrf.mxu0
      %6582 = vdwg.mxu0
      %v6583 = vadd.f32 %v6576, %v5826
      %v6584 = vadd.f32 %v6578, %v5868
      %v6585 = vld [vmem:[%s43] sm:$0xf]
      %v6586 = vld [vmem:[%s43 + $0x4] sm:$0xf]
      %v6587 = vld [vmem:[%s43 + $0x8] sm:$0x1]
      %v6588 = vpack.c.bf16 %v6584, %v6583
      %v6592 = vunpack.c.l.b16 %v6585
      %v6593 = vunpack.c.l.b16 %v6586
      %v6594 = vunpack.c.l.b16 %v6587
      %v6595 = vpack.c.b16 %v6593, %v6592
      %v6596 = vpack.c.b16 %v6594, %v6594
      %v6598 = vsel %vm5808, %v6595, 0
      %v6601 = vsel %vm5808, %v6596, 0
      %v6604 = vsel %vm5812, %v6588, 0
      %6606 = vmatpush.bf16.msra.mxu0 0
      %6607 = vmatpush.bf16.msra.mxu0 0
      %6608 = vmatpush.bf16.msra.mxu0 0
      %6609 = vmatpush.bf16.msra.mxu0 0
      %6610 = vmatpush.bf16.msra.mxu0 0
      %6611 = vmatpush.bf16.msra.mxu0 0
      %6612 = vmatpush.bf16.msra.mxu0 0
      %6613 = vmatpush.bf16.msra.mxu0 %v6604
      %6614 = vmatmul.bf16.gmra.mxu0 %v6598
      %v6615 = vpop.f32.mrf.mxu0
      %v6616 = vadd.f32 0.0, %v6615
      %v6617 = vpop.f32.mrf.mxu0
      %v6618 = vadd.f32 0.0, %v6617
      %6619 = vmatmul.bf16.gmra.mxu0 %v6601
      %v6620 = vpop.f32.mrf.mxu0
      %v6621 = vadd.f32 0.0, %v6620
      %v6622 = vpop.f32.mrf.mxu0
      %6623 = vdwg.mxu0
      %6624 = vst.msk [vmem:[%s1070] sm:$0xff] %vm1093, %v6616
      %6625 = vst.msk [vmem:[%s1070 + $0x8] sm:$0xff] %vm1093, %v6618
      %vm6626 = vcmask 123904
      %6627 = vst.msk [vmem:[%s1070 + $0x10] sm:$0x3] %vm6626, %v6621
      %p6628 = scmp.lt.s32.totalorder %s82, 1
      %s6629 = scalar_select %p6628, %s82, 1
      %s6630 = smul.addr %s6629, 3
      %s6631 = smul.addr %s6630, 8
      %s6632 = scalar_lea.vmem %s71, %s6631
      // Predicated region
      $region161: #{_lambda_.1} parent=159 // pred_check
        %p6633 = pneg %p840
      $region162: #{_lambda_.1} parent=159 // pred_check_branch
        %6635 = sbr.rel (%p6633) target = $region164
      $region163: #{_lambda_.1} parent=159 // pred_region
        _
      $region164: #{_lambda_.1} parent=159 // pred_fallthru
        _
    $region160: #{_lambda_.1} parent=5 // pred_fallthru
      _
    %p6636 = scmp.le.s32.totalorder 2, %s77
    // Predicated region
    $region165: #{_lambda_.1} parent=5 // pred_check
      %p6637 = pneg %p6636
    $region166: #{_lambda_.1} parent=5 // pred_check_branch
      %6639 = sbr.rel (%p6637) target = $region168
    $region167: #{_lambda_.1} parent=5 // pred_region
      %s6640 = ssub.s32 %s77, 2
      // Predicated region
      $region169: #{_lambda_.1} parent=167 // pred_check
        %p6641 = pneg %p846
      $region170: #{_lambda_.1} parent=167 // pred_check_branch
        %6643 = sbr.rel (%p6641) target = $region172
      $region171: #{_lambda_.1} parent=167 // pred_region
        %p6644 = scmp.lt.s32.totalorder %s83, 1
        %s6645 = scalar_select %p6644, %s83, 1
        %s6646 = smul.addr %s6645, 3
        %s6647 = smul.addr %s6646, 8
        %s6648 = scalar_lea.vmem %s71, %s6647
      $region172: #{_lambda_.1} parent=167 // pred_fallthru
        _
    $region168: #{_lambda_.1} parent=5 // pred_fallthru
      _
  $region6: #{_lambda_.1} parent=0 // loop_footer
    %s81 = sadd.s32 1, %s77
  $region7: #{_lambda_.1} parent=0 // loop_footer_branch
    %76 = sbr.rel target = $region3
  $region8: #{_lambda_.1} parent=0 // loop_exit
    _

</llo_original>
